<compile_context>
chip_gen: v7x
topology: tpu7x:2x2x1
jax: 0.10.0
libtpu: 0.0.40
codegen_flags: <defaults>
</compile_context>

<pallas_src>
import numpy as np
import jax
import jax.numpy as jnp
from jax.experimental import pallas as pl
from jax.experimental.pallas import tpu as pltpu

LRELU_SLOPE = 0.01   # F.leaky_relu default negative slope
BN_EPS = 1e-5        # nn.BatchNorm2d default eps

INPUT_NC = 3
NDF = 8
H_IN = 16                          # square input
H1, H2, H3, H4 = 8, 7, 6, 5        # spatial size after conv1..conv4 (k=4,p=1; conv1 s=2)
C1, C2, C3, C4 = NDF, NDF * 2, NDF * 4, NDF * 8      # 8, 16, 32, 64
SPP_LEVELS = (4, 2, 1)
N_BINS = sum(p * p for p in SPP_LEVELS)              # 21
SPP_DIM = C4 * N_BINS                                # 1344
FC1_OUT = 128
FC2_OUT = 64

S = 10                             # fixed row stride of every flattened spatial buffer
R = 112                            # rows per flattened buffer (mult. of 8, covers 10x10 + margin)
K_IM2COL = 16 * INPUT_NC           # 48 im2col columns for conv1


# --------------------------------------------------------------------------
# Trace-time constants (no runtime mask arithmetic)
# --------------------------------------------------------------------------
def _valid_mask(oh):
    """(R, 1) f32: 1.0 at gapped rows i*S + j for i, j < oh, else 0."""
    m = np.zeros((R, 1), np.float32)
    for i in range(oh):
        m[i * S:i * S + oh, 0] = 1.0
    return m


_MASK7 = _valid_mask(H2)           # conv2 output validity (7x7)
_MASK6 = _valid_mask(H3)           # conv3 output validity (6x6)
_CONV1_DST_ROWS = np.asarray(
    [(i + 1) * S + (j + 1) for i in range(H1) for j in range(H1)], dtype=np.int32)


# --------------------------------------------------------------------------
# In-kernel helpers
# --------------------------------------------------------------------------
def _leaky_relu(x):
    return jnp.where(x >= 0, x, LRELU_SLOPE * x)


def _shift_up(x, s):
    """y[r, :] = x[(r + s) % R, :] via a single XLU sublane rotation.  Wrapped
    rows only ever land on positions that are masked or never read as valid."""
    if s == 0:
        return x
    return pltpu.roll(x, shift=R - s, axis=0)


def _conv4x4(p, w_ref):
    """4x4 / stride-1 / pad-1 conv.  `p` (R, Cin) f32 is the zero-padded
    channels-last input flattened with row stride S (padded pixel (a, b) at row
    a*S + b, zeros everywhere else).  The 16 kernel taps become 16 accumulated
    MXU matmuls of sublane-shifted copies of `p` against per-tap weight slabs
    (no im2col lane concatenation).  Output is 'gapped': valid output pixel
    (i, j) lives at row i*S + j; all other rows are don't-care."""
    acc = None
    for di in range(4):
        for dj in range(4):
            lhs = _shift_up(p, di * S + dj).astype(jnp.bfloat16)
            t = jnp.dot(lhs, w_ref[di * 4 + dj], preferred_element_type=jnp.float32)
            acc = t if acc is None else acc + t
    return acc


def _bn_leaky_relu(z, mask, count):
    """Training-mode BatchNorm (per-image batch statistics over the `count`
    valid positions, gamma=1 / beta=0) fused with leaky_relu on a gapped (R, C)
    activation.  `mask` is a constant (R,1) input; the result is exactly zero
    on invalid rows, which the padded-layout roll below relies on."""
    inv = 1.0 / count
    mean = jnp.sum(z * mask, axis=0, keepdims=True) * inv
    d = (z - mean) * mask
    var = jnp.sum(d * d, axis=0, keepdims=True) * inv      # biased variance
    return _leaky_relu(d * jax.lax.rsqrt(var + BN_EPS))


# --------------------------------------------------------------------------
# The single fused Pallas kernel (one grid step == one image)
# --------------------------------------------------------------------------
def _spp_net_kernel(a1_ref, w1_ref, w2_ref, w3_ref, w4_ref,
                    fc1w_ref, fc1b_ref, fc2w_ref, fc2b_ref,
                    m7_ref, m6_ref,
                    out_ref, spp_ref):
    f32 = jnp.float32

    # conv1 (stride 2, bias-free) + LReLU.  The wrapper placed each im2col row
    # at its padded-for-conv2 position ((i+1)*S + (j+1)) and zeroed every other
    # row, so this matmul output *is* the zero-padded conv2 input (leaky_relu
    # preserves the zeros).
    # TODO(synk): self.LReLU1 is never defined in the reference __init__ (the
    # PyTorch forward would crash); leaky_relu(0.01) is assumed here.
    p2 = jnp.dot(a1_ref[0], w1_ref[...], preferred_element_type=f32)     # (R, C1)
    p2 = _leaky_relu(p2)

    # conv2 -> BN1 -> leaky_relu, then gapped -> padded remap with ONE roll.
    # TODO(synk): BatchNorm uses per-image batch statistics with gamma=1/beta=0
    # (fresh nn.BatchNorm2d in train()); eval-mode running stats would differ.
    z2 = _bn_leaky_relu(_conv4x4(p2, w2_ref), m7_ref[...], float(H2 * H2))
    p3 = pltpu.roll(z2, shift=S + 1, axis=0)      # p3[a*S+b] = z2[(a-1)*S+(b-1)]

    # conv3 -> BN2 -> leaky_relu, remap.
    z3 = _bn_leaky_relu(_conv4x4(p3, w3_ref), m6_ref[...], float(H3 * H3))
    p4 = pltpu.roll(z3, shift=S + 1, axis=0)

    # conv4 (the reference forward applies no BN/activation before SPP).
    z4 = _conv4x4(p4, w4_ref)                                            # (R, C4)

    # Spatial pyramid max pooling over the valid 5x5 map: separable running
    # maxima via sublane rotations.  Every contributor of a valid bin is a
    # valid pixel, so no -inf masking is needed.
    # TODO(synk): the reference spatial_pyramid_pool helper is not included in
    # the snippet; adaptive-max-pool bin boundaries are used (same intent).
    c2 = jnp.maximum(z4, _shift_up(z4, 1))                # cols j..j+1
    c3 = jnp.maximum(c2, _shift_up(z4, 2))                # cols j..j+2
    r2 = jnp.maximum(c2, _shift_up(c2, S))                # 2x2 window anchored (i, j)
    r3 = jnp.maximum(jnp.maximum(c3, _shift_up(c3, S)),
                     _shift_up(c3, 2 * S))                # 3x3 window anchored (i, j)

    # Emit the 21 bins lane-dense into the (1, SPP_DIM) scratch (fc1's weight
    # is pre-permuted to this (level, i, j, channel) order).
    b = 0
    for i in range(4):                                    # level 4: anchors (i, j)
        for j in range(4):
            spp_ref[:, b * C4:(b + 1) * C4] = r2[i * S + j:i * S + j + 1, :]
            b += 1
    lvl2 = []
    for si in (0, 2):                                     # level 2: anchors (0/2, 0/2)
        for sj in (0, 2):
            row = r3[si * S + sj:si * S + sj + 1, :]
            lvl2.append(row)
            spp_ref[:, b * C4:(b + 1) * C4] = row
            b += 1
    spp_ref[:, b * C4:(b + 1) * C4] = jnp.maximum(        # level 1 = max of level-2 bins
        jnp.maximum(lvl2[0], lvl2[1]), jnp.maximum(lvl2[2], lvl2[3]))

    # fc1 -> fc2 -> sigmoid (no activation between fc1 and fc2, as in forward()).
    spp = spp_ref[...].astype(jnp.bfloat16)                              # (1, SPP_DIM)
    h = jnp.dot(spp, fc1w_ref[...], preferred_element_type=f32) + fc1b_ref[...]
    y = jnp.dot(h.astype(jnp.bfloat16), fc2w_ref[...],
                preferred_element_type=f32) + fc2b_ref[...]
    out_ref[0] = jax.nn.sigmoid(y)


def _fused_spp_net(a1, w1, w2, w3, w4, fc1_w, fc1_b, fc2_w, fc2_b):
    batch = a1.shape[0]
    m7 = jnp.asarray(_MASK7)
    m6 = jnp.asarray(_MASK6)
    return pl.pallas_call(
        _spp_net_kernel,
        out_shape=jax.ShapeDtypeStruct((batch, 1, FC2_OUT), jnp.float32),
        grid=(batch,),
        in_specs=[
            pl.BlockSpec((1, R, K_IM2COL), lambda b: (b, 0, 0)),    # per-image im2col
            pl.BlockSpec((K_IM2COL, C1), lambda b: (0, 0)),         # weights / masks:
            pl.BlockSpec((16, C1, C2), lambda b: (0, 0, 0)),        #   constant
            pl.BlockSpec((16, C2, C3), lambda b: (0, 0, 0)),        #   index_map ->
            pl.BlockSpec((16, C3, C4), lambda b: (0, 0, 0)),        #   DMA'd once,
            pl.BlockSpec((SPP_DIM, FC1_OUT), lambda b: (0, 0)),     #   VMEM-resident
            pl.BlockSpec((1, FC1_OUT), lambda b: (0, 0)),
            pl.BlockSpec((FC1_OUT, FC2_OUT), lambda b: (0, 0)),
            pl.BlockSpec((1, FC2_OUT), lambda b: (0, 0)),
            pl.BlockSpec((R, 1), lambda b: (0, 0)),
            pl.BlockSpec((R, 1), lambda b: (0, 0)),
        ],
        out_specs=pl.BlockSpec((1, 1, FC2_OUT), lambda b: (b, 0, 0)),
        scratch_shapes=[pltpu.VMEM((1, SPP_DIM), jnp.float32)],
        compiler_params=pltpu.CompilerParams(
            dimension_semantics=("parallel",)),   # shards batch across TCs (v7x)
    )(a1, w1, w2, w3, w4, fc1_w, fc1_b, fc2_w, fc2_b, m7, m6)


# --------------------------------------------------------------------------
# Wrapper-side glue (tiny, per forward) and parameter preparation
# --------------------------------------------------------------------------
def spp_net_forward(x_nchw, prep):
    """Batched forward; each image is processed independently, exactly like the
    batch-1 reference forward (spatial_pyramid_pool(x, 1, ...))."""
    assert x_nchw.shape[1:] == (INPUT_NC, H_IN, H_IN), x_nchw.shape
    bsz = x_nchw.shape[0]
    x = x_nchw.astype(jnp.float32)
    # conv1 (k=4, s=2, p=1) im2col; columns ordered (di*4+dj)*Cin + c.
    xp = jnp.pad(x, ((0, 0), (0, 0), (1, 1), (1, 1)))                   # (B,3,18,18)
    cols = [xp[:, :, di:di + 2 * H1 - 1:2, dj:dj + 2 * H1 - 1:2]        # (B,3,8,8)
            for di in range(4) for dj in range(4)]
    a = jnp.stack(cols, axis=1)                                         # (B,16,3,8,8)
    a = a.transpose(0, 3, 4, 1, 2).reshape(bsz, H1 * H1, K_IM2COL)      # (B,64,48)
    # Place each im2col row at its padded-for-conv2 position; zeros elsewhere.
    a1 = jnp.zeros((bsz, R, K_IM2COL), jnp.float32)
    a1 = a1.at[:, _CONV1_DST_ROWS, :].set(a).astype(jnp.bfloat16)
    out = _fused_spp_net(a1, prep["w1"], prep["w2"], prep["w3"], prep["w4"],
                         prep["fc1_w"], prep["fc1_b"], prep["fc2_w"], prep["fc2_b"])
    return out.reshape(bsz, FC2_OUT)


def init_params(key, input_nc=INPUT_NC, ndf=NDF, fc1_out=FC1_OUT, fc2_out=FC2_OUT):
    """Deterministic synthetic parameters in PyTorch layout (scaled down:
    spp dim = ndf*8*21; at ndf=64 this would be the module's 10752)."""
    ks = jax.random.split(key, 8)

    def w(k, shape, scale=0.05):
        return (scale * jax.random.normal(k, shape)).astype(jnp.float32)

    spp_dim = ndf * 8 * N_BINS
    return {
        "conv1": w(ks[0], (ndf, input_nc, 4, 4)),
        "conv2": w(ks[1], (ndf * 2, ndf, 4, 4)),
        "conv3": w(ks[2], (ndf * 4, ndf * 2, 4, 4)),
        "conv4": w(ks[3], (ndf * 8, ndf * 4, 4, 4)),
        "fc1_w": w(ks[4], (fc1_out, spp_dim)),
        "fc1_b": w(ks[5], (fc1_out,)),
        "fc2_w": w(ks[6], (fc2_out, fc1_out)),
        "fc2_b": w(ks[7], (fc2_out,)),
    }


def prepare_params(params):
    """One-time conversion of PyTorch-layout parameters into kernel-ready
    operands: conv1 as a (16*Cin, Cout) matrix, conv2..4 split per 4x4 tap into
    (16, Cin, Cout), fc weights transposed (fc1 columns pre-permuted to the
    kernel's SPP emission order), all matmul weights in bf16."""
    def conv1_mat(w):    # (Cout, Cin, 4, 4) -> (16*Cin, Cout); row = (di*4+dj)*Cin + c
        cout = w.shape[0]
        return jnp.transpose(w, (2, 3, 1, 0)).reshape(-1, cout).astype(jnp.bfloat16)

    def conv_taps(w):    # (Cout, Cin, 4, 4) -> (16, Cin, Cout); tap k = di*4 + dj
        cout, cin = w.shape[0], w.shape[1]
        return jnp.transpose(w, (2, 3, 1, 0)).reshape(16, cin, cout).astype(jnp.bfloat16)

    # Kernel SPP order: bins in (level, i, j) order, channels fastest.
    # PyTorch flatten order (per level, then concatenated): c*p*p + i*p + j.
    perm = []
    offset = 0
    for p in SPP_LEVELS:
        for i in range(p):
            for j in range(p):
                for c in range(C4):
                    perm.append(offset + c * p * p + i * p + j)
        offset += C4 * p * p
    perm = jnp.asarray(perm, dtype=jnp.int32)
    fc1_w = jnp.take(params["fc1_w"], perm, axis=1).T.astype(jnp.bfloat16)   # (1344,128)

    return {
        "w1": conv1_mat(params["conv1"]),
        "w2": conv_taps(params["conv2"]),
        "w3": conv_taps(params["conv3"]),
        "w4": conv_taps(params["conv4"]),
        "fc1_w": fc1_w,
        "fc1_b": params["fc1_b"].reshape(1, -1).astype(jnp.float32),
        "fc2_w": params["fc2_w"].T.astype(jnp.bfloat16),                     # (128, 64)
        "fc2_b": params["fc2_b"].reshape(1, -1).astype(jnp.float32),
    }


if __name__ == "__main__":
    key = jax.random.PRNGKey(0)
    kx, kp = jax.random.split(key)
    BATCH = 2
    x = jax.random.normal(kx, (BATCH, INPUT_NC, H_IN, H_IN), dtype=jnp.float32)
    prep = prepare_params(init_params(kp))

    fwd = jax.jit(spp_net_forward)
    out = jax.block_until_ready(fwd(x, prep))

    assert out.shape == (BATCH, FC2_OUT), out.shape
    assert bool(jnp.all(jnp.isfinite(out)))
    assert bool(jnp.all((out >= 0) & (out <= 1)))        # sigmoid range
    print("KERNEL_OK")
</pallas_src>

<mosaic_0001>
module attributes {stable_mosaic.version = 11 : i64} {
  func.func @_spp_net_kernel(%arg0: i32, %arg1: memref<1x112x48xbf16, #tpu.memory_space<vmem>>, %arg2: memref<48x8xbf16, #tpu.memory_space<vmem>>, %arg3: memref<16x8x16xbf16, #tpu.memory_space<vmem>>, %arg4: memref<16x16x32xbf16, #tpu.memory_space<vmem>>, %arg5: memref<16x32x64xbf16, #tpu.memory_space<vmem>>, %arg6: memref<1344x128xbf16, #tpu.memory_space<vmem>>, %arg7: memref<1x128xf32, #tpu.memory_space<vmem>>, %arg8: memref<128x64xbf16, #tpu.memory_space<vmem>>, %arg9: memref<1x64xf32, #tpu.memory_space<vmem>>, %arg10: memref<112x1xf32, #tpu.memory_space<vmem>>, %arg11: memref<112x1xf32, #tpu.memory_space<vmem>>, %arg12: memref<1x1x64xf32, #tpu.memory_space<vmem>>, %arg13: memref<1x1344xf32, #tpu.memory_space<vmem>>) attributes {dimension_semantics = [#tpu.dimension_semantics<parallel>], iteration_bounds = array<i64: 2>, scalar_prefetch = 0 : i64, scratch_operands = 1 : i64, tpu.core_type = #tpu.core_type<tc>, window_params = [{transform_indices = @transform_0, window_bounds = array<i64: 1, 112, 48>}, {pipeline_mode = #tpu.pipeline_mode<synchronous>, transform_indices = @transform_1, window_bounds = array<i64: 48, 8>}, {pipeline_mode = #tpu.pipeline_mode<synchronous>, transform_indices = @transform_2, window_bounds = array<i64: 16, 8, 16>}, {pipeline_mode = #tpu.pipeline_mode<synchronous>, transform_indices = @transform_3, window_bounds = array<i64: 16, 16, 32>}, {pipeline_mode = #tpu.pipeline_mode<synchronous>, transform_indices = @transform_4, window_bounds = array<i64: 16, 32, 64>}, {pipeline_mode = #tpu.pipeline_mode<synchronous>, transform_indices = @transform_5, window_bounds = array<i64: 1344, 128>}, {pipeline_mode = #tpu.pipeline_mode<synchronous>, transform_indices = @transform_6, window_bounds = array<i64: 1, 128>}, {pipeline_mode = #tpu.pipeline_mode<synchronous>, transform_indices = @transform_7, window_bounds = array<i64: 128, 64>}, {pipeline_mode = #tpu.pipeline_mode<synchronous>, transform_indices = @transform_8, window_bounds = array<i64: 1, 64>}, {pipeline_mode = #tpu.pipeline_mode<synchronous>, transform_indices = @transform_9, window_bounds = array<i64: 112, 1>}, {pipeline_mode = #tpu.pipeline_mode<synchronous>, transform_indices = @transform_10, window_bounds = array<i64: 112, 1>}, {transform_indices = @transform_11, window_bounds = array<i64: 1, 1, 64>}]} {
    %c0 = arith.constant 0 : index
    %c0_0 = arith.constant 0 : index
    %c0_1 = arith.constant 0 : index
    %0 = vector.load %arg1[%c0, %c0_0, %c0_1] : memref<1x112x48xbf16, #tpu.memory_space<vmem>>, vector<1x112x48xbf16>
    %1 = vector.shape_cast %0 : vector<1x112x48xbf16> to vector<112x48xbf16>
    %c0_2 = arith.constant 0 : index
    %c0_3 = arith.constant 0 : index
    %2 = vector.load %arg2[%c0_2, %c0_3] : memref<48x8xbf16, #tpu.memory_space<vmem>>, vector<48x8xbf16>
    %cst = arith.constant dense<0.000000e+00> : vector<112x8xf32>
    %3 = tpu.matmul %1, %2, %cst {dimension_numbers = #tpu.dot_dimension_numbers<[1], [0], [0], [1], [0, 0, 1, 1], [], []>} : vector<112x48xbf16>, vector<48x8xbf16>, vector<112x8xf32> -> vector<112x8xf32>
    %cst_4 = arith.constant 0.000000e+00 : f32
    %4 = vector.broadcast %cst_4 : f32 to vector<112x8xf32>
    %5 = arith.cmpf oge, %3, %4 : vector<112x8xf32>
    %cst_5 = arith.constant 0.00999999977 : f32
    %6 = vector.broadcast %cst_5 : f32 to vector<112x8xf32>
    %7 = arith.mulf %6, %3 : vector<112x8xf32>
    %8 = arith.select %5, %3, %7 : vector<112x8xi1>, vector<112x8xf32>
    %9 = arith.truncf %8 : vector<112x8xf32> to vector<112x8xbf16>
    %c0_6 = arith.constant 0 : index
    %c0_7 = arith.constant 0 : index
    %c0_8 = arith.constant 0 : index
    %10 = vector.load %arg3[%c0_6, %c0_7, %c0_8] : memref<16x8x16xbf16, #tpu.memory_space<vmem>>, vector<1x8x16xbf16>
    %11 = vector.shape_cast %10 : vector<1x8x16xbf16> to vector<8x16xbf16>
    %cst_9 = arith.constant dense<0.000000e+00> : vector<112x16xf32>
    %12 = tpu.matmul %9, %11, %cst_9 {dimension_numbers = #tpu.dot_dimension_numbers<[1], [0], [0], [1], [0, 0, 1, 1], [], []>} : vector<112x8xbf16>, vector<8x16xbf16>, vector<112x16xf32> -> vector<112x16xf32>
    %c111_i32 = arith.constant 111 : i32
    %13 = tpu.dynamic_rotate %8 by %c111_i32 dim 0 : vector<112x8xf32>, i32 -> vector<112x8xf32>
    %14 = arith.truncf %13 : vector<112x8xf32> to vector<112x8xbf16>
    %c1 = arith.constant 1 : index
    %c0_10 = arith.constant 0 : index
    %c0_11 = arith.constant 0 : index
    %15 = vector.load %arg3[%c1, %c0_10, %c0_11] : memref<16x8x16xbf16, #tpu.memory_space<vmem>>, vector<1x8x16xbf16>
    %16 = vector.shape_cast %15 : vector<1x8x16xbf16> to vector<8x16xbf16>
    %cst_12 = arith.constant dense<0.000000e+00> : vector<112x16xf32>
    %17 = tpu.matmul %14, %16, %cst_12 {dimension_numbers = #tpu.dot_dimension_numbers<[1], [0], [0], [1], [0, 0, 1, 1], [], []>} : vector<112x8xbf16>, vector<8x16xbf16>, vector<112x16xf32> -> vector<112x16xf32>
    %18 = arith.addf %12, %17 : vector<112x16xf32>
    %c110_i32 = arith.constant 110 : i32
    %19 = tpu.dynamic_rotate %8 by %c110_i32 dim 0 : vector<112x8xf32>, i32 -> vector<112x8xf32>
    %20 = arith.truncf %19 : vector<112x8xf32> to vector<112x8xbf16>
    %c2 = arith.constant 2 : index
    %c0_13 = arith.constant 0 : index
    %c0_14 = arith.constant 0 : index
    %21 = vector.load %arg3[%c2, %c0_13, %c0_14] : memref<16x8x16xbf16, #tpu.memory_space<vmem>>, vector<1x8x16xbf16>
    %22 = vector.shape_cast %21 : vector<1x8x16xbf16> to vector<8x16xbf16>
    %cst_15 = arith.constant dense<0.000000e+00> : vector<112x16xf32>
    %23 = tpu.matmul %20, %22, %cst_15 {dimension_numbers = #tpu.dot_dimension_numbers<[1], [0], [0], [1], [0, 0, 1, 1], [], []>} : vector<112x8xbf16>, vector<8x16xbf16>, vector<112x16xf32> -> vector<112x16xf32>
    %24 = arith.addf %18, %23 : vector<112x16xf32>
    %c109_i32 = arith.constant 109 : i32
    %25 = tpu.dynamic_rotate %8 by %c109_i32 dim 0 : vector<112x8xf32>, i32 -> vector<112x8xf32>
    %26 = arith.truncf %25 : vector<112x8xf32> to vector<112x8xbf16>
    %c3 = arith.constant 3 : index
    %c0_16 = arith.constant 0 : index
    %c0_17 = arith.constant 0 : index
    %27 = vector.load %arg3[%c3, %c0_16, %c0_17] : memref<16x8x16xbf16, #tpu.memory_space<vmem>>, vector<1x8x16xbf16>
    %28 = vector.shape_cast %27 : vector<1x8x16xbf16> to vector<8x16xbf16>
    %cst_18 = arith.constant dense<0.000000e+00> : vector<112x16xf32>
    %29 = tpu.matmul %26, %28, %cst_18 {dimension_numbers = #tpu.dot_dimension_numbers<[1], [0], [0], [1], [0, 0, 1, 1], [], []>} : vector<112x8xbf16>, vector<8x16xbf16>, vector<112x16xf32> -> vector<112x16xf32>
    %30 = arith.addf %24, %29 : vector<112x16xf32>
    %c102_i32 = arith.constant 102 : i32
    %31 = tpu.dynamic_rotate %8 by %c102_i32 dim 0 : vector<112x8xf32>, i32 -> vector<112x8xf32>
    %32 = arith.truncf %31 : vector<112x8xf32> to vector<112x8xbf16>
    %c4 = arith.constant 4 : index
    %c0_19 = arith.constant 0 : index
    %c0_20 = arith.constant 0 : index
    %33 = vector.load %arg3[%c4, %c0_19, %c0_20] : memref<16x8x16xbf16, #tpu.memory_space<vmem>>, vector<1x8x16xbf16>
    %34 = vector.shape_cast %33 : vector<1x8x16xbf16> to vector<8x16xbf16>
    %cst_21 = arith.constant dense<0.000000e+00> : vector<112x16xf32>
    %35 = tpu.matmul %32, %34, %cst_21 {dimension_numbers = #tpu.dot_dimension_numbers<[1], [0], [0], [1], [0, 0, 1, 1], [], []>} : vector<112x8xbf16>, vector<8x16xbf16>, vector<112x16xf32> -> vector<112x16xf32>
    %36 = arith.addf %30, %35 : vector<112x16xf32>
    %c101_i32 = arith.constant 101 : i32
    %37 = tpu.dynamic_rotate %8 by %c101_i32 dim 0 : vector<112x8xf32>, i32 -> vector<112x8xf32>
    %38 = arith.truncf %37 : vector<112x8xf32> to vector<112x8xbf16>
    %c5 = arith.constant 5 : index
    %c0_22 = arith.constant 0 : index
    %c0_23 = arith.constant 0 : index
    %39 = vector.load %arg3[%c5, %c0_22, %c0_23] : memref<16x8x16xbf16, #tpu.memory_space<vmem>>, vector<1x8x16xbf16>
    %40 = vector.shape_cast %39 : vector<1x8x16xbf16> to vector<8x16xbf16>
    %cst_24 = arith.constant dense<0.000000e+00> : vector<112x16xf32>
    %41 = tpu.matmul %38, %40, %cst_24 {dimension_numbers = #tpu.dot_dimension_numbers<[1], [0], [0], [1], [0, 0, 1, 1], [], []>} : vector<112x8xbf16>, vector<8x16xbf16>, vector<112x16xf32> -> vector<112x16xf32>
    %42 = arith.addf %36, %41 : vector<112x16xf32>
    %c100_i32 = arith.constant 100 : i32
    %43 = tpu.dynamic_rotate %8 by %c100_i32 dim 0 : vector<112x8xf32>, i32 -> vector<112x8xf32>
    %44 = arith.truncf %43 : vector<112x8xf32> to vector<112x8xbf16>
    %c6 = arith.constant 6 : index
    %c0_25 = arith.constant 0 : index
    %c0_26 = arith.constant 0 : index
    %45 = vector.load %arg3[%c6, %c0_25, %c0_26] : memref<16x8x16xbf16, #tpu.memory_space<vmem>>, vector<1x8x16xbf16>
    %46 = vector.shape_cast %45 : vector<1x8x16xbf16> to vector<8x16xbf16>
    %cst_27 = arith.constant dense<0.000000e+00> : vector<112x16xf32>
    %47 = tpu.matmul %44, %46, %cst_27 {dimension_numbers = #tpu.dot_dimension_numbers<[1], [0], [0], [1], [0, 0, 1, 1], [], []>} : vector<112x8xbf16>, vector<8x16xbf16>, vector<112x16xf32> -> vector<112x16xf32>
    %48 = arith.addf %42, %47 : vector<112x16xf32>
    %c99_i32 = arith.constant 99 : i32
    %49 = tpu.dynamic_rotate %8 by %c99_i32 dim 0 : vector<112x8xf32>, i32 -> vector<112x8xf32>
    %50 = arith.truncf %49 : vector<112x8xf32> to vector<112x8xbf16>
    %c7 = arith.constant 7 : index
    %c0_28 = arith.constant 0 : index
    %c0_29 = arith.constant 0 : index
    %51 = vector.load %arg3[%c7, %c0_28, %c0_29] : memref<16x8x16xbf16, #tpu.memory_space<vmem>>, vector<1x8x16xbf16>
    %52 = vector.shape_cast %51 : vector<1x8x16xbf16> to vector<8x16xbf16>
    %cst_30 = arith.constant dense<0.000000e+00> : vector<112x16xf32>
    %53 = tpu.matmul %50, %52, %cst_30 {dimension_numbers = #tpu.dot_dimension_numbers<[1], [0], [0], [1], [0, 0, 1, 1], [], []>} : vector<112x8xbf16>, vector<8x16xbf16>, vector<112x16xf32> -> vector<112x16xf32>
    %54 = arith.addf %48, %53 : vector<112x16xf32>
    %c92_i32 = arith.constant 92 : i32
    %55 = tpu.dynamic_rotate %8 by %c92_i32 dim 0 : vector<112x8xf32>, i32 -> vector<112x8xf32>
    %56 = arith.truncf %55 : vector<112x8xf32> to vector<112x8xbf16>
    %c8 = arith.constant 8 : index
    %c0_31 = arith.constant 0 : index
    %c0_32 = arith.constant 0 : index
    %57 = vector.load %arg3[%c8, %c0_31, %c0_32] : memref<16x8x16xbf16, #tpu.memory_space<vmem>>, vector<1x8x16xbf16>
    %58 = vector.shape_cast %57 : vector<1x8x16xbf16> to vector<8x16xbf16>
    %cst_33 = arith.constant dense<0.000000e+00> : vector<112x16xf32>
    %59 = tpu.matmul %56, %58, %cst_33 {dimension_numbers = #tpu.dot_dimension_numbers<[1], [0], [0], [1], [0, 0, 1, 1], [], []>} : vector<112x8xbf16>, vector<8x16xbf16>, vector<112x16xf32> -> vector<112x16xf32>
    %60 = arith.addf %54, %59 : vector<112x16xf32>
    %c91_i32 = arith.constant 91 : i32
    %61 = tpu.dynamic_rotate %8 by %c91_i32 dim 0 : vector<112x8xf32>, i32 -> vector<112x8xf32>
    %62 = arith.truncf %61 : vector<112x8xf32> to vector<112x8xbf16>
    %c9 = arith.constant 9 : index
    %c0_34 = arith.constant 0 : index
    %c0_35 = arith.constant 0 : index
    %63 = vector.load %arg3[%c9, %c0_34, %c0_35] : memref<16x8x16xbf16, #tpu.memory_space<vmem>>, vector<1x8x16xbf16>
    %64 = vector.shape_cast %63 : vector<1x8x16xbf16> to vector<8x16xbf16>
    %cst_36 = arith.constant dense<0.000000e+00> : vector<112x16xf32>
    %65 = tpu.matmul %62, %64, %cst_36 {dimension_numbers = #tpu.dot_dimension_numbers<[1], [0], [0], [1], [0, 0, 1, 1], [], []>} : vector<112x8xbf16>, vector<8x16xbf16>, vector<112x16xf32> -> vector<112x16xf32>
    %66 = arith.addf %60, %65 : vector<112x16xf32>
    %c90_i32 = arith.constant 90 : i32
    %67 = tpu.dynamic_rotate %8 by %c90_i32 dim 0 : vector<112x8xf32>, i32 -> vector<112x8xf32>
    %68 = arith.truncf %67 : vector<112x8xf32> to vector<112x8xbf16>
    %c10 = arith.constant 10 : index
    %c0_37 = arith.constant 0 : index
    %c0_38 = arith.constant 0 : index
    %69 = vector.load %arg3[%c10, %c0_37, %c0_38] : memref<16x8x16xbf16, #tpu.memory_space<vmem>>, vector<1x8x16xbf16>
    %70 = vector.shape_cast %69 : vector<1x8x16xbf16> to vector<8x16xbf16>
    %cst_39 = arith.constant dense<0.000000e+00> : vector<112x16xf32>
    %71 = tpu.matmul %68, %70, %cst_39 {dimension_numbers = #tpu.dot_dimension_numbers<[1], [0], [0], [1], [0, 0, 1, 1], [], []>} : vector<112x8xbf16>, vector<8x16xbf16>, vector<112x16xf32> -> vector<112x16xf32>
    %72 = arith.addf %66, %71 : vector<112x16xf32>
    %c89_i32 = arith.constant 89 : i32
    %73 = tpu.dynamic_rotate %8 by %c89_i32 dim 0 : vector<112x8xf32>, i32 -> vector<112x8xf32>
    %74 = arith.truncf %73 : vector<112x8xf32> to vector<112x8xbf16>
    %c11 = arith.constant 11 : index
    %c0_40 = arith.constant 0 : index
    %c0_41 = arith.constant 0 : index
    %75 = vector.load %arg3[%c11, %c0_40, %c0_41] : memref<16x8x16xbf16, #tpu.memory_space<vmem>>, vector<1x8x16xbf16>
    %76 = vector.shape_cast %75 : vector<1x8x16xbf16> to vector<8x16xbf16>
    %cst_42 = arith.constant dense<0.000000e+00> : vector<112x16xf32>
    %77 = tpu.matmul %74, %76, %cst_42 {dimension_numbers = #tpu.dot_dimension_numbers<[1], [0], [0], [1], [0, 0, 1, 1], [], []>} : vector<112x8xbf16>, vector<8x16xbf16>, vector<112x16xf32> -> vector<112x16xf32>
    %78 = arith.addf %72, %77 : vector<112x16xf32>
    %c82_i32 = arith.constant 82 : i32
    %79 = tpu.dynamic_rotate %8 by %c82_i32 dim 0 : vector<112x8xf32>, i32 -> vector<112x8xf32>
    %80 = arith.truncf %79 : vector<112x8xf32> to vector<112x8xbf16>
    %c12 = arith.constant 12 : index
    %c0_43 = arith.constant 0 : index
    %c0_44 = arith.constant 0 : index
    %81 = vector.load %arg3[%c12, %c0_43, %c0_44] : memref<16x8x16xbf16, #tpu.memory_space<vmem>>, vector<1x8x16xbf16>
    %82 = vector.shape_cast %81 : vector<1x8x16xbf16> to vector<8x16xbf16>
    %cst_45 = arith.constant dense<0.000000e+00> : vector<112x16xf32>
    %83 = tpu.matmul %80, %82, %cst_45 {dimension_numbers = #tpu.dot_dimension_numbers<[1], [0], [0], [1], [0, 0, 1, 1], [], []>} : vector<112x8xbf16>, vector<8x16xbf16>, vector<112x16xf32> -> vector<112x16xf32>
    %84 = arith.addf %78, %83 : vector<112x16xf32>
    %c81_i32 = arith.constant 81 : i32
    %85 = tpu.dynamic_rotate %8 by %c81_i32 dim 0 : vector<112x8xf32>, i32 -> vector<112x8xf32>
    %86 = arith.truncf %85 : vector<112x8xf32> to vector<112x8xbf16>
    %c13 = arith.constant 13 : index
    %c0_46 = arith.constant 0 : index
    %c0_47 = arith.constant 0 : index
    %87 = vector.load %arg3[%c13, %c0_46, %c0_47] : memref<16x8x16xbf16, #tpu.memory_space<vmem>>, vector<1x8x16xbf16>
    %88 = vector.shape_cast %87 : vector<1x8x16xbf16> to vector<8x16xbf16>
    %cst_48 = arith.constant dense<0.000000e+00> : vector<112x16xf32>
    %89 = tpu.matmul %86, %88, %cst_48 {dimension_numbers = #tpu.dot_dimension_numbers<[1], [0], [0], [1], [0, 0, 1, 1], [], []>} : vector<112x8xbf16>, vector<8x16xbf16>, vector<112x16xf32> -> vector<112x16xf32>
    %90 = arith.addf %84, %89 : vector<112x16xf32>
    %c80_i32 = arith.constant 80 : i32
    %91 = tpu.dynamic_rotate %8 by %c80_i32 dim 0 : vector<112x8xf32>, i32 -> vector<112x8xf32>
    %92 = arith.truncf %91 : vector<112x8xf32> to vector<112x8xbf16>
    %c14 = arith.constant 14 : index
    %c0_49 = arith.constant 0 : index
    %c0_50 = arith.constant 0 : index
    %93 = vector.load %arg3[%c14, %c0_49, %c0_50] : memref<16x8x16xbf16, #tpu.memory_space<vmem>>, vector<1x8x16xbf16>
    %94 = vector.shape_cast %93 : vector<1x8x16xbf16> to vector<8x16xbf16>
    %cst_51 = arith.constant dense<0.000000e+00> : vector<112x16xf32>
    %95 = tpu.matmul %92, %94, %cst_51 {dimension_numbers = #tpu.dot_dimension_numbers<[1], [0], [0], [1], [0, 0, 1, 1], [], []>} : vector<112x8xbf16>, vector<8x16xbf16>, vector<112x16xf32> -> vector<112x16xf32>
    %96 = arith.addf %90, %95 : vector<112x16xf32>
    %c79_i32 = arith.constant 79 : i32
    %97 = tpu.dynamic_rotate %8 by %c79_i32 dim 0 : vector<112x8xf32>, i32 -> vector<112x8xf32>
    %98 = arith.truncf %97 : vector<112x8xf32> to vector<112x8xbf16>
    %c15 = arith.constant 15 : index
    %c0_52 = arith.constant 0 : index
    %c0_53 = arith.constant 0 : index
    %99 = vector.load %arg3[%c15, %c0_52, %c0_53] : memref<16x8x16xbf16, #tpu.memory_space<vmem>>, vector<1x8x16xbf16>
    %100 = vector.shape_cast %99 : vector<1x8x16xbf16> to vector<8x16xbf16>
    %cst_54 = arith.constant dense<0.000000e+00> : vector<112x16xf32>
    %101 = tpu.matmul %98, %100, %cst_54 {dimension_numbers = #tpu.dot_dimension_numbers<[1], [0], [0], [1], [0, 0, 1, 1], [], []>} : vector<112x8xbf16>, vector<8x16xbf16>, vector<112x16xf32> -> vector<112x16xf32>
    %102 = arith.addf %96, %101 : vector<112x16xf32>
    %c0_55 = arith.constant 0 : index
    %c0_56 = arith.constant 0 : index
    %103 = vector.load %arg10[%c0_55, %c0_56] : memref<112x1xf32, #tpu.memory_space<vmem>>, vector<112x1xf32>
    %104 = vector.broadcast %103 : vector<112x1xf32> to vector<112x16xf32>
    %105 = arith.mulf %102, %104 : vector<112x16xf32>
    %cst_57 = arith.constant dense<0.000000e+00> : vector<16xf32>
    %106 = vector.multi_reduction <add>, %105, %cst_57 [0] : vector<112x16xf32> to vector<16xf32>
    %107 = vector.shape_cast %106 : vector<16xf32> to vector<1x16xf32>
    %cst_58 = arith.constant 0.0204081628 : f32
    %108 = vector.broadcast %cst_58 : f32 to vector<1x16xf32>
    %109 = arith.mulf %107, %108 : vector<1x16xf32>
    %110 = vector.broadcast %109 : vector<1x16xf32> to vector<112x16xf32>
    %111 = arith.subf %102, %110 : vector<112x16xf32>
    %112 = vector.broadcast %103 : vector<112x1xf32> to vector<112x16xf32>
    %113 = arith.mulf %111, %112 : vector<112x16xf32>
    %114 = arith.mulf %113, %113 : vector<112x16xf32>
    %cst_59 = arith.constant dense<0.000000e+00> : vector<16xf32>
    %115 = vector.multi_reduction <add>, %114, %cst_59 [0] : vector<112x16xf32> to vector<16xf32>
    %116 = vector.shape_cast %115 : vector<16xf32> to vector<1x16xf32>
    %cst_60 = arith.constant 0.0204081628 : f32
    %117 = vector.broadcast %cst_60 : f32 to vector<1x16xf32>
    %118 = arith.mulf %116, %117 : vector<1x16xf32>
    %cst_61 = arith.constant 9.99999974E-6 : f32
    %119 = vector.broadcast %cst_61 : f32 to vector<1x16xf32>
    %120 = arith.addf %118, %119 : vector<1x16xf32>
    %121 = math.rsqrt %120 : vector<1x16xf32>
    %122 = vector.broadcast %121 : vector<1x16xf32> to vector<112x16xf32>
    %123 = arith.mulf %113, %122 : vector<112x16xf32>
    %cst_62 = arith.constant 0.000000e+00 : f32
    %124 = vector.broadcast %cst_62 : f32 to vector<112x16xf32>
    %125 = arith.cmpf oge, %123, %124 : vector<112x16xf32>
    %cst_63 = arith.constant 0.00999999977 : f32
    %126 = vector.broadcast %cst_63 : f32 to vector<112x16xf32>
    %127 = arith.mulf %126, %123 : vector<112x16xf32>
    %128 = arith.select %125, %123, %127 : vector<112x16xi1>, vector<112x16xf32>
    %c11_i32 = arith.constant 11 : i32
    %129 = tpu.dynamic_rotate %128 by %c11_i32 dim 0 : vector<112x16xf32>, i32 -> vector<112x16xf32>
    %130 = arith.truncf %129 : vector<112x16xf32> to vector<112x16xbf16>
    %c0_64 = arith.constant 0 : index
    %c0_65 = arith.constant 0 : index
    %c0_66 = arith.constant 0 : index
    %131 = vector.load %arg4[%c0_64, %c0_65, %c0_66] : memref<16x16x32xbf16, #tpu.memory_space<vmem>>, vector<1x16x32xbf16>
    %132 = vector.shape_cast %131 : vector<1x16x32xbf16> to vector<16x32xbf16>
    %cst_67 = arith.constant dense<0.000000e+00> : vector<112x32xf32>
    %133 = tpu.matmul %130, %132, %cst_67 {dimension_numbers = #tpu.dot_dimension_numbers<[1], [0], [0], [1], [0, 0, 1, 1], [], []>} : vector<112x16xbf16>, vector<16x32xbf16>, vector<112x32xf32> -> vector<112x32xf32>
    %c111_i32_68 = arith.constant 111 : i32
    %134 = tpu.dynamic_rotate %129 by %c111_i32_68 dim 0 : vector<112x16xf32>, i32 -> vector<112x16xf32>
    %135 = arith.truncf %134 : vector<112x16xf32> to vector<112x16xbf16>
    %c1_69 = arith.constant 1 : index
    %c0_70 = arith.constant 0 : index
    %c0_71 = arith.constant 0 : index
    %136 = vector.load %arg4[%c1_69, %c0_70, %c0_71] : memref<16x16x32xbf16, #tpu.memory_space<vmem>>, vector<1x16x32xbf16>
    %137 = vector.shape_cast %136 : vector<1x16x32xbf16> to vector<16x32xbf16>
    %cst_72 = arith.constant dense<0.000000e+00> : vector<112x32xf32>
    %138 = tpu.matmul %135, %137, %cst_72 {dimension_numbers = #tpu.dot_dimension_numbers<[1], [0], [0], [1], [0, 0, 1, 1], [], []>} : vector<112x16xbf16>, vector<16x32xbf16>, vector<112x32xf32> -> vector<112x32xf32>
    %139 = arith.addf %133, %138 : vector<112x32xf32>
    %c110_i32_73 = arith.constant 110 : i32
    %140 = tpu.dynamic_rotate %129 by %c110_i32_73 dim 0 : vector<112x16xf32>, i32 -> vector<112x16xf32>
    %141 = arith.truncf %140 : vector<112x16xf32> to vector<112x16xbf16>
    %c2_74 = arith.constant 2 : index
    %c0_75 = arith.constant 0 : index
    %c0_76 = arith.constant 0 : index
    %142 = vector.load %arg4[%c2_74, %c0_75, %c0_76] : memref<16x16x32xbf16, #tpu.memory_space<vmem>>, vector<1x16x32xbf16>
    %143 = vector.shape_cast %142 : vector<1x16x32xbf16> to vector<16x32xbf16>
    %cst_77 = arith.constant dense<0.000000e+00> : vector<112x32xf32>
    %144 = tpu.matmul %141, %143, %cst_77 {dimension_numbers = #tpu.dot_dimension_numbers<[1], [0], [0], [1], [0, 0, 1, 1], [], []>} : vector<112x16xbf16>, vector<16x32xbf16>, vector<112x32xf32> -> vector<112x32xf32>
    %145 = arith.addf %139, %144 : vector<112x32xf32>
    %c109_i32_78 = arith.constant 109 : i32
    %146 = tpu.dynamic_rotate %129 by %c109_i32_78 dim 0 : vector<112x16xf32>, i32 -> vector<112x16xf32>
    %147 = arith.truncf %146 : vector<112x16xf32> to vector<112x16xbf16>
    %c3_79 = arith.constant 3 : index
    %c0_80 = arith.constant 0 : index
    %c0_81 = arith.constant 0 : index
    %148 = vector.load %arg4[%c3_79, %c0_80, %c0_81] : memref<16x16x32xbf16, #tpu.memory_space<vmem>>, vector<1x16x32xbf16>
    %149 = vector.shape_cast %148 : vector<1x16x32xbf16> to vector<16x32xbf16>
    %cst_82 = arith.constant dense<0.000000e+00> : vector<112x32xf32>
    %150 = tpu.matmul %147, %149, %cst_82 {dimension_numbers = #tpu.dot_dimension_numbers<[1], [0], [0], [1], [0, 0, 1, 1], [], []>} : vector<112x16xbf16>, vector<16x32xbf16>, vector<112x32xf32> -> vector<112x32xf32>
    %151 = arith.addf %145, %150 : vector<112x32xf32>
    %c102_i32_83 = arith.constant 102 : i32
    %152 = tpu.dynamic_rotate %129 by %c102_i32_83 dim 0 : vector<112x16xf32>, i32 -> vector<112x16xf32>
    %153 = arith.truncf %152 : vector<112x16xf32> to vector<112x16xbf16>
    %c4_84 = arith.constant 4 : index
    %c0_85 = arith.constant 0 : index
    %c0_86 = arith.constant 0 : index
    %154 = vector.load %arg4[%c4_84, %c0_85, %c0_86] : memref<16x16x32xbf16, #tpu.memory_space<vmem>>, vector<1x16x32xbf16>
    %155 = vector.shape_cast %154 : vector<1x16x32xbf16> to vector<16x32xbf16>
    %cst_87 = arith.constant dense<0.000000e+00> : vector<112x32xf32>
    %156 = tpu.matmul %153, %155, %cst_87 {dimension_numbers = #tpu.dot_dimension_numbers<[1], [0], [0], [1], [0, 0, 1, 1], [], []>} : vector<112x16xbf16>, vector<16x32xbf16>, vector<112x32xf32> -> vector<112x32xf32>
    %157 = arith.addf %151, %156 : vector<112x32xf32>
    %c101_i32_88 = arith.constant 101 : i32
    %158 = tpu.dynamic_rotate %129 by %c101_i32_88 dim 0 : vector<112x16xf32>, i32 -> vector<112x16xf32>
    %159 = arith.truncf %158 : vector<112x16xf32> to vector<112x16xbf16>
    %c5_89 = arith.constant 5 : index
    %c0_90 = arith.constant 0 : index
    %c0_91 = arith.constant 0 : index
    %160 = vector.load %arg4[%c5_89, %c0_90, %c0_91] : memref<16x16x32xbf16, #tpu.memory_space<vmem>>, vector<1x16x32xbf16>
    %161 = vector.shape_cast %160 : vector<1x16x32xbf16> to vector<16x32xbf16>
    %cst_92 = arith.constant dense<0.000000e+00> : vector<112x32xf32>
    %162 = tpu.matmul %159, %161, %cst_92 {dimension_numbers = #tpu.dot_dimension_numbers<[1], [0], [0], [1], [0, 0, 1, 1], [], []>} : vector<112x16xbf16>, vector<16x32xbf16>, vector<112x32xf32> -> vector<112x32xf32>
    %163 = arith.addf %157, %162 : vector<112x32xf32>
    %c100_i32_93 = arith.constant 100 : i32
    %164 = tpu.dynamic_rotate %129 by %c100_i32_93 dim 0 : vector<112x16xf32>, i32 -> vector<112x16xf32>
    %165 = arith.truncf %164 : vector<112x16xf32> to vector<112x16xbf16>
    %c6_94 = arith.constant 6 : index
    %c0_95 = arith.constant 0 : index
    %c0_96 = arith.constant 0 : index
    %166 = vector.load %arg4[%c6_94, %c0_95, %c0_96] : memref<16x16x32xbf16, #tpu.memory_space<vmem>>, vector<1x16x32xbf16>
    %167 = vector.shape_cast %166 : vector<1x16x32xbf16> to vector<16x32xbf16>
    %cst_97 = arith.constant dense<0.000000e+00> : vector<112x32xf32>
    %168 = tpu.matmul %165, %167, %cst_97 {dimension_numbers = #tpu.dot_dimension_numbers<[1], [0], [0], [1], [0, 0, 1, 1], [], []>} : vector<112x16xbf16>, vector<16x32xbf16>, vector<112x32xf32> -> vector<112x32xf32>
    %169 = arith.addf %163, %168 : vector<112x32xf32>
    %c99_i32_98 = arith.constant 99 : i32
    %170 = tpu.dynamic_rotate %129 by %c99_i32_98 dim 0 : vector<112x16xf32>, i32 -> vector<112x16xf32>
    %171 = arith.truncf %170 : vector<112x16xf32> to vector<112x16xbf16>
    %c7_99 = arith.constant 7 : index
    %c0_100 = arith.constant 0 : index
    %c0_101 = arith.constant 0 : index
    %172 = vector.load %arg4[%c7_99, %c0_100, %c0_101] : memref<16x16x32xbf16, #tpu.memory_space<vmem>>, vector<1x16x32xbf16>
    %173 = vector.shape_cast %172 : vector<1x16x32xbf16> to vector<16x32xbf16>
    %cst_102 = arith.constant dense<0.000000e+00> : vector<112x32xf32>
    %174 = tpu.matmul %171, %173, %cst_102 {dimension_numbers = #tpu.dot_dimension_numbers<[1], [0], [0], [1], [0, 0, 1, 1], [], []>} : vector<112x16xbf16>, vector<16x32xbf16>, vector<112x32xf32> -> vector<112x32xf32>
    %175 = arith.addf %169, %174 : vector<112x32xf32>
    %c92_i32_103 = arith.constant 92 : i32
    %176 = tpu.dynamic_rotate %129 by %c92_i32_103 dim 0 : vector<112x16xf32>, i32 -> vector<112x16xf32>
    %177 = arith.truncf %176 : vector<112x16xf32> to vector<112x16xbf16>
    %c8_104 = arith.constant 8 : index
    %c0_105 = arith.constant 0 : index
    %c0_106 = arith.constant 0 : index
    %178 = vector.load %arg4[%c8_104, %c0_105, %c0_106] : memref<16x16x32xbf16, #tpu.memory_space<vmem>>, vector<1x16x32xbf16>
    %179 = vector.shape_cast %178 : vector<1x16x32xbf16> to vector<16x32xbf16>
    %cst_107 = arith.constant dense<0.000000e+00> : vector<112x32xf32>
    %180 = tpu.matmul %177, %179, %cst_107 {dimension_numbers = #tpu.dot_dimension_numbers<[1], [0], [0], [1], [0, 0, 1, 1], [], []>} : vector<112x16xbf16>, vector<16x32xbf16>, vector<112x32xf32> -> vector<112x32xf32>
    %181 = arith.addf %175, %180 : vector<112x32xf32>
    %c91_i32_108 = arith.constant 91 : i32
    %182 = tpu.dynamic_rotate %129 by %c91_i32_108 dim 0 : vector<112x16xf32>, i32 -> vector<112x16xf32>
    %183 = arith.truncf %182 : vector<112x16xf32> to vector<112x16xbf16>
    %c9_109 = arith.constant 9 : index
    %c0_110 = arith.constant 0 : index
    %c0_111 = arith.constant 0 : index
    %184 = vector.load %arg4[%c9_109, %c0_110, %c0_111] : memref<16x16x32xbf16, #tpu.memory_space<vmem>>, vector<1x16x32xbf16>
    %185 = vector.shape_cast %184 : vector<1x16x32xbf16> to vector<16x32xbf16>
    %cst_112 = arith.constant dense<0.000000e+00> : vector<112x32xf32>
    %186 = tpu.matmul %183, %185, %cst_112 {dimension_numbers = #tpu.dot_dimension_numbers<[1], [0], [0], [1], [0, 0, 1, 1], [], []>} : vector<112x16xbf16>, vector<16x32xbf16>, vector<112x32xf32> -> vector<112x32xf32>
    %187 = arith.addf %181, %186 : vector<112x32xf32>
    %c90_i32_113 = arith.constant 90 : i32
    %188 = tpu.dynamic_rotate %129 by %c90_i32_113 dim 0 : vector<112x16xf32>, i32 -> vector<112x16xf32>
    %189 = arith.truncf %188 : vector<112x16xf32> to vector<112x16xbf16>
    %c10_114 = arith.constant 10 : index
    %c0_115 = arith.constant 0 : index
    %c0_116 = arith.constant 0 : index
    %190 = vector.load %arg4[%c10_114, %c0_115, %c0_116] : memref<16x16x32xbf16, #tpu.memory_space<vmem>>, vector<1x16x32xbf16>
    %191 = vector.shape_cast %190 : vector<1x16x32xbf16> to vector<16x32xbf16>
    %cst_117 = arith.constant dense<0.000000e+00> : vector<112x32xf32>
    %192 = tpu.matmul %189, %191, %cst_117 {dimension_numbers = #tpu.dot_dimension_numbers<[1], [0], [0], [1], [0, 0, 1, 1], [], []>} : vector<112x16xbf16>, vector<16x32xbf16>, vector<112x32xf32> -> vector<112x32xf32>
    %193 = arith.addf %187, %192 : vector<112x32xf32>
    %c89_i32_118 = arith.constant 89 : i32
    %194 = tpu.dynamic_rotate %129 by %c89_i32_118 dim 0 : vector<112x16xf32>, i32 -> vector<112x16xf32>
    %195 = arith.truncf %194 : vector<112x16xf32> to vector<112x16xbf16>
    %c11_119 = arith.constant 11 : index
    %c0_120 = arith.constant 0 : index
    %c0_121 = arith.constant 0 : index
    %196 = vector.load %arg4[%c11_119, %c0_120, %c0_121] : memref<16x16x32xbf16, #tpu.memory_space<vmem>>, vector<1x16x32xbf16>
    %197 = vector.shape_cast %196 : vector<1x16x32xbf16> to vector<16x32xbf16>
    %cst_122 = arith.constant dense<0.000000e+00> : vector<112x32xf32>
    %198 = tpu.matmul %195, %197, %cst_122 {dimension_numbers = #tpu.dot_dimension_numbers<[1], [0], [0], [1], [0, 0, 1, 1], [], []>} : vector<112x16xbf16>, vector<16x32xbf16>, vector<112x32xf32> -> vector<112x32xf32>
    %199 = arith.addf %193, %198 : vector<112x32xf32>
    %c82_i32_123 = arith.constant 82 : i32
    %200 = tpu.dynamic_rotate %129 by %c82_i32_123 dim 0 : vector<112x16xf32>, i32 -> vector<112x16xf32>
    %201 = arith.truncf %200 : vector<112x16xf32> to vector<112x16xbf16>
    %c12_124 = arith.constant 12 : index
    %c0_125 = arith.constant 0 : index
    %c0_126 = arith.constant 0 : index
    %202 = vector.load %arg4[%c12_124, %c0_125, %c0_126] : memref<16x16x32xbf16, #tpu.memory_space<vmem>>, vector<1x16x32xbf16>
    %203 = vector.shape_cast %202 : vector<1x16x32xbf16> to vector<16x32xbf16>
    %cst_127 = arith.constant dense<0.000000e+00> : vector<112x32xf32>
    %204 = tpu.matmul %201, %203, %cst_127 {dimension_numbers = #tpu.dot_dimension_numbers<[1], [0], [0], [1], [0, 0, 1, 1], [], []>} : vector<112x16xbf16>, vector<16x32xbf16>, vector<112x32xf32> -> vector<112x32xf32>
    %205 = arith.addf %199, %204 : vector<112x32xf32>
    %c81_i32_128 = arith.constant 81 : i32
    %206 = tpu.dynamic_rotate %129 by %c81_i32_128 dim 0 : vector<112x16xf32>, i32 -> vector<112x16xf32>
    %207 = arith.truncf %206 : vector<112x16xf32> to vector<112x16xbf16>
    %c13_129 = arith.constant 13 : index
    %c0_130 = arith.constant 0 : index
    %c0_131 = arith.constant 0 : index
    %208 = vector.load %arg4[%c13_129, %c0_130, %c0_131] : memref<16x16x32xbf16, #tpu.memory_space<vmem>>, vector<1x16x32xbf16>
    %209 = vector.shape_cast %208 : vector<1x16x32xbf16> to vector<16x32xbf16>
    %cst_132 = arith.constant dense<0.000000e+00> : vector<112x32xf32>
    %210 = tpu.matmul %207, %209, %cst_132 {dimension_numbers = #tpu.dot_dimension_numbers<[1], [0], [0], [1], [0, 0, 1, 1], [], []>} : vector<112x16xbf16>, vector<16x32xbf16>, vector<112x32xf32> -> vector<112x32xf32>
    %211 = arith.addf %205, %210 : vector<112x32xf32>
    %c80_i32_133 = arith.constant 80 : i32
    %212 = tpu.dynamic_rotate %129 by %c80_i32_133 dim 0 : vector<112x16xf32>, i32 -> vector<112x16xf32>
    %213 = arith.truncf %212 : vector<112x16xf32> to vector<112x16xbf16>
    %c14_134 = arith.constant 14 : index
    %c0_135 = arith.constant 0 : index
    %c0_136 = arith.constant 0 : index
    %214 = vector.load %arg4[%c14_134, %c0_135, %c0_136] : memref<16x16x32xbf16, #tpu.memory_space<vmem>>, vector<1x16x32xbf16>
    %215 = vector.shape_cast %214 : vector<1x16x32xbf16> to vector<16x32xbf16>
    %cst_137 = arith.constant dense<0.000000e+00> : vector<112x32xf32>
    %216 = tpu.matmul %213, %215, %cst_137 {dimension_numbers = #tpu.dot_dimension_numbers<[1], [0], [0], [1], [0, 0, 1, 1], [], []>} : vector<112x16xbf16>, vector<16x32xbf16>, vector<112x32xf32> -> vector<112x32xf32>
    %217 = arith.addf %211, %216 : vector<112x32xf32>
    %c79_i32_138 = arith.constant 79 : i32
    %218 = tpu.dynamic_rotate %129 by %c79_i32_138 dim 0 : vector<112x16xf32>, i32 -> vector<112x16xf32>
    %219 = arith.truncf %218 : vector<112x16xf32> to vector<112x16xbf16>
    %c15_139 = arith.constant 15 : index
    %c0_140 = arith.constant 0 : index
    %c0_141 = arith.constant 0 : index
    %220 = vector.load %arg4[%c15_139, %c0_140, %c0_141] : memref<16x16x32xbf16, #tpu.memory_space<vmem>>, vector<1x16x32xbf16>
    %221 = vector.shape_cast %220 : vector<1x16x32xbf16> to vector<16x32xbf16>
    %cst_142 = arith.constant dense<0.000000e+00> : vector<112x32xf32>
    %222 = tpu.matmul %219, %221, %cst_142 {dimension_numbers = #tpu.dot_dimension_numbers<[1], [0], [0], [1], [0, 0, 1, 1], [], []>} : vector<112x16xbf16>, vector<16x32xbf16>, vector<112x32xf32> -> vector<112x32xf32>
    %223 = arith.addf %217, %222 : vector<112x32xf32>
    %c0_143 = arith.constant 0 : index
    %c0_144 = arith.constant 0 : index
    %224 = vector.load %arg11[%c0_143, %c0_144] : memref<112x1xf32, #tpu.memory_space<vmem>>, vector<112x1xf32>
    %225 = vector.broadcast %224 : vector<112x1xf32> to vector<112x32xf32>
    %226 = arith.mulf %223, %225 : vector<112x32xf32>
    %cst_145 = arith.constant dense<0.000000e+00> : vector<32xf32>
    %227 = vector.multi_reduction <add>, %226, %cst_145 [0] : vector<112x32xf32> to vector<32xf32>
    %228 = vector.shape_cast %227 : vector<32xf32> to vector<1x32xf32>
    %cst_146 = arith.constant 0.027777778 : f32
    %229 = vector.broadcast %cst_146 : f32 to vector<1x32xf32>
    %230 = arith.mulf %228, %229 : vector<1x32xf32>
    %231 = vector.broadcast %230 : vector<1x32xf32> to vector<112x32xf32>
    %232 = arith.subf %223, %231 : vector<112x32xf32>
    %233 = vector.broadcast %224 : vector<112x1xf32> to vector<112x32xf32>
    %234 = arith.mulf %232, %233 : vector<112x32xf32>
    %235 = arith.mulf %234, %234 : vector<112x32xf32>
    %cst_147 = arith.constant dense<0.000000e+00> : vector<32xf32>
    %236 = vector.multi_reduction <add>, %235, %cst_147 [0] : vector<112x32xf32> to vector<32xf32>
    %237 = vector.shape_cast %236 : vector<32xf32> to vector<1x32xf32>
    %cst_148 = arith.constant 0.027777778 : f32
    %238 = vector.broadcast %cst_148 : f32 to vector<1x32xf32>
    %239 = arith.mulf %237, %238 : vector<1x32xf32>
    %cst_149 = arith.constant 9.99999974E-6 : f32
    %240 = vector.broadcast %cst_149 : f32 to vector<1x32xf32>
    %241 = arith.addf %239, %240 : vector<1x32xf32>
    %242 = math.rsqrt %241 : vector<1x32xf32>
    %243 = vector.broadcast %242 : vector<1x32xf32> to vector<112x32xf32>
    %244 = arith.mulf %234, %243 : vector<112x32xf32>
    %cst_150 = arith.constant 0.000000e+00 : f32
    %245 = vector.broadcast %cst_150 : f32 to vector<112x32xf32>
    %246 = arith.cmpf oge, %244, %245 : vector<112x32xf32>
    %cst_151 = arith.constant 0.00999999977 : f32
    %247 = vector.broadcast %cst_151 : f32 to vector<112x32xf32>
    %248 = arith.mulf %247, %244 : vector<112x32xf32>
    %249 = arith.select %246, %244, %248 : vector<112x32xi1>, vector<112x32xf32>
    %c11_i32_152 = arith.constant 11 : i32
    %250 = tpu.dynamic_rotate %249 by %c11_i32_152 dim 0 : vector<112x32xf32>, i32 -> vector<112x32xf32>
    %251 = arith.truncf %250 : vector<112x32xf32> to vector<112x32xbf16>
    %c0_153 = arith.constant 0 : index
    %c0_154 = arith.constant 0 : index
    %c0_155 = arith.constant 0 : index
    %252 = vector.load %arg5[%c0_153, %c0_154, %c0_155] : memref<16x32x64xbf16, #tpu.memory_space<vmem>>, vector<1x32x64xbf16>
    %253 = vector.shape_cast %252 : vector<1x32x64xbf16> to vector<32x64xbf16>
    %cst_156 = arith.constant dense<0.000000e+00> : vector<112x64xf32>
    %254 = tpu.matmul %251, %253, %cst_156 {dimension_numbers = #tpu.dot_dimension_numbers<[1], [0], [0], [1], [0, 0, 1, 1], [], []>} : vector<112x32xbf16>, vector<32x64xbf16>, vector<112x64xf32> -> vector<112x64xf32>
    %c111_i32_157 = arith.constant 111 : i32
    %255 = tpu.dynamic_rotate %250 by %c111_i32_157 dim 0 : vector<112x32xf32>, i32 -> vector<112x32xf32>
    %256 = arith.truncf %255 : vector<112x32xf32> to vector<112x32xbf16>
    %c1_158 = arith.constant 1 : index
    %c0_159 = arith.constant 0 : index
    %c0_160 = arith.constant 0 : index
    %257 = vector.load %arg5[%c1_158, %c0_159, %c0_160] : memref<16x32x64xbf16, #tpu.memory_space<vmem>>, vector<1x32x64xbf16>
    %258 = vector.shape_cast %257 : vector<1x32x64xbf16> to vector<32x64xbf16>
    %cst_161 = arith.constant dense<0.000000e+00> : vector<112x64xf32>
    %259 = tpu.matmul %256, %258, %cst_161 {dimension_numbers = #tpu.dot_dimension_numbers<[1], [0], [0], [1], [0, 0, 1, 1], [], []>} : vector<112x32xbf16>, vector<32x64xbf16>, vector<112x64xf32> -> vector<112x64xf32>
    %260 = arith.addf %254, %259 : vector<112x64xf32>
    %c110_i32_162 = arith.constant 110 : i32
    %261 = tpu.dynamic_rotate %250 by %c110_i32_162 dim 0 : vector<112x32xf32>, i32 -> vector<112x32xf32>
    %262 = arith.truncf %261 : vector<112x32xf32> to vector<112x32xbf16>
    %c2_163 = arith.constant 2 : index
    %c0_164 = arith.constant 0 : index
    %c0_165 = arith.constant 0 : index
    %263 = vector.load %arg5[%c2_163, %c0_164, %c0_165] : memref<16x32x64xbf16, #tpu.memory_space<vmem>>, vector<1x32x64xbf16>
    %264 = vector.shape_cast %263 : vector<1x32x64xbf16> to vector<32x64xbf16>
    %cst_166 = arith.constant dense<0.000000e+00> : vector<112x64xf32>
    %265 = tpu.matmul %262, %264, %cst_166 {dimension_numbers = #tpu.dot_dimension_numbers<[1], [0], [0], [1], [0, 0, 1, 1], [], []>} : vector<112x32xbf16>, vector<32x64xbf16>, vector<112x64xf32> -> vector<112x64xf32>
    %266 = arith.addf %260, %265 : vector<112x64xf32>
    %c109_i32_167 = arith.constant 109 : i32
    %267 = tpu.dynamic_rotate %250 by %c109_i32_167 dim 0 : vector<112x32xf32>, i32 -> vector<112x32xf32>
    %268 = arith.truncf %267 : vector<112x32xf32> to vector<112x32xbf16>
    %c3_168 = arith.constant 3 : index
    %c0_169 = arith.constant 0 : index
    %c0_170 = arith.constant 0 : index
    %269 = vector.load %arg5[%c3_168, %c0_169, %c0_170] : memref<16x32x64xbf16, #tpu.memory_space<vmem>>, vector<1x32x64xbf16>
    %270 = vector.shape_cast %269 : vector<1x32x64xbf16> to vector<32x64xbf16>
    %cst_171 = arith.constant dense<0.000000e+00> : vector<112x64xf32>
    %271 = tpu.matmul %268, %270, %cst_171 {dimension_numbers = #tpu.dot_dimension_numbers<[1], [0], [0], [1], [0, 0, 1, 1], [], []>} : vector<112x32xbf16>, vector<32x64xbf16>, vector<112x64xf32> -> vector<112x64xf32>
    %272 = arith.addf %266, %271 : vector<112x64xf32>
    %c102_i32_172 = arith.constant 102 : i32
    %273 = tpu.dynamic_rotate %250 by %c102_i32_172 dim 0 : vector<112x32xf32>, i32 -> vector<112x32xf32>
    %274 = arith.truncf %273 : vector<112x32xf32> to vector<112x32xbf16>
    %c4_173 = arith.constant 4 : index
    %c0_174 = arith.constant 0 : index
    %c0_175 = arith.constant 0 : index
    %275 = vector.load %arg5[%c4_173, %c0_174, %c0_175] : memref<16x32x64xbf16, #tpu.memory_space<vmem>>, vector<1x32x64xbf16>
    %276 = vector.shape_cast %275 : vector<1x32x64xbf16> to vector<32x64xbf16>
    %cst_176 = arith.constant dense<0.000000e+00> : vector<112x64xf32>
    %277 = tpu.matmul %274, %276, %cst_176 {dimension_numbers = #tpu.dot_dimension_numbers<[1], [0], [0], [1], [0, 0, 1, 1], [], []>} : vector<112x32xbf16>, vector<32x64xbf16>, vector<112x64xf32> -> vector<112x64xf32>
    %278 = arith.addf %272, %277 : vector<112x64xf32>
    %c101_i32_177 = arith.constant 101 : i32
    %279 = tpu.dynamic_rotate %250 by %c101_i32_177 dim 0 : vector<112x32xf32>, i32 -> vector<112x32xf32>
    %280 = arith.truncf %279 : vector<112x32xf32> to vector<112x32xbf16>
    %c5_178 = arith.constant 5 : index
    %c0_179 = arith.constant 0 : index
    %c0_180 = arith.constant 0 : index
    %281 = vector.load %arg5[%c5_178, %c0_179, %c0_180] : memref<16x32x64xbf16, #tpu.memory_space<vmem>>, vector<1x32x64xbf16>
    %282 = vector.shape_cast %281 : vector<1x32x64xbf16> to vector<32x64xbf16>
    %cst_181 = arith.constant dense<0.000000e+00> : vector<112x64xf32>
    %283 = tpu.matmul %280, %282, %cst_181 {dimension_numbers = #tpu.dot_dimension_numbers<[1], [0], [0], [1], [0, 0, 1, 1], [], []>} : vector<112x32xbf16>, vector<32x64xbf16>, vector<112x64xf32> -> vector<112x64xf32>
    %284 = arith.addf %278, %283 : vector<112x64xf32>
    %c100_i32_182 = arith.constant 100 : i32
    %285 = tpu.dynamic_rotate %250 by %c100_i32_182 dim 0 : vector<112x32xf32>, i32 -> vector<112x32xf32>
    %286 = arith.truncf %285 : vector<112x32xf32> to vector<112x32xbf16>
    %c6_183 = arith.constant 6 : index
    %c0_184 = arith.constant 0 : index
    %c0_185 = arith.constant 0 : index
    %287 = vector.load %arg5[%c6_183, %c0_184, %c0_185] : memref<16x32x64xbf16, #tpu.memory_space<vmem>>, vector<1x32x64xbf16>
    %288 = vector.shape_cast %287 : vector<1x32x64xbf16> to vector<32x64xbf16>
    %cst_186 = arith.constant dense<0.000000e+00> : vector<112x64xf32>
    %289 = tpu.matmul %286, %288, %cst_186 {dimension_numbers = #tpu.dot_dimension_numbers<[1], [0], [0], [1], [0, 0, 1, 1], [], []>} : vector<112x32xbf16>, vector<32x64xbf16>, vector<112x64xf32> -> vector<112x64xf32>
    %290 = arith.addf %284, %289 : vector<112x64xf32>
    %c99_i32_187 = arith.constant 99 : i32
    %291 = tpu.dynamic_rotate %250 by %c99_i32_187 dim 0 : vector<112x32xf32>, i32 -> vector<112x32xf32>
    %292 = arith.truncf %291 : vector<112x32xf32> to vector<112x32xbf16>
    %c7_188 = arith.constant 7 : index
    %c0_189 = arith.constant 0 : index
    %c0_190 = arith.constant 0 : index
    %293 = vector.load %arg5[%c7_188, %c0_189, %c0_190] : memref<16x32x64xbf16, #tpu.memory_space<vmem>>, vector<1x32x64xbf16>
    %294 = vector.shape_cast %293 : vector<1x32x64xbf16> to vector<32x64xbf16>
    %cst_191 = arith.constant dense<0.000000e+00> : vector<112x64xf32>
    %295 = tpu.matmul %292, %294, %cst_191 {dimension_numbers = #tpu.dot_dimension_numbers<[1], [0], [0], [1], [0, 0, 1, 1], [], []>} : vector<112x32xbf16>, vector<32x64xbf16>, vector<112x64xf32> -> vector<112x64xf32>
    %296 = arith.addf %290, %295 : vector<112x64xf32>
    %c92_i32_192 = arith.constant 92 : i32
    %297 = tpu.dynamic_rotate %250 by %c92_i32_192 dim 0 : vector<112x32xf32>, i32 -> vector<112x32xf32>
    %298 = arith.truncf %297 : vector<112x32xf32> to vector<112x32xbf16>
    %c8_193 = arith.constant 8 : index
    %c0_194 = arith.constant 0 : index
    %c0_195 = arith.constant 0 : index
    %299 = vector.load %arg5[%c8_193, %c0_194, %c0_195] : memref<16x32x64xbf16, #tpu.memory_space<vmem>>, vector<1x32x64xbf16>
    %300 = vector.shape_cast %299 : vector<1x32x64xbf16> to vector<32x64xbf16>
    %cst_196 = arith.constant dense<0.000000e+00> : vector<112x64xf32>
    %301 = tpu.matmul %298, %300, %cst_196 {dimension_numbers = #tpu.dot_dimension_numbers<[1], [0], [0], [1], [0, 0, 1, 1], [], []>} : vector<112x32xbf16>, vector<32x64xbf16>, vector<112x64xf32> -> vector<112x64xf32>
    %302 = arith.addf %296, %301 : vector<112x64xf32>
    %c91_i32_197 = arith.constant 91 : i32
    %303 = tpu.dynamic_rotate %250 by %c91_i32_197 dim 0 : vector<112x32xf32>, i32 -> vector<112x32xf32>
    %304 = arith.truncf %303 : vector<112x32xf32> to vector<112x32xbf16>
    %c9_198 = arith.constant 9 : index
    %c0_199 = arith.constant 0 : index
    %c0_200 = arith.constant 0 : index
    %305 = vector.load %arg5[%c9_198, %c0_199, %c0_200] : memref<16x32x64xbf16, #tpu.memory_space<vmem>>, vector<1x32x64xbf16>
    %306 = vector.shape_cast %305 : vector<1x32x64xbf16> to vector<32x64xbf16>
    %cst_201 = arith.constant dense<0.000000e+00> : vector<112x64xf32>
    %307 = tpu.matmul %304, %306, %cst_201 {dimension_numbers = #tpu.dot_dimension_numbers<[1], [0], [0], [1], [0, 0, 1, 1], [], []>} : vector<112x32xbf16>, vector<32x64xbf16>, vector<112x64xf32> -> vector<112x64xf32>
    %308 = arith.addf %302, %307 : vector<112x64xf32>
    %c90_i32_202 = arith.constant 90 : i32
    %309 = tpu.dynamic_rotate %250 by %c90_i32_202 dim 0 : vector<112x32xf32>, i32 -> vector<112x32xf32>
    %310 = arith.truncf %309 : vector<112x32xf32> to vector<112x32xbf16>
    %c10_203 = arith.constant 10 : index
    %c0_204 = arith.constant 0 : index
    %c0_205 = arith.constant 0 : index
    %311 = vector.load %arg5[%c10_203, %c0_204, %c0_205] : memref<16x32x64xbf16, #tpu.memory_space<vmem>>, vector<1x32x64xbf16>
    %312 = vector.shape_cast %311 : vector<1x32x64xbf16> to vector<32x64xbf16>
    %cst_206 = arith.constant dense<0.000000e+00> : vector<112x64xf32>
    %313 = tpu.matmul %310, %312, %cst_206 {dimension_numbers = #tpu.dot_dimension_numbers<[1], [0], [0], [1], [0, 0, 1, 1], [], []>} : vector<112x32xbf16>, vector<32x64xbf16>, vector<112x64xf32> -> vector<112x64xf32>
    %314 = arith.addf %308, %313 : vector<112x64xf32>
    %c89_i32_207 = arith.constant 89 : i32
    %315 = tpu.dynamic_rotate %250 by %c89_i32_207 dim 0 : vector<112x32xf32>, i32 -> vector<112x32xf32>
    %316 = arith.truncf %315 : vector<112x32xf32> to vector<112x32xbf16>
    %c11_208 = arith.constant 11 : index
    %c0_209 = arith.constant 0 : index
    %c0_210 = arith.constant 0 : index
    %317 = vector.load %arg5[%c11_208, %c0_209, %c0_210] : memref<16x32x64xbf16, #tpu.memory_space<vmem>>, vector<1x32x64xbf16>
    %318 = vector.shape_cast %317 : vector<1x32x64xbf16> to vector<32x64xbf16>
    %cst_211 = arith.constant dense<0.000000e+00> : vector<112x64xf32>
    %319 = tpu.matmul %316, %318, %cst_211 {dimension_numbers = #tpu.dot_dimension_numbers<[1], [0], [0], [1], [0, 0, 1, 1], [], []>} : vector<112x32xbf16>, vector<32x64xbf16>, vector<112x64xf32> -> vector<112x64xf32>
    %320 = arith.addf %314, %319 : vector<112x64xf32>
    %c82_i32_212 = arith.constant 82 : i32
    %321 = tpu.dynamic_rotate %250 by %c82_i32_212 dim 0 : vector<112x32xf32>, i32 -> vector<112x32xf32>
    %322 = arith.truncf %321 : vector<112x32xf32> to vector<112x32xbf16>
    %c12_213 = arith.constant 12 : index
    %c0_214 = arith.constant 0 : index
    %c0_215 = arith.constant 0 : index
    %323 = vector.load %arg5[%c12_213, %c0_214, %c0_215] : memref<16x32x64xbf16, #tpu.memory_space<vmem>>, vector<1x32x64xbf16>
    %324 = vector.shape_cast %323 : vector<1x32x64xbf16> to vector<32x64xbf16>
    %cst_216 = arith.constant dense<0.000000e+00> : vector<112x64xf32>
    %325 = tpu.matmul %322, %324, %cst_216 {dimension_numbers = #tpu.dot_dimension_numbers<[1], [0], [0], [1], [0, 0, 1, 1], [], []>} : vector<112x32xbf16>, vector<32x64xbf16>, vector<112x64xf32> -> vector<112x64xf32>
    %326 = arith.addf %320, %325 : vector<112x64xf32>
    %c81_i32_217 = arith.constant 81 : i32
    %327 = tpu.dynamic_rotate %250 by %c81_i32_217 dim 0 : vector<112x32xf32>, i32 -> vector<112x32xf32>
    %328 = arith.truncf %327 : vector<112x32xf32> to vector<112x32xbf16>
    %c13_218 = arith.constant 13 : index
    %c0_219 = arith.constant 0 : index
    %c0_220 = arith.constant 0 : index
    %329 = vector.load %arg5[%c13_218, %c0_219, %c0_220] : memref<16x32x64xbf16, #tpu.memory_space<vmem>>, vector<1x32x64xbf16>
    %330 = vector.shape_cast %329 : vector<1x32x64xbf16> to vector<32x64xbf16>
    %cst_221 = arith.constant dense<0.000000e+00> : vector<112x64xf32>
    %331 = tpu.matmul %328, %330, %cst_221 {dimension_numbers = #tpu.dot_dimension_numbers<[1], [0], [0], [1], [0, 0, 1, 1], [], []>} : vector<112x32xbf16>, vector<32x64xbf16>, vector<112x64xf32> -> vector<112x64xf32>
    %332 = arith.addf %326, %331 : vector<112x64xf32>
    %c80_i32_222 = arith.constant 80 : i32
    %333 = tpu.dynamic_rotate %250 by %c80_i32_222 dim 0 : vector<112x32xf32>, i32 -> vector<112x32xf32>
    %334 = arith.truncf %333 : vector<112x32xf32> to vector<112x32xbf16>
    %c14_223 = arith.constant 14 : index
    %c0_224 = arith.constant 0 : index
    %c0_225 = arith.constant 0 : index
    %335 = vector.load %arg5[%c14_223, %c0_224, %c0_225] : memref<16x32x64xbf16, #tpu.memory_space<vmem>>, vector<1x32x64xbf16>
    %336 = vector.shape_cast %335 : vector<1x32x64xbf16> to vector<32x64xbf16>
    %cst_226 = arith.constant dense<0.000000e+00> : vector<112x64xf32>
    %337 = tpu.matmul %334, %336, %cst_226 {dimension_numbers = #tpu.dot_dimension_numbers<[1], [0], [0], [1], [0, 0, 1, 1], [], []>} : vector<112x32xbf16>, vector<32x64xbf16>, vector<112x64xf32> -> vector<112x64xf32>
    %338 = arith.addf %332, %337 : vector<112x64xf32>
    %c79_i32_227 = arith.constant 79 : i32
    %339 = tpu.dynamic_rotate %250 by %c79_i32_227 dim 0 : vector<112x32xf32>, i32 -> vector<112x32xf32>
    %340 = arith.truncf %339 : vector<112x32xf32> to vector<112x32xbf16>
    %c15_228 = arith.constant 15 : index
    %c0_229 = arith.constant 0 : index
    %c0_230 = arith.constant 0 : index
    %341 = vector.load %arg5[%c15_228, %c0_229, %c0_230] : memref<16x32x64xbf16, #tpu.memory_space<vmem>>, vector<1x32x64xbf16>
    %342 = vector.shape_cast %341 : vector<1x32x64xbf16> to vector<32x64xbf16>
    %cst_231 = arith.constant dense<0.000000e+00> : vector<112x64xf32>
    %343 = tpu.matmul %340, %342, %cst_231 {dimension_numbers = #tpu.dot_dimension_numbers<[1], [0], [0], [1], [0, 0, 1, 1], [], []>} : vector<112x32xbf16>, vector<32x64xbf16>, vector<112x64xf32> -> vector<112x64xf32>
    %344 = arith.addf %338, %343 : vector<112x64xf32>
    %c111_i32_232 = arith.constant 111 : i32
    %345 = tpu.dynamic_rotate %344 by %c111_i32_232 dim 0 : vector<112x64xf32>, i32 -> vector<112x64xf32>
    %346 = arith.maximumf %344, %345 : vector<112x64xf32>
    %c110_i32_233 = arith.constant 110 : i32
    %347 = tpu.dynamic_rotate %344 by %c110_i32_233 dim 0 : vector<112x64xf32>, i32 -> vector<112x64xf32>
    %348 = arith.maximumf %346, %347 : vector<112x64xf32>
    %c102_i32_234 = arith.constant 102 : i32
    %349 = tpu.dynamic_rotate %346 by %c102_i32_234 dim 0 : vector<112x64xf32>, i32 -> vector<112x64xf32>
    %350 = arith.maximumf %346, %349 : vector<112x64xf32>
    %c102_i32_235 = arith.constant 102 : i32
    %351 = tpu.dynamic_rotate %348 by %c102_i32_235 dim 0 : vector<112x64xf32>, i32 -> vector<112x64xf32>
    %352 = arith.maximumf %348, %351 : vector<112x64xf32>
    %c92_i32_236 = arith.constant 92 : i32
    %353 = tpu.dynamic_rotate %348 by %c92_i32_236 dim 0 : vector<112x64xf32>, i32 -> vector<112x64xf32>
    %354 = arith.maximumf %352, %353 : vector<112x64xf32>
    %355 = vector.extract_strided_slice %350 {offsets = [0, 0], sizes = [1, 64], strides = [1, 1]} : vector<112x64xf32> to vector<1x64xf32>
    %c0_237 = arith.constant 0 : index
    %c0_238 = arith.constant 0 : index
    %356 = vector.load %arg13[%c0_237, %c0_238] : memref<1x1344xf32, #tpu.memory_space<vmem>>, vector<1x64xf32>
    tpu.vector_store %arg13[%c0_237, %c0_238], %355 {strides = array<i32>} : memref<1x1344xf32, #tpu.memory_space<vmem>>, vector<1x64xf32>,
    %357 = vector.extract_strided_slice %350 {offsets = [1, 0], sizes = [1, 64], strides = [1, 1]} : vector<112x64xf32> to vector<1x64xf32>
    %c0_239 = arith.constant 0 : index
    %c64 = arith.constant 64 : index
    %358 = vector.load %arg13[%c0_239, %c64] : memref<1x1344xf32, #tpu.memory_space<vmem>>, vector<1x64xf32>
    tpu.vector_store %arg13[%c0_239, %c64], %357 {strides = array<i32>} : memref<1x1344xf32, #tpu.memory_space<vmem>>, vector<1x64xf32>,
    %359 = vector.extract_strided_slice %350 {offsets = [2, 0], sizes = [1, 64], strides = [1, 1]} : vector<112x64xf32> to vector<1x64xf32>
    %c0_240 = arith.constant 0 : index
    %c128 = arith.constant 128 : index
    %360 = vector.load %arg13[%c0_240, %c128] : memref<1x1344xf32, #tpu.memory_space<vmem>>, vector<1x64xf32>
    tpu.vector_store %arg13[%c0_240, %c128], %359 {strides = array<i32>} : memref<1x1344xf32, #tpu.memory_space<vmem>>, vector<1x64xf32>,
    %361 = vector.extract_strided_slice %350 {offsets = [3, 0], sizes = [1, 64], strides = [1, 1]} : vector<112x64xf32> to vector<1x64xf32>
    %c0_241 = arith.constant 0 : index
    %c192 = arith.constant 192 : index
    %362 = vector.load %arg13[%c0_241, %c192] : memref<1x1344xf32, #tpu.memory_space<vmem>>, vector<1x64xf32>
    tpu.vector_store %arg13[%c0_241, %c192], %361 {strides = array<i32>} : memref<1x1344xf32, #tpu.memory_space<vmem>>, vector<1x64xf32>,
    %363 = vector.extract_strided_slice %350 {offsets = [10, 0], sizes = [1, 64], strides = [1, 1]} : vector<112x64xf32> to vector<1x64xf32>
    %c0_242 = arith.constant 0 : index
    %c256 = arith.constant 256 : index
    %364 = vector.load %arg13[%c0_242, %c256] : memref<1x1344xf32, #tpu.memory_space<vmem>>, vector<1x64xf32>
    tpu.vector_store %arg13[%c0_242, %c256], %363 {strides = array<i32>} : memref<1x1344xf32, #tpu.memory_space<vmem>>, vector<1x64xf32>,
    %365 = vector.extract_strided_slice %350 {offsets = [11, 0], sizes = [1, 64], strides = [1, 1]} : vector<112x64xf32> to vector<1x64xf32>
    %c0_243 = arith.constant 0 : index
    %c320 = arith.constant 320 : index
    %366 = vector.load %arg13[%c0_243, %c320] : memref<1x1344xf32, #tpu.memory_space<vmem>>, vector<1x64xf32>
    tpu.vector_store %arg13[%c0_243, %c320], %365 {strides = array<i32>} : memref<1x1344xf32, #tpu.memory_space<vmem>>, vector<1x64xf32>,
    %367 = vector.extract_strided_slice %350 {offsets = [12, 0], sizes = [1, 64], strides = [1, 1]} : vector<112x64xf32> to vector<1x64xf32>
    %c0_244 = arith.constant 0 : index
    %c384 = arith.constant 384 : index
    %368 = vector.load %arg13[%c0_244, %c384] : memref<1x1344xf32, #tpu.memory_space<vmem>>, vector<1x64xf32>
    tpu.vector_store %arg13[%c0_244, %c384], %367 {strides = array<i32>} : memref<1x1344xf32, #tpu.memory_space<vmem>>, vector<1x64xf32>,
    %369 = vector.extract_strided_slice %350 {offsets = [13, 0], sizes = [1, 64], strides = [1, 1]} : vector<112x64xf32> to vector<1x64xf32>
    %c0_245 = arith.constant 0 : index
    %c448 = arith.constant 448 : index
    %370 = vector.load %arg13[%c0_245, %c448] : memref<1x1344xf32, #tpu.memory_space<vmem>>, vector<1x64xf32>
    tpu.vector_store %arg13[%c0_245, %c448], %369 {strides = array<i32>} : memref<1x1344xf32, #tpu.memory_space<vmem>>, vector<1x64xf32>,
    %371 = vector.extract_strided_slice %350 {offsets = [20, 0], sizes = [1, 64], strides = [1, 1]} : vector<112x64xf32> to vector<1x64xf32>
    %c0_246 = arith.constant 0 : index
    %c512 = arith.constant 512 : index
    %372 = vector.load %arg13[%c0_246, %c512] : memref<1x1344xf32, #tpu.memory_space<vmem>>, vector<1x64xf32>
    tpu.vector_store %arg13[%c0_246, %c512], %371 {strides = array<i32>} : memref<1x1344xf32, #tpu.memory_space<vmem>>, vector<1x64xf32>,
    %373 = vector.extract_strided_slice %350 {offsets = [21, 0], sizes = [1, 64], strides = [1, 1]} : vector<112x64xf32> to vector<1x64xf32>
    %c0_247 = arith.constant 0 : index
    %c576 = arith.constant 576 : index
    %374 = vector.load %arg13[%c0_247, %c576] : memref<1x1344xf32, #tpu.memory_space<vmem>>, vector<1x64xf32>
    tpu.vector_store %arg13[%c0_247, %c576], %373 {strides = array<i32>} : memref<1x1344xf32, #tpu.memory_space<vmem>>, vector<1x64xf32>,
    %375 = vector.extract_strided_slice %350 {offsets = [22, 0], sizes = [1, 64], strides = [1, 1]} : vector<112x64xf32> to vector<1x64xf32>
    %c0_248 = arith.constant 0 : index
    %c640 = arith.constant 640 : index
    %376 = vector.load %arg13[%c0_248, %c640] : memref<1x1344xf32, #tpu.memory_space<vmem>>, vector<1x64xf32>
    tpu.vector_store %arg13[%c0_248, %c640], %375 {strides = array<i32>} : memref<1x1344xf32, #tpu.memory_space<vmem>>, vector<1x64xf32>,
    %377 = vector.extract_strided_slice %350 {offsets = [23, 0], sizes = [1, 64], strides = [1, 1]} : vector<112x64xf32> to vector<1x64xf32>
    %c0_249 = arith.constant 0 : index
    %c704 = arith.constant 704 : index
    %378 = vector.load %arg13[%c0_249, %c704] : memref<1x1344xf32, #tpu.memory_space<vmem>>, vector<1x64xf32>
    tpu.vector_store %arg13[%c0_249, %c704], %377 {strides = array<i32>} : memref<1x1344xf32, #tpu.memory_space<vmem>>, vector<1x64xf32>,
    %379 = vector.extract_strided_slice %350 {offsets = [30, 0], sizes = [1, 64], strides = [1, 1]} : vector<112x64xf32> to vector<1x64xf32>
    %c0_250 = arith.constant 0 : index
    %c768 = arith.constant 768 : index
    %380 = vector.load %arg13[%c0_250, %c768] : memref<1x1344xf32, #tpu.memory_space<vmem>>, vector<1x64xf32>
    tpu.vector_store %arg13[%c0_250, %c768], %379 {strides = array<i32>} : memref<1x1344xf32, #tpu.memory_space<vmem>>, vector<1x64xf32>,
    %381 = vector.extract_strided_slice %350 {offsets = [31, 0], sizes = [1, 64], strides = [1, 1]} : vector<112x64xf32> to vector<1x64xf32>
    %c0_251 = arith.constant 0 : index
    %c832 = arith.constant 832 : index
    %382 = vector.load %arg13[%c0_251, %c832] : memref<1x1344xf32, #tpu.memory_space<vmem>>, vector<1x64xf32>
    tpu.vector_store %arg13[%c0_251, %c832], %381 {strides = array<i32>} : memref<1x1344xf32, #tpu.memory_space<vmem>>, vector<1x64xf32>,
    %383 = vector.extract_strided_slice %350 {offsets = [32, 0], sizes = [1, 64], strides = [1, 1]} : vector<112x64xf32> to vector<1x64xf32>
    %c0_252 = arith.constant 0 : index
    %c896 = arith.constant 896 : index
    %384 = vector.load %arg13[%c0_252, %c896] : memref<1x1344xf32, #tpu.memory_space<vmem>>, vector<1x64xf32>
    tpu.vector_store %arg13[%c0_252, %c896], %383 {strides = array<i32>} : memref<1x1344xf32, #tpu.memory_space<vmem>>, vector<1x64xf32>,
    %385 = vector.extract_strided_slice %350 {offsets = [33, 0], sizes = [1, 64], strides = [1, 1]} : vector<112x64xf32> to vector<1x64xf32>
    %c0_253 = arith.constant 0 : index
    %c960 = arith.constant 960 : index
    %386 = vector.load %arg13[%c0_253, %c960] : memref<1x1344xf32, #tpu.memory_space<vmem>>, vector<1x64xf32>
    tpu.vector_store %arg13[%c0_253, %c960], %385 {strides = array<i32>} : memref<1x1344xf32, #tpu.memory_space<vmem>>, vector<1x64xf32>,
    %387 = vector.extract_strided_slice %354 {offsets = [0, 0], sizes = [1, 64], strides = [1, 1]} : vector<112x64xf32> to vector<1x64xf32>
    %c0_254 = arith.constant 0 : index
    %c1024 = arith.constant 1024 : index
    %388 = vector.load %arg13[%c0_254, %c1024] : memref<1x1344xf32, #tpu.memory_space<vmem>>, vector<1x64xf32>
    tpu.vector_store %arg13[%c0_254, %c1024], %387 {strides = array<i32>} : memref<1x1344xf32, #tpu.memory_space<vmem>>, vector<1x64xf32>,
    %389 = vector.extract_strided_slice %354 {offsets = [2, 0], sizes = [1, 64], strides = [1, 1]} : vector<112x64xf32> to vector<1x64xf32>
    %c0_255 = arith.constant 0 : index
    %c1088 = arith.constant 1088 : index
    %390 = vector.load %arg13[%c0_255, %c1088] : memref<1x1344xf32, #tpu.memory_space<vmem>>, vector<1x64xf32>
    tpu.vector_store %arg13[%c0_255, %c1088], %389 {strides = array<i32>} : memref<1x1344xf32, #tpu.memory_space<vmem>>, vector<1x64xf32>,
    %391 = vector.extract_strided_slice %354 {offsets = [20, 0], sizes = [1, 64], strides = [1, 1]} : vector<112x64xf32> to vector<1x64xf32>
    %c0_256 = arith.constant 0 : index
    %c1152 = arith.constant 1152 : index
    %392 = vector.load %arg13[%c0_256, %c1152] : memref<1x1344xf32, #tpu.memory_space<vmem>>, vector<1x64xf32>
    tpu.vector_store %arg13[%c0_256, %c1152], %391 {strides = array<i32>} : memref<1x1344xf32, #tpu.memory_space<vmem>>, vector<1x64xf32>,
    %393 = vector.extract_strided_slice %354 {offsets = [22, 0], sizes = [1, 64], strides = [1, 1]} : vector<112x64xf32> to vector<1x64xf32>
    %c0_257 = arith.constant 0 : index
    %c1216 = arith.constant 1216 : index
    %394 = vector.load %arg13[%c0_257, %c1216] : memref<1x1344xf32, #tpu.memory_space<vmem>>, vector<1x64xf32>
    tpu.vector_store %arg13[%c0_257, %c1216], %393 {strides = array<i32>} : memref<1x1344xf32, #tpu.memory_space<vmem>>, vector<1x64xf32>,
    %395 = arith.maximumf %387, %389 : vector<1x64xf32>
    %396 = arith.maximumf %391, %393 : vector<1x64xf32>
    %397 = arith.maximumf %395, %396 : vector<1x64xf32>
    %c0_258 = arith.constant 0 : index
    %c1280 = arith.constant 1280 : index
    %398 = vector.load %arg13[%c0_258, %c1280] : memref<1x1344xf32, #tpu.memory_space<vmem>>, vector<1x64xf32>
    tpu.vector_store %arg13[%c0_258, %c1280], %397 {strides = array<i32>} : memref<1x1344xf32, #tpu.memory_space<vmem>>, vector<1x64xf32>,
    %c0_259 = arith.constant 0 : index
    %c0_260 = arith.constant 0 : index
    %399 = vector.load %arg13[%c0_259, %c0_260] : memref<1x1344xf32, #tpu.memory_space<vmem>>, vector<1x1344xf32>
    %400 = arith.truncf %399 : vector<1x1344xf32> to vector<1x1344xbf16>
    %c0_261 = arith.constant 0 : index
    %c0_262 = arith.constant 0 : index
    %401 = vector.load %arg6[%c0_261, %c0_262] : memref<1344x128xbf16, #tpu.memory_space<vmem>>, vector<1344x128xbf16>
    %cst_263 = arith.constant dense<0.000000e+00> : vector<1x128xf32>
    %402 = tpu.matmul %400, %401, %cst_263 {dimension_numbers = #tpu.dot_dimension_numbers<[1], [0], [0], [1], [0, 0, 1, 1], [], []>} : vector<1x1344xbf16>, vector<1344x128xbf16>, vector<1x128xf32> -> vector<1x128xf32>
    %c0_264 = arith.constant 0 : index
    %c0_265 = arith.constant 0 : index
    %403 = vector.load %arg7[%c0_264, %c0_265] : memref<1x128xf32, #tpu.memory_space<vmem>>, vector<1x128xf32>
    %404 = arith.addf %402, %403 : vector<1x128xf32>
    %405 = arith.truncf %404 : vector<1x128xf32> to vector<1x128xbf16>
    %c0_266 = arith.constant 0 : index
    %c0_267 = arith.constant 0 : index
    %406 = vector.load %arg8[%c0_266, %c0_267] : memref<128x64xbf16, #tpu.memory_space<vmem>>, vector<128x64xbf16>
    %cst_268 = arith.constant dense<0.000000e+00> : vector<1x64xf32>
    %407 = tpu.matmul %405, %406, %cst_268 {dimension_numbers = #tpu.dot_dimension_numbers<[1], [0], [0], [1], [0, 0, 1, 1], [], []>} : vector<1x128xbf16>, vector<128x64xbf16>, vector<1x64xf32> -> vector<1x64xf32>
    %c0_269 = arith.constant 0 : index
    %c0_270 = arith.constant 0 : index
    %408 = vector.load %arg9[%c0_269, %c0_270] : memref<1x64xf32, #tpu.memory_space<vmem>>, vector<1x64xf32>
    %409 = arith.addf %407, %408 : vector<1x64xf32>
    %410 = arith.negf %409 : vector<1x64xf32>
    %411 = math.exp %410 : vector<1x64xf32>
    %cst_271 = arith.constant 1.000000e+00 : f32
    %412 = vector.broadcast %cst_271 : f32 to vector<1x64xf32>
    %413 = arith.addf %412, %411 : vector<1x64xf32>
    %414 = arith.divf %412, %413 : vector<1x64xf32>
    %c0_272 = arith.constant 0 : index
    %c0_273 = arith.constant 0 : index
    %c0_274 = arith.constant 0 : index
    %415 = vector.load %arg12[%c0_272, %c0_273, %c0_274] : memref<1x1x64xf32, #tpu.memory_space<vmem>>, vector<1x1x64xf32>
    %416 = vector.shape_cast %415 : vector<1x1x64xf32> to vector<1x64xf32>
    %417 = vector.shape_cast %414 : vector<1x64xf32> to vector<1x1x64xf32>
    tpu.vector_store %arg12[%c0_272, %c0_273, %c0_274], %417 {strides = array<i32>} : memref<1x1x64xf32, #tpu.memory_space<vmem>>, vector<1x1x64xf32>,
    return
  }
  func.func @transform_0(%arg0: i32) -> (i32, i32, i32) {
    %c0_i32 = arith.constant 0 : i32
    %c0_i32_0 = arith.constant 0 : i32
    %c0_i32_1 = arith.constant 0 : i32
    return %arg0, %c0_i32, %c0_i32_0 : i32, i32, i32
  }
  func.func @transform_1(%arg0: i32) -> (i32, i32) {
    %c0_i32 = arith.constant 0 : i32
    %c0_i32_0 = arith.constant 0 : i32
    %c0_i32_1 = arith.constant 0 : i32
    return %c0_i32, %c0_i32_0 : i32, i32
  }
  func.func @transform_2(%arg0: i32) -> (i32, i32, i32) {
    %c0_i32 = arith.constant 0 : i32
    %c0_i32_0 = arith.constant 0 : i32
    %c0_i32_1 = arith.constant 0 : i32
    %c0_i32_2 = arith.constant 0 : i32
    return %c0_i32, %c0_i32_0, %c0_i32_1 : i32, i32, i32
  }
  func.func @transform_3(%arg0: i32) -> (i32, i32, i32) {
    %c0_i32 = arith.constant 0 : i32
    %c0_i32_0 = arith.constant 0 : i32
    %c0_i32_1 = arith.constant 0 : i32
    %c0_i32_2 = arith.constant 0 : i32
    return %c0_i32, %c0_i32_0, %c0_i32_1 : i32, i32, i32
  }
  func.func @transform_4(%arg0: i32) -> (i32, i32, i32) {
    %c0_i32 = arith.constant 0 : i32
    %c0_i32_0 = arith.constant 0 : i32
    %c0_i32_1 = arith.constant 0 : i32
    %c0_i32_2 = arith.constant 0 : i32
    return %c0_i32, %c0_i32_0, %c0_i32_1 : i32, i32, i32
  }
  func.func @transform_5(%arg0: i32) -> (i32, i32) {
    %c0_i32 = arith.constant 0 : i32
    %c0_i32_0 = arith.constant 0 : i32
    %c0_i32_1 = arith.constant 0 : i32
    return %c0_i32, %c0_i32_0 : i32, i32
  }
  func.func @transform_6(%arg0: i32) -> (i32, i32) {
    %c0_i32 = arith.constant 0 : i32
    %c0_i32_0 = arith.constant 0 : i32
    %c0_i32_1 = arith.constant 0 : i32
    return %c0_i32, %c0_i32_0 : i32, i32
  }
  func.func @transform_7(%arg0: i32) -> (i32, i32) {
    %c0_i32 = arith.constant 0 : i32
    %c0_i32_0 = arith.constant 0 : i32
    %c0_i32_1 = arith.constant 0 : i32
    return %c0_i32, %c0_i32_0 : i32, i32
  }
  func.func @transform_8(%arg0: i32) -> (i32, i32) {
    %c0_i32 = arith.constant 0 : i32
    %c0_i32_0 = arith.constant 0 : i32
    %c0_i32_1 = arith.constant 0 : i32
    return %c0_i32, %c0_i32_0 : i32, i32
  }
  func.func @transform_9(%arg0: i32) -> (i32, i32) {
    %c0_i32 = arith.constant 0 : i32
    %c0_i32_0 = arith.constant 0 : i32
    %c0_i32_1 = arith.constant 0 : i32
    return %c0_i32, %c0_i32_0 : i32, i32
  }
  func.func @transform_10(%arg0: i32) -> (i32, i32) {
    %c0_i32 = arith.constant 0 : i32
    %c0_i32_0 = arith.constant 0 : i32
    %c0_i32_1 = arith.constant 0 : i32
    return %c0_i32, %c0_i32_0 : i32, i32
  }
  func.func @transform_11(%arg0: i32) -> (i32, i32, i32) {
    %c0_i32 = arith.constant 0 : i32
    %c0_i32_0 = arith.constant 0 : i32
    %c0_i32_1 = arith.constant 0 : i32
    return %arg0, %c0_i32, %c0_i32_0 : i32, i32, i32
  }
}

</mosaic_0001>

<llo_original>
// kernel: spp_net_forward.1
$region0: #{spp_net_forward.1}
  #allocation0 [shape = 'u32[]', space=smem, size = 0x4, offset = 0x4, fixed_abs, tag = 'smem constant byte address 0x4 - core index']
  #allocation1 [shape = 'u32[144,128]{1,0:T(1,128)}', space=vmem, size = 0x12000, scoped, tag = 'internal scratch']
  #allocation2 [shape = 'f32[1,1344]{1,0:T(1,128)}', space=vmem, size = 0x1600, scoped, tag = 'scratch operand']
  %s0 = inlined_call_operand.vmem [shape: bf16[2,112,48], index: 0, kind: input, shape index: {}]
  %s1 = inlined_call_operand.vmem [shape: bf16[48,8], index: 1, kind: input, shape index: {}]
  %s2 = inlined_call_operand.vmem [shape: bf16[16,8,16], index: 2, kind: input, shape index: {}]
  %s3 = inlined_call_operand.vmem [shape: bf16[16,16,32], index: 3, kind: input, shape index: {}]
  %s4 = inlined_call_operand.vmem [shape: bf16[16,32,64], index: 4, kind: input, shape index: {}]
  %s5 = inlined_call_operand.vmem [shape: bf16[1344,128], index: 5, kind: input, shape index: {}]
  %s6 = inlined_call_operand.vmem [shape: f32[1,128], index: 6, kind: input, shape index: {}]
  %s7 = inlined_call_operand.vmem [shape: bf16[128,64], index: 7, kind: input, shape index: {}]
  %s8 = inlined_call_operand.vmem [shape: f32[1,64], index: 8, kind: input, shape index: {}]
  %s9 = inlined_call_operand.vmem [shape: f32[112,1], index: 9, kind: input, shape index: {}]
  %s10 = inlined_call_operand.vmem [shape: f32[112,1], index: 10, kind: input, shape index: {}]
  %s11 = inlined_call_operand.hbm [shape: f32[2,1,64], index: 11, kind: output, shape index: {}]
  %s12 = sld [smem:[#allocation0]]
  $region77: #{spp_net_forward.1} parent=0
    _
  %s14 = ssub.s32 1, %s12
  %s15 = scalar_select 0, %s14, %s12
  $region1: #{spp_net_forward.1} parent=0
    #allocation3 [shape = 'u8[1024]{0}', space=vmem, size = 0x400, scoped, tag = 'output window, operand 0']
    #allocation4 [shape = 's32[2]{0}', space=sflag, size = 0x8, scoped, tag = 'scoped memory for spp_net_forward.1']
    %16 = vsyncpa [#allocation4], 0
    %s17 = scalar_lea.sflag [#allocation4], 1
    %18 = vsyncpa %s17, 0
    loop: start=0, step=1, limit=4
    $region2: #{spp_net_forward.1} parent=1 // loop_pre_header
      _
    $region3: #{spp_net_forward.1} parent=1 // loop_header
      %s20 = sphi 0, %s24
      %p21 = scmp.ge.s32.totalorder %s20, 4
      %s30 = sphi 0, %s32
      %s33 = sphi 0, %s30
      %s34 = sphi 0, %s33
      %s50 = sphi 0, %s34
      %s54 = sphi 0, %s54
      %s56 = sphi 0, %s54
      %s57 = sphi 0, %s56
      %s71 = sphi 0, %s57
      %s75 = sphi 0, %s75
      %s77 = sphi 0, %s75
      %s78 = sphi 0, %s77
      %s92 = sphi 0, %s78
      %s96 = sphi 0, %s96
      %s98 = sphi 0, %s96
      %s99 = sphi 0, %s98
      %s113 = sphi 0, %s99
      %s117 = sphi 0, %s117
      %s119 = sphi 0, %s117
      %s120 = sphi 0, %s119
      %s134 = sphi 0, %s120
      %s138 = sphi 0, %s138
      %s140 = sphi 0, %s138
      %s141 = sphi 0, %s140
      %s155 = sphi 0, %s141
      %s159 = sphi 0, %s159
      %s161 = sphi 0, %s159
      %s162 = sphi 0, %s161
      %s176 = sphi 0, %s162
      %s180 = sphi 0, %s180
      %s182 = sphi 0, %s180
      %s183 = sphi 0, %s182
      %s197 = sphi 0, %s183
      %s201 = sphi 0, %s201
      %s203 = sphi 0, %s201
      %s204 = sphi 0, %s203
      %s218 = sphi 0, %s204
      %s222 = sphi 0, %s222
      %s224 = sphi 0, %s222
      %s225 = sphi 0, %s224
      %s239 = sphi 0, %s225
      %s243 = sphi 0, %s243
      %s245 = sphi 0, %s243
      %s246 = sphi 0, %s245
      %s260 = sphi 0, %s246
      %s266 = sphi 0, %s268
      %s269 = sphi 0, %s266
      %s270 = sphi 0, %s269
      %s286 = sphi 0, %s270
    $region4: #{spp_net_forward.1} parent=1 // loop_header_branch
      %23 = sbr.rel (%p21) target = $region8
    $region5: #{spp_net_forward.1} parent=1 // loop_body
      %s25 = ssub.s32 %s20, 1
      %s26 = ssub.s32 %s20, 2
      %s27 = sadd.s32 %s20, 1
      %s28 = ssub.s32 %s20, %s27
      %p29 = scmp.eq.s32.totalorder %s28, 0
      %s31 = sadd.s32 %s30, 1
      %s32 = scalar_select %p29, %s30, %s31
      %p35 = pneg %p29
      %p36 = scmp.eq.s32.totalorder %s20, 1
      %p37 = por %p35, %p36
      %p38 = scmp.ne.s32.totalorder %s30, %s33
      %p39 = scmp.eq.s32.totalorder %s20, 0
      %p40 = por %p38, %p39
      %p41 = scmp.ne.s32.totalorder %s30, %s33
      %p42 = scmp.eq.s32.totalorder %s25, 1
      %p43 = por %p41, %p42
      %p44 = scmp.ne.s32.totalorder %s33, %s34
      %p45 = scmp.eq.s32.totalorder %s25, 0
      %p46 = por %p44, %p45
      %p47 = scmp.ne.s32.totalorder %s33, %s34
      %p48 = scmp.eq.s32.totalorder %s26, 1
      %p49 = por %p47, %p48
      %p51 = scmp.ne.s32.totalorder %s34, %s50
      %p52 = scmp.eq.s32.totalorder %s26, 0
      %p53 = por %p51, %p52
      %s55 = sadd.s32 %s54, 1
      %p58 = scmp.eq.s32.totalorder %s20, 1
      %p59 = scmp.ne.s32.totalorder %s54, %s56
      %p60 = scmp.eq.s32.totalorder %s20, 0
      %p61 = por %p59, %p60
      %p62 = scmp.ne.s32.totalorder %s54, %s56
      %p63 = scmp.eq.s32.totalorder %s25, 1
      %p64 = por %p62, %p63
      %p65 = scmp.ne.s32.totalorder %s56, %s57
      %p66 = scmp.eq.s32.totalorder %s25, 0
      %p67 = por %p65, %p66
      %p68 = scmp.ne.s32.totalorder %s56, %s57
      %p69 = scmp.eq.s32.totalorder %s26, 1
      %p70 = por %p68, %p69
      %p72 = scmp.ne.s32.totalorder %s57, %s71
      %p73 = scmp.eq.s32.totalorder %s26, 0
      %p74 = por %p72, %p73
      %s76 = sadd.s32 %s75, 1
      %p79 = scmp.eq.s32.totalorder %s20, 1
      %p80 = scmp.ne.s32.totalorder %s75, %s77
      %p81 = scmp.eq.s32.totalorder %s20, 0
      %p82 = por %p80, %p81
      %p83 = scmp.ne.s32.totalorder %s75, %s77
      %p84 = scmp.eq.s32.totalorder %s25, 1
      %p85 = por %p83, %p84
      %p86 = scmp.ne.s32.totalorder %s77, %s78
      %p87 = scmp.eq.s32.totalorder %s25, 0
      %p88 = por %p86, %p87
      %p89 = scmp.ne.s32.totalorder %s77, %s78
      %p90 = scmp.eq.s32.totalorder %s26, 1
      %p91 = por %p89, %p90
      %p93 = scmp.ne.s32.totalorder %s78, %s92
      %p94 = scmp.eq.s32.totalorder %s26, 0
      %p95 = por %p93, %p94
      %s97 = sadd.s32 %s96, 1
      %p100 = scmp.eq.s32.totalorder %s20, 1
      %p101 = scmp.ne.s32.totalorder %s96, %s98
      %p102 = scmp.eq.s32.totalorder %s20, 0
      %p103 = por %p101, %p102
      %p104 = scmp.ne.s32.totalorder %s96, %s98
      %p105 = scmp.eq.s32.totalorder %s25, 1
      %p106 = por %p104, %p105
      %p107 = scmp.ne.s32.totalorder %s98, %s99
      %p108 = scmp.eq.s32.totalorder %s25, 0
      %p109 = por %p107, %p108
      %p110 = scmp.ne.s32.totalorder %s98, %s99
      %p111 = scmp.eq.s32.totalorder %s26, 1
      %p112 = por %p110, %p111
      %p114 = scmp.ne.s32.totalorder %s99, %s113
      %p115 = scmp.eq.s32.totalorder %s26, 0
      %p116 = por %p114, %p115
      %s118 = sadd.s32 %s117, 1
      %p121 = scmp.eq.s32.totalorder %s20, 1
      %p122 = scmp.ne.s32.totalorder %s117, %s119
      %p123 = scmp.eq.s32.totalorder %s20, 0
      %p124 = por %p122, %p123
      %p125 = scmp.ne.s32.totalorder %s117, %s119
      %p126 = scmp.eq.s32.totalorder %s25, 1
      %p127 = por %p125, %p126
      %p128 = scmp.ne.s32.totalorder %s119, %s120
      %p129 = scmp.eq.s32.totalorder %s25, 0
      %p130 = por %p128, %p129
      %p131 = scmp.ne.s32.totalorder %s119, %s120
      %p132 = scmp.eq.s32.totalorder %s26, 1
      %p133 = por %p131, %p132
      %p135 = scmp.ne.s32.totalorder %s120, %s134
      %p136 = scmp.eq.s32.totalorder %s26, 0
      %p137 = por %p135, %p136
      %s139 = sadd.s32 %s138, 1
      %p142 = scmp.eq.s32.totalorder %s20, 1
      %p143 = scmp.ne.s32.totalorder %s138, %s140
      %p144 = scmp.eq.s32.totalorder %s20, 0
      %p145 = por %p143, %p144
      %p146 = scmp.ne.s32.totalorder %s138, %s140
      %p147 = scmp.eq.s32.totalorder %s25, 1
      %p148 = por %p146, %p147
      %p149 = scmp.ne.s32.totalorder %s140, %s141
      %p150 = scmp.eq.s32.totalorder %s25, 0
      %p151 = por %p149, %p150
      %p152 = scmp.ne.s32.totalorder %s140, %s141
      %p153 = scmp.eq.s32.totalorder %s26, 1
      %p154 = por %p152, %p153
      %p156 = scmp.ne.s32.totalorder %s141, %s155
      %p157 = scmp.eq.s32.totalorder %s26, 0
      %p158 = por %p156, %p157
      %s160 = sadd.s32 %s159, 1
      %p163 = scmp.eq.s32.totalorder %s20, 1
      %p164 = scmp.ne.s32.totalorder %s159, %s161
      %p165 = scmp.eq.s32.totalorder %s20, 0
      %p166 = por %p164, %p165
      %p167 = scmp.ne.s32.totalorder %s159, %s161
      %p168 = scmp.eq.s32.totalorder %s25, 1
      %p169 = por %p167, %p168
      %p170 = scmp.ne.s32.totalorder %s161, %s162
      %p171 = scmp.eq.s32.totalorder %s25, 0
      %p172 = por %p170, %p171
      %p173 = scmp.ne.s32.totalorder %s161, %s162
      %p174 = scmp.eq.s32.totalorder %s26, 1
      %p175 = por %p173, %p174
      %p177 = scmp.ne.s32.totalorder %s162, %s176
      %p178 = scmp.eq.s32.totalorder %s26, 0
      %p179 = por %p177, %p178
      %s181 = sadd.s32 %s180, 1
      %p184 = scmp.eq.s32.totalorder %s20, 1
      %p185 = scmp.ne.s32.totalorder %s180, %s182
      %p186 = scmp.eq.s32.totalorder %s20, 0
      %p187 = por %p185, %p186
      %p188 = scmp.ne.s32.totalorder %s180, %s182
      %p189 = scmp.eq.s32.totalorder %s25, 1
      %p190 = por %p188, %p189
      %p191 = scmp.ne.s32.totalorder %s182, %s183
      %p192 = scmp.eq.s32.totalorder %s25, 0
      %p193 = por %p191, %p192
      %p194 = scmp.ne.s32.totalorder %s182, %s183
      %p195 = scmp.eq.s32.totalorder %s26, 1
      %p196 = por %p194, %p195
      %p198 = scmp.ne.s32.totalorder %s183, %s197
      %p199 = scmp.eq.s32.totalorder %s26, 0
      %p200 = por %p198, %p199
      %s202 = sadd.s32 %s201, 1
      %p205 = scmp.eq.s32.totalorder %s20, 1
      %p206 = scmp.ne.s32.totalorder %s201, %s203
      %p207 = scmp.eq.s32.totalorder %s20, 0
      %p208 = por %p206, %p207
      %p209 = scmp.ne.s32.totalorder %s201, %s203
      %p210 = scmp.eq.s32.totalorder %s25, 1
      %p211 = por %p209, %p210
      %p212 = scmp.ne.s32.totalorder %s203, %s204
      %p213 = scmp.eq.s32.totalorder %s25, 0
      %p214 = por %p212, %p213
      %p215 = scmp.ne.s32.totalorder %s203, %s204
      %p216 = scmp.eq.s32.totalorder %s26, 1
      %p217 = por %p215, %p216
      %p219 = scmp.ne.s32.totalorder %s204, %s218
      %p220 = scmp.eq.s32.totalorder %s26, 0
      %p221 = por %p219, %p220
      %s223 = sadd.s32 %s222, 1
      %p226 = scmp.eq.s32.totalorder %s20, 1
      %p227 = scmp.ne.s32.totalorder %s222, %s224
      %p228 = scmp.eq.s32.totalorder %s20, 0
      %p229 = por %p227, %p228
      %p230 = scmp.ne.s32.totalorder %s222, %s224
      %p231 = scmp.eq.s32.totalorder %s25, 1
      %p232 = por %p230, %p231
      %p233 = scmp.ne.s32.totalorder %s224, %s225
      %p234 = scmp.eq.s32.totalorder %s25, 0
      %p235 = por %p233, %p234
      %p236 = scmp.ne.s32.totalorder %s224, %s225
      %p237 = scmp.eq.s32.totalorder %s26, 1
      %p238 = por %p236, %p237
      %p240 = scmp.ne.s32.totalorder %s225, %s239
      %p241 = scmp.eq.s32.totalorder %s26, 0
      %p242 = por %p240, %p241
      %s244 = sadd.s32 %s243, 1
      %p247 = scmp.eq.s32.totalorder %s20, 1
      %p248 = scmp.ne.s32.totalorder %s243, %s245
      %p249 = scmp.eq.s32.totalorder %s20, 0
      %p250 = por %p248, %p249
      %p251 = scmp.ne.s32.totalorder %s243, %s245
      %p252 = scmp.eq.s32.totalorder %s25, 1
      %p253 = por %p251, %p252
      %p254 = scmp.ne.s32.totalorder %s245, %s246
      %p255 = scmp.eq.s32.totalorder %s25, 0
      %p256 = por %p254, %p255
      %p257 = scmp.ne.s32.totalorder %s245, %s246
      %p258 = scmp.eq.s32.totalorder %s26, 1
      %p259 = por %p257, %p258
      %p261 = scmp.ne.s32.totalorder %s246, %s260
      %p262 = scmp.eq.s32.totalorder %s26, 0
      %p263 = por %p261, %p262
      %s264 = ssub.s32 %s20, %s27
      %p265 = scmp.eq.s32.totalorder %s264, 0
      %s267 = sadd.s32 %s266, 1
      %s268 = scalar_select %p265, %s266, %s267
      %p271 = pneg %p265
      %p272 = scmp.eq.s32.totalorder %s20, 1
      %p273 = por %p271, %p272
      %p274 = scmp.ne.s32.totalorder %s266, %s269
      %p275 = scmp.eq.s32.totalorder %s20, 0
      %p276 = por %p274, %p275
      %p277 = scmp.ne.s32.totalorder %s266, %s269
      %p278 = scmp.eq.s32.totalorder %s25, 1
      %p279 = por %p277, %p278
      %p280 = scmp.ne.s32.totalorder %s269, %s270
      %p281 = scmp.eq.s32.totalorder %s25, 0
      %p282 = por %p280, %p281
      %p283 = scmp.ne.s32.totalorder %s269, %s270
      %p284 = scmp.eq.s32.totalorder %s26, 1
      %p285 = por %p283, %p284
      %p287 = scmp.ne.s32.totalorder %s270, %s286
      %p288 = scmp.eq.s32.totalorder %s26, 0
      %p289 = por %p287, %p288
      %p290 = scmp.le.s32.totalorder 1, %s20
      %p291 = scmp.lt.s32.totalorder %s20, 3
      %p292 = pnand %p290, %p291
      %p293 = pneg %p292
      // Predicated region
      $region9: #{spp_net_forward.1} parent=5 // pred_check
        _
      $region10: #{spp_net_forward.1} parent=5 // pred_check_branch
        %295 = sbr.rel (%p292) target = $region12
      $region11: #{spp_net_forward.1} parent=5 // pred_region
        %s296 = ssub.s32 %s20, 1
        // Predicated region
        $region13: #{spp_net_forward.1} parent=11 // pred_check
          %p297 = pneg %p67
        $region14: #{spp_net_forward.1} parent=11 // pred_check_branch
          %299 = sbr.rel (%p297) target = $region16
        $region15: #{spp_net_forward.1} parent=11 // pred_region
          _
        $region16: #{spp_net_forward.1} parent=11 // pred_fallthru
          _
        // Predicated region
        $region17: #{spp_net_forward.1} parent=11 // pred_check
          %p300 = pneg %p88
        $region18: #{spp_net_forward.1} parent=11 // pred_check_branch
          %302 = sbr.rel (%p300) target = $region20
        $region19: #{spp_net_forward.1} parent=11 // pred_region
          _
        $region20: #{spp_net_forward.1} parent=11 // pred_fallthru
          _
        // Predicated region
        $region21: #{spp_net_forward.1} parent=11 // pred_check
          %p303 = pneg %p109
        $region22: #{spp_net_forward.1} parent=11 // pred_check_branch
          %305 = sbr.rel (%p303) target = $region24
        $region23: #{spp_net_forward.1} parent=11 // pred_region
          _
        $region24: #{spp_net_forward.1} parent=11 // pred_fallthru
          _
        // Predicated region
        $region25: #{spp_net_forward.1} parent=11 // pred_check
          %p306 = pneg %p130
        $region26: #{spp_net_forward.1} parent=11 // pred_check_branch
          %308 = sbr.rel (%p306) target = $region28
        $region27: #{spp_net_forward.1} parent=11 // pred_region
          _
        $region28: #{spp_net_forward.1} parent=11 // pred_fallthru
          _
        // Predicated region
        $region29: #{spp_net_forward.1} parent=11 // pred_check
          %p309 = pneg %p151
        $region30: #{spp_net_forward.1} parent=11 // pred_check_branch
          %311 = sbr.rel (%p309) target = $region32
        $region31: #{spp_net_forward.1} parent=11 // pred_region
          _
        $region32: #{spp_net_forward.1} parent=11 // pred_fallthru
          _
        // Predicated region
        $region33: #{spp_net_forward.1} parent=11 // pred_check
          %p312 = pneg %p172
        $region34: #{spp_net_forward.1} parent=11 // pred_check_branch
          %314 = sbr.rel (%p312) target = $region36
        $region35: #{spp_net_forward.1} parent=11 // pred_region
          _
        $region36: #{spp_net_forward.1} parent=11 // pred_fallthru
          _
        // Predicated region
        $region37: #{spp_net_forward.1} parent=11 // pred_check
          %p315 = pneg %p193
        $region38: #{spp_net_forward.1} parent=11 // pred_check_branch
          %317 = sbr.rel (%p315) target = $region40
        $region39: #{spp_net_forward.1} parent=11 // pred_region
          _
        $region40: #{spp_net_forward.1} parent=11 // pred_fallthru
          _
        // Predicated region
        $region41: #{spp_net_forward.1} parent=11 // pred_check
          %p318 = pneg %p214
        $region42: #{spp_net_forward.1} parent=11 // pred_check_branch
          %320 = sbr.rel (%p318) target = $region44
        $region43: #{spp_net_forward.1} parent=11 // pred_region
          _
        $region44: #{spp_net_forward.1} parent=11 // pred_fallthru
          _
        // Predicated region
        $region45: #{spp_net_forward.1} parent=11 // pred_check
          %p321 = pneg %p235
        $region46: #{spp_net_forward.1} parent=11 // pred_check_branch
          %323 = sbr.rel (%p321) target = $region48
        $region47: #{spp_net_forward.1} parent=11 // pred_region
          _
        $region48: #{spp_net_forward.1} parent=11 // pred_fallthru
          _
        // Predicated region
        $region49: #{spp_net_forward.1} parent=11 // pred_check
          %p324 = pneg %p256
        $region50: #{spp_net_forward.1} parent=11 // pred_check_branch
          %326 = sbr.rel (%p324) target = $region52
        $region51: #{spp_net_forward.1} parent=11 // pred_region
          _
        $region52: #{spp_net_forward.1} parent=11 // pred_fallthru
          _
      $region12: #{spp_net_forward.1} parent=5 // pred_fallthru
        _
      %p327 = scmp.lt.s32.totalorder %s20, 2
      // Predicated region
      $region53: #{spp_net_forward.1} parent=5 // pred_check
        %p328 = pneg %p327
      $region54: #{spp_net_forward.1} parent=5 // pred_check_branch
        %330 = sbr.rel (%p328) target = $region56
      $region55: #{spp_net_forward.1} parent=5 // pred_region
        // Predicated region
        $region57: #{spp_net_forward.1} parent=55 // pred_check
          %p331 = pneg %p40
        $region58: #{spp_net_forward.1} parent=55 // pred_check_branch
          %333 = sbr.rel (%p331) target = $region60
        $region59: #{spp_net_forward.1} parent=55 // pred_region
          %p334 = scmp.lt.s32.totalorder %s20, 1
          %s335 = scalar_select %p334, %s20, 1
          %s336 = smul.addr %s335, 14
          %s337 = smul.addr %s336, 4
          %s338 = scalar_lea.vmem %s0, %s337
        $region60: #{spp_net_forward.1} parent=55 // pred_fallthru
          _
      $region56: #{spp_net_forward.1} parent=5 // pred_fallthru
        _
      %p339 = scmp.le.s32.totalorder 1, %s20
      %p340 = scmp.lt.s32.totalorder %s20, 3
      %p341 = pnand %p339, %p340
      %p342 = pneg %p341
      // Predicated region
      $region61: #{spp_net_forward.1} parent=5 // pred_check
        _
      $region62: #{spp_net_forward.1} parent=5 // pred_check_branch
        %344 = sbr.rel (%p341) target = $region64
      $region63: #{spp_net_forward.1} parent=5 // pred_region
        %s345 = ssub.s32 %s20, 1
        %p346 = scmp.lt.s32.totalorder %s25, 1
        %s347 = scalar_select %p346, %s25, 1
        %s348 = smul.addr %s347, 14
        %s349 = smul.addr %s348, 4
        %s350 = scalar_lea.vmem %s0, %s349
        %p351 = pneg %p46
        %p352 = pneg %p43
        %p353 = pneg %p67
        %p354 = pneg %p64
        %p355 = pneg %p88
        %p356 = pneg %p85
        %p357 = pneg %p109
        %p358 = pneg %p106
        %p359 = pneg %p130
        %p360 = pneg %p127
        %p361 = pneg %p151
        %p362 = pneg %p148
        %p363 = pneg %p172
        %p364 = pneg %p169
        %p365 = pneg %p193
        %p366 = pneg %p190
        %p367 = pneg %p214
        %p368 = pneg %p211
        %p369 = pneg %p235
        %p370 = pneg %p232
        %p371 = pneg %p256
        %p372 = pneg %p253
        %p373 = pneg %p282
        %p374 = pneg %p279
        %s375 = sand.u32 %s269, 1
        %s376 = scalar_lea.sflag [#allocation4], %s375
        %s377 = sand.u32 %s269, 1
        %s378 = scalar_lea.vmem [#allocation3], %s377
        %p379 = scmp.lt.s32.totalorder %s25, 1
        %s380 = scalar_select %p379, %s25, 1
        %s381 = smul.addr %s380, 14
        %s382 = smul.addr %s381, 4
        %s383 = scalar_lea.vmem %s0, %s382
        %v385 = vld [vmem:[%s383] sm:$0xf]
        %v386 = vld [vmem:[%s383 + $0x4] sm:$0xf]
        %v387 = vld [vmem:[%s383 + $0x8] sm:$0xf]
        %v388 = vld [vmem:[%s383 + $0xc] sm:$0xf]
        %v389 = vld [vmem:[%s383 + $0x10] sm:$0xf]
        %v390 = vld [vmem:[%s383 + $0x14] sm:$0xf]
        %v391 = vld [vmem:[%s383 + $0x18] sm:$0xf]
        %v392 = vld [vmem:[%s383 + $0x1c] sm:$0xf]
        %v393 = vld [vmem:[%s383 + $0x20] sm:$0xf]
        %v394 = vld [vmem:[%s383 + $0x24] sm:$0xf]
        %v395 = vld [vmem:[%s383 + $0x28] sm:$0xf]
        %v396 = vld [vmem:[%s383 + $0x2c] sm:$0xf]
        %v397 = vld [vmem:[%s383 + $0x30] sm:$0xf]
        %v398 = vld [vmem:[%s383 + $0x34] sm:$0xf]
        %v399 = vld [vmem:[%s1] sm:$0xf]
        %v400 = vld [vmem:[%s1 + $0x4] sm:$0xf]
        %v401 = vld [vmem:[%s1 + $0x8] sm:$0xf]
        %v402 = vld [vmem:[%s1 + $0xc] sm:$0xf]
        %v403 = vld [vmem:[%s1 + $0x10] sm:$0xf]
        %v404 = vld [vmem:[%s1 + $0x14] sm:$0xf]
        %v419 = vunpack.c.l.b16 %v385
        %v420 = vunpack.c.l.b16 %v386
        %v421 = vunpack.c.l.b16 %v387
        %v422 = vunpack.c.l.b16 %v388
        %v423 = vunpack.c.l.b16 %v389
        %v424 = vunpack.c.l.b16 %v390
        %v425 = vunpack.c.l.b16 %v391
        %v426 = vunpack.c.l.b16 %v392
        %v427 = vunpack.c.l.b16 %v393
        %v428 = vunpack.c.l.b16 %v394
        %v429 = vunpack.c.l.b16 %v395
        %v430 = vunpack.c.l.b16 %v396
        %v431 = vunpack.c.l.b16 %v397
        %v432 = vunpack.c.l.b16 %v398
        %v433 = vpack.c.b16 %v420, %v419
        %v434 = vpack.c.b16 %v422, %v421
        %v435 = vpack.c.b16 %v424, %v423
        %v436 = vpack.c.b16 %v426, %v425
        %v437 = vpack.c.b16 %v428, %v427
        %v438 = vpack.c.b16 %v430, %v429
        %v439 = vpack.c.b16 %v432, %v431
        %v446 = vunpack.c.l.b16 %v399
        %v447 = vunpack.c.l.b16 %v400
        %v448 = vunpack.c.l.b16 %v401
        %v449 = vunpack.c.l.b16 %v402
        %v450 = vunpack.c.l.b16 %v403
        %v451 = vunpack.c.l.b16 %v404
        %v452 = vpack.c.b16 %v447, %v446
        %v453 = vpack.c.b16 %v449, %v448
        %v454 = vpack.c.b16 %v451, %v450
        %vm458 = vcmask 392192
        %v460 = vsel %vm458, %v433, 0
        %v463 = vsel %vm458, %v434, 0
        %v466 = vsel %vm458, %v435, 0
        %v469 = vsel %vm458, %v436, 0
        %v472 = vsel %vm458, %v437, 0
        %v475 = vsel %vm458, %v438, 0
        %v478 = vsel %vm458, %v439, 0
        %480 = vmatprep.subr.bf16.mxu0 0
        %481 = vmatpush1.bf16.msra.mxu0 %v452
        %482 = vmatprep.subr.bf16.mxu0 0
        %483 = vmatpush1.bf16.msra.mxu0 %v453
        %484 = vmatprep.subr.bf16.mxu0 0
        %485 = vmatpush1.bf16.msra.mxu0 %v454
        %486 = vmatprep.subr.bf16.mxu0 0
        %487 = vmatpush1.bf16.msra.mxu0 0
        %488 = vmatprep.subr.bf16.mxu0 0
        %489 = vmatpush1.bf16.msra.mxu0 0
        %490 = vmatprep.subr.bf16.mxu0 0
        %491 = vmatpush1.bf16.msra.mxu0 0
        %492 = vmatprep.subr.bf16.mxu0 0
        %493 = vmatpush1.bf16.msra.mxu0 0
        %494 = vmatprep.subr.bf16.mxu0 0
        %495 = vmatpush1.bf16.msra.mxu0 0
        %496 = vmatprep.subr.bf16.mxu0 0
        %497 = vmatpush1.bf16.msra.mxu0 0
        %498 = vmatprep.subr.bf16.mxu0 0
        %499 = vmatpush1.bf16.msra.mxu0 0
        %500 = vmatprep.subr.bf16.mxu0 0
        %501 = vmatpush1.bf16.msra.mxu0 0
        %502 = vmatprep.subr.bf16.mxu0 0
        %503 = vmatpush1.bf16.msra.mxu0 0
        %504 = vmatprep.subr.bf16.mxu0 0
        %505 = vmatpush1.bf16.msra.mxu0 0
        %506 = vmatprep.subr.bf16.mxu0 0
        %507 = vmatpush1.bf16.msra.mxu0 0
        %508 = vmatprep.subr.bf16.mxu0 0
        %509 = vmatpush1.bf16.msra.mxu0 0
        %510 = vmatprep.subr.bf16.mxu0 0
        %511 = vmatpush1.bf16.msra.mxu0 0
        %512 = vmatprep.mubr.bf16.mxu0 0
        %513 = vmatmul.mubr.bf16.gmra.mrb[0].mxu0 %v460
        %v514 = vpop.f32.mrb[0].mxu0
        %v515 = vadd.f32 0.0, %v514
        %v516 = vpop.f32.mrb[0].mxu0
        %v517 = vpop.f32.mrb[0].mxu0
        %v518 = vadd.f32 0.0, %v517
        %v519 = vpop.f32.mrb[0].mxu0
        %520 = vmatprep.mubr.bf16.mxu0 0
        %521 = vmatmul.mubr.bf16.gmra.mrb[0].mxu0 %v463
        %v522 = vpop.f32.mrb[0].mxu0
        %v523 = vadd.f32 0.0, %v522
        %v524 = vpop.f32.mrb[0].mxu0
        %v525 = vpop.f32.mrb[0].mxu0
        %v526 = vadd.f32 0.0, %v525
        %v527 = vpop.f32.mrb[0].mxu0
        %528 = vmatprep.mubr.bf16.mxu0 0
        %529 = vmatmul.mubr.bf16.gmra.mrb[0].mxu0 %v466
        %v530 = vpop.f32.mrb[0].mxu0
        %v531 = vadd.f32 0.0, %v530
        %v532 = vpop.f32.mrb[0].mxu0
        %v533 = vpop.f32.mrb[0].mxu0
        %v534 = vadd.f32 0.0, %v533
        %v535 = vpop.f32.mrb[0].mxu0
        %536 = vmatprep.mubr.bf16.mxu0 0
        %537 = vmatmul.mubr.bf16.gmra.mrb[0].mxu0 %v469
        %v538 = vpop.f32.mrb[0].mxu0
        %v539 = vadd.f32 0.0, %v538
        %v540 = vpop.f32.mrb[0].mxu0
        %v541 = vpop.f32.mrb[0].mxu0
        %v542 = vadd.f32 0.0, %v541
        %v543 = vpop.f32.mrb[0].mxu0
        %544 = vmatprep.mubr.bf16.mxu0 0
        %545 = vmatmul.mubr.bf16.gmra.mrb[0].mxu0 %v472
        %v546 = vpop.f32.mrb[0].mxu0
        %v547 = vadd.f32 0.0, %v546
        %v548 = vpop.f32.mrb[0].mxu0
        %v549 = vpop.f32.mrb[0].mxu0
        %v550 = vadd.f32 0.0, %v549
        %v551 = vpop.f32.mrb[0].mxu0
        %552 = vmatprep.mubr.bf16.mxu0 0
        %553 = vmatmul.mubr.bf16.gmra.mrb[0].mxu0 %v475
        %v554 = vpop.f32.mrb[0].mxu0
        %v555 = vadd.f32 0.0, %v554
        %v556 = vpop.f32.mrb[0].mxu0
        %v557 = vpop.f32.mrb[0].mxu0
        %v558 = vadd.f32 0.0, %v557
        %v559 = vpop.f32.mrb[0].mxu0
        %560 = vmatprep.mubr.bf16.mxu0 0
        %561 = vmatmul.mubr.bf16.gmra.mrb[0].mxu0 %v478
        %v562 = vpop.f32.mrb[0].mxu0
        %v563 = vadd.f32 0.0, %v562
        %v564 = vpop.f32.mrb[0].mxu0
        %v565 = vpop.f32.mrb[0].mxu0
        %v566 = vadd.f32 0.0, %v565
        %v567 = vpop.f32.mrb[0].mxu0
        %568 = vdwg.mxu0
        %vm569 = vcmp.ge.f32.partialorder %v515, 0.0
        %vm570 = vcmp.ge.f32.partialorder %v518, 0.0
        %vm571 = vcmp.ge.f32.partialorder %v523, 0.0
        %vm572 = vcmp.ge.f32.partialorder %v526, 0.0
        %vm573 = vcmp.ge.f32.partialorder %v531, 0.0
        %vm574 = vcmp.ge.f32.partialorder %v534, 0.0
        %vm575 = vcmp.ge.f32.partialorder %v539, 0.0
        %vm576 = vcmp.ge.f32.partialorder %v542, 0.0
        %vm577 = vcmp.ge.f32.partialorder %v547, 0.0
        %vm578 = vcmp.ge.f32.partialorder %v550, 0.0
        %vm579 = vcmp.ge.f32.partialorder %v555, 0.0
        %vm580 = vcmp.ge.f32.partialorder %v558, 0.0
        %vm581 = vcmp.ge.f32.partialorder %v563, 0.0
        %vm582 = vcmp.ge.f32.partialorder %v566, 0.0
        %v583 = vmul.f32 %v515, 0.01
        %v584 = vmul.f32 %v518, 0.01
        %v585 = vmul.f32 %v523, 0.01
        %v586 = vmul.f32 %v526, 0.01
        %v587 = vmul.f32 %v531, 0.01
        %v588 = vmul.f32 %v534, 0.01
        %v589 = vmul.f32 %v539, 0.01
        %v590 = vmul.f32 %v542, 0.01
        %v591 = vmul.f32 %v547, 0.01
        %v592 = vmul.f32 %v550, 0.01
        %v593 = vmul.f32 %v555, 0.01
        %v594 = vmul.f32 %v558, 0.01
        %v595 = vmul.f32 %v563, 0.01
        %v596 = vmul.f32 %v566, 0.01
        %v597 = vsel %vm569, %v515, %v583
        %v598 = vsel %vm570, %v518, %v584
        %v599 = vsel %vm571, %v523, %v585
        %v600 = vsel %vm572, %v526, %v586
        %v601 = vsel %vm573, %v531, %v587
        %v602 = vsel %vm574, %v534, %v588
        %v603 = vsel %vm575, %v539, %v589
        %v604 = vsel %vm576, %v542, %v590
        %v605 = vsel %vm577, %v547, %v591
        %v606 = vsel %vm578, %v550, %v592
        %v607 = vsel %vm579, %v555, %v593
        %v608 = vsel %vm580, %v558, %v594
        %v609 = vsel %vm581, %v563, %v595
        %v610 = vsel %vm582, %v566, %v596
        %v611 = vpack.c.bf16 %v598, %v597
        %v612 = vpack.c.bf16 %v600, %v599
        %v613 = vpack.c.bf16 %v602, %v601
        %v614 = vpack.c.bf16 %v604, %v603
        %v615 = vpack.c.bf16 %v606, %v605
        %v616 = vpack.c.bf16 %v608, %v607
        %v617 = vpack.c.bf16 %v610, %v609
        %v618 = vld [vmem:[%s2] sm:$0xf]
        %v619 = vrot.slane %v597, 1
        %v620 = vrot.slane %v598, 1
        %v621 = vrot.slane %v599, 1
        %v622 = vrot.slane %v600, 1
        %v623 = vrot.slane %v601, 1
        %v624 = vrot.slane %v602, 1
        %v625 = vrot.slane %v603, 1
        %v626 = vrot.slane %v604, 1
        %v627 = vrot.slane %v605, 1
        %v628 = vrot.slane %v606, 1
        %v629 = vrot.slane %v607, 1
        %v630 = vrot.slane %v608, 1
        %v631 = vrot.slane %v609, 1
        %v632 = vrot.slane %v610, 1
        %v633 = vlaneseq
        %v634 = vshrl.u32 %v633, 7
        %vm635 = vcmp.lt.s32.totalorder %v634, 7
        %v636 = vsel %vm635, %v631, %v632
        %v637 = vsel %vm635, %v630, %v631
        %v638 = vsel %vm635, %v629, %v630
        %v639 = vsel %vm635, %v628, %v629
        %v640 = vsel %vm635, %v627, %v628
        %v641 = vsel %vm635, %v626, %v627
        %v642 = vsel %vm635, %v625, %v626
        %v643 = vsel %vm635, %v624, %v625
        %v644 = vsel %vm635, %v623, %v624
        %v645 = vsel %vm635, %v622, %v623
        %v646 = vsel %vm635, %v621, %v622
        %v647 = vsel %vm635, %v620, %v621
        %v648 = vsel %vm635, %v619, %v620
        %v649 = vsel %vm635, %v632, %v619
        %v650 = vpack.c.bf16 %v647, %v648
        %v651 = vpack.c.bf16 %v645, %v646
        %v652 = vpack.c.bf16 %v643, %v644
        %v653 = vpack.c.bf16 %v641, %v642
        %v654 = vpack.c.bf16 %v639, %v640
        %v655 = vpack.c.bf16 %v637, %v638
        %v656 = vpack.c.bf16 %v649, %v636
        %s657 = scalar_lea.vmem %s2, 4
        %v658 = vld [vmem:[%s657] sm:$0xf]
        %vm659 = vcmask 64512
        %v661 = vsel %vm659, %v650, 0
        %v664 = vsel %vm659, %v651, 0
        %v667 = vsel %vm659, %v652, 0
        %v670 = vsel %vm659, %v653, 0
        %v673 = vsel %vm659, %v654, 0
        %v676 = vsel %vm659, %v655, 0
        %v679 = vsel %vm659, %v656, 0
        %vm681 = vcmask 1043456
        %v683 = vsel %vm681, %v658, 0
        %685 = vmatprep.subr.bf16.mxu0 0
        %686 = vmatpush1.bf16.msra.mxu0 %v683
        %687 = vmatprep.subr.bf16.mxu0 0
        %688 = vmatpush1.bf16.msra.mxu0 0
        %689 = vmatprep.subr.bf16.mxu0 0
        %690 = vmatpush1.bf16.msra.mxu0 0
        %691 = vmatprep.subr.bf16.mxu0 0
        %692 = vmatpush1.bf16.msra.mxu0 0
        %693 = vmatprep.subr.bf16.mxu0 0
        %694 = vmatpush1.bf16.msra.mxu0 0
        %695 = vmatprep.subr.bf16.mxu0 0
        %696 = vmatpush1.bf16.msra.mxu0 0
        %697 = vmatprep.subr.bf16.mxu0 0
        %698 = vmatpush1.bf16.msra.mxu0 0
        %699 = vmatprep.subr.bf16.mxu0 0
        %700 = vmatpush1.bf16.msra.mxu0 0
        %701 = vmatprep.subr.bf16.mxu0 0
        %702 = vmatpush1.bf16.msra.mxu0 0
        %703 = vmatprep.subr.bf16.mxu0 0
        %704 = vmatpush1.bf16.msra.mxu0 0
        %705 = vmatprep.subr.bf16.mxu0 0
        %706 = vmatpush1.bf16.msra.mxu0 0
        %707 = vmatprep.subr.bf16.mxu0 0
        %708 = vmatpush1.bf16.msra.mxu0 0
        %709 = vmatprep.subr.bf16.mxu0 0
        %710 = vmatpush1.bf16.msra.mxu0 0
        %711 = vmatprep.subr.bf16.mxu0 0
        %712 = vmatpush1.bf16.msra.mxu0 0
        %713 = vmatprep.subr.bf16.mxu0 0
        %714 = vmatpush1.bf16.msra.mxu0 0
        %715 = vmatprep.subr.bf16.mxu0 0
        %716 = vmatpush1.bf16.msra.mxu0 0
        %717 = vmatprep.mubr.bf16.mxu0 0
        %718 = vmatmul.mubr.bf16.gmra.mrb[0].mxu0 %v661
        %v719 = vpop.f32.mrb[0].mxu0
        %v720 = vadd.f32 0.0, %v719
        %v721 = vpop.f32.mrb[0].mxu0
        %v722 = vpop.f32.mrb[0].mxu0
        %v723 = vadd.f32 0.0, %v722
        %v724 = vpop.f32.mrb[0].mxu0
        %725 = vmatprep.mubr.bf16.mxu0 0
        %726 = vmatmul.mubr.bf16.gmra.mrb[0].mxu0 %v664
        %v727 = vpop.f32.mrb[0].mxu0
        %v728 = vadd.f32 0.0, %v727
        %v729 = vpop.f32.mrb[0].mxu0
        %v730 = vpop.f32.mrb[0].mxu0
        %v731 = vadd.f32 0.0, %v730
        %v732 = vpop.f32.mrb[0].mxu0
        %733 = vmatprep.mubr.bf16.mxu0 0
        %734 = vmatmul.mubr.bf16.gmra.mrb[0].mxu0 %v667
        %v735 = vpop.f32.mrb[0].mxu0
        %v736 = vadd.f32 0.0, %v735
        %v737 = vpop.f32.mrb[0].mxu0
        %v738 = vpop.f32.mrb[0].mxu0
        %v739 = vadd.f32 0.0, %v738
        %v740 = vpop.f32.mrb[0].mxu0
        %741 = vmatprep.mubr.bf16.mxu0 0
        %742 = vmatmul.mubr.bf16.gmra.mrb[0].mxu0 %v670
        %v743 = vpop.f32.mrb[0].mxu0
        %v744 = vadd.f32 0.0, %v743
        %v745 = vpop.f32.mrb[0].mxu0
        %v746 = vpop.f32.mrb[0].mxu0
        %v747 = vadd.f32 0.0, %v746
        %v748 = vpop.f32.mrb[0].mxu0
        %749 = vmatprep.mubr.bf16.mxu0 0
        %750 = vmatmul.mubr.bf16.gmra.mrb[0].mxu0 %v673
        %v751 = vpop.f32.mrb[0].mxu0
        %v752 = vadd.f32 0.0, %v751
        %v753 = vpop.f32.mrb[0].mxu0
        %v754 = vpop.f32.mrb[0].mxu0
        %v755 = vadd.f32 0.0, %v754
        %v756 = vpop.f32.mrb[0].mxu0
        %757 = vmatprep.mubr.bf16.mxu0 0
        %758 = vmatmul.mubr.bf16.gmra.mrb[0].mxu0 %v676
        %v759 = vpop.f32.mrb[0].mxu0
        %v760 = vadd.f32 0.0, %v759
        %v761 = vpop.f32.mrb[0].mxu0
        %v762 = vpop.f32.mrb[0].mxu0
        %v763 = vadd.f32 0.0, %v762
        %v764 = vpop.f32.mrb[0].mxu0
        %765 = vmatprep.mubr.bf16.mxu0 0
        %766 = vmatmul.mubr.bf16.gmra.mrb[0].mxu0 %v679
        %v767 = vpop.f32.mrb[0].mxu0
        %v768 = vadd.f32 0.0, %v767
        %v769 = vpop.f32.mrb[0].mxu0
        %v770 = vpop.f32.mrb[0].mxu0
        %v771 = vadd.f32 0.0, %v770
        %v772 = vpop.f32.mrb[0].mxu0
        %773 = vdwg.mxu0
        %v775 = vsel %vm659, %v611, 0
        %v778 = vsel %vm659, %v612, 0
        %v781 = vsel %vm659, %v613, 0
        %v784 = vsel %vm659, %v614, 0
        %v787 = vsel %vm659, %v615, 0
        %v790 = vsel %vm659, %v616, 0
        %v793 = vsel %vm659, %v617, 0
        %v796 = vsel %vm681, %v618, 0
        %798 = vmatprep.subr.bf16.mxu0 0
        %799 = vmatpush1.bf16.msra.mxu0 %v796
        %800 = vmatprep.subr.bf16.mxu0 0
        %801 = vmatpush1.bf16.msra.mxu0 0
        %802 = vmatprep.subr.bf16.mxu0 0
        %803 = vmatpush1.bf16.msra.mxu0 0
        %804 = vmatprep.subr.bf16.mxu0 0
        %805 = vmatpush1.bf16.msra.mxu0 0
        %806 = vmatprep.subr.bf16.mxu0 0
        %807 = vmatpush1.bf16.msra.mxu0 0
        %808 = vmatprep.subr.bf16.mxu0 0
        %809 = vmatpush1.bf16.msra.mxu0 0
        %810 = vmatprep.subr.bf16.mxu0 0
        %811 = vmatpush1.bf16.msra.mxu0 0
        %812 = vmatprep.subr.bf16.mxu0 0
        %813 = vmatpush1.bf16.msra.mxu0 0
        %814 = vmatprep.subr.bf16.mxu0 0
        %815 = vmatpush1.bf16.msra.mxu0 0
        %816 = vmatprep.subr.bf16.mxu0 0
        %817 = vmatpush1.bf16.msra.mxu0 0
        %818 = vmatprep.subr.bf16.mxu0 0
        %819 = vmatpush1.bf16.msra.mxu0 0
        %820 = vmatprep.subr.bf16.mxu0 0
        %821 = vmatpush1.bf16.msra.mxu0 0
        %822 = vmatprep.subr.bf16.mxu0 0
        %823 = vmatpush1.bf16.msra.mxu0 0
        %824 = vmatprep.subr.bf16.mxu0 0
        %825 = vmatpush1.bf16.msra.mxu0 0
        %826 = vmatprep.subr.bf16.mxu0 0
        %827 = vmatpush1.bf16.msra.mxu0 0
        %828 = vmatprep.subr.bf16.mxu0 0
        %829 = vmatpush1.bf16.msra.mxu0 0
        %830 = vmatprep.mubr.bf16.mxu0 0
        %831 = vmatmul.mubr.bf16.gmra.mrb[0].mxu0 %v775
        %v832 = vpop.f32.mrb[0].mxu0
        %v833 = vadd.f32 %v720, %v832
        %v834 = vpop.f32.mrb[0].mxu0
        %v835 = vpop.f32.mrb[0].mxu0
        %v836 = vadd.f32 %v723, %v835
        %v837 = vpop.f32.mrb[0].mxu0
        %838 = vmatprep.mubr.bf16.mxu0 0
        %839 = vmatmul.mubr.bf16.gmra.mrb[0].mxu0 %v778
        %v840 = vpop.f32.mrb[0].mxu0
        %v841 = vadd.f32 %v728, %v840
        %v842 = vpop.f32.mrb[0].mxu0
        %v843 = vpop.f32.mrb[0].mxu0
        %v844 = vadd.f32 %v731, %v843
        %v845 = vpop.f32.mrb[0].mxu0
        %846 = vmatprep.mubr.bf16.mxu0 0
        %847 = vmatmul.mubr.bf16.gmra.mrb[0].mxu0 %v781
        %v848 = vpop.f32.mrb[0].mxu0
        %v849 = vadd.f32 %v736, %v848
        %v850 = vpop.f32.mrb[0].mxu0
        %v851 = vpop.f32.mrb[0].mxu0
        %v852 = vadd.f32 %v739, %v851
        %v853 = vpop.f32.mrb[0].mxu0
        %854 = vmatprep.mubr.bf16.mxu0 0
        %855 = vmatmul.mubr.bf16.gmra.mrb[0].mxu0 %v784
        %v856 = vpop.f32.mrb[0].mxu0
        %v857 = vadd.f32 %v744, %v856
        %v858 = vpop.f32.mrb[0].mxu0
        %v859 = vpop.f32.mrb[0].mxu0
        %v860 = vadd.f32 %v747, %v859
        %v861 = vpop.f32.mrb[0].mxu0
        %862 = vmatprep.mubr.bf16.mxu0 0
        %863 = vmatmul.mubr.bf16.gmra.mrb[0].mxu0 %v787
        %v864 = vpop.f32.mrb[0].mxu0
        %v865 = vadd.f32 %v752, %v864
        %v866 = vpop.f32.mrb[0].mxu0
        %v867 = vpop.f32.mrb[0].mxu0
        %v868 = vadd.f32 %v755, %v867
        %v869 = vpop.f32.mrb[0].mxu0
        %870 = vmatprep.mubr.bf16.mxu0 0
        %871 = vmatmul.mubr.bf16.gmra.mrb[0].mxu0 %v790
        %v872 = vpop.f32.mrb[0].mxu0
        %v873 = vadd.f32 %v760, %v872
        %v874 = vpop.f32.mrb[0].mxu0
        %v875 = vpop.f32.mrb[0].mxu0
        %v876 = vadd.f32 %v763, %v875
        %v877 = vpop.f32.mrb[0].mxu0
        %878 = vmatprep.mubr.bf16.mxu0 0
        %879 = vmatmul.mubr.bf16.gmra.mrb[0].mxu0 %v793
        %v880 = vpop.f32.mrb[0].mxu0
        %v881 = vadd.f32 %v768, %v880
        %v882 = vpop.f32.mrb[0].mxu0
        %v883 = vpop.f32.mrb[0].mxu0
        %v884 = vadd.f32 %v771, %v883
        %v885 = vpop.f32.mrb[0].mxu0
        %886 = vdwg.mxu0
        %v887 = vrot.slane %v597, 2
        %v888 = vrot.slane %v598, 2
        %v889 = vrot.slane %v599, 2
        %v890 = vrot.slane %v600, 2
        %v891 = vrot.slane %v601, 2
        %v892 = vrot.slane %v602, 2
        %v893 = vrot.slane %v603, 2
        %v894 = vrot.slane %v604, 2
        %v895 = vrot.slane %v605, 2
        %v896 = vrot.slane %v606, 2
        %v897 = vrot.slane %v607, 2
        %v898 = vrot.slane %v608, 2
        %v899 = vrot.slane %v609, 2
        %v900 = vrot.slane %v610, 2
        %vm901 = vcmp.lt.s32.totalorder %v634, 6
        %v902 = vsel %vm901, %v899, %v900
        %v903 = vsel %vm901, %v898, %v899
        %v904 = vsel %vm901, %v897, %v898
        %v905 = vsel %vm901, %v896, %v897
        %v906 = vsel %vm901, %v895, %v896
        %v907 = vsel %vm901, %v894, %v895
        %v908 = vsel %vm901, %v893, %v894
        %v909 = vsel %vm901, %v892, %v893
        %v910 = vsel %vm901, %v891, %v892
        %v911 = vsel %vm901, %v890, %v891
        %v912 = vsel %vm901, %v889, %v890
        %v913 = vsel %vm901, %v888, %v889
        %v914 = vsel %vm901, %v887, %v888
        %v915 = vsel %vm901, %v900, %v887
        %v916 = vpack.c.bf16 %v913, %v914
        %v917 = vpack.c.bf16 %v911, %v912
        %v918 = vpack.c.bf16 %v909, %v910
        %v919 = vpack.c.bf16 %v907, %v908
        %v920 = vpack.c.bf16 %v905, %v906
        %v921 = vpack.c.bf16 %v903, %v904
        %v922 = vpack.c.bf16 %v915, %v902
        %s923 = scalar_lea.vmem %s2, 8
        %v924 = vld [vmem:[%s923] sm:$0xf]
        %v926 = vsel %vm659, %v916, 0
        %v929 = vsel %vm659, %v917, 0
        %v932 = vsel %vm659, %v918, 0
        %v935 = vsel %vm659, %v919, 0
        %v938 = vsel %vm659, %v920, 0
        %v941 = vsel %vm659, %v921, 0
        %v944 = vsel %vm659, %v922, 0
        %v947 = vsel %vm681, %v924, 0
        %949 = vmatprep.subr.bf16.mxu0 0
        %950 = vmatpush1.bf16.msra.mxu0 %v947
        %951 = vmatprep.subr.bf16.mxu0 0
        %952 = vmatpush1.bf16.msra.mxu0 0
        %953 = vmatprep.subr.bf16.mxu0 0
        %954 = vmatpush1.bf16.msra.mxu0 0
        %955 = vmatprep.subr.bf16.mxu0 0
        %956 = vmatpush1.bf16.msra.mxu0 0
        %957 = vmatprep.subr.bf16.mxu0 0
        %958 = vmatpush1.bf16.msra.mxu0 0
        %959 = vmatprep.subr.bf16.mxu0 0
        %960 = vmatpush1.bf16.msra.mxu0 0
        %961 = vmatprep.subr.bf16.mxu0 0
        %962 = vmatpush1.bf16.msra.mxu0 0
        %963 = vmatprep.subr.bf16.mxu0 0
        %964 = vmatpush1.bf16.msra.mxu0 0
        %965 = vmatprep.subr.bf16.mxu0 0
        %966 = vmatpush1.bf16.msra.mxu0 0
        %967 = vmatprep.subr.bf16.mxu0 0
        %968 = vmatpush1.bf16.msra.mxu0 0
        %969 = vmatprep.subr.bf16.mxu0 0
        %970 = vmatpush1.bf16.msra.mxu0 0
        %971 = vmatprep.subr.bf16.mxu0 0
        %972 = vmatpush1.bf16.msra.mxu0 0
        %973 = vmatprep.subr.bf16.mxu0 0
        %974 = vmatpush1.bf16.msra.mxu0 0
        %975 = vmatprep.subr.bf16.mxu0 0
        %976 = vmatpush1.bf16.msra.mxu0 0
        %977 = vmatprep.subr.bf16.mxu0 0
        %978 = vmatpush1.bf16.msra.mxu0 0
        %979 = vmatprep.subr.bf16.mxu0 0
        %980 = vmatpush1.bf16.msra.mxu0 0
        %981 = vmatprep.mubr.bf16.mxu0 0
        %982 = vmatmul.mubr.bf16.gmra.mrb[0].mxu0 %v926
        %v983 = vpop.f32.mrb[0].mxu0
        %v984 = vadd.f32 0.0, %v983
        %v985 = vpop.f32.mrb[0].mxu0
        %v986 = vpop.f32.mrb[0].mxu0
        %v987 = vadd.f32 0.0, %v986
        %v988 = vpop.f32.mrb[0].mxu0
        %989 = vmatprep.mubr.bf16.mxu0 0
        %990 = vmatmul.mubr.bf16.gmra.mrb[0].mxu0 %v929
        %v991 = vpop.f32.mrb[0].mxu0
        %v992 = vadd.f32 0.0, %v991
        %v993 = vpop.f32.mrb[0].mxu0
        %v994 = vpop.f32.mrb[0].mxu0
        %v995 = vadd.f32 0.0, %v994
        %v996 = vpop.f32.mrb[0].mxu0
        %997 = vmatprep.mubr.bf16.mxu0 0
        %998 = vmatmul.mubr.bf16.gmra.mrb[0].mxu0 %v932
        %v999 = vpop.f32.mrb[0].mxu0
        %v1000 = vadd.f32 0.0, %v999
        %v1001 = vpop.f32.mrb[0].mxu0
        %v1002 = vpop.f32.mrb[0].mxu0
        %v1003 = vadd.f32 0.0, %v1002
        %v1004 = vpop.f32.mrb[0].mxu0
        %1005 = vmatprep.mubr.bf16.mxu0 0
        %1006 = vmatmul.mubr.bf16.gmra.mrb[0].mxu0 %v935
        %v1007 = vpop.f32.mrb[0].mxu0
        %v1008 = vadd.f32 0.0, %v1007
        %v1009 = vpop.f32.mrb[0].mxu0
        %v1010 = vpop.f32.mrb[0].mxu0
        %v1011 = vadd.f32 0.0, %v1010
        %v1012 = vpop.f32.mrb[0].mxu0
        %1013 = vmatprep.mubr.bf16.mxu0 0
        %1014 = vmatmul.mubr.bf16.gmra.mrb[0].mxu0 %v938
        %v1015 = vpop.f32.mrb[0].mxu0
        %v1016 = vadd.f32 0.0, %v1015
        %v1017 = vpop.f32.mrb[0].mxu0
        %v1018 = vpop.f32.mrb[0].mxu0
        %v1019 = vadd.f32 0.0, %v1018
        %v1020 = vpop.f32.mrb[0].mxu0
        %1021 = vmatprep.mubr.bf16.mxu0 0
        %1022 = vmatmul.mubr.bf16.gmra.mrb[0].mxu0 %v941
        %v1023 = vpop.f32.mrb[0].mxu0
        %v1024 = vadd.f32 0.0, %v1023
        %v1025 = vpop.f32.mrb[0].mxu0
        %v1026 = vpop.f32.mrb[0].mxu0
        %v1027 = vadd.f32 0.0, %v1026
        %v1028 = vpop.f32.mrb[0].mxu0
        %1029 = vmatprep.mubr.bf16.mxu0 0
        %1030 = vmatmul.mubr.bf16.gmra.mrb[0].mxu0 %v944
        %v1031 = vpop.f32.mrb[0].mxu0
        %v1032 = vadd.f32 0.0, %v1031
        %v1033 = vpop.f32.mrb[0].mxu0
        %v1034 = vpop.f32.mrb[0].mxu0
        %v1035 = vadd.f32 0.0, %v1034
        %v1036 = vpop.f32.mrb[0].mxu0
        %1037 = vdwg.mxu0
        %v1038 = vadd.f32 %v833, %v984
        %v1039 = vadd.f32 %v836, %v987
        %v1040 = vadd.f32 %v841, %v992
        %v1041 = vadd.f32 %v844, %v995
        %v1042 = vadd.f32 %v849, %v1000
        %v1043 = vadd.f32 %v852, %v1003
        %v1044 = vadd.f32 %v857, %v1008
        %v1045 = vadd.f32 %v860, %v1011
        %v1046 = vadd.f32 %v865, %v1016
        %v1047 = vadd.f32 %v868, %v1019
        %v1048 = vadd.f32 %v873, %v1024
        %v1049 = vadd.f32 %v876, %v1027
        %v1050 = vadd.f32 %v881, %v1032
        %v1051 = vadd.f32 %v884, %v1035
        %v1052 = vrot.slane %v597, 3
        %v1053 = vrot.slane %v598, 3
        %v1054 = vrot.slane %v599, 3
        %v1055 = vrot.slane %v600, 3
        %v1056 = vrot.slane %v601, 3
        %v1057 = vrot.slane %v602, 3
        %v1058 = vrot.slane %v603, 3
        %v1059 = vrot.slane %v604, 3
        %v1060 = vrot.slane %v605, 3
        %v1061 = vrot.slane %v606, 3
        %v1062 = vrot.slane %v607, 3
        %v1063 = vrot.slane %v608, 3
        %v1064 = vrot.slane %v609, 3
        %v1065 = vrot.slane %v610, 3
        %vm1066 = vcmp.lt.s32.totalorder %v634, 5
        %v1067 = vsel %vm1066, %v1064, %v1065
        %v1068 = vsel %vm1066, %v1063, %v1064
        %v1069 = vsel %vm1066, %v1062, %v1063
        %v1070 = vsel %vm1066, %v1061, %v1062
        %v1071 = vsel %vm1066, %v1060, %v1061
        %v1072 = vsel %vm1066, %v1059, %v1060
        %v1073 = vsel %vm1066, %v1058, %v1059
        %v1074 = vsel %vm1066, %v1057, %v1058
        %v1075 = vsel %vm1066, %v1056, %v1057
        %v1076 = vsel %vm1066, %v1055, %v1056
        %v1077 = vsel %vm1066, %v1054, %v1055
        %v1078 = vsel %vm1066, %v1053, %v1054
        %v1079 = vsel %vm1066, %v1052, %v1053
        %v1080 = vsel %vm1066, %v1065, %v1052
        %v1081 = vpack.c.bf16 %v1078, %v1079
        %v1082 = vpack.c.bf16 %v1076, %v1077
        %v1083 = vpack.c.bf16 %v1074, %v1075
        %v1084 = vpack.c.bf16 %v1072, %v1073
        %v1085 = vpack.c.bf16 %v1070, %v1071
        %v1086 = vpack.c.bf16 %v1068, %v1069
        %v1087 = vpack.c.bf16 %v1080, %v1067
        %s1088 = scalar_lea.vmem %s2, 12
        %v1089 = vld [vmem:[%s1088] sm:$0xf]
        %v1091 = vsel %vm659, %v1081, 0
        %v1094 = vsel %vm659, %v1082, 0
        %v1097 = vsel %vm659, %v1083, 0
        %v1100 = vsel %vm659, %v1084, 0
        %v1103 = vsel %vm659, %v1085, 0
        %v1106 = vsel %vm659, %v1086, 0
        %v1109 = vsel %vm659, %v1087, 0
        %v1112 = vsel %vm681, %v1089, 0
        %1114 = vmatprep.subr.bf16.mxu0 0
        %1115 = vmatpush1.bf16.msra.mxu0 %v1112
        %1116 = vmatprep.subr.bf16.mxu0 0
        %1117 = vmatpush1.bf16.msra.mxu0 0
        %1118 = vmatprep.subr.bf16.mxu0 0
        %1119 = vmatpush1.bf16.msra.mxu0 0
        %1120 = vmatprep.subr.bf16.mxu0 0
        %1121 = vmatpush1.bf16.msra.mxu0 0
        %1122 = vmatprep.subr.bf16.mxu0 0
        %1123 = vmatpush1.bf16.msra.mxu0 0
        %1124 = vmatprep.subr.bf16.mxu0 0
        %1125 = vmatpush1.bf16.msra.mxu0 0
        %1126 = vmatprep.subr.bf16.mxu0 0
        %1127 = vmatpush1.bf16.msra.mxu0 0
        %1128 = vmatprep.subr.bf16.mxu0 0
        %1129 = vmatpush1.bf16.msra.mxu0 0
        %1130 = vmatprep.subr.bf16.mxu0 0
        %1131 = vmatpush1.bf16.msra.mxu0 0
        %1132 = vmatprep.subr.bf16.mxu0 0
        %1133 = vmatpush1.bf16.msra.mxu0 0
        %1134 = vmatprep.subr.bf16.mxu0 0
        %1135 = vmatpush1.bf16.msra.mxu0 0
        %1136 = vmatprep.subr.bf16.mxu0 0
        %1137 = vmatpush1.bf16.msra.mxu0 0
        %1138 = vmatprep.subr.bf16.mxu0 0
        %1139 = vmatpush1.bf16.msra.mxu0 0
        %1140 = vmatprep.subr.bf16.mxu0 0
        %1141 = vmatpush1.bf16.msra.mxu0 0
        %1142 = vmatprep.subr.bf16.mxu0 0
        %1143 = vmatpush1.bf16.msra.mxu0 0
        %1144 = vmatprep.subr.bf16.mxu0 0
        %1145 = vmatpush1.bf16.msra.mxu0 0
        %1146 = vmatprep.mubr.bf16.mxu0 0
        %1147 = vmatmul.mubr.bf16.gmra.mrb[0].mxu0 %v1091
        %v1148 = vpop.f32.mrb[0].mxu0
        %v1149 = vadd.f32 0.0, %v1148
        %v1150 = vpop.f32.mrb[0].mxu0
        %v1151 = vpop.f32.mrb[0].mxu0
        %v1152 = vadd.f32 0.0, %v1151
        %v1153 = vpop.f32.mrb[0].mxu0
        %1154 = vmatprep.mubr.bf16.mxu0 0
        %1155 = vmatmul.mubr.bf16.gmra.mrb[0].mxu0 %v1094
        %v1156 = vpop.f32.mrb[0].mxu0
        %v1157 = vadd.f32 0.0, %v1156
        %v1158 = vpop.f32.mrb[0].mxu0
        %v1159 = vpop.f32.mrb[0].mxu0
        %v1160 = vadd.f32 0.0, %v1159
        %v1161 = vpop.f32.mrb[0].mxu0
        %1162 = vmatprep.mubr.bf16.mxu0 0
        %1163 = vmatmul.mubr.bf16.gmra.mrb[0].mxu0 %v1097
        %v1164 = vpop.f32.mrb[0].mxu0
        %v1165 = vadd.f32 0.0, %v1164
        %v1166 = vpop.f32.mrb[0].mxu0
        %v1167 = vpop.f32.mrb[0].mxu0
        %v1168 = vadd.f32 0.0, %v1167
        %v1169 = vpop.f32.mrb[0].mxu0
        %1170 = vmatprep.mubr.bf16.mxu0 0
        %1171 = vmatmul.mubr.bf16.gmra.mrb[0].mxu0 %v1100
        %v1172 = vpop.f32.mrb[0].mxu0
        %v1173 = vadd.f32 0.0, %v1172
        %v1174 = vpop.f32.mrb[0].mxu0
        %v1175 = vpop.f32.mrb[0].mxu0
        %v1176 = vadd.f32 0.0, %v1175
        %v1177 = vpop.f32.mrb[0].mxu0
        %1178 = vmatprep.mubr.bf16.mxu0 0
        %1179 = vmatmul.mubr.bf16.gmra.mrb[0].mxu0 %v1103
        %v1180 = vpop.f32.mrb[0].mxu0
        %v1181 = vadd.f32 0.0, %v1180
        %v1182 = vpop.f32.mrb[0].mxu0
        %v1183 = vpop.f32.mrb[0].mxu0
        %v1184 = vadd.f32 0.0, %v1183
        %v1185 = vpop.f32.mrb[0].mxu0
        %1186 = vmatprep.mubr.bf16.mxu0 0
        %1187 = vmatmul.mubr.bf16.gmra.mrb[0].mxu0 %v1106
        %v1188 = vpop.f32.mrb[0].mxu0
        %v1189 = vadd.f32 0.0, %v1188
        %v1190 = vpop.f32.mrb[0].mxu0
        %v1191 = vpop.f32.mrb[0].mxu0
        %v1192 = vadd.f32 0.0, %v1191
        %v1193 = vpop.f32.mrb[0].mxu0
        %1194 = vmatprep.mubr.bf16.mxu0 0
        %1195 = vmatmul.mubr.bf16.gmra.mrb[0].mxu0 %v1109
        %v1196 = vpop.f32.mrb[0].mxu0
        %v1197 = vadd.f32 0.0, %v1196
        %v1198 = vpop.f32.mrb[0].mxu0
        %v1199 = vpop.f32.mrb[0].mxu0
        %v1200 = vadd.f32 0.0, %v1199
        %v1201 = vpop.f32.mrb[0].mxu0
        %1202 = vdwg.mxu0
        %v1203 = vadd.f32 %v1038, %v1149
        %v1204 = vadd.f32 %v1039, %v1152
        %v1205 = vadd.f32 %v1040, %v1157
        %v1206 = vadd.f32 %v1041, %v1160
        %v1207 = vadd.f32 %v1042, %v1165
        %v1208 = vadd.f32 %v1043, %v1168
        %v1209 = vadd.f32 %v1044, %v1173
        %v1210 = vadd.f32 %v1045, %v1176
        %v1211 = vadd.f32 %v1046, %v1181
        %v1212 = vadd.f32 %v1047, %v1184
        %v1213 = vadd.f32 %v1048, %v1189
        %v1214 = vadd.f32 %v1049, %v1192
        %v1215 = vadd.f32 %v1050, %v1197
        %v1216 = vadd.f32 %v1051, %v1200
        %v1217 = vpack.c.bf16 %v912, %v913
        %v1218 = vpack.c.bf16 %v910, %v911
        %v1219 = vpack.c.bf16 %v908, %v909
        %v1220 = vpack.c.bf16 %v906, %v907
        %v1221 = vpack.c.bf16 %v904, %v905
        %v1222 = vpack.c.bf16 %v902, %v903
        %v1223 = vpack.c.bf16 %v914, %v915
        %s1224 = scalar_lea.vmem %s2, 16
        %v1225 = vld [vmem:[%s1224] sm:$0xf]
        %v1227 = vsel %vm659, %v1217, 0
        %v1230 = vsel %vm659, %v1218, 0
        %v1233 = vsel %vm659, %v1219, 0
        %v1236 = vsel %vm659, %v1220, 0
        %v1239 = vsel %vm659, %v1221, 0
        %v1242 = vsel %vm659, %v1222, 0
        %v1245 = vsel %vm659, %v1223, 0
        %v1248 = vsel %vm681, %v1225, 0
        %1250 = vmatprep.subr.bf16.mxu0 0
        %1251 = vmatpush1.bf16.msra.mxu0 %v1248
        %1252 = vmatprep.subr.bf16.mxu0 0
        %1253 = vmatpush1.bf16.msra.mxu0 0
        %1254 = vmatprep.subr.bf16.mxu0 0
        %1255 = vmatpush1.bf16.msra.mxu0 0
        %1256 = vmatprep.subr.bf16.mxu0 0
        %1257 = vmatpush1.bf16.msra.mxu0 0
        %1258 = vmatprep.subr.bf16.mxu0 0
        %1259 = vmatpush1.bf16.msra.mxu0 0
        %1260 = vmatprep.subr.bf16.mxu0 0
        %1261 = vmatpush1.bf16.msra.mxu0 0
        %1262 = vmatprep.subr.bf16.mxu0 0
        %1263 = vmatpush1.bf16.msra.mxu0 0
        %1264 = vmatprep.subr.bf16.mxu0 0
        %1265 = vmatpush1.bf16.msra.mxu0 0
        %1266 = vmatprep.subr.bf16.mxu0 0
        %1267 = vmatpush1.bf16.msra.mxu0 0
        %1268 = vmatprep.subr.bf16.mxu0 0
        %1269 = vmatpush1.bf16.msra.mxu0 0
        %1270 = vmatprep.subr.bf16.mxu0 0
        %1271 = vmatpush1.bf16.msra.mxu0 0
        %1272 = vmatprep.subr.bf16.mxu0 0
        %1273 = vmatpush1.bf16.msra.mxu0 0
        %1274 = vmatprep.subr.bf16.mxu0 0
        %1275 = vmatpush1.bf16.msra.mxu0 0
        %1276 = vmatprep.subr.bf16.mxu0 0
        %1277 = vmatpush1.bf16.msra.mxu0 0
        %1278 = vmatprep.subr.bf16.mxu0 0
        %1279 = vmatpush1.bf16.msra.mxu0 0
        %1280 = vmatprep.subr.bf16.mxu0 0
        %1281 = vmatpush1.bf16.msra.mxu0 0
        %1282 = vmatprep.mubr.bf16.mxu0 0
        %1283 = vmatmul.mubr.bf16.gmra.mrb[0].mxu0 %v1227
        %v1284 = vpop.f32.mrb[0].mxu0
        %v1285 = vadd.f32 0.0, %v1284
        %v1286 = vpop.f32.mrb[0].mxu0
        %v1287 = vpop.f32.mrb[0].mxu0
        %v1288 = vadd.f32 0.0, %v1287
        %v1289 = vpop.f32.mrb[0].mxu0
        %1290 = vmatprep.mubr.bf16.mxu0 0
        %1291 = vmatmul.mubr.bf16.gmra.mrb[0].mxu0 %v1230
        %v1292 = vpop.f32.mrb[0].mxu0
        %v1293 = vadd.f32 0.0, %v1292
        %v1294 = vpop.f32.mrb[0].mxu0
        %v1295 = vpop.f32.mrb[0].mxu0
        %v1296 = vadd.f32 0.0, %v1295
        %v1297 = vpop.f32.mrb[0].mxu0
        %1298 = vmatprep.mubr.bf16.mxu0 0
        %1299 = vmatmul.mubr.bf16.gmra.mrb[0].mxu0 %v1233
        %v1300 = vpop.f32.mrb[0].mxu0
        %v1301 = vadd.f32 0.0, %v1300
        %v1302 = vpop.f32.mrb[0].mxu0
        %v1303 = vpop.f32.mrb[0].mxu0
        %v1304 = vadd.f32 0.0, %v1303
        %v1305 = vpop.f32.mrb[0].mxu0
        %1306 = vmatprep.mubr.bf16.mxu0 0
        %1307 = vmatmul.mubr.bf16.gmra.mrb[0].mxu0 %v1236
        %v1308 = vpop.f32.mrb[0].mxu0
        %v1309 = vadd.f32 0.0, %v1308
        %v1310 = vpop.f32.mrb[0].mxu0
        %v1311 = vpop.f32.mrb[0].mxu0
        %v1312 = vadd.f32 0.0, %v1311
        %v1313 = vpop.f32.mrb[0].mxu0
        %1314 = vmatprep.mubr.bf16.mxu0 0
        %1315 = vmatmul.mubr.bf16.gmra.mrb[0].mxu0 %v1239
        %v1316 = vpop.f32.mrb[0].mxu0
        %v1317 = vadd.f32 0.0, %v1316
        %v1318 = vpop.f32.mrb[0].mxu0
        %v1319 = vpop.f32.mrb[0].mxu0
        %v1320 = vadd.f32 0.0, %v1319
        %v1321 = vpop.f32.mrb[0].mxu0
        %1322 = vmatprep.mubr.bf16.mxu0 0
        %1323 = vmatmul.mubr.bf16.gmra.mrb[0].mxu0 %v1242
        %v1324 = vpop.f32.mrb[0].mxu0
        %v1325 = vadd.f32 0.0, %v1324
        %v1326 = vpop.f32.mrb[0].mxu0
        %v1327 = vpop.f32.mrb[0].mxu0
        %v1328 = vadd.f32 0.0, %v1327
        %v1329 = vpop.f32.mrb[0].mxu0
        %1330 = vmatprep.mubr.bf16.mxu0 0
        %1331 = vmatmul.mubr.bf16.gmra.mrb[0].mxu0 %v1245
        %v1332 = vpop.f32.mrb[0].mxu0
        %v1333 = vadd.f32 0.0, %v1332
        %v1334 = vpop.f32.mrb[0].mxu0
        %v1335 = vpop.f32.mrb[0].mxu0
        %v1336 = vadd.f32 0.0, %v1335
        %v1337 = vpop.f32.mrb[0].mxu0
        %1338 = vdwg.mxu0
        %v1339 = vadd.f32 %v1203, %v1285
        %v1340 = vadd.f32 %v1204, %v1288
        %v1341 = vadd.f32 %v1205, %v1293
        %v1342 = vadd.f32 %v1206, %v1296
        %v1343 = vadd.f32 %v1207, %v1301
        %v1344 = vadd.f32 %v1208, %v1304
        %v1345 = vadd.f32 %v1209, %v1309
        %v1346 = vadd.f32 %v1210, %v1312
        %v1347 = vadd.f32 %v1211, %v1317
        %v1348 = vadd.f32 %v1212, %v1320
        %v1349 = vadd.f32 %v1213, %v1325
        %v1350 = vadd.f32 %v1214, %v1328
        %v1351 = vadd.f32 %v1215, %v1333
        %v1352 = vadd.f32 %v1216, %v1336
        %v1353 = vpack.c.bf16 %v1077, %v1078
        %v1354 = vpack.c.bf16 %v1075, %v1076
        %v1355 = vpack.c.bf16 %v1073, %v1074
        %v1356 = vpack.c.bf16 %v1071, %v1072
        %v1357 = vpack.c.bf16 %v1069, %v1070
        %v1358 = vpack.c.bf16 %v1067, %v1068
        %v1359 = vpack.c.bf16 %v1079, %v1080
        %s1360 = scalar_lea.vmem %s2, 20
        %v1361 = vld [vmem:[%s1360] sm:$0xf]
        %v1363 = vsel %vm659, %v1353, 0
        %v1366 = vsel %vm659, %v1354, 0
        %v1369 = vsel %vm659, %v1355, 0
        %v1372 = vsel %vm659, %v1356, 0
        %v1375 = vsel %vm659, %v1357, 0
        %v1378 = vsel %vm659, %v1358, 0
        %v1381 = vsel %vm659, %v1359, 0
        %v1384 = vsel %vm681, %v1361, 0
        %1386 = vmatprep.subr.bf16.mxu0 0
        %1387 = vmatpush1.bf16.msra.mxu0 %v1384
        %1388 = vmatprep.subr.bf16.mxu0 0
        %1389 = vmatpush1.bf16.msra.mxu0 0
        %1390 = vmatprep.subr.bf16.mxu0 0
        %1391 = vmatpush1.bf16.msra.mxu0 0
        %1392 = vmatprep.subr.bf16.mxu0 0
        %1393 = vmatpush1.bf16.msra.mxu0 0
        %1394 = vmatprep.subr.bf16.mxu0 0
        %1395 = vmatpush1.bf16.msra.mxu0 0
        %1396 = vmatprep.subr.bf16.mxu0 0
        %1397 = vmatpush1.bf16.msra.mxu0 0
        %1398 = vmatprep.subr.bf16.mxu0 0
        %1399 = vmatpush1.bf16.msra.mxu0 0
        %1400 = vmatprep.subr.bf16.mxu0 0
        %1401 = vmatpush1.bf16.msra.mxu0 0
        %1402 = vmatprep.subr.bf16.mxu0 0
        %1403 = vmatpush1.bf16.msra.mxu0 0
        %1404 = vmatprep.subr.bf16.mxu0 0
        %1405 = vmatpush1.bf16.msra.mxu0 0
        %1406 = vmatprep.subr.bf16.mxu0 0
        %1407 = vmatpush1.bf16.msra.mxu0 0
        %1408 = vmatprep.subr.bf16.mxu0 0
        %1409 = vmatpush1.bf16.msra.mxu0 0
        %1410 = vmatprep.subr.bf16.mxu0 0
        %1411 = vmatpush1.bf16.msra.mxu0 0
        %1412 = vmatprep.subr.bf16.mxu0 0
        %1413 = vmatpush1.bf16.msra.mxu0 0
        %1414 = vmatprep.subr.bf16.mxu0 0
        %1415 = vmatpush1.bf16.msra.mxu0 0
        %1416 = vmatprep.subr.bf16.mxu0 0
        %1417 = vmatpush1.bf16.msra.mxu0 0
        %1418 = vmatprep.mubr.bf16.mxu0 0
        %1419 = vmatmul.mubr.bf16.gmra.mrb[0].mxu0 %v1363
        %v1420 = vpop.f32.mrb[0].mxu0
        %v1421 = vadd.f32 0.0, %v1420
        %v1422 = vpop.f32.mrb[0].mxu0
        %v1423 = vpop.f32.mrb[0].mxu0
        %v1424 = vadd.f32 0.0, %v1423
        %v1425 = vpop.f32.mrb[0].mxu0
        %1426 = vmatprep.mubr.bf16.mxu0 0
        %1427 = vmatmul.mubr.bf16.gmra.mrb[0].mxu0 %v1366
        %v1428 = vpop.f32.mrb[0].mxu0
        %v1429 = vadd.f32 0.0, %v1428
        %v1430 = vpop.f32.mrb[0].mxu0
        %v1431 = vpop.f32.mrb[0].mxu0
        %v1432 = vadd.f32 0.0, %v1431
        %v1433 = vpop.f32.mrb[0].mxu0
        %1434 = vmatprep.mubr.bf16.mxu0 0
        %1435 = vmatmul.mubr.bf16.gmra.mrb[0].mxu0 %v1369
        %v1436 = vpop.f32.mrb[0].mxu0
        %v1437 = vadd.f32 0.0, %v1436
        %v1438 = vpop.f32.mrb[0].mxu0
        %v1439 = vpop.f32.mrb[0].mxu0
        %v1440 = vadd.f32 0.0, %v1439
        %v1441 = vpop.f32.mrb[0].mxu0
        %1442 = vmatprep.mubr.bf16.mxu0 0
        %1443 = vmatmul.mubr.bf16.gmra.mrb[0].mxu0 %v1372
        %v1444 = vpop.f32.mrb[0].mxu0
        %v1445 = vadd.f32 0.0, %v1444
        %v1446 = vpop.f32.mrb[0].mxu0
        %v1447 = vpop.f32.mrb[0].mxu0
        %v1448 = vadd.f32 0.0, %v1447
        %v1449 = vpop.f32.mrb[0].mxu0
        %1450 = vmatprep.mubr.bf16.mxu0 0
        %1451 = vmatmul.mubr.bf16.gmra.mrb[0].mxu0 %v1375
        %v1452 = vpop.f32.mrb[0].mxu0
        %v1453 = vadd.f32 0.0, %v1452
        %v1454 = vpop.f32.mrb[0].mxu0
        %v1455 = vpop.f32.mrb[0].mxu0
        %v1456 = vadd.f32 0.0, %v1455
        %v1457 = vpop.f32.mrb[0].mxu0
        %1458 = vmatprep.mubr.bf16.mxu0 0
        %1459 = vmatmul.mubr.bf16.gmra.mrb[0].mxu0 %v1378
        %v1460 = vpop.f32.mrb[0].mxu0
        %v1461 = vadd.f32 0.0, %v1460
        %v1462 = vpop.f32.mrb[0].mxu0
        %v1463 = vpop.f32.mrb[0].mxu0
        %v1464 = vadd.f32 0.0, %v1463
        %v1465 = vpop.f32.mrb[0].mxu0
        %1466 = vmatprep.mubr.bf16.mxu0 0
        %1467 = vmatmul.mubr.bf16.gmra.mrb[0].mxu0 %v1381
        %v1468 = vpop.f32.mrb[0].mxu0
        %v1469 = vadd.f32 0.0, %v1468
        %v1470 = vpop.f32.mrb[0].mxu0
        %v1471 = vpop.f32.mrb[0].mxu0
        %v1472 = vadd.f32 0.0, %v1471
        %v1473 = vpop.f32.mrb[0].mxu0
        %1474 = vdwg.mxu0
        %v1475 = vadd.f32 %v1339, %v1421
        %v1476 = vadd.f32 %v1340, %v1424
        %v1477 = vadd.f32 %v1341, %v1429
        %v1478 = vadd.f32 %v1342, %v1432
        %v1479 = vadd.f32 %v1343, %v1437
        %v1480 = vadd.f32 %v1344, %v1440
        %v1481 = vadd.f32 %v1345, %v1445
        %v1482 = vadd.f32 %v1346, %v1448
        %v1483 = vadd.f32 %v1347, %v1453
        %v1484 = vadd.f32 %v1348, %v1456
        %v1485 = vadd.f32 %v1349, %v1461
        %v1486 = vadd.f32 %v1350, %v1464
        %v1487 = vadd.f32 %v1351, %v1469
        %v1488 = vadd.f32 %v1352, %v1472
        %v1489 = vrot.slane %v597, 4
        %v1490 = vrot.slane %v598, 4
        %v1491 = vrot.slane %v599, 4
        %v1492 = vrot.slane %v600, 4
        %v1493 = vrot.slane %v601, 4
        %v1494 = vrot.slane %v602, 4
        %v1495 = vrot.slane %v603, 4
        %v1496 = vrot.slane %v604, 4
        %v1497 = vrot.slane %v605, 4
        %v1498 = vrot.slane %v606, 4
        %v1499 = vrot.slane %v607, 4
        %v1500 = vrot.slane %v608, 4
        %v1501 = vrot.slane %v609, 4
        %v1502 = vrot.slane %v610, 4
        %vm1503 = vcmp.lt.s32.totalorder %v634, 4
        %v1504 = vsel %vm1503, %v1501, %v1502
        %v1505 = vsel %vm1503, %v1500, %v1501
        %v1506 = vsel %vm1503, %v1499, %v1500
        %v1507 = vsel %vm1503, %v1498, %v1499
        %v1508 = vsel %vm1503, %v1497, %v1498
        %v1509 = vsel %vm1503, %v1496, %v1497
        %v1510 = vsel %vm1503, %v1495, %v1496
        %v1511 = vsel %vm1503, %v1494, %v1495
        %v1512 = vsel %vm1503, %v1493, %v1494
        %v1513 = vsel %vm1503, %v1492, %v1493
        %v1514 = vsel %vm1503, %v1491, %v1492
        %v1515 = vsel %vm1503, %v1490, %v1491
        %v1516 = vsel %vm1503, %v1489, %v1490
        %v1517 = vsel %vm1503, %v1502, %v1489
        %v1518 = vpack.c.bf16 %v1514, %v1515
        %v1519 = vpack.c.bf16 %v1512, %v1513
        %v1520 = vpack.c.bf16 %v1510, %v1511
        %v1521 = vpack.c.bf16 %v1508, %v1509
        %v1522 = vpack.c.bf16 %v1506, %v1507
        %v1523 = vpack.c.bf16 %v1504, %v1505
        %v1524 = vpack.c.bf16 %v1516, %v1517
        %s1525 = scalar_lea.vmem %s2, 24
        %v1526 = vld [vmem:[%s1525] sm:$0xf]
        %v1528 = vsel %vm659, %v1518, 0
        %v1531 = vsel %vm659, %v1519, 0
        %v1534 = vsel %vm659, %v1520, 0
        %v1537 = vsel %vm659, %v1521, 0
        %v1540 = vsel %vm659, %v1522, 0
        %v1543 = vsel %vm659, %v1523, 0
        %v1546 = vsel %vm659, %v1524, 0
        %v1549 = vsel %vm681, %v1526, 0
        %1551 = vmatprep.subr.bf16.mxu0 0
        %1552 = vmatpush1.bf16.msra.mxu0 %v1549
        %1553 = vmatprep.subr.bf16.mxu0 0
        %1554 = vmatpush1.bf16.msra.mxu0 0
        %1555 = vmatprep.subr.bf16.mxu0 0
        %1556 = vmatpush1.bf16.msra.mxu0 0
        %1557 = vmatprep.subr.bf16.mxu0 0
        %1558 = vmatpush1.bf16.msra.mxu0 0
        %1559 = vmatprep.subr.bf16.mxu0 0
        %1560 = vmatpush1.bf16.msra.mxu0 0
        %1561 = vmatprep.subr.bf16.mxu0 0
        %1562 = vmatpush1.bf16.msra.mxu0 0
        %1563 = vmatprep.subr.bf16.mxu0 0
        %1564 = vmatpush1.bf16.msra.mxu0 0
        %1565 = vmatprep.subr.bf16.mxu0 0
        %1566 = vmatpush1.bf16.msra.mxu0 0
        %1567 = vmatprep.subr.bf16.mxu0 0
        %1568 = vmatpush1.bf16.msra.mxu0 0
        %1569 = vmatprep.subr.bf16.mxu0 0
        %1570 = vmatpush1.bf16.msra.mxu0 0
        %1571 = vmatprep.subr.bf16.mxu0 0
        %1572 = vmatpush1.bf16.msra.mxu0 0
        %1573 = vmatprep.subr.bf16.mxu0 0
        %1574 = vmatpush1.bf16.msra.mxu0 0
        %1575 = vmatprep.subr.bf16.mxu0 0
        %1576 = vmatpush1.bf16.msra.mxu0 0
        %1577 = vmatprep.subr.bf16.mxu0 0
        %1578 = vmatpush1.bf16.msra.mxu0 0
        %1579 = vmatprep.subr.bf16.mxu0 0
        %1580 = vmatpush1.bf16.msra.mxu0 0
        %1581 = vmatprep.subr.bf16.mxu0 0
        %1582 = vmatpush1.bf16.msra.mxu0 0
        %1583 = vmatprep.mubr.bf16.mxu0 0
        %1584 = vmatmul.mubr.bf16.gmra.mrb[0].mxu0 %v1528
        %v1585 = vpop.f32.mrb[0].mxu0
        %v1586 = vadd.f32 0.0, %v1585
        %v1587 = vpop.f32.mrb[0].mxu0
        %v1588 = vpop.f32.mrb[0].mxu0
        %v1589 = vadd.f32 0.0, %v1588
        %v1590 = vpop.f32.mrb[0].mxu0
        %1591 = vmatprep.mubr.bf16.mxu0 0
        %1592 = vmatmul.mubr.bf16.gmra.mrb[0].mxu0 %v1531
        %v1593 = vpop.f32.mrb[0].mxu0
        %v1594 = vadd.f32 0.0, %v1593
        %v1595 = vpop.f32.mrb[0].mxu0
        %v1596 = vpop.f32.mrb[0].mxu0
        %v1597 = vadd.f32 0.0, %v1596
        %v1598 = vpop.f32.mrb[0].mxu0
        %1599 = vmatprep.mubr.bf16.mxu0 0
        %1600 = vmatmul.mubr.bf16.gmra.mrb[0].mxu0 %v1534
        %v1601 = vpop.f32.mrb[0].mxu0
        %v1602 = vadd.f32 0.0, %v1601
        %v1603 = vpop.f32.mrb[0].mxu0
        %v1604 = vpop.f32.mrb[0].mxu0
        %v1605 = vadd.f32 0.0, %v1604
        %v1606 = vpop.f32.mrb[0].mxu0
        %1607 = vmatprep.mubr.bf16.mxu0 0
        %1608 = vmatmul.mubr.bf16.gmra.mrb[0].mxu0 %v1537
        %v1609 = vpop.f32.mrb[0].mxu0
        %v1610 = vadd.f32 0.0, %v1609
        %v1611 = vpop.f32.mrb[0].mxu0
        %v1612 = vpop.f32.mrb[0].mxu0
        %v1613 = vadd.f32 0.0, %v1612
        %v1614 = vpop.f32.mrb[0].mxu0
        %1615 = vmatprep.mubr.bf16.mxu0 0
        %1616 = vmatmul.mubr.bf16.gmra.mrb[0].mxu0 %v1540
        %v1617 = vpop.f32.mrb[0].mxu0
        %v1618 = vadd.f32 0.0, %v1617
        %v1619 = vpop.f32.mrb[0].mxu0
        %v1620 = vpop.f32.mrb[0].mxu0
        %v1621 = vadd.f32 0.0, %v1620
        %v1622 = vpop.f32.mrb[0].mxu0
        %1623 = vmatprep.mubr.bf16.mxu0 0
        %1624 = vmatmul.mubr.bf16.gmra.mrb[0].mxu0 %v1543
        %v1625 = vpop.f32.mrb[0].mxu0
        %v1626 = vadd.f32 0.0, %v1625
        %v1627 = vpop.f32.mrb[0].mxu0
        %v1628 = vpop.f32.mrb[0].mxu0
        %v1629 = vadd.f32 0.0, %v1628
        %v1630 = vpop.f32.mrb[0].mxu0
        %1631 = vmatprep.mubr.bf16.mxu0 0
        %1632 = vmatmul.mubr.bf16.gmra.mrb[0].mxu0 %v1546
        %v1633 = vpop.f32.mrb[0].mxu0
        %v1634 = vadd.f32 0.0, %v1633
        %v1635 = vpop.f32.mrb[0].mxu0
        %v1636 = vpop.f32.mrb[0].mxu0
        %v1637 = vadd.f32 0.0, %v1636
        %v1638 = vpop.f32.mrb[0].mxu0
        %1639 = vdwg.mxu0
        %v1640 = vadd.f32 %v1475, %v1586
        %v1641 = vadd.f32 %v1476, %v1589
        %v1642 = vadd.f32 %v1477, %v1594
        %v1643 = vadd.f32 %v1478, %v1597
        %v1644 = vadd.f32 %v1479, %v1602
        %v1645 = vadd.f32 %v1480, %v1605
        %v1646 = vadd.f32 %v1481, %v1610
        %v1647 = vadd.f32 %v1482, %v1613
        %v1648 = vadd.f32 %v1483, %v1618
        %v1649 = vadd.f32 %v1484, %v1621
        %v1650 = vadd.f32 %v1485, %v1626
        %v1651 = vadd.f32 %v1486, %v1629
        %v1652 = vadd.f32 %v1487, %v1634
        %v1653 = vadd.f32 %v1488, %v1637
        %v1654 = vrot.slane %v597, 5
        %v1655 = vrot.slane %v598, 5
        %v1656 = vrot.slane %v599, 5
        %v1657 = vrot.slane %v600, 5
        %v1658 = vrot.slane %v601, 5
        %v1659 = vrot.slane %v602, 5
        %v1660 = vrot.slane %v603, 5
        %v1661 = vrot.slane %v604, 5
        %v1662 = vrot.slane %v605, 5
        %v1663 = vrot.slane %v606, 5
        %v1664 = vrot.slane %v607, 5
        %v1665 = vrot.slane %v608, 5
        %v1666 = vrot.slane %v609, 5
        %v1667 = vrot.slane %v610, 5
        %vm1668 = vcmp.lt.s32.totalorder %v634, 3
        %v1669 = vsel %vm1668, %v1666, %v1667
        %v1670 = vsel %vm1668, %v1665, %v1666
        %v1671 = vsel %vm1668, %v1664, %v1665
        %v1672 = vsel %vm1668, %v1663, %v1664
        %v1673 = vsel %vm1668, %v1662, %v1663
        %v1674 = vsel %vm1668, %v1661, %v1662
        %v1675 = vsel %vm1668, %v1660, %v1661
        %v1676 = vsel %vm1668, %v1659, %v1660
        %v1677 = vsel %vm1668, %v1658, %v1659
        %v1678 = vsel %vm1668, %v1657, %v1658
        %v1679 = vsel %vm1668, %v1656, %v1657
        %v1680 = vsel %vm1668, %v1655, %v1656
        %v1681 = vsel %vm1668, %v1654, %v1655
        %v1682 = vsel %vm1668, %v1667, %v1654
        %v1683 = vpack.c.bf16 %v1679, %v1680
        %v1684 = vpack.c.bf16 %v1677, %v1678
        %v1685 = vpack.c.bf16 %v1675, %v1676
        %v1686 = vpack.c.bf16 %v1673, %v1674
        %v1687 = vpack.c.bf16 %v1671, %v1672
        %v1688 = vpack.c.bf16 %v1669, %v1670
        %v1689 = vpack.c.bf16 %v1681, %v1682
        %s1690 = scalar_lea.vmem %s2, 28
        %v1691 = vld [vmem:[%s1690] sm:$0xf]
        %v1693 = vsel %vm659, %v1683, 0
        %v1696 = vsel %vm659, %v1684, 0
        %v1699 = vsel %vm659, %v1685, 0
        %v1702 = vsel %vm659, %v1686, 0
        %v1705 = vsel %vm659, %v1687, 0
        %v1708 = vsel %vm659, %v1688, 0
        %v1711 = vsel %vm659, %v1689, 0
        %v1714 = vsel %vm681, %v1691, 0
        %1716 = vmatprep.subr.bf16.mxu0 0
        %1717 = vmatpush1.bf16.msra.mxu0 %v1714
        %1718 = vmatprep.subr.bf16.mxu0 0
        %1719 = vmatpush1.bf16.msra.mxu0 0
        %1720 = vmatprep.subr.bf16.mxu0 0
        %1721 = vmatpush1.bf16.msra.mxu0 0
        %1722 = vmatprep.subr.bf16.mxu0 0
        %1723 = vmatpush1.bf16.msra.mxu0 0
        %1724 = vmatprep.subr.bf16.mxu0 0
        %1725 = vmatpush1.bf16.msra.mxu0 0
        %1726 = vmatprep.subr.bf16.mxu0 0
        %1727 = vmatpush1.bf16.msra.mxu0 0
        %1728 = vmatprep.subr.bf16.mxu0 0
        %1729 = vmatpush1.bf16.msra.mxu0 0
        %1730 = vmatprep.subr.bf16.mxu0 0
        %1731 = vmatpush1.bf16.msra.mxu0 0
        %1732 = vmatprep.subr.bf16.mxu0 0
        %1733 = vmatpush1.bf16.msra.mxu0 0
        %1734 = vmatprep.subr.bf16.mxu0 0
        %1735 = vmatpush1.bf16.msra.mxu0 0
        %1736 = vmatprep.subr.bf16.mxu0 0
        %1737 = vmatpush1.bf16.msra.mxu0 0
        %1738 = vmatprep.subr.bf16.mxu0 0
        %1739 = vmatpush1.bf16.msra.mxu0 0
        %1740 = vmatprep.subr.bf16.mxu0 0
        %1741 = vmatpush1.bf16.msra.mxu0 0
        %1742 = vmatprep.subr.bf16.mxu0 0
        %1743 = vmatpush1.bf16.msra.mxu0 0
        %1744 = vmatprep.subr.bf16.mxu0 0
        %1745 = vmatpush1.bf16.msra.mxu0 0
        %1746 = vmatprep.subr.bf16.mxu0 0
        %1747 = vmatpush1.bf16.msra.mxu0 0
        %1748 = vmatprep.mubr.bf16.mxu0 0
        %1749 = vmatmul.mubr.bf16.gmra.mrb[0].mxu0 %v1693
        %v1750 = vpop.f32.mrb[0].mxu0
        %v1751 = vadd.f32 0.0, %v1750
        %v1752 = vpop.f32.mrb[0].mxu0
        %v1753 = vpop.f32.mrb[0].mxu0
        %v1754 = vadd.f32 0.0, %v1753
        %v1755 = vpop.f32.mrb[0].mxu0
        %1756 = vmatprep.mubr.bf16.mxu0 0
        %1757 = vmatmul.mubr.bf16.gmra.mrb[0].mxu0 %v1696
        %v1758 = vpop.f32.mrb[0].mxu0
        %v1759 = vadd.f32 0.0, %v1758
        %v1760 = vpop.f32.mrb[0].mxu0
        %v1761 = vpop.f32.mrb[0].mxu0
        %v1762 = vadd.f32 0.0, %v1761
        %v1763 = vpop.f32.mrb[0].mxu0
        %1764 = vmatprep.mubr.bf16.mxu0 0
        %1765 = vmatmul.mubr.bf16.gmra.mrb[0].mxu0 %v1699
        %v1766 = vpop.f32.mrb[0].mxu0
        %v1767 = vadd.f32 0.0, %v1766
        %v1768 = vpop.f32.mrb[0].mxu0
        %v1769 = vpop.f32.mrb[0].mxu0
        %v1770 = vadd.f32 0.0, %v1769
        %v1771 = vpop.f32.mrb[0].mxu0
        %1772 = vmatprep.mubr.bf16.mxu0 0
        %1773 = vmatmul.mubr.bf16.gmra.mrb[0].mxu0 %v1702
        %v1774 = vpop.f32.mrb[0].mxu0
        %v1775 = vadd.f32 0.0, %v1774
        %v1776 = vpop.f32.mrb[0].mxu0
        %v1777 = vpop.f32.mrb[0].mxu0
        %v1778 = vadd.f32 0.0, %v1777
        %v1779 = vpop.f32.mrb[0].mxu0
        %1780 = vmatprep.mubr.bf16.mxu0 0
        %1781 = vmatmul.mubr.bf16.gmra.mrb[0].mxu0 %v1705
        %v1782 = vpop.f32.mrb[0].mxu0
        %v1783 = vadd.f32 0.0, %v1782
        %v1784 = vpop.f32.mrb[0].mxu0
        %v1785 = vpop.f32.mrb[0].mxu0
        %v1786 = vadd.f32 0.0, %v1785
        %v1787 = vpop.f32.mrb[0].mxu0
        %1788 = vmatprep.mubr.bf16.mxu0 0
        %1789 = vmatmul.mubr.bf16.gmra.mrb[0].mxu0 %v1708
        %v1790 = vpop.f32.mrb[0].mxu0
        %v1791 = vadd.f32 0.0, %v1790
        %v1792 = vpop.f32.mrb[0].mxu0
        %v1793 = vpop.f32.mrb[0].mxu0
        %v1794 = vadd.f32 0.0, %v1793
        %v1795 = vpop.f32.mrb[0].mxu0
        %1796 = vmatprep.mubr.bf16.mxu0 0
        %1797 = vmatmul.mubr.bf16.gmra.mrb[0].mxu0 %v1711
        %v1798 = vpop.f32.mrb[0].mxu0
        %v1799 = vadd.f32 0.0, %v1798
        %v1800 = vpop.f32.mrb[0].mxu0
        %v1801 = vpop.f32.mrb[0].mxu0
        %v1802 = vadd.f32 0.0, %v1801
        %v1803 = vpop.f32.mrb[0].mxu0
        %1804 = vdwg.mxu0
        %v1805 = vadd.f32 %v1640, %v1751
        %v1806 = vadd.f32 %v1641, %v1754
        %v1807 = vadd.f32 %v1642, %v1759
        %v1808 = vadd.f32 %v1643, %v1762
        %v1809 = vadd.f32 %v1644, %v1767
        %v1810 = vadd.f32 %v1645, %v1770
        %v1811 = vadd.f32 %v1646, %v1775
        %v1812 = vadd.f32 %v1647, %v1778
        %v1813 = vadd.f32 %v1648, %v1783
        %v1814 = vadd.f32 %v1649, %v1786
        %v1815 = vadd.f32 %v1650, %v1791
        %v1816 = vadd.f32 %v1651, %v1794
        %v1817 = vadd.f32 %v1652, %v1799
        %v1818 = vadd.f32 %v1653, %v1802
        %v1819 = vpack.c.bf16 %v1513, %v1514
        %v1820 = vpack.c.bf16 %v1511, %v1512
        %v1821 = vpack.c.bf16 %v1509, %v1510
        %v1822 = vpack.c.bf16 %v1507, %v1508
        %v1823 = vpack.c.bf16 %v1505, %v1506
        %v1824 = vpack.c.bf16 %v1517, %v1504
        %v1825 = vpack.c.bf16 %v1515, %v1516
        %s1826 = scalar_lea.vmem %s2, 32
        %v1827 = vld [vmem:[%s1826] sm:$0xf]
        %v1829 = vsel %vm659, %v1819, 0
        %v1832 = vsel %vm659, %v1820, 0
        %v1835 = vsel %vm659, %v1821, 0
        %v1838 = vsel %vm659, %v1822, 0
        %v1841 = vsel %vm659, %v1823, 0
        %v1844 = vsel %vm659, %v1824, 0
        %v1847 = vsel %vm659, %v1825, 0
        %v1850 = vsel %vm681, %v1827, 0
        %1852 = vmatprep.subr.bf16.mxu0 0
        %1853 = vmatpush1.bf16.msra.mxu0 %v1850
        %1854 = vmatprep.subr.bf16.mxu0 0
        %1855 = vmatpush1.bf16.msra.mxu0 0
        %1856 = vmatprep.subr.bf16.mxu0 0
        %1857 = vmatpush1.bf16.msra.mxu0 0
        %1858 = vmatprep.subr.bf16.mxu0 0
        %1859 = vmatpush1.bf16.msra.mxu0 0
        %1860 = vmatprep.subr.bf16.mxu0 0
        %1861 = vmatpush1.bf16.msra.mxu0 0
        %1862 = vmatprep.subr.bf16.mxu0 0
        %1863 = vmatpush1.bf16.msra.mxu0 0
        %1864 = vmatprep.subr.bf16.mxu0 0
        %1865 = vmatpush1.bf16.msra.mxu0 0
        %1866 = vmatprep.subr.bf16.mxu0 0
        %1867 = vmatpush1.bf16.msra.mxu0 0
        %1868 = vmatprep.subr.bf16.mxu0 0
        %1869 = vmatpush1.bf16.msra.mxu0 0
        %1870 = vmatprep.subr.bf16.mxu0 0
        %1871 = vmatpush1.bf16.msra.mxu0 0
        %1872 = vmatprep.subr.bf16.mxu0 0
        %1873 = vmatpush1.bf16.msra.mxu0 0
        %1874 = vmatprep.subr.bf16.mxu0 0
        %1875 = vmatpush1.bf16.msra.mxu0 0
        %1876 = vmatprep.subr.bf16.mxu0 0
        %1877 = vmatpush1.bf16.msra.mxu0 0
        %1878 = vmatprep.subr.bf16.mxu0 0
        %1879 = vmatpush1.bf16.msra.mxu0 0
        %1880 = vmatprep.subr.bf16.mxu0 0
        %1881 = vmatpush1.bf16.msra.mxu0 0
        %1882 = vmatprep.subr.bf16.mxu0 0
        %1883 = vmatpush1.bf16.msra.mxu0 0
        %1884 = vmatprep.mubr.bf16.mxu0 0
        %1885 = vmatmul.mubr.bf16.gmra.mrb[0].mxu0 %v1829
        %v1886 = vpop.f32.mrb[0].mxu0
        %v1887 = vadd.f32 0.0, %v1886
        %v1888 = vpop.f32.mrb[0].mxu0
        %v1889 = vpop.f32.mrb[0].mxu0
        %v1890 = vadd.f32 0.0, %v1889
        %v1891 = vpop.f32.mrb[0].mxu0
        %1892 = vmatprep.mubr.bf16.mxu0 0
        %1893 = vmatmul.mubr.bf16.gmra.mrb[0].mxu0 %v1832
        %v1894 = vpop.f32.mrb[0].mxu0
        %v1895 = vadd.f32 0.0, %v1894
        %v1896 = vpop.f32.mrb[0].mxu0
        %v1897 = vpop.f32.mrb[0].mxu0
        %v1898 = vadd.f32 0.0, %v1897
        %v1899 = vpop.f32.mrb[0].mxu0
        %1900 = vmatprep.mubr.bf16.mxu0 0
        %1901 = vmatmul.mubr.bf16.gmra.mrb[0].mxu0 %v1835
        %v1902 = vpop.f32.mrb[0].mxu0
        %v1903 = vadd.f32 0.0, %v1902
        %v1904 = vpop.f32.mrb[0].mxu0
        %v1905 = vpop.f32.mrb[0].mxu0
        %v1906 = vadd.f32 0.0, %v1905
        %v1907 = vpop.f32.mrb[0].mxu0
        %1908 = vmatprep.mubr.bf16.mxu0 0
        %1909 = vmatmul.mubr.bf16.gmra.mrb[0].mxu0 %v1838
        %v1910 = vpop.f32.mrb[0].mxu0
        %v1911 = vadd.f32 0.0, %v1910
        %v1912 = vpop.f32.mrb[0].mxu0
        %v1913 = vpop.f32.mrb[0].mxu0
        %v1914 = vadd.f32 0.0, %v1913
        %v1915 = vpop.f32.mrb[0].mxu0
        %1916 = vmatprep.mubr.bf16.mxu0 0
        %1917 = vmatmul.mubr.bf16.gmra.mrb[0].mxu0 %v1841
        %v1918 = vpop.f32.mrb[0].mxu0
        %v1919 = vadd.f32 0.0, %v1918
        %v1920 = vpop.f32.mrb[0].mxu0
        %v1921 = vpop.f32.mrb[0].mxu0
        %v1922 = vadd.f32 0.0, %v1921
        %v1923 = vpop.f32.mrb[0].mxu0
        %1924 = vmatprep.mubr.bf16.mxu0 0
        %1925 = vmatmul.mubr.bf16.gmra.mrb[0].mxu0 %v1844
        %v1926 = vpop.f32.mrb[0].mxu0
        %v1927 = vadd.f32 0.0, %v1926
        %v1928 = vpop.f32.mrb[0].mxu0
        %v1929 = vpop.f32.mrb[0].mxu0
        %v1930 = vadd.f32 0.0, %v1929
        %v1931 = vpop.f32.mrb[0].mxu0
        %1932 = vmatprep.mubr.bf16.mxu0 0
        %1933 = vmatmul.mubr.bf16.gmra.mrb[0].mxu0 %v1847
        %v1934 = vpop.f32.mrb[0].mxu0
        %v1935 = vadd.f32 0.0, %v1934
        %v1936 = vpop.f32.mrb[0].mxu0
        %v1937 = vpop.f32.mrb[0].mxu0
        %v1938 = vadd.f32 0.0, %v1937
        %v1939 = vpop.f32.mrb[0].mxu0
        %1940 = vdwg.mxu0
        %v1941 = vadd.f32 %v1805, %v1887
        %v1942 = vadd.f32 %v1806, %v1890
        %v1943 = vadd.f32 %v1807, %v1895
        %v1944 = vadd.f32 %v1808, %v1898
        %v1945 = vadd.f32 %v1809, %v1903
        %v1946 = vadd.f32 %v1810, %v1906
        %v1947 = vadd.f32 %v1811, %v1911
        %v1948 = vadd.f32 %v1812, %v1914
        %v1949 = vadd.f32 %v1813, %v1919
        %v1950 = vadd.f32 %v1814, %v1922
        %v1951 = vadd.f32 %v1815, %v1927
        %v1952 = vadd.f32 %v1816, %v1930
        %v1953 = vadd.f32 %v1817, %v1935
        %v1954 = vadd.f32 %v1818, %v1938
        %v1955 = vpack.c.bf16 %v1678, %v1679
        %v1956 = vpack.c.bf16 %v1676, %v1677
        %v1957 = vpack.c.bf16 %v1674, %v1675
        %v1958 = vpack.c.bf16 %v1672, %v1673
        %v1959 = vpack.c.bf16 %v1670, %v1671
        %v1960 = vpack.c.bf16 %v1682, %v1669
        %v1961 = vpack.c.bf16 %v1680, %v1681
        %s1962 = scalar_lea.vmem %s2, 36
        %v1963 = vld [vmem:[%s1962] sm:$0xf]
        %v1965 = vsel %vm659, %v1955, 0
        %v1968 = vsel %vm659, %v1956, 0
        %v1971 = vsel %vm659, %v1957, 0
        %v1974 = vsel %vm659, %v1958, 0
        %v1977 = vsel %vm659, %v1959, 0
        %v1980 = vsel %vm659, %v1960, 0
        %v1983 = vsel %vm659, %v1961, 0
        %v1986 = vsel %vm681, %v1963, 0
        %1988 = vmatprep.subr.bf16.mxu0 0
        %1989 = vmatpush1.bf16.msra.mxu0 %v1986
        %1990 = vmatprep.subr.bf16.mxu0 0
        %1991 = vmatpush1.bf16.msra.mxu0 0
        %1992 = vmatprep.subr.bf16.mxu0 0
        %1993 = vmatpush1.bf16.msra.mxu0 0
        %1994 = vmatprep.subr.bf16.mxu0 0
        %1995 = vmatpush1.bf16.msra.mxu0 0
        %1996 = vmatprep.subr.bf16.mxu0 0
        %1997 = vmatpush1.bf16.msra.mxu0 0
        %1998 = vmatprep.subr.bf16.mxu0 0
        %1999 = vmatpush1.bf16.msra.mxu0 0
        %2000 = vmatprep.subr.bf16.mxu0 0
        %2001 = vmatpush1.bf16.msra.mxu0 0
        %2002 = vmatprep.subr.bf16.mxu0 0
        %2003 = vmatpush1.bf16.msra.mxu0 0
        %2004 = vmatprep.subr.bf16.mxu0 0
        %2005 = vmatpush1.bf16.msra.mxu0 0
        %2006 = vmatprep.subr.bf16.mxu0 0
        %2007 = vmatpush1.bf16.msra.mxu0 0
        %2008 = vmatprep.subr.bf16.mxu0 0
        %2009 = vmatpush1.bf16.msra.mxu0 0
        %2010 = vmatprep.subr.bf16.mxu0 0
        %2011 = vmatpush1.bf16.msra.mxu0 0
        %2012 = vmatprep.subr.bf16.mxu0 0
        %2013 = vmatpush1.bf16.msra.mxu0 0
        %2014 = vmatprep.subr.bf16.mxu0 0
        %2015 = vmatpush1.bf16.msra.mxu0 0
        %2016 = vmatprep.subr.bf16.mxu0 0
        %2017 = vmatpush1.bf16.msra.mxu0 0
        %2018 = vmatprep.subr.bf16.mxu0 0
        %2019 = vmatpush1.bf16.msra.mxu0 0
        %2020 = vmatprep.mubr.bf16.mxu0 0
        %2021 = vmatmul.mubr.bf16.gmra.mrb[0].mxu0 %v1965
        %v2022 = vpop.f32.mrb[0].mxu0
        %v2023 = vadd.f32 0.0, %v2022
        %v2024 = vpop.f32.mrb[0].mxu0
        %v2025 = vpop.f32.mrb[0].mxu0
        %v2026 = vadd.f32 0.0, %v2025
        %v2027 = vpop.f32.mrb[0].mxu0
        %2028 = vmatprep.mubr.bf16.mxu0 0
        %2029 = vmatmul.mubr.bf16.gmra.mrb[0].mxu0 %v1968
        %v2030 = vpop.f32.mrb[0].mxu0
        %v2031 = vadd.f32 0.0, %v2030
        %v2032 = vpop.f32.mrb[0].mxu0
        %v2033 = vpop.f32.mrb[0].mxu0
        %v2034 = vadd.f32 0.0, %v2033
        %v2035 = vpop.f32.mrb[0].mxu0
        %2036 = vmatprep.mubr.bf16.mxu0 0
        %2037 = vmatmul.mubr.bf16.gmra.mrb[0].mxu0 %v1971
        %v2038 = vpop.f32.mrb[0].mxu0
        %v2039 = vadd.f32 0.0, %v2038
        %v2040 = vpop.f32.mrb[0].mxu0
        %v2041 = vpop.f32.mrb[0].mxu0
        %v2042 = vadd.f32 0.0, %v2041
        %v2043 = vpop.f32.mrb[0].mxu0
        %2044 = vmatprep.mubr.bf16.mxu0 0
        %2045 = vmatmul.mubr.bf16.gmra.mrb[0].mxu0 %v1974
        %v2046 = vpop.f32.mrb[0].mxu0
        %v2047 = vadd.f32 0.0, %v2046
        %v2048 = vpop.f32.mrb[0].mxu0
        %v2049 = vpop.f32.mrb[0].mxu0
        %v2050 = vadd.f32 0.0, %v2049
        %v2051 = vpop.f32.mrb[0].mxu0
        %2052 = vmatprep.mubr.bf16.mxu0 0
        %2053 = vmatmul.mubr.bf16.gmra.mrb[0].mxu0 %v1977
        %v2054 = vpop.f32.mrb[0].mxu0
        %v2055 = vadd.f32 0.0, %v2054
        %v2056 = vpop.f32.mrb[0].mxu0
        %v2057 = vpop.f32.mrb[0].mxu0
        %v2058 = vadd.f32 0.0, %v2057
        %v2059 = vpop.f32.mrb[0].mxu0
        %2060 = vmatprep.mubr.bf16.mxu0 0
        %2061 = vmatmul.mubr.bf16.gmra.mrb[0].mxu0 %v1980
        %v2062 = vpop.f32.mrb[0].mxu0
        %v2063 = vadd.f32 0.0, %v2062
        %v2064 = vpop.f32.mrb[0].mxu0
        %v2065 = vpop.f32.mrb[0].mxu0
        %v2066 = vadd.f32 0.0, %v2065
        %v2067 = vpop.f32.mrb[0].mxu0
        %2068 = vmatprep.mubr.bf16.mxu0 0
        %2069 = vmatmul.mubr.bf16.gmra.mrb[0].mxu0 %v1983
        %v2070 = vpop.f32.mrb[0].mxu0
        %v2071 = vadd.f32 0.0, %v2070
        %v2072 = vpop.f32.mrb[0].mxu0
        %v2073 = vpop.f32.mrb[0].mxu0
        %v2074 = vadd.f32 0.0, %v2073
        %v2075 = vpop.f32.mrb[0].mxu0
        %2076 = vdwg.mxu0
        %v2077 = vadd.f32 %v1941, %v2023
        %v2078 = vadd.f32 %v1942, %v2026
        %v2079 = vadd.f32 %v1943, %v2031
        %v2080 = vadd.f32 %v1944, %v2034
        %v2081 = vadd.f32 %v1945, %v2039
        %v2082 = vadd.f32 %v1946, %v2042
        %v2083 = vadd.f32 %v1947, %v2047
        %v2084 = vadd.f32 %v1948, %v2050
        %v2085 = vadd.f32 %v1949, %v2055
        %v2086 = vadd.f32 %v1950, %v2058
        %v2087 = vadd.f32 %v1951, %v2063
        %v2088 = vadd.f32 %v1952, %v2066
        %v2089 = vadd.f32 %v1953, %v2071
        %v2090 = vadd.f32 %v1954, %v2074
        %v2091 = vrot.slane %v597, 6
        %v2092 = vrot.slane %v598, 6
        %v2093 = vrot.slane %v599, 6
        %v2094 = vrot.slane %v600, 6
        %v2095 = vrot.slane %v601, 6
        %v2096 = vrot.slane %v602, 6
        %v2097 = vrot.slane %v603, 6
        %v2098 = vrot.slane %v604, 6
        %v2099 = vrot.slane %v605, 6
        %v2100 = vrot.slane %v606, 6
        %v2101 = vrot.slane %v607, 6
        %v2102 = vrot.slane %v608, 6
        %v2103 = vrot.slane %v609, 6
        %v2104 = vrot.slane %v610, 6
        %vm2105 = vcmp.lt.s32.totalorder %v634, 2
        %v2106 = vsel %vm2105, %v2103, %v2104
        %v2107 = vsel %vm2105, %v2102, %v2103
        %v2108 = vsel %vm2105, %v2101, %v2102
        %v2109 = vsel %vm2105, %v2100, %v2101
        %v2110 = vsel %vm2105, %v2099, %v2100
        %v2111 = vsel %vm2105, %v2098, %v2099
        %v2112 = vsel %vm2105, %v2097, %v2098
        %v2113 = vsel %vm2105, %v2096, %v2097
        %v2114 = vsel %vm2105, %v2095, %v2096
        %v2115 = vsel %vm2105, %v2094, %v2095
        %v2116 = vsel %vm2105, %v2093, %v2094
        %v2117 = vsel %vm2105, %v2092, %v2093
        %v2118 = vsel %vm2105, %v2091, %v2092
        %v2119 = vsel %vm2105, %v2104, %v2091
        %v2120 = vpack.c.bf16 %v2115, %v2116
        %v2121 = vpack.c.bf16 %v2113, %v2114
        %v2122 = vpack.c.bf16 %v2111, %v2112
        %v2123 = vpack.c.bf16 %v2109, %v2110
        %v2124 = vpack.c.bf16 %v2107, %v2108
        %v2125 = vpack.c.bf16 %v2119, %v2106
        %v2126 = vpack.c.bf16 %v2117, %v2118
        %s2127 = scalar_lea.vmem %s2, 40
        %v2128 = vld [vmem:[%s2127] sm:$0xf]
        %v2130 = vsel %vm659, %v2120, 0
        %v2133 = vsel %vm659, %v2121, 0
        %v2136 = vsel %vm659, %v2122, 0
        %v2139 = vsel %vm659, %v2123, 0
        %v2142 = vsel %vm659, %v2124, 0
        %v2145 = vsel %vm659, %v2125, 0
        %v2148 = vsel %vm659, %v2126, 0
        %v2151 = vsel %vm681, %v2128, 0
        %2153 = vmatprep.subr.bf16.mxu0 0
        %2154 = vmatpush1.bf16.msra.mxu0 %v2151
        %2155 = vmatprep.subr.bf16.mxu0 0
        %2156 = vmatpush1.bf16.msra.mxu0 0
        %2157 = vmatprep.subr.bf16.mxu0 0
        %2158 = vmatpush1.bf16.msra.mxu0 0
        %2159 = vmatprep.subr.bf16.mxu0 0
        %2160 = vmatpush1.bf16.msra.mxu0 0
        %2161 = vmatprep.subr.bf16.mxu0 0
        %2162 = vmatpush1.bf16.msra.mxu0 0
        %2163 = vmatprep.subr.bf16.mxu0 0
        %2164 = vmatpush1.bf16.msra.mxu0 0
        %2165 = vmatprep.subr.bf16.mxu0 0
        %2166 = vmatpush1.bf16.msra.mxu0 0
        %2167 = vmatprep.subr.bf16.mxu0 0
        %2168 = vmatpush1.bf16.msra.mxu0 0
        %2169 = vmatprep.subr.bf16.mxu0 0
        %2170 = vmatpush1.bf16.msra.mxu0 0
        %2171 = vmatprep.subr.bf16.mxu0 0
        %2172 = vmatpush1.bf16.msra.mxu0 0
        %2173 = vmatprep.subr.bf16.mxu0 0
        %2174 = vmatpush1.bf16.msra.mxu0 0
        %2175 = vmatprep.subr.bf16.mxu0 0
        %2176 = vmatpush1.bf16.msra.mxu0 0
        %2177 = vmatprep.subr.bf16.mxu0 0
        %2178 = vmatpush1.bf16.msra.mxu0 0
        %2179 = vmatprep.subr.bf16.mxu0 0
        %2180 = vmatpush1.bf16.msra.mxu0 0
        %2181 = vmatprep.subr.bf16.mxu0 0
        %2182 = vmatpush1.bf16.msra.mxu0 0
        %2183 = vmatprep.subr.bf16.mxu0 0
        %2184 = vmatpush1.bf16.msra.mxu0 0
        %2185 = vmatprep.mubr.bf16.mxu0 0
        %2186 = vmatmul.mubr.bf16.gmra.mrb[0].mxu0 %v2130
        %v2187 = vpop.f32.mrb[0].mxu0
        %v2188 = vadd.f32 0.0, %v2187
        %v2189 = vpop.f32.mrb[0].mxu0
        %v2190 = vpop.f32.mrb[0].mxu0
        %v2191 = vadd.f32 0.0, %v2190
        %v2192 = vpop.f32.mrb[0].mxu0
        %2193 = vmatprep.mubr.bf16.mxu0 0
        %2194 = vmatmul.mubr.bf16.gmra.mrb[0].mxu0 %v2133
        %v2195 = vpop.f32.mrb[0].mxu0
        %v2196 = vadd.f32 0.0, %v2195
        %v2197 = vpop.f32.mrb[0].mxu0
        %v2198 = vpop.f32.mrb[0].mxu0
        %v2199 = vadd.f32 0.0, %v2198
        %v2200 = vpop.f32.mrb[0].mxu0
        %2201 = vmatprep.mubr.bf16.mxu0 0
        %2202 = vmatmul.mubr.bf16.gmra.mrb[0].mxu0 %v2136
        %v2203 = vpop.f32.mrb[0].mxu0
        %v2204 = vadd.f32 0.0, %v2203
        %v2205 = vpop.f32.mrb[0].mxu0
        %v2206 = vpop.f32.mrb[0].mxu0
        %v2207 = vadd.f32 0.0, %v2206
        %v2208 = vpop.f32.mrb[0].mxu0
        %2209 = vmatprep.mubr.bf16.mxu0 0
        %2210 = vmatmul.mubr.bf16.gmra.mrb[0].mxu0 %v2139
        %v2211 = vpop.f32.mrb[0].mxu0
        %v2212 = vadd.f32 0.0, %v2211
        %v2213 = vpop.f32.mrb[0].mxu0
        %v2214 = vpop.f32.mrb[0].mxu0
        %v2215 = vadd.f32 0.0, %v2214
        %v2216 = vpop.f32.mrb[0].mxu0
        %2217 = vmatprep.mubr.bf16.mxu0 0
        %2218 = vmatmul.mubr.bf16.gmra.mrb[0].mxu0 %v2142
        %v2219 = vpop.f32.mrb[0].mxu0
        %v2220 = vadd.f32 0.0, %v2219
        %v2221 = vpop.f32.mrb[0].mxu0
        %v2222 = vpop.f32.mrb[0].mxu0
        %v2223 = vadd.f32 0.0, %v2222
        %v2224 = vpop.f32.mrb[0].mxu0
        %2225 = vmatprep.mubr.bf16.mxu0 0
        %2226 = vmatmul.mubr.bf16.gmra.mrb[0].mxu0 %v2145
        %v2227 = vpop.f32.mrb[0].mxu0
        %v2228 = vadd.f32 0.0, %v2227
        %v2229 = vpop.f32.mrb[0].mxu0
        %v2230 = vpop.f32.mrb[0].mxu0
        %v2231 = vadd.f32 0.0, %v2230
        %v2232 = vpop.f32.mrb[0].mxu0
        %2233 = vmatprep.mubr.bf16.mxu0 0
        %2234 = vmatmul.mubr.bf16.gmra.mrb[0].mxu0 %v2148
        %v2235 = vpop.f32.mrb[0].mxu0
        %v2236 = vadd.f32 0.0, %v2235
        %v2237 = vpop.f32.mrb[0].mxu0
        %v2238 = vpop.f32.mrb[0].mxu0
        %v2239 = vadd.f32 0.0, %v2238
        %v2240 = vpop.f32.mrb[0].mxu0
        %2241 = vdwg.mxu0
        %v2242 = vadd.f32 %v2077, %v2188
        %v2243 = vadd.f32 %v2078, %v2191
        %v2244 = vadd.f32 %v2079, %v2196
        %v2245 = vadd.f32 %v2080, %v2199
        %v2246 = vadd.f32 %v2081, %v2204
        %v2247 = vadd.f32 %v2082, %v2207
        %v2248 = vadd.f32 %v2083, %v2212
        %v2249 = vadd.f32 %v2084, %v2215
        %v2250 = vadd.f32 %v2085, %v2220
        %v2251 = vadd.f32 %v2086, %v2223
        %v2252 = vadd.f32 %v2087, %v2228
        %v2253 = vadd.f32 %v2088, %v2231
        %v2254 = vadd.f32 %v2089, %v2236
        %v2255 = vadd.f32 %v2090, %v2239
        %v2256 = vrot.slane %v597, 7
        %v2257 = vrot.slane %v598, 7
        %v2258 = vrot.slane %v599, 7
        %v2259 = vrot.slane %v600, 7
        %v2260 = vrot.slane %v601, 7
        %v2261 = vrot.slane %v602, 7
        %v2262 = vrot.slane %v603, 7
        %v2263 = vrot.slane %v604, 7
        %v2264 = vrot.slane %v605, 7
        %v2265 = vrot.slane %v606, 7
        %v2266 = vrot.slane %v607, 7
        %v2267 = vrot.slane %v608, 7
        %v2268 = vrot.slane %v609, 7
        %v2269 = vrot.slane %v610, 7
        %vm2270 = vcmp.lt.s32.totalorder %v634, 1
        %v2271 = vsel %vm2270, %v2268, %v2269
        %v2272 = vsel %vm2270, %v2267, %v2268
        %v2273 = vsel %vm2270, %v2266, %v2267
        %v2274 = vsel %vm2270, %v2265, %v2266
        %v2275 = vsel %vm2270, %v2264, %v2265
        %v2276 = vsel %vm2270, %v2263, %v2264
        %v2277 = vsel %vm2270, %v2262, %v2263
        %v2278 = vsel %vm2270, %v2261, %v2262
        %v2279 = vsel %vm2270, %v2260, %v2261
        %v2280 = vsel %vm2270, %v2259, %v2260
        %v2281 = vsel %vm2270, %v2258, %v2259
        %v2282 = vsel %vm2270, %v2257, %v2258
        %v2283 = vsel %vm2270, %v2256, %v2257
        %v2284 = vsel %vm2270, %v2269, %v2256
        %v2285 = vpack.c.bf16 %v2280, %v2281
        %v2286 = vpack.c.bf16 %v2278, %v2279
        %v2287 = vpack.c.bf16 %v2276, %v2277
        %v2288 = vpack.c.bf16 %v2274, %v2275
        %v2289 = vpack.c.bf16 %v2272, %v2273
        %v2290 = vpack.c.bf16 %v2284, %v2271
        %v2291 = vpack.c.bf16 %v2282, %v2283
        %s2292 = scalar_lea.vmem %s2, 44
        %v2293 = vld [vmem:[%s2292] sm:$0xf]
        %v2295 = vsel %vm659, %v2285, 0
        %v2298 = vsel %vm659, %v2286, 0
        %v2301 = vsel %vm659, %v2287, 0
        %v2304 = vsel %vm659, %v2288, 0
        %v2307 = vsel %vm659, %v2289, 0
        %v2310 = vsel %vm659, %v2290, 0
        %v2313 = vsel %vm659, %v2291, 0
        %v2316 = vsel %vm681, %v2293, 0
        %2318 = vmatprep.subr.bf16.mxu0 0
        %2319 = vmatpush1.bf16.msra.mxu0 %v2316
        %2320 = vmatprep.subr.bf16.mxu0 0
        %2321 = vmatpush1.bf16.msra.mxu0 0
        %2322 = vmatprep.subr.bf16.mxu0 0
        %2323 = vmatpush1.bf16.msra.mxu0 0
        %2324 = vmatprep.subr.bf16.mxu0 0
        %2325 = vmatpush1.bf16.msra.mxu0 0
        %2326 = vmatprep.subr.bf16.mxu0 0
        %2327 = vmatpush1.bf16.msra.mxu0 0
        %2328 = vmatprep.subr.bf16.mxu0 0
        %2329 = vmatpush1.bf16.msra.mxu0 0
        %2330 = vmatprep.subr.bf16.mxu0 0
        %2331 = vmatpush1.bf16.msra.mxu0 0
        %2332 = vmatprep.subr.bf16.mxu0 0
        %2333 = vmatpush1.bf16.msra.mxu0 0
        %2334 = vmatprep.subr.bf16.mxu0 0
        %2335 = vmatpush1.bf16.msra.mxu0 0
        %2336 = vmatprep.subr.bf16.mxu0 0
        %2337 = vmatpush1.bf16.msra.mxu0 0
        %2338 = vmatprep.subr.bf16.mxu0 0
        %2339 = vmatpush1.bf16.msra.mxu0 0
        %2340 = vmatprep.subr.bf16.mxu0 0
        %2341 = vmatpush1.bf16.msra.mxu0 0
        %2342 = vmatprep.subr.bf16.mxu0 0
        %2343 = vmatpush1.bf16.msra.mxu0 0
        %2344 = vmatprep.subr.bf16.mxu0 0
        %2345 = vmatpush1.bf16.msra.mxu0 0
        %2346 = vmatprep.subr.bf16.mxu0 0
        %2347 = vmatpush1.bf16.msra.mxu0 0
        %2348 = vmatprep.subr.bf16.mxu0 0
        %2349 = vmatpush1.bf16.msra.mxu0 0
        %2350 = vmatprep.mubr.bf16.mxu0 0
        %2351 = vmatmul.mubr.bf16.gmra.mrb[0].mxu0 %v2295
        %v2352 = vpop.f32.mrb[0].mxu0
        %v2353 = vadd.f32 0.0, %v2352
        %v2354 = vpop.f32.mrb[0].mxu0
        %v2355 = vpop.f32.mrb[0].mxu0
        %v2356 = vadd.f32 0.0, %v2355
        %v2357 = vpop.f32.mrb[0].mxu0
        %2358 = vmatprep.mubr.bf16.mxu0 0
        %2359 = vmatmul.mubr.bf16.gmra.mrb[0].mxu0 %v2298
        %v2360 = vpop.f32.mrb[0].mxu0
        %v2361 = vadd.f32 0.0, %v2360
        %v2362 = vpop.f32.mrb[0].mxu0
        %v2363 = vpop.f32.mrb[0].mxu0
        %v2364 = vadd.f32 0.0, %v2363
        %v2365 = vpop.f32.mrb[0].mxu0
        %2366 = vmatprep.mubr.bf16.mxu0 0
        %2367 = vmatmul.mubr.bf16.gmra.mrb[0].mxu0 %v2301
        %v2368 = vpop.f32.mrb[0].mxu0
        %v2369 = vadd.f32 0.0, %v2368
        %v2370 = vpop.f32.mrb[0].mxu0
        %v2371 = vpop.f32.mrb[0].mxu0
        %v2372 = vadd.f32 0.0, %v2371
        %v2373 = vpop.f32.mrb[0].mxu0
        %2374 = vmatprep.mubr.bf16.mxu0 0
        %2375 = vmatmul.mubr.bf16.gmra.mrb[0].mxu0 %v2304
        %v2376 = vpop.f32.mrb[0].mxu0
        %v2377 = vadd.f32 0.0, %v2376
        %v2378 = vpop.f32.mrb[0].mxu0
        %v2379 = vpop.f32.mrb[0].mxu0
        %v2380 = vadd.f32 0.0, %v2379
        %v2381 = vpop.f32.mrb[0].mxu0
        %2382 = vmatprep.mubr.bf16.mxu0 0
        %2383 = vmatmul.mubr.bf16.gmra.mrb[0].mxu0 %v2307
        %v2384 = vpop.f32.mrb[0].mxu0
        %v2385 = vadd.f32 0.0, %v2384
        %v2386 = vpop.f32.mrb[0].mxu0
        %v2387 = vpop.f32.mrb[0].mxu0
        %v2388 = vadd.f32 0.0, %v2387
        %v2389 = vpop.f32.mrb[0].mxu0
        %2390 = vmatprep.mubr.bf16.mxu0 0
        %2391 = vmatmul.mubr.bf16.gmra.mrb[0].mxu0 %v2310
        %v2392 = vpop.f32.mrb[0].mxu0
        %v2393 = vadd.f32 0.0, %v2392
        %v2394 = vpop.f32.mrb[0].mxu0
        %v2395 = vpop.f32.mrb[0].mxu0
        %v2396 = vadd.f32 0.0, %v2395
        %v2397 = vpop.f32.mrb[0].mxu0
        %2398 = vmatprep.mubr.bf16.mxu0 0
        %2399 = vmatmul.mubr.bf16.gmra.mrb[0].mxu0 %v2313
        %v2400 = vpop.f32.mrb[0].mxu0
        %v2401 = vadd.f32 0.0, %v2400
        %v2402 = vpop.f32.mrb[0].mxu0
        %v2403 = vpop.f32.mrb[0].mxu0
        %v2404 = vadd.f32 0.0, %v2403
        %v2405 = vpop.f32.mrb[0].mxu0
        %2406 = vdwg.mxu0
        %v2407 = vadd.f32 %v2242, %v2353
        %v2408 = vadd.f32 %v2243, %v2356
        %v2409 = vadd.f32 %v2244, %v2361
        %v2410 = vadd.f32 %v2245, %v2364
        %v2411 = vadd.f32 %v2246, %v2369
        %v2412 = vadd.f32 %v2247, %v2372
        %v2413 = vadd.f32 %v2248, %v2377
        %v2414 = vadd.f32 %v2249, %v2380
        %v2415 = vadd.f32 %v2250, %v2385
        %v2416 = vadd.f32 %v2251, %v2388
        %v2417 = vadd.f32 %v2252, %v2393
        %v2418 = vadd.f32 %v2253, %v2396
        %v2419 = vadd.f32 %v2254, %v2401
        %v2420 = vadd.f32 %v2255, %v2404
        %v2421 = vpack.c.bf16 %v2114, %v2115
        %v2422 = vpack.c.bf16 %v2112, %v2113
        %v2423 = vpack.c.bf16 %v2110, %v2111
        %v2424 = vpack.c.bf16 %v2108, %v2109
        %v2425 = vpack.c.bf16 %v2106, %v2107
        %v2426 = vpack.c.bf16 %v2118, %v2119
        %v2427 = vpack.c.bf16 %v2116, %v2117
        %s2428 = scalar_lea.vmem %s2, 48
        %v2429 = vld [vmem:[%s2428] sm:$0xf]
        %v2431 = vsel %vm659, %v2421, 0
        %v2434 = vsel %vm659, %v2422, 0
        %v2437 = vsel %vm659, %v2423, 0
        %v2440 = vsel %vm659, %v2424, 0
        %v2443 = vsel %vm659, %v2425, 0
        %v2446 = vsel %vm659, %v2426, 0
        %v2449 = vsel %vm659, %v2427, 0
        %v2452 = vsel %vm681, %v2429, 0
        %2454 = vmatprep.subr.bf16.mxu0 0
        %2455 = vmatpush1.bf16.msra.mxu0 %v2452
        %2456 = vmatprep.subr.bf16.mxu0 0
        %2457 = vmatpush1.bf16.msra.mxu0 0
        %2458 = vmatprep.subr.bf16.mxu0 0
        %2459 = vmatpush1.bf16.msra.mxu0 0
        %2460 = vmatprep.subr.bf16.mxu0 0
        %2461 = vmatpush1.bf16.msra.mxu0 0
        %2462 = vmatprep.subr.bf16.mxu0 0
        %2463 = vmatpush1.bf16.msra.mxu0 0
        %2464 = vmatprep.subr.bf16.mxu0 0
        %2465 = vmatpush1.bf16.msra.mxu0 0
        %2466 = vmatprep.subr.bf16.mxu0 0
        %2467 = vmatpush1.bf16.msra.mxu0 0
        %2468 = vmatprep.subr.bf16.mxu0 0
        %2469 = vmatpush1.bf16.msra.mxu0 0
        %2470 = vmatprep.subr.bf16.mxu0 0
        %2471 = vmatpush1.bf16.msra.mxu0 0
        %2472 = vmatprep.subr.bf16.mxu0 0
        %2473 = vmatpush1.bf16.msra.mxu0 0
        %2474 = vmatprep.subr.bf16.mxu0 0
        %2475 = vmatpush1.bf16.msra.mxu0 0
        %2476 = vmatprep.subr.bf16.mxu0 0
        %2477 = vmatpush1.bf16.msra.mxu0 0
        %2478 = vmatprep.subr.bf16.mxu0 0
        %2479 = vmatpush1.bf16.msra.mxu0 0
        %2480 = vmatprep.subr.bf16.mxu0 0
        %2481 = vmatpush1.bf16.msra.mxu0 0
        %2482 = vmatprep.subr.bf16.mxu0 0
        %2483 = vmatpush1.bf16.msra.mxu0 0
        %2484 = vmatprep.subr.bf16.mxu0 0
        %2485 = vmatpush1.bf16.msra.mxu0 0
        %2486 = vmatprep.mubr.bf16.mxu0 0
        %2487 = vmatmul.mubr.bf16.gmra.mrb[0].mxu0 %v2431
        %v2488 = vpop.f32.mrb[0].mxu0
        %v2489 = vadd.f32 0.0, %v2488
        %v2490 = vpop.f32.mrb[0].mxu0
        %v2491 = vpop.f32.mrb[0].mxu0
        %v2492 = vadd.f32 0.0, %v2491
        %v2493 = vpop.f32.mrb[0].mxu0
        %2494 = vmatprep.mubr.bf16.mxu0 0
        %2495 = vmatmul.mubr.bf16.gmra.mrb[0].mxu0 %v2434
        %v2496 = vpop.f32.mrb[0].mxu0
        %v2497 = vadd.f32 0.0, %v2496
        %v2498 = vpop.f32.mrb[0].mxu0
        %v2499 = vpop.f32.mrb[0].mxu0
        %v2500 = vadd.f32 0.0, %v2499
        %v2501 = vpop.f32.mrb[0].mxu0
        %2502 = vmatprep.mubr.bf16.mxu0 0
        %2503 = vmatmul.mubr.bf16.gmra.mrb[0].mxu0 %v2437
        %v2504 = vpop.f32.mrb[0].mxu0
        %v2505 = vadd.f32 0.0, %v2504
        %v2506 = vpop.f32.mrb[0].mxu0
        %v2507 = vpop.f32.mrb[0].mxu0
        %v2508 = vadd.f32 0.0, %v2507
        %v2509 = vpop.f32.mrb[0].mxu0
        %2510 = vmatprep.mubr.bf16.mxu0 0
        %2511 = vmatmul.mubr.bf16.gmra.mrb[0].mxu0 %v2440
        %v2512 = vpop.f32.mrb[0].mxu0
        %v2513 = vadd.f32 0.0, %v2512
        %v2514 = vpop.f32.mrb[0].mxu0
        %v2515 = vpop.f32.mrb[0].mxu0
        %v2516 = vadd.f32 0.0, %v2515
        %v2517 = vpop.f32.mrb[0].mxu0
        %2518 = vmatprep.mubr.bf16.mxu0 0
        %2519 = vmatmul.mubr.bf16.gmra.mrb[0].mxu0 %v2443
        %v2520 = vpop.f32.mrb[0].mxu0
        %v2521 = vadd.f32 0.0, %v2520
        %v2522 = vpop.f32.mrb[0].mxu0
        %v2523 = vpop.f32.mrb[0].mxu0
        %v2524 = vadd.f32 0.0, %v2523
        %v2525 = vpop.f32.mrb[0].mxu0
        %2526 = vmatprep.mubr.bf16.mxu0 0
        %2527 = vmatmul.mubr.bf16.gmra.mrb[0].mxu0 %v2446
        %v2528 = vpop.f32.mrb[0].mxu0
        %v2529 = vadd.f32 0.0, %v2528
        %v2530 = vpop.f32.mrb[0].mxu0
        %v2531 = vpop.f32.mrb[0].mxu0
        %v2532 = vadd.f32 0.0, %v2531
        %v2533 = vpop.f32.mrb[0].mxu0
        %2534 = vmatprep.mubr.bf16.mxu0 0
        %2535 = vmatmul.mubr.bf16.gmra.mrb[0].mxu0 %v2449
        %v2536 = vpop.f32.mrb[0].mxu0
        %v2537 = vadd.f32 0.0, %v2536
        %v2538 = vpop.f32.mrb[0].mxu0
        %v2539 = vpop.f32.mrb[0].mxu0
        %v2540 = vadd.f32 0.0, %v2539
        %v2541 = vpop.f32.mrb[0].mxu0
        %2542 = vdwg.mxu0
        %v2543 = vadd.f32 %v2407, %v2489
        %v2544 = vadd.f32 %v2408, %v2492
        %v2545 = vadd.f32 %v2409, %v2497
        %v2546 = vadd.f32 %v2410, %v2500
        %v2547 = vadd.f32 %v2411, %v2505
        %v2548 = vadd.f32 %v2412, %v2508
        %v2549 = vadd.f32 %v2413, %v2513
        %v2550 = vadd.f32 %v2414, %v2516
        %v2551 = vadd.f32 %v2415, %v2521
        %v2552 = vadd.f32 %v2416, %v2524
        %v2553 = vadd.f32 %v2417, %v2529
        %v2554 = vadd.f32 %v2418, %v2532
        %v2555 = vadd.f32 %v2419, %v2537
        %v2556 = vadd.f32 %v2420, %v2540
        %v2557 = vpack.c.bf16 %v2279, %v2280
        %v2558 = vpack.c.bf16 %v2277, %v2278
        %v2559 = vpack.c.bf16 %v2275, %v2276
        %v2560 = vpack.c.bf16 %v2273, %v2274
        %v2561 = vpack.c.bf16 %v2271, %v2272
        %v2562 = vpack.c.bf16 %v2283, %v2284
        %v2563 = vpack.c.bf16 %v2281, %v2282
        %s2564 = scalar_lea.vmem %s2, 52
        %v2565 = vld [vmem:[%s2564] sm:$0xf]
        %v2567 = vsel %vm659, %v2557, 0
        %v2570 = vsel %vm659, %v2558, 0
        %v2573 = vsel %vm659, %v2559, 0
        %v2576 = vsel %vm659, %v2560, 0
        %v2579 = vsel %vm659, %v2561, 0
        %v2582 = vsel %vm659, %v2562, 0
        %v2585 = vsel %vm659, %v2563, 0
        %v2588 = vsel %vm681, %v2565, 0
        %2590 = vmatprep.subr.bf16.mxu0 0
        %2591 = vmatpush1.bf16.msra.mxu0 %v2588
        %2592 = vmatprep.subr.bf16.mxu0 0
        %2593 = vmatpush1.bf16.msra.mxu0 0
        %2594 = vmatprep.subr.bf16.mxu0 0
        %2595 = vmatpush1.bf16.msra.mxu0 0
        %2596 = vmatprep.subr.bf16.mxu0 0
        %2597 = vmatpush1.bf16.msra.mxu0 0
        %2598 = vmatprep.subr.bf16.mxu0 0
        %2599 = vmatpush1.bf16.msra.mxu0 0
        %2600 = vmatprep.subr.bf16.mxu0 0
        %2601 = vmatpush1.bf16.msra.mxu0 0
        %2602 = vmatprep.subr.bf16.mxu0 0
        %2603 = vmatpush1.bf16.msra.mxu0 0
        %2604 = vmatprep.subr.bf16.mxu0 0
        %2605 = vmatpush1.bf16.msra.mxu0 0
        %2606 = vmatprep.subr.bf16.mxu0 0
        %2607 = vmatpush1.bf16.msra.mxu0 0
        %2608 = vmatprep.subr.bf16.mxu0 0
        %2609 = vmatpush1.bf16.msra.mxu0 0
        %2610 = vmatprep.subr.bf16.mxu0 0
        %2611 = vmatpush1.bf16.msra.mxu0 0
        %2612 = vmatprep.subr.bf16.mxu0 0
        %2613 = vmatpush1.bf16.msra.mxu0 0
        %2614 = vmatprep.subr.bf16.mxu0 0
        %2615 = vmatpush1.bf16.msra.mxu0 0
        %2616 = vmatprep.subr.bf16.mxu0 0
        %2617 = vmatpush1.bf16.msra.mxu0 0
        %2618 = vmatprep.subr.bf16.mxu0 0
        %2619 = vmatpush1.bf16.msra.mxu0 0
        %2620 = vmatprep.subr.bf16.mxu0 0
        %2621 = vmatpush1.bf16.msra.mxu0 0
        %2622 = vmatprep.mubr.bf16.mxu0 0
        %2623 = vmatmul.mubr.bf16.gmra.mrb[0].mxu0 %v2567
        %v2624 = vpop.f32.mrb[0].mxu0
        %v2625 = vadd.f32 0.0, %v2624
        %v2626 = vpop.f32.mrb[0].mxu0
        %v2627 = vpop.f32.mrb[0].mxu0
        %v2628 = vadd.f32 0.0, %v2627
        %v2629 = vpop.f32.mrb[0].mxu0
        %2630 = vmatprep.mubr.bf16.mxu0 0
        %2631 = vmatmul.mubr.bf16.gmra.mrb[0].mxu0 %v2570
        %v2632 = vpop.f32.mrb[0].mxu0
        %v2633 = vadd.f32 0.0, %v2632
        %v2634 = vpop.f32.mrb[0].mxu0
        %v2635 = vpop.f32.mrb[0].mxu0
        %v2636 = vadd.f32 0.0, %v2635
        %v2637 = vpop.f32.mrb[0].mxu0
        %2638 = vmatprep.mubr.bf16.mxu0 0
        %2639 = vmatmul.mubr.bf16.gmra.mrb[0].mxu0 %v2573
        %v2640 = vpop.f32.mrb[0].mxu0
        %v2641 = vadd.f32 0.0, %v2640
        %v2642 = vpop.f32.mrb[0].mxu0
        %v2643 = vpop.f32.mrb[0].mxu0
        %v2644 = vadd.f32 0.0, %v2643
        %v2645 = vpop.f32.mrb[0].mxu0
        %2646 = vmatprep.mubr.bf16.mxu0 0
        %2647 = vmatmul.mubr.bf16.gmra.mrb[0].mxu0 %v2576
        %v2648 = vpop.f32.mrb[0].mxu0
        %v2649 = vadd.f32 0.0, %v2648
        %v2650 = vpop.f32.mrb[0].mxu0
        %v2651 = vpop.f32.mrb[0].mxu0
        %v2652 = vadd.f32 0.0, %v2651
        %v2653 = vpop.f32.mrb[0].mxu0
        %2654 = vmatprep.mubr.bf16.mxu0 0
        %2655 = vmatmul.mubr.bf16.gmra.mrb[0].mxu0 %v2579
        %v2656 = vpop.f32.mrb[0].mxu0
        %v2657 = vadd.f32 0.0, %v2656
        %v2658 = vpop.f32.mrb[0].mxu0
        %v2659 = vpop.f32.mrb[0].mxu0
        %v2660 = vadd.f32 0.0, %v2659
        %v2661 = vpop.f32.mrb[0].mxu0
        %2662 = vmatprep.mubr.bf16.mxu0 0
        %2663 = vmatmul.mubr.bf16.gmra.mrb[0].mxu0 %v2582
        %v2664 = vpop.f32.mrb[0].mxu0
        %v2665 = vadd.f32 0.0, %v2664
        %v2666 = vpop.f32.mrb[0].mxu0
        %v2667 = vpop.f32.mrb[0].mxu0
        %v2668 = vadd.f32 0.0, %v2667
        %v2669 = vpop.f32.mrb[0].mxu0
        %2670 = vmatprep.mubr.bf16.mxu0 0
        %2671 = vmatmul.mubr.bf16.gmra.mrb[0].mxu0 %v2585
        %v2672 = vpop.f32.mrb[0].mxu0
        %v2673 = vadd.f32 0.0, %v2672
        %v2674 = vpop.f32.mrb[0].mxu0
        %v2675 = vpop.f32.mrb[0].mxu0
        %v2676 = vadd.f32 0.0, %v2675
        %v2677 = vpop.f32.mrb[0].mxu0
        %2678 = vdwg.mxu0
        %v2679 = vadd.f32 %v2543, %v2625
        %v2680 = vadd.f32 %v2544, %v2628
        %v2681 = vadd.f32 %v2545, %v2633
        %v2682 = vadd.f32 %v2546, %v2636
        %v2683 = vadd.f32 %v2547, %v2641
        %v2684 = vadd.f32 %v2548, %v2644
        %v2685 = vadd.f32 %v2549, %v2649
        %v2686 = vadd.f32 %v2550, %v2652
        %v2687 = vadd.f32 %v2551, %v2657
        %v2688 = vadd.f32 %v2552, %v2660
        %v2689 = vadd.f32 %v2553, %v2665
        %v2690 = vadd.f32 %v2554, %v2668
        %v2691 = vadd.f32 %v2555, %v2673
        %v2692 = vadd.f32 %v2556, %v2676
        %s2693 = scalar_lea.vmem %s2, 56
        %v2694 = vld [vmem:[%s2693] sm:$0xf]
        %v2696 = vsel %vm681, %v2694, 0
        %2698 = vmatprep.subr.bf16.mxu0 0
        %2699 = vmatpush1.bf16.msra.mxu0 %v2696
        %2700 = vmatprep.subr.bf16.mxu0 0
        %2701 = vmatpush1.bf16.msra.mxu0 0
        %2702 = vmatprep.subr.bf16.mxu0 0
        %2703 = vmatpush1.bf16.msra.mxu0 0
        %2704 = vmatprep.subr.bf16.mxu0 0
        %2705 = vmatpush1.bf16.msra.mxu0 0
        %2706 = vmatprep.subr.bf16.mxu0 0
        %2707 = vmatpush1.bf16.msra.mxu0 0
        %2708 = vmatprep.subr.bf16.mxu0 0
        %2709 = vmatpush1.bf16.msra.mxu0 0
        %2710 = vmatprep.subr.bf16.mxu0 0
        %2711 = vmatpush1.bf16.msra.mxu0 0
        %2712 = vmatprep.subr.bf16.mxu0 0
        %2713 = vmatpush1.bf16.msra.mxu0 0
        %2714 = vmatprep.subr.bf16.mxu0 0
        %2715 = vmatpush1.bf16.msra.mxu0 0
        %2716 = vmatprep.subr.bf16.mxu0 0
        %2717 = vmatpush1.bf16.msra.mxu0 0
        %2718 = vmatprep.subr.bf16.mxu0 0
        %2719 = vmatpush1.bf16.msra.mxu0 0
        %2720 = vmatprep.subr.bf16.mxu0 0
        %2721 = vmatpush1.bf16.msra.mxu0 0
        %2722 = vmatprep.subr.bf16.mxu0 0
        %2723 = vmatpush1.bf16.msra.mxu0 0
        %2724 = vmatprep.subr.bf16.mxu0 0
        %2725 = vmatpush1.bf16.msra.mxu0 0
        %2726 = vmatprep.subr.bf16.mxu0 0
        %2727 = vmatpush1.bf16.msra.mxu0 0
        %2728 = vmatprep.subr.bf16.mxu0 0
        %2729 = vmatpush1.bf16.msra.mxu0 0
        %2730 = vmatprep.mubr.bf16.mxu0 0
        %2731 = vmatmul.mubr.bf16.gmra.mrb[0].mxu0 %v781
        %v2732 = vpop.f32.mrb[0].mxu0
        %v2733 = vadd.f32 0.0, %v2732
        %v2734 = vpop.f32.mrb[0].mxu0
        %v2735 = vpop.f32.mrb[0].mxu0
        %v2736 = vadd.f32 0.0, %v2735
        %v2737 = vpop.f32.mrb[0].mxu0
        %2738 = vmatprep.mubr.bf16.mxu0 0
        %2739 = vmatmul.mubr.bf16.gmra.mrb[0].mxu0 %v784
        %v2740 = vpop.f32.mrb[0].mxu0
        %v2741 = vadd.f32 0.0, %v2740
        %v2742 = vpop.f32.mrb[0].mxu0
        %v2743 = vpop.f32.mrb[0].mxu0
        %v2744 = vadd.f32 0.0, %v2743
        %v2745 = vpop.f32.mrb[0].mxu0
        %2746 = vmatprep.mubr.bf16.mxu0 0
        %2747 = vmatmul.mubr.bf16.gmra.mrb[0].mxu0 %v787
        %v2748 = vpop.f32.mrb[0].mxu0
        %v2749 = vadd.f32 0.0, %v2748
        %v2750 = vpop.f32.mrb[0].mxu0
        %v2751 = vpop.f32.mrb[0].mxu0
        %v2752 = vadd.f32 0.0, %v2751
        %v2753 = vpop.f32.mrb[0].mxu0
        %2754 = vmatprep.mubr.bf16.mxu0 0
        %2755 = vmatmul.mubr.bf16.gmra.mrb[0].mxu0 %v790
        %v2756 = vpop.f32.mrb[0].mxu0
        %v2757 = vadd.f32 0.0, %v2756
        %v2758 = vpop.f32.mrb[0].mxu0
        %v2759 = vpop.f32.mrb[0].mxu0
        %v2760 = vadd.f32 0.0, %v2759
        %v2761 = vpop.f32.mrb[0].mxu0
        %2762 = vmatprep.mubr.bf16.mxu0 0
        %2763 = vmatmul.mubr.bf16.gmra.mrb[0].mxu0 %v793
        %v2764 = vpop.f32.mrb[0].mxu0
        %v2765 = vadd.f32 0.0, %v2764
        %v2766 = vpop.f32.mrb[0].mxu0
        %v2767 = vpop.f32.mrb[0].mxu0
        %v2768 = vadd.f32 0.0, %v2767
        %v2769 = vpop.f32.mrb[0].mxu0
        %2770 = vmatprep.mubr.bf16.mxu0 0
        %2771 = vmatmul.mubr.bf16.gmra.mrb[0].mxu0 %v775
        %v2772 = vpop.f32.mrb[0].mxu0
        %v2773 = vadd.f32 0.0, %v2772
        %v2774 = vpop.f32.mrb[0].mxu0
        %v2775 = vpop.f32.mrb[0].mxu0
        %v2776 = vadd.f32 0.0, %v2775
        %v2777 = vpop.f32.mrb[0].mxu0
        %2778 = vmatprep.mubr.bf16.mxu0 0
        %2779 = vmatmul.mubr.bf16.gmra.mrb[0].mxu0 %v778
        %v2780 = vpop.f32.mrb[0].mxu0
        %v2781 = vadd.f32 0.0, %v2780
        %v2782 = vpop.f32.mrb[0].mxu0
        %v2783 = vpop.f32.mrb[0].mxu0
        %v2784 = vadd.f32 0.0, %v2783
        %v2785 = vpop.f32.mrb[0].mxu0
        %2786 = vdwg.mxu0
        %v2787 = vadd.f32 %v2679, %v2733
        %v2788 = vadd.f32 %v2680, %v2736
        %v2789 = vadd.f32 %v2681, %v2741
        %v2790 = vadd.f32 %v2682, %v2744
        %v2791 = vadd.f32 %v2683, %v2749
        %v2792 = vadd.f32 %v2684, %v2752
        %v2793 = vadd.f32 %v2685, %v2757
        %v2794 = vadd.f32 %v2686, %v2760
        %v2795 = vadd.f32 %v2687, %v2765
        %v2796 = vadd.f32 %v2688, %v2768
        %v2797 = vadd.f32 %v2689, %v2773
        %v2798 = vadd.f32 %v2690, %v2776
        %v2799 = vadd.f32 %v2691, %v2781
        %v2800 = vadd.f32 %v2692, %v2784
        %s2801 = scalar_lea.vmem %s2, 60
        %v2802 = vld [vmem:[%s2801] sm:$0xf]
        %v2804 = vsel %vm681, %v2802, 0
        %2806 = vmatprep.subr.bf16.mxu0 0
        %2807 = vmatpush1.bf16.msra.mxu0 %v2804
        %2808 = vmatprep.subr.bf16.mxu0 0
        %2809 = vmatpush1.bf16.msra.mxu0 0
        %2810 = vmatprep.subr.bf16.mxu0 0
        %2811 = vmatpush1.bf16.msra.mxu0 0
        %2812 = vmatprep.subr.bf16.mxu0 0
        %2813 = vmatpush1.bf16.msra.mxu0 0
        %2814 = vmatprep.subr.bf16.mxu0 0
        %2815 = vmatpush1.bf16.msra.mxu0 0
        %2816 = vmatprep.subr.bf16.mxu0 0
        %2817 = vmatpush1.bf16.msra.mxu0 0
        %2818 = vmatprep.subr.bf16.mxu0 0
        %2819 = vmatpush1.bf16.msra.mxu0 0
        %2820 = vmatprep.subr.bf16.mxu0 0
        %2821 = vmatpush1.bf16.msra.mxu0 0
        %2822 = vmatprep.subr.bf16.mxu0 0
        %2823 = vmatpush1.bf16.msra.mxu0 0
        %2824 = vmatprep.subr.bf16.mxu0 0
        %2825 = vmatpush1.bf16.msra.mxu0 0
        %2826 = vmatprep.subr.bf16.mxu0 0
        %2827 = vmatpush1.bf16.msra.mxu0 0
        %2828 = vmatprep.subr.bf16.mxu0 0
        %2829 = vmatpush1.bf16.msra.mxu0 0
        %2830 = vmatprep.subr.bf16.mxu0 0
        %2831 = vmatpush1.bf16.msra.mxu0 0
        %2832 = vmatprep.subr.bf16.mxu0 0
        %2833 = vmatpush1.bf16.msra.mxu0 0
        %2834 = vmatprep.subr.bf16.mxu0 0
        %2835 = vmatpush1.bf16.msra.mxu0 0
        %2836 = vmatprep.subr.bf16.mxu0 0
        %2837 = vmatpush1.bf16.msra.mxu0 0
        %2838 = vmatprep.mubr.bf16.mxu0 0
        %2839 = vmatmul.mubr.bf16.gmra.mrb[0].mxu0 %v667
        %v2840 = vpop.f32.mrb[0].mxu0
        %v2841 = vadd.f32 0.0, %v2840
        %v2842 = vpop.f32.mrb[0].mxu0
        %v2843 = vpop.f32.mrb[0].mxu0
        %v2844 = vadd.f32 0.0, %v2843
        %v2845 = vpop.f32.mrb[0].mxu0
        %2846 = vmatprep.mubr.bf16.mxu0 0
        %2847 = vmatmul.mubr.bf16.gmra.mrb[0].mxu0 %v670
        %v2848 = vpop.f32.mrb[0].mxu0
        %v2849 = vadd.f32 0.0, %v2848
        %v2850 = vpop.f32.mrb[0].mxu0
        %v2851 = vpop.f32.mrb[0].mxu0
        %v2852 = vadd.f32 0.0, %v2851
        %v2853 = vpop.f32.mrb[0].mxu0
        %2854 = vmatprep.mubr.bf16.mxu0 0
        %2855 = vmatmul.mubr.bf16.gmra.mrb[0].mxu0 %v673
        %v2856 = vpop.f32.mrb[0].mxu0
        %v2857 = vadd.f32 0.0, %v2856
        %v2858 = vpop.f32.mrb[0].mxu0
        %v2859 = vpop.f32.mrb[0].mxu0
        %v2860 = vadd.f32 0.0, %v2859
        %v2861 = vpop.f32.mrb[0].mxu0
        %2862 = vmatprep.mubr.bf16.mxu0 0
        %2863 = vmatmul.mubr.bf16.gmra.mrb[0].mxu0 %v676
        %v2864 = vpop.f32.mrb[0].mxu0
        %v2865 = vadd.f32 0.0, %v2864
        %v2866 = vpop.f32.mrb[0].mxu0
        %v2867 = vpop.f32.mrb[0].mxu0
        %v2868 = vadd.f32 0.0, %v2867
        %v2869 = vpop.f32.mrb[0].mxu0
        %2870 = vmatprep.mubr.bf16.mxu0 0
        %2871 = vmatmul.mubr.bf16.gmra.mrb[0].mxu0 %v679
        %v2872 = vpop.f32.mrb[0].mxu0
        %v2873 = vadd.f32 0.0, %v2872
        %v2874 = vpop.f32.mrb[0].mxu0
        %v2875 = vpop.f32.mrb[0].mxu0
        %v2876 = vadd.f32 0.0, %v2875
        %v2877 = vpop.f32.mrb[0].mxu0
        %2878 = vmatprep.mubr.bf16.mxu0 0
        %2879 = vmatmul.mubr.bf16.gmra.mrb[0].mxu0 %v661
        %v2880 = vpop.f32.mrb[0].mxu0
        %v2881 = vadd.f32 0.0, %v2880
        %v2882 = vpop.f32.mrb[0].mxu0
        %v2883 = vpop.f32.mrb[0].mxu0
        %v2884 = vadd.f32 0.0, %v2883
        %v2885 = vpop.f32.mrb[0].mxu0
        %2886 = vmatprep.mubr.bf16.mxu0 0
        %2887 = vmatmul.mubr.bf16.gmra.mrb[0].mxu0 %v664
        %v2888 = vpop.f32.mrb[0].mxu0
        %v2889 = vadd.f32 0.0, %v2888
        %v2890 = vpop.f32.mrb[0].mxu0
        %v2891 = vpop.f32.mrb[0].mxu0
        %v2892 = vadd.f32 0.0, %v2891
        %v2893 = vpop.f32.mrb[0].mxu0
        %2894 = vdwg.mxu0
        %v2895 = vadd.f32 %v2787, %v2841
        %v2896 = vadd.f32 %v2788, %v2844
        %v2897 = vadd.f32 %v2789, %v2849
        %v2898 = vadd.f32 %v2790, %v2852
        %v2899 = vadd.f32 %v2791, %v2857
        %v2900 = vadd.f32 %v2792, %v2860
        %v2901 = vadd.f32 %v2793, %v2865
        %v2902 = vadd.f32 %v2794, %v2868
        %v2903 = vadd.f32 %v2795, %v2873
        %v2904 = vadd.f32 %v2796, %v2876
        %v2905 = vadd.f32 %v2797, %v2881
        %v2906 = vadd.f32 %v2798, %v2884
        %v2907 = vadd.f32 %v2799, %v2889
        %v2908 = vadd.f32 %v2800, %v2892
        %v2909 = vld [vmem:[%s9] sm:$0xff]
        %v2910 = vld [vmem:[%s9 + $0x8] sm:$0xff]
        %v2911 = vld [vmem:[%s9 + $0x10] sm:$0xff]
        %v2912 = vld [vmem:[%s9 + $0x18] sm:$0xff]
        %v2913 = vld [vmem:[%s9 + $0x20] sm:$0xff]
        %v2914 = vld [vmem:[%s9 + $0x28] sm:$0xff]
        %v2915 = vld [vmem:[%s9 + $0x30] sm:$0xff]
        %v2916 = vld [vmem:[%s9 + $0x38] sm:$0xff]
        %v2917 = vld [vmem:[%s9 + $0x40] sm:$0xff]
        %v2918 = vld [vmem:[%s9 + $0x48] sm:$0xff]
        %v2919 = vld [vmem:[%s9 + $0x50] sm:$0xff]
        %v2920 = vld [vmem:[%s9 + $0x58] sm:$0xff]
        %v2921 = vld [vmem:[%s9 + $0x60] sm:$0xff]
        %v2922 = vld [vmem:[%s9 + $0x68] sm:$0xff]
        %2924 = vset.pattern.permute.xlu0 0
        %2925 = vperm.xlu0 %2924, %v2909
        %v2926 = vpop.permute.xlu0 %2925
        %2929 = vset.pattern.permute.xlu0 0
        %2930 = vperm.xlu0 %2929, %v2910
        %v2931 = vpop.permute.xlu0 %2930
        %2934 = vset.pattern.permute.xlu0 0
        %2935 = vperm.xlu0 %2934, %v2911
        %v2936 = vpop.permute.xlu0 %2935
        %2939 = vset.pattern.permute.xlu0 0
        %2940 = vperm.xlu0 %2939, %v2912
        %v2941 = vpop.permute.xlu0 %2940
        %2944 = vset.pattern.permute.xlu0 0
        %2945 = vperm.xlu0 %2944, %v2913
        %v2946 = vpop.permute.xlu0 %2945
        %2949 = vset.pattern.permute.xlu0 0
        %2950 = vperm.xlu0 %2949, %v2914
        %v2951 = vpop.permute.xlu0 %2950
        %2954 = vset.pattern.permute.xlu0 0
        %2955 = vperm.xlu0 %2954, %v2915
        %v2956 = vpop.permute.xlu0 %2955
        %2959 = vset.pattern.permute.xlu0 0
        %2960 = vperm.xlu0 %2959, %v2916
        %v2961 = vpop.permute.xlu0 %2960
        %2964 = vset.pattern.permute.xlu0 0
        %2965 = vperm.xlu0 %2964, %v2917
        %v2966 = vpop.permute.xlu0 %2965
        %2969 = vset.pattern.permute.xlu0 0
        %2970 = vperm.xlu0 %2969, %v2918
        %v2971 = vpop.permute.xlu0 %2970
        %2974 = vset.pattern.permute.xlu0 0
        %2975 = vperm.xlu0 %2974, %v2919
        %v2976 = vpop.permute.xlu0 %2975
        %2979 = vset.pattern.permute.xlu0 0
        %2980 = vperm.xlu0 %2979, %v2920
        %v2981 = vpop.permute.xlu0 %2980
        %2984 = vset.pattern.permute.xlu0 0
        %2985 = vperm.xlu0 %2984, %v2921
        %v2986 = vpop.permute.xlu0 %2985
        %2989 = vset.pattern.permute.xlu0 0
        %2990 = vperm.xlu0 %2989, %v2922
        %v2991 = vpop.permute.xlu0 %2990
        %v2993 = vmul.f32 %v2895, %v2926
        %v2994 = vmul.f32 %v2896, %v2931
        %v2995 = vmul.f32 %v2897, %v2936
        %v2996 = vmul.f32 %v2898, %v2941
        %v2997 = vmul.f32 %v2899, %v2946
        %v2998 = vmul.f32 %v2900, %v2951
        %v2999 = vmul.f32 %v2901, %v2956
        %v3000 = vmul.f32 %v2902, %v2961
        %v3001 = vmul.f32 %v2903, %v2966
        %v3002 = vmul.f32 %v2904, %v2971
        %v3003 = vmul.f32 %v2905, %v2976
        %v3004 = vmul.f32 %v2906, %v2981
        %v3005 = vmul.f32 %v2907, %v2986
        %v3006 = vmul.f32 %v2908, %v2991
        %vm3007 = vcmask 130048
        %v3008 = vsel %vm3007, %v2993, 0.0
        %v3009 = vsel %vm3007, %v2994, 0.0
        %v3010 = vadd.f32 %v3008, %v3009
        %v3011 = vsel %vm3007, %v2995, 0.0
        %v3012 = vadd.f32 %v3010, %v3011
        %v3013 = vsel %vm3007, %v2996, 0.0
        %v3014 = vadd.f32 %v3012, %v3013
        %v3015 = vsel %vm3007, %v2997, 0.0
        %v3016 = vadd.f32 %v3014, %v3015
        %v3017 = vsel %vm3007, %v2998, 0.0
        %v3018 = vadd.f32 %v3016, %v3017
        %v3019 = vsel %vm3007, %v2999, 0.0
        %v3020 = vadd.f32 %v3018, %v3019
        %v3021 = vsel %vm3007, %v3000, 0.0
        %v3022 = vadd.f32 %v3020, %v3021
        %v3023 = vsel %vm3007, %v3001, 0.0
        %v3024 = vadd.f32 %v3022, %v3023
        %v3025 = vsel %vm3007, %v3002, 0.0
        %v3026 = vadd.f32 %v3024, %v3025
        %v3027 = vsel %vm3007, %v3003, 0.0
        %v3028 = vadd.f32 %v3026, %v3027
        %v3029 = vsel %vm3007, %v3004, 0.0
        %v3030 = vadd.f32 %v3028, %v3029
        %v3031 = vsel %vm3007, %v3005, 0.0
        %v3032 = vadd.f32 %v3030, %v3031
        %v3033 = vsel %vm3007, %v3006, 0.0
        %v3034 = vadd.f32 %v3032, %v3033
        %v3035 = vrot.slane %v3034, 4
        %v3036 = vadd.f32 %v3034, %v3035
        %v3037 = vrot.slane %v3036, 2
        %v3038 = vadd.f32 %v3036, %v3037
        %v3039 = vrot.slane %v3038, 1
        %v3040 = vadd.f32 %v3038, %v3039
        %v3041 = vmul.f32 %v3040, 0.020408163
        %v3042 = vsub.f32 %v2895, %v3041
        %v3043 = vsub.f32 %v2896, %v3041
        %v3044 = vsub.f32 %v2897, %v3041
        %v3045 = vsub.f32 %v2898, %v3041
        %v3046 = vsub.f32 %v2899, %v3041
        %v3047 = vsub.f32 %v2900, %v3041
        %v3048 = vsub.f32 %v2901, %v3041
        %v3049 = vsub.f32 %v2902, %v3041
        %v3050 = vsub.f32 %v2903, %v3041
        %v3051 = vsub.f32 %v2904, %v3041
        %v3052 = vsub.f32 %v2905, %v3041
        %v3053 = vsub.f32 %v2906, %v3041
        %v3054 = vsub.f32 %v2907, %v3041
        %v3055 = vsub.f32 %v2908, %v3041
        %v3056 = vmul.f32 %v3042, %v2926
        %v3057 = vmul.f32 %v3043, %v2931
        %v3058 = vmul.f32 %v3044, %v2936
        %v3059 = vmul.f32 %v3045, %v2941
        %v3060 = vmul.f32 %v3046, %v2946
        %v3061 = vmul.f32 %v3047, %v2951
        %v3062 = vmul.f32 %v3048, %v2956
        %v3063 = vmul.f32 %v3049, %v2961
        %v3064 = vmul.f32 %v3050, %v2966
        %v3065 = vmul.f32 %v3051, %v2971
        %v3066 = vmul.f32 %v3052, %v2976
        %v3067 = vmul.f32 %v3053, %v2981
        %v3068 = vmul.f32 %v3054, %v2986
        %v3069 = vmul.f32 %v3055, %v2991
        %v3070 = vmul.f32 %v3056, %v3056
        %v3071 = vmul.f32 %v3057, %v3057
        %v3072 = vmul.f32 %v3058, %v3058
        %v3073 = vmul.f32 %v3059, %v3059
        %v3074 = vmul.f32 %v3060, %v3060
        %v3075 = vmul.f32 %v3061, %v3061
        %v3076 = vmul.f32 %v3062, %v3062
        %v3077 = vmul.f32 %v3063, %v3063
        %v3078 = vmul.f32 %v3064, %v3064
        %v3079 = vmul.f32 %v3065, %v3065
        %v3080 = vmul.f32 %v3066, %v3066
        %v3081 = vmul.f32 %v3067, %v3067
        %v3082 = vmul.f32 %v3068, %v3068
        %v3083 = vmul.f32 %v3069, %v3069
        %v3084 = vsel %vm3007, %v3070, 0.0
        %v3085 = vsel %vm3007, %v3071, 0.0
        %v3086 = vadd.f32 %v3084, %v3085
        %v3087 = vsel %vm3007, %v3072, 0.0
        %v3088 = vadd.f32 %v3086, %v3087
        %v3089 = vsel %vm3007, %v3073, 0.0
        %v3090 = vadd.f32 %v3088, %v3089
        %v3091 = vsel %vm3007, %v3074, 0.0
        %v3092 = vadd.f32 %v3090, %v3091
        %v3093 = vsel %vm3007, %v3075, 0.0
        %v3094 = vadd.f32 %v3092, %v3093
        %v3095 = vsel %vm3007, %v3076, 0.0
        %v3096 = vadd.f32 %v3094, %v3095
        %v3097 = vsel %vm3007, %v3077, 0.0
        %v3098 = vadd.f32 %v3096, %v3097
        %v3099 = vsel %vm3007, %v3078, 0.0
        %v3100 = vadd.f32 %v3098, %v3099
        %v3101 = vsel %vm3007, %v3079, 0.0
        %v3102 = vadd.f32 %v3100, %v3101
        %v3103 = vsel %vm3007, %v3080, 0.0
        %v3104 = vadd.f32 %v3102, %v3103
        %v3105 = vsel %vm3007, %v3081, 0.0
        %v3106 = vadd.f32 %v3104, %v3105
        %v3107 = vsel %vm3007, %v3082, 0.0
        %v3108 = vadd.f32 %v3106, %v3107
        %v3109 = vsel %vm3007, %v3083, 0.0
        %v3110 = vadd.f32 %v3108, %v3109
        %v3111 = vrot.slane %v3110, 4
        %v3112 = vadd.f32 %v3110, %v3111
        %v3113 = vrot.slane %v3112, 2
        %v3114 = vadd.f32 %v3112, %v3113
        %v3115 = vrot.slane %v3114, 1
        %v3116 = vadd.f32 %v3114, %v3115
        %v3117 = vmul.f32 %v3116, 0.020408163
        %v3118 = vadd.f32 %v3117, 1e-05
        %v3119 = vrsqrt.pop %v3118
        %v3120 = vmul.f32 %v3056, %v3119
        %v3121 = vmul.f32 %v3057, %v3119
        %v3122 = vmul.f32 %v3058, %v3119
        %v3123 = vmul.f32 %v3059, %v3119
        %v3124 = vmul.f32 %v3060, %v3119
        %v3125 = vmul.f32 %v3061, %v3119
        %v3126 = vmul.f32 %v3062, %v3119
        %v3127 = vmul.f32 %v3063, %v3119
        %v3128 = vmul.f32 %v3064, %v3119
        %v3129 = vmul.f32 %v3065, %v3119
        %v3130 = vmul.f32 %v3066, %v3119
        %v3131 = vmul.f32 %v3067, %v3119
        %v3132 = vmul.f32 %v3068, %v3119
        %v3133 = vmul.f32 %v3069, %v3119
        %vm3134 = vcmp.ge.f32.partialorder %v3120, 0.0
        %vm3135 = vcmp.ge.f32.partialorder %v3121, 0.0
        %vm3136 = vcmp.ge.f32.partialorder %v3122, 0.0
        %vm3137 = vcmp.ge.f32.partialorder %v3123, 0.0
        %vm3138 = vcmp.ge.f32.partialorder %v3124, 0.0
        %vm3139 = vcmp.ge.f32.partialorder %v3125, 0.0
        %vm3140 = vcmp.ge.f32.partialorder %v3126, 0.0
        %vm3141 = vcmp.ge.f32.partialorder %v3127, 0.0
        %vm3142 = vcmp.ge.f32.partialorder %v3128, 0.0
        %vm3143 = vcmp.ge.f32.partialorder %v3129, 0.0
        %vm3144 = vcmp.ge.f32.partialorder %v3130, 0.0
        %vm3145 = vcmp.ge.f32.partialorder %v3131, 0.0
        %vm3146 = vcmp.ge.f32.partialorder %v3132, 0.0
        %vm3147 = vcmp.ge.f32.partialorder %v3133, 0.0
        %v3148 = vmul.f32 %v3120, 0.01
        %v3149 = vmul.f32 %v3121, 0.01
        %v3150 = vmul.f32 %v3122, 0.01
        %v3151 = vmul.f32 %v3123, 0.01
        %v3152 = vmul.f32 %v3124, 0.01
        %v3153 = vmul.f32 %v3125, 0.01
        %v3154 = vmul.f32 %v3126, 0.01
        %v3155 = vmul.f32 %v3127, 0.01
        %v3156 = vmul.f32 %v3128, 0.01
        %v3157 = vmul.f32 %v3129, 0.01
        %v3158 = vmul.f32 %v3130, 0.01
        %v3159 = vmul.f32 %v3131, 0.01
        %v3160 = vmul.f32 %v3132, 0.01
        %v3161 = vmul.f32 %v3133, 0.01
        %v3162 = vsel %vm3134, %v3120, %v3148
        %v3163 = vsel %vm3135, %v3121, %v3149
        %v3164 = vsel %vm3136, %v3122, %v3150
        %v3165 = vsel %vm3137, %v3123, %v3151
        %v3166 = vsel %vm3138, %v3124, %v3152
        %v3167 = vsel %vm3139, %v3125, %v3153
        %v3168 = vsel %vm3140, %v3126, %v3154
        %v3169 = vsel %vm3141, %v3127, %v3155
        %v3170 = vsel %vm3142, %v3128, %v3156
        %v3171 = vsel %vm3143, %v3129, %v3157
        %v3172 = vsel %vm3144, %v3130, %v3158
        %v3173 = vsel %vm3145, %v3131, %v3159
        %v3174 = vsel %vm3146, %v3132, %v3160
        %v3175 = vsel %vm3147, %v3133, %v3161
        %v3176 = vrot.slane %v3162, 5
        %v3177 = vrot.slane %v3163, 5
        %v3178 = vrot.slane %v3164, 5
        %v3179 = vrot.slane %v3165, 5
        %v3180 = vrot.slane %v3166, 5
        %v3181 = vrot.slane %v3167, 5
        %v3182 = vrot.slane %v3168, 5
        %v3183 = vrot.slane %v3169, 5
        %v3184 = vrot.slane %v3170, 5
        %v3185 = vrot.slane %v3171, 5
        %v3186 = vrot.slane %v3172, 5
        %v3187 = vrot.slane %v3173, 5
        %v3188 = vrot.slane %v3174, 5
        %v3189 = vrot.slane %v3175, 5
        %v3190 = vsel %vm1668, %v3188, %v3189
        %v3191 = vsel %vm1668, %v3187, %v3188
        %v3192 = vsel %vm1668, %v3186, %v3187
        %v3193 = vsel %vm1668, %v3185, %v3186
        %v3194 = vsel %vm1668, %v3184, %v3185
        %v3195 = vsel %vm1668, %v3183, %v3184
        %v3196 = vsel %vm1668, %v3182, %v3183
        %v3197 = vsel %vm1668, %v3181, %v3182
        %v3198 = vsel %vm1668, %v3180, %v3181
        %v3199 = vsel %vm1668, %v3179, %v3180
        %v3200 = vsel %vm1668, %v3178, %v3179
        %v3201 = vsel %vm1668, %v3177, %v3178
        %v3202 = vsel %vm1668, %v3176, %v3177
        %v3203 = vsel %vm1668, %v3189, %v3176
        %v3204 = vpack.c.bf16 %v3203, %v3190
        %v3205 = vpack.c.bf16 %v3201, %v3202
        %v3206 = vpack.c.bf16 %v3199, %v3200
        %v3207 = vpack.c.bf16 %v3197, %v3198
        %v3208 = vpack.c.bf16 %v3195, %v3196
        %v3209 = vpack.c.bf16 %v3193, %v3194
        %v3210 = vpack.c.bf16 %v3191, %v3192
        %v3211 = vld [vmem:[%s3] sm:$0xf]
        %v3212 = vld [vmem:[%s3 + $0x4] sm:$0xf]
        %v3213 = vrot.slane %v3190, 1
        %v3214 = vrot.slane %v3203, 1
        %v3215 = vrot.slane %v3202, 1
        %v3216 = vrot.slane %v3201, 1
        %v3217 = vrot.slane %v3200, 1
        %v3218 = vrot.slane %v3199, 1
        %v3219 = vrot.slane %v3198, 1
        %v3220 = vrot.slane %v3197, 1
        %v3221 = vrot.slane %v3196, 1
        %v3222 = vrot.slane %v3195, 1
        %v3223 = vrot.slane %v3194, 1
        %v3224 = vrot.slane %v3193, 1
        %v3225 = vrot.slane %v3192, 1
        %v3226 = vrot.slane %v3191, 1
        %v3227 = vsel %vm635, %v3225, %v3226
        %v3228 = vsel %vm635, %v3224, %v3225
        %v3229 = vsel %vm635, %v3223, %v3224
        %v3230 = vsel %vm635, %v3222, %v3223
        %v3231 = vsel %vm635, %v3221, %v3222
        %v3232 = vsel %vm635, %v3220, %v3221
        %v3233 = vsel %vm635, %v3219, %v3220
        %v3234 = vsel %vm635, %v3218, %v3219
        %v3235 = vsel %vm635, %v3217, %v3218
        %v3236 = vsel %vm635, %v3216, %v3217
        %v3237 = vsel %vm635, %v3215, %v3216
        %v3238 = vsel %vm635, %v3214, %v3215
        %v3239 = vsel %vm635, %v3213, %v3214
        %v3240 = vsel %vm635, %v3226, %v3213
        %v3241 = vpack.c.bf16 %v3238, %v3239
        %v3242 = vpack.c.bf16 %v3236, %v3237
        %v3243 = vpack.c.bf16 %v3234, %v3235
        %v3244 = vpack.c.bf16 %v3232, %v3233
        %v3245 = vpack.c.bf16 %v3230, %v3231
        %v3246 = vpack.c.bf16 %v3228, %v3229
        %v3247 = vpack.c.bf16 %v3240, %v3227
        %s3248 = scalar_lea.vmem %s3, 8
        %v3249 = vld [vmem:[%s3248] sm:$0xf]
        %v3250 = vld [vmem:[%s3248 + $0x4] sm:$0xf]
        %v3253 = vunpack.c.l.b16 %v3249
        %v3254 = vunpack.c.l.b16 %v3250
        %v3255 = vpack.c.b16 %v3254, %v3253
        %v3258 = vsel %vm3007, %v3241, 0
        %v3261 = vsel %vm3007, %v3242, 0
        %v3264 = vsel %vm3007, %v3243, 0
        %v3267 = vsel %vm3007, %v3244, 0
        %v3270 = vsel %vm3007, %v3245, 0
        %v3273 = vsel %vm3007, %v3246, 0
        %v3276 = vsel %vm3007, %v3247, 0
        %3278 = vmatprep.subr.bf16.mxu0 0
        %3279 = vmatpush1.bf16.msra.mxu0 %v3255
        %3280 = vmatprep.subr.bf16.mxu0 0
        %3281 = vmatpush1.bf16.msra.mxu0 0
        %3282 = vmatprep.subr.bf16.mxu0 0
        %3283 = vmatpush1.bf16.msra.mxu0 0
        %3284 = vmatprep.subr.bf16.mxu0 0
        %3285 = vmatpush1.bf16.msra.mxu0 0
        %3286 = vmatprep.subr.bf16.mxu0 0
        %3287 = vmatpush1.bf16.msra.mxu0 0
        %3288 = vmatprep.subr.bf16.mxu0 0
        %3289 = vmatpush1.bf16.msra.mxu0 0
        %3290 = vmatprep.subr.bf16.mxu0 0
        %3291 = vmatpush1.bf16.msra.mxu0 0
        %3292 = vmatprep.subr.bf16.mxu0 0
        %3293 = vmatpush1.bf16.msra.mxu0 0
        %3294 = vmatprep.subr.bf16.mxu0 0
        %3295 = vmatpush1.bf16.msra.mxu0 0
        %3296 = vmatprep.subr.bf16.mxu0 0
        %3297 = vmatpush1.bf16.msra.mxu0 0
        %3298 = vmatprep.subr.bf16.mxu0 0
        %3299 = vmatpush1.bf16.msra.mxu0 0
        %3300 = vmatprep.subr.bf16.mxu0 0
        %3301 = vmatpush1.bf16.msra.mxu0 0
        %3302 = vmatprep.subr.bf16.mxu0 0
        %3303 = vmatpush1.bf16.msra.mxu0 0
        %3304 = vmatprep.subr.bf16.mxu0 0
        %3305 = vmatpush1.bf16.msra.mxu0 0
        %3306 = vmatprep.subr.bf16.mxu0 0
        %3307 = vmatpush1.bf16.msra.mxu0 0
        %3308 = vmatprep.subr.bf16.mxu0 0
        %3309 = vmatpush1.bf16.msra.mxu0 0
        %3310 = vmatprep.mubr.bf16.mxu0 0
        %3311 = vmatmul.mubr.bf16.gmra.mrb[0].mxu0 %v3258
        %v3312 = vpop.f32.mrb[0].mxu0
        %v3313 = vadd.f32 0.0, %v3312
        %v3314 = vpop.f32.mrb[0].mxu0
        %v3315 = vpop.f32.mrb[0].mxu0
        %v3316 = vadd.f32 0.0, %v3315
        %v3317 = vpop.f32.mrb[0].mxu0
        %3318 = vmatprep.mubr.bf16.mxu0 0
        %3319 = vmatmul.mubr.bf16.gmra.mrb[0].mxu0 %v3261
        %v3320 = vpop.f32.mrb[0].mxu0
        %v3321 = vadd.f32 0.0, %v3320
        %v3322 = vpop.f32.mrb[0].mxu0
        %v3323 = vpop.f32.mrb[0].mxu0
        %v3324 = vadd.f32 0.0, %v3323
        %v3325 = vpop.f32.mrb[0].mxu0
        %3326 = vmatprep.mubr.bf16.mxu0 0
        %3327 = vmatmul.mubr.bf16.gmra.mrb[0].mxu0 %v3264
        %v3328 = vpop.f32.mrb[0].mxu0
        %v3329 = vadd.f32 0.0, %v3328
        %v3330 = vpop.f32.mrb[0].mxu0
        %v3331 = vpop.f32.mrb[0].mxu0
        %v3332 = vadd.f32 0.0, %v3331
        %v3333 = vpop.f32.mrb[0].mxu0
        %3334 = vmatprep.mubr.bf16.mxu0 0
        %3335 = vmatmul.mubr.bf16.gmra.mrb[0].mxu0 %v3267
        %v3336 = vpop.f32.mrb[0].mxu0
        %v3337 = vadd.f32 0.0, %v3336
        %v3338 = vpop.f32.mrb[0].mxu0
        %v3339 = vpop.f32.mrb[0].mxu0
        %v3340 = vadd.f32 0.0, %v3339
        %v3341 = vpop.f32.mrb[0].mxu0
        %3342 = vmatprep.mubr.bf16.mxu0 0
        %3343 = vmatmul.mubr.bf16.gmra.mrb[0].mxu0 %v3270
        %v3344 = vpop.f32.mrb[0].mxu0
        %v3345 = vadd.f32 0.0, %v3344
        %v3346 = vpop.f32.mrb[0].mxu0
        %v3347 = vpop.f32.mrb[0].mxu0
        %v3348 = vadd.f32 0.0, %v3347
        %v3349 = vpop.f32.mrb[0].mxu0
        %3350 = vmatprep.mubr.bf16.mxu0 0
        %3351 = vmatmul.mubr.bf16.gmra.mrb[0].mxu0 %v3273
        %v3352 = vpop.f32.mrb[0].mxu0
        %v3353 = vadd.f32 0.0, %v3352
        %v3354 = vpop.f32.mrb[0].mxu0
        %v3355 = vpop.f32.mrb[0].mxu0
        %v3356 = vadd.f32 0.0, %v3355
        %v3357 = vpop.f32.mrb[0].mxu0
        %3358 = vmatprep.mubr.bf16.mxu0 0
        %3359 = vmatmul.mubr.bf16.gmra.mrb[0].mxu0 %v3276
        %v3360 = vpop.f32.mrb[0].mxu0
        %v3361 = vadd.f32 0.0, %v3360
        %v3362 = vpop.f32.mrb[0].mxu0
        %v3363 = vpop.f32.mrb[0].mxu0
        %v3364 = vadd.f32 0.0, %v3363
        %v3365 = vpop.f32.mrb[0].mxu0
        %3366 = vdwg.mxu0
        %v3369 = vunpack.c.l.b16 %v3211
        %v3370 = vunpack.c.l.b16 %v3212
        %v3371 = vpack.c.b16 %v3370, %v3369
        %v3374 = vsel %vm3007, %v3204, 0
        %v3377 = vsel %vm3007, %v3205, 0
        %v3380 = vsel %vm3007, %v3206, 0
        %v3383 = vsel %vm3007, %v3207, 0
        %v3386 = vsel %vm3007, %v3208, 0
        %v3389 = vsel %vm3007, %v3209, 0
        %v3392 = vsel %vm3007, %v3210, 0
        %3394 = vmatprep.subr.bf16.mxu0 0
        %3395 = vmatpush1.bf16.msra.mxu0 %v3371
        %3396 = vmatprep.subr.bf16.mxu0 0
        %3397 = vmatpush1.bf16.msra.mxu0 0
        %3398 = vmatprep.subr.bf16.mxu0 0
        %3399 = vmatpush1.bf16.msra.mxu0 0
        %3400 = vmatprep.subr.bf16.mxu0 0
        %3401 = vmatpush1.bf16.msra.mxu0 0
        %3402 = vmatprep.subr.bf16.mxu0 0
        %3403 = vmatpush1.bf16.msra.mxu0 0
        %3404 = vmatprep.subr.bf16.mxu0 0
        %3405 = vmatpush1.bf16.msra.mxu0 0
        %3406 = vmatprep.subr.bf16.mxu0 0
        %3407 = vmatpush1.bf16.msra.mxu0 0
        %3408 = vmatprep.subr.bf16.mxu0 0
        %3409 = vmatpush1.bf16.msra.mxu0 0
        %3410 = vmatprep.subr.bf16.mxu0 0
        %3411 = vmatpush1.bf16.msra.mxu0 0
        %3412 = vmatprep.subr.bf16.mxu0 0
        %3413 = vmatpush1.bf16.msra.mxu0 0
        %3414 = vmatprep.subr.bf16.mxu0 0
        %3415 = vmatpush1.bf16.msra.mxu0 0
        %3416 = vmatprep.subr.bf16.mxu0 0
        %3417 = vmatpush1.bf16.msra.mxu0 0
        %3418 = vmatprep.subr.bf16.mxu0 0
        %3419 = vmatpush1.bf16.msra.mxu0 0
        %3420 = vmatprep.subr.bf16.mxu0 0
        %3421 = vmatpush1.bf16.msra.mxu0 0
        %3422 = vmatprep.subr.bf16.mxu0 0
        %3423 = vmatpush1.bf16.msra.mxu0 0
        %3424 = vmatprep.subr.bf16.mxu0 0
        %3425 = vmatpush1.bf16.msra.mxu0 0
        %3426 = vmatprep.mubr.bf16.mxu0 0
        %3427 = vmatmul.mubr.bf16.gmra.mrb[0].mxu0 %v3374
        %v3428 = vpop.f32.mrb[0].mxu0
        %v3429 = vadd.f32 %v3313, %v3428
        %v3430 = vpop.f32.mrb[0].mxu0
        %v3431 = vpop.f32.mrb[0].mxu0
        %v3432 = vadd.f32 %v3316, %v3431
        %v3433 = vpop.f32.mrb[0].mxu0
        %3434 = vmatprep.mubr.bf16.mxu0 0
        %3435 = vmatmul.mubr.bf16.gmra.mrb[0].mxu0 %v3377
        %v3436 = vpop.f32.mrb[0].mxu0
        %v3437 = vadd.f32 %v3321, %v3436
        %v3438 = vpop.f32.mrb[0].mxu0
        %v3439 = vpop.f32.mrb[0].mxu0
        %v3440 = vadd.f32 %v3324, %v3439
        %v3441 = vpop.f32.mrb[0].mxu0
        %3442 = vmatprep.mubr.bf16.mxu0 0
        %3443 = vmatmul.mubr.bf16.gmra.mrb[0].mxu0 %v3380
        %v3444 = vpop.f32.mrb[0].mxu0
        %v3445 = vadd.f32 %v3329, %v3444
        %v3446 = vpop.f32.mrb[0].mxu0
        %v3447 = vpop.f32.mrb[0].mxu0
        %v3448 = vadd.f32 %v3332, %v3447
        %v3449 = vpop.f32.mrb[0].mxu0
        %3450 = vmatprep.mubr.bf16.mxu0 0
        %3451 = vmatmul.mubr.bf16.gmra.mrb[0].mxu0 %v3383
        %v3452 = vpop.f32.mrb[0].mxu0
        %v3453 = vadd.f32 %v3337, %v3452
        %v3454 = vpop.f32.mrb[0].mxu0
        %v3455 = vpop.f32.mrb[0].mxu0
        %v3456 = vadd.f32 %v3340, %v3455
        %v3457 = vpop.f32.mrb[0].mxu0
        %3458 = vmatprep.mubr.bf16.mxu0 0
        %3459 = vmatmul.mubr.bf16.gmra.mrb[0].mxu0 %v3386
        %v3460 = vpop.f32.mrb[0].mxu0
        %v3461 = vadd.f32 %v3345, %v3460
        %v3462 = vpop.f32.mrb[0].mxu0
        %v3463 = vpop.f32.mrb[0].mxu0
        %v3464 = vadd.f32 %v3348, %v3463
        %v3465 = vpop.f32.mrb[0].mxu0
        %3466 = vmatprep.mubr.bf16.mxu0 0
        %3467 = vmatmul.mubr.bf16.gmra.mrb[0].mxu0 %v3389
        %v3468 = vpop.f32.mrb[0].mxu0
        %v3469 = vadd.f32 %v3353, %v3468
        %v3470 = vpop.f32.mrb[0].mxu0
        %v3471 = vpop.f32.mrb[0].mxu0
        %v3472 = vadd.f32 %v3356, %v3471
        %v3473 = vpop.f32.mrb[0].mxu0
        %3474 = vmatprep.mubr.bf16.mxu0 0
        %3475 = vmatmul.mubr.bf16.gmra.mrb[0].mxu0 %v3392
        %v3476 = vpop.f32.mrb[0].mxu0
        %v3477 = vadd.f32 %v3361, %v3476
        %v3478 = vpop.f32.mrb[0].mxu0
        %v3479 = vpop.f32.mrb[0].mxu0
        %v3480 = vadd.f32 %v3364, %v3479
        %v3481 = vpop.f32.mrb[0].mxu0
        %3482 = vdwg.mxu0
        %v3483 = vrot.slane %v3190, 2
        %v3484 = vrot.slane %v3203, 2
        %v3485 = vrot.slane %v3202, 2
        %v3486 = vrot.slane %v3201, 2
        %v3487 = vrot.slane %v3200, 2
        %v3488 = vrot.slane %v3199, 2
        %v3489 = vrot.slane %v3198, 2
        %v3490 = vrot.slane %v3197, 2
        %v3491 = vrot.slane %v3196, 2
        %v3492 = vrot.slane %v3195, 2
        %v3493 = vrot.slane %v3194, 2
        %v3494 = vrot.slane %v3193, 2
        %v3495 = vrot.slane %v3192, 2
        %v3496 = vrot.slane %v3191, 2
        %v3497 = vsel %vm901, %v3495, %v3496
        %v3498 = vsel %vm901, %v3494, %v3495
        %v3499 = vsel %vm901, %v3493, %v3494
        %v3500 = vsel %vm901, %v3492, %v3493
        %v3501 = vsel %vm901, %v3491, %v3492
        %v3502 = vsel %vm901, %v3490, %v3491
        %v3503 = vsel %vm901, %v3489, %v3490
        %v3504 = vsel %vm901, %v3488, %v3489
        %v3505 = vsel %vm901, %v3487, %v3488
        %v3506 = vsel %vm901, %v3486, %v3487
        %v3507 = vsel %vm901, %v3485, %v3486
        %v3508 = vsel %vm901, %v3484, %v3485
        %v3509 = vsel %vm901, %v3483, %v3484
        %v3510 = vsel %vm901, %v3496, %v3483
        %v3511 = vpack.c.bf16 %v3508, %v3509
        %v3512 = vpack.c.bf16 %v3506, %v3507
        %v3513 = vpack.c.bf16 %v3504, %v3505
        %v3514 = vpack.c.bf16 %v3502, %v3503
        %v3515 = vpack.c.bf16 %v3500, %v3501
        %v3516 = vpack.c.bf16 %v3498, %v3499
        %v3517 = vpack.c.bf16 %v3510, %v3497
        %s3518 = scalar_lea.vmem %s3, 16
        %v3519 = vld [vmem:[%s3518] sm:$0xf]
        %v3520 = vld [vmem:[%s3518 + $0x4] sm:$0xf]
        %v3523 = vunpack.c.l.b16 %v3519
        %v3524 = vunpack.c.l.b16 %v3520
        %v3525 = vpack.c.b16 %v3524, %v3523
        %v3528 = vsel %vm3007, %v3511, 0
        %v3531 = vsel %vm3007, %v3512, 0
        %v3534 = vsel %vm3007, %v3513, 0
        %v3537 = vsel %vm3007, %v3514, 0
        %v3540 = vsel %vm3007, %v3515, 0
        %v3543 = vsel %vm3007, %v3516, 0
        %v3546 = vsel %vm3007, %v3517, 0
        %3548 = vmatprep.subr.bf16.mxu0 0
        %3549 = vmatpush1.bf16.msra.mxu0 %v3525
        %3550 = vmatprep.subr.bf16.mxu0 0
        %3551 = vmatpush1.bf16.msra.mxu0 0
        %3552 = vmatprep.subr.bf16.mxu0 0
        %3553 = vmatpush1.bf16.msra.mxu0 0
        %3554 = vmatprep.subr.bf16.mxu0 0
        %3555 = vmatpush1.bf16.msra.mxu0 0
        %3556 = vmatprep.subr.bf16.mxu0 0
        %3557 = vmatpush1.bf16.msra.mxu0 0
        %3558 = vmatprep.subr.bf16.mxu0 0
        %3559 = vmatpush1.bf16.msra.mxu0 0
        %3560 = vmatprep.subr.bf16.mxu0 0
        %3561 = vmatpush1.bf16.msra.mxu0 0
        %3562 = vmatprep.subr.bf16.mxu0 0
        %3563 = vmatpush1.bf16.msra.mxu0 0
        %3564 = vmatprep.subr.bf16.mxu0 0
        %3565 = vmatpush1.bf16.msra.mxu0 0
        %3566 = vmatprep.subr.bf16.mxu0 0
        %3567 = vmatpush1.bf16.msra.mxu0 0
        %3568 = vmatprep.subr.bf16.mxu0 0
        %3569 = vmatpush1.bf16.msra.mxu0 0
        %3570 = vmatprep.subr.bf16.mxu0 0
        %3571 = vmatpush1.bf16.msra.mxu0 0
        %3572 = vmatprep.subr.bf16.mxu0 0
        %3573 = vmatpush1.bf16.msra.mxu0 0
        %3574 = vmatprep.subr.bf16.mxu0 0
        %3575 = vmatpush1.bf16.msra.mxu0 0
        %3576 = vmatprep.subr.bf16.mxu0 0
        %3577 = vmatpush1.bf16.msra.mxu0 0
        %3578 = vmatprep.subr.bf16.mxu0 0
        %3579 = vmatpush1.bf16.msra.mxu0 0
        %3580 = vmatprep.mubr.bf16.mxu0 0
        %3581 = vmatmul.mubr.bf16.gmra.mrb[0].mxu0 %v3528
        %v3582 = vpop.f32.mrb[0].mxu0
        %v3583 = vadd.f32 0.0, %v3582
        %v3584 = vpop.f32.mrb[0].mxu0
        %v3585 = vpop.f32.mrb[0].mxu0
        %v3586 = vadd.f32 0.0, %v3585
        %v3587 = vpop.f32.mrb[0].mxu0
        %3588 = vmatprep.mubr.bf16.mxu0 0
        %3589 = vmatmul.mubr.bf16.gmra.mrb[0].mxu0 %v3531
        %v3590 = vpop.f32.mrb[0].mxu0
        %v3591 = vadd.f32 0.0, %v3590
        %v3592 = vpop.f32.mrb[0].mxu0
        %v3593 = vpop.f32.mrb[0].mxu0
        %v3594 = vadd.f32 0.0, %v3593
        %v3595 = vpop.f32.mrb[0].mxu0
        %3596 = vmatprep.mubr.bf16.mxu0 0
        %3597 = vmatmul.mubr.bf16.gmra.mrb[0].mxu0 %v3534
        %v3598 = vpop.f32.mrb[0].mxu0
        %v3599 = vadd.f32 0.0, %v3598
        %v3600 = vpop.f32.mrb[0].mxu0
        %v3601 = vpop.f32.mrb[0].mxu0
        %v3602 = vadd.f32 0.0, %v3601
        %v3603 = vpop.f32.mrb[0].mxu0
        %3604 = vmatprep.mubr.bf16.mxu0 0
        %3605 = vmatmul.mubr.bf16.gmra.mrb[0].mxu0 %v3537
        %v3606 = vpop.f32.mrb[0].mxu0
        %v3607 = vadd.f32 0.0, %v3606
        %v3608 = vpop.f32.mrb[0].mxu0
        %v3609 = vpop.f32.mrb[0].mxu0
        %v3610 = vadd.f32 0.0, %v3609
        %v3611 = vpop.f32.mrb[0].mxu0
        %3612 = vmatprep.mubr.bf16.mxu0 0
        %3613 = vmatmul.mubr.bf16.gmra.mrb[0].mxu0 %v3540
        %v3614 = vpop.f32.mrb[0].mxu0
        %v3615 = vadd.f32 0.0, %v3614
        %v3616 = vpop.f32.mrb[0].mxu0
        %v3617 = vpop.f32.mrb[0].mxu0
        %v3618 = vadd.f32 0.0, %v3617
        %v3619 = vpop.f32.mrb[0].mxu0
        %3620 = vmatprep.mubr.bf16.mxu0 0
        %3621 = vmatmul.mubr.bf16.gmra.mrb[0].mxu0 %v3543
        %v3622 = vpop.f32.mrb[0].mxu0
        %v3623 = vadd.f32 0.0, %v3622
        %v3624 = vpop.f32.mrb[0].mxu0
        %v3625 = vpop.f32.mrb[0].mxu0
        %v3626 = vadd.f32 0.0, %v3625
        %v3627 = vpop.f32.mrb[0].mxu0
        %3628 = vmatprep.mubr.bf16.mxu0 0
        %3629 = vmatmul.mubr.bf16.gmra.mrb[0].mxu0 %v3546
        %v3630 = vpop.f32.mrb[0].mxu0
        %v3631 = vadd.f32 0.0, %v3630
        %v3632 = vpop.f32.mrb[0].mxu0
        %v3633 = vpop.f32.mrb[0].mxu0
        %v3634 = vadd.f32 0.0, %v3633
        %v3635 = vpop.f32.mrb[0].mxu0
        %3636 = vdwg.mxu0
        %v3637 = vadd.f32 %v3429, %v3583
        %v3638 = vadd.f32 %v3432, %v3586
        %v3639 = vadd.f32 %v3437, %v3591
        %v3640 = vadd.f32 %v3440, %v3594
        %v3641 = vadd.f32 %v3445, %v3599
        %v3642 = vadd.f32 %v3448, %v3602
        %v3643 = vadd.f32 %v3453, %v3607
        %v3644 = vadd.f32 %v3456, %v3610
        %v3645 = vadd.f32 %v3461, %v3615
        %v3646 = vadd.f32 %v3464, %v3618
        %v3647 = vadd.f32 %v3469, %v3623
        %v3648 = vadd.f32 %v3472, %v3626
        %v3649 = vadd.f32 %v3477, %v3631
        %v3650 = vadd.f32 %v3480, %v3634
        %v3651 = vrot.slane %v3190, 3
        %v3652 = vrot.slane %v3203, 3
        %v3653 = vrot.slane %v3202, 3
        %v3654 = vrot.slane %v3201, 3
        %v3655 = vrot.slane %v3200, 3
        %v3656 = vrot.slane %v3199, 3
        %v3657 = vrot.slane %v3198, 3
        %v3658 = vrot.slane %v3197, 3
        %v3659 = vrot.slane %v3196, 3
        %v3660 = vrot.slane %v3195, 3
        %v3661 = vrot.slane %v3194, 3
        %v3662 = vrot.slane %v3193, 3
        %v3663 = vrot.slane %v3192, 3
        %v3664 = vrot.slane %v3191, 3
        %v3665 = vsel %vm1066, %v3663, %v3664
        %v3666 = vsel %vm1066, %v3662, %v3663
        %v3667 = vsel %vm1066, %v3661, %v3662
        %v3668 = vsel %vm1066, %v3660, %v3661
        %v3669 = vsel %vm1066, %v3659, %v3660
        %v3670 = vsel %vm1066, %v3658, %v3659
        %v3671 = vsel %vm1066, %v3657, %v3658
        %v3672 = vsel %vm1066, %v3656, %v3657
        %v3673 = vsel %vm1066, %v3655, %v3656
        %v3674 = vsel %vm1066, %v3654, %v3655
        %v3675 = vsel %vm1066, %v3653, %v3654
        %v3676 = vsel %vm1066, %v3652, %v3653
        %v3677 = vsel %vm1066, %v3651, %v3652
        %v3678 = vsel %vm1066, %v3664, %v3651
        %v3679 = vpack.c.bf16 %v3676, %v3677
        %v3680 = vpack.c.bf16 %v3674, %v3675
        %v3681 = vpack.c.bf16 %v3672, %v3673
        %v3682 = vpack.c.bf16 %v3670, %v3671
        %v3683 = vpack.c.bf16 %v3668, %v3669
        %v3684 = vpack.c.bf16 %v3666, %v3667
        %v3685 = vpack.c.bf16 %v3678, %v3665
        %s3686 = scalar_lea.vmem %s3, 24
        %v3687 = vld [vmem:[%s3686] sm:$0xf]
        %v3688 = vld [vmem:[%s3686 + $0x4] sm:$0xf]
        %v3691 = vunpack.c.l.b16 %v3687
        %v3692 = vunpack.c.l.b16 %v3688
        %v3693 = vpack.c.b16 %v3692, %v3691
        %v3696 = vsel %vm3007, %v3679, 0
        %v3699 = vsel %vm3007, %v3680, 0
        %v3702 = vsel %vm3007, %v3681, 0
        %v3705 = vsel %vm3007, %v3682, 0
        %v3708 = vsel %vm3007, %v3683, 0
        %v3711 = vsel %vm3007, %v3684, 0
        %v3714 = vsel %vm3007, %v3685, 0
        %3716 = vmatprep.subr.bf16.mxu0 0
        %3717 = vmatpush1.bf16.msra.mxu0 %v3693
        %3718 = vmatprep.subr.bf16.mxu0 0
        %3719 = vmatpush1.bf16.msra.mxu0 0
        %3720 = vmatprep.subr.bf16.mxu0 0
        %3721 = vmatpush1.bf16.msra.mxu0 0
        %3722 = vmatprep.subr.bf16.mxu0 0
        %3723 = vmatpush1.bf16.msra.mxu0 0
        %3724 = vmatprep.subr.bf16.mxu0 0
        %3725 = vmatpush1.bf16.msra.mxu0 0
        %3726 = vmatprep.subr.bf16.mxu0 0
        %3727 = vmatpush1.bf16.msra.mxu0 0
        %3728 = vmatprep.subr.bf16.mxu0 0
        %3729 = vmatpush1.bf16.msra.mxu0 0
        %3730 = vmatprep.subr.bf16.mxu0 0
        %3731 = vmatpush1.bf16.msra.mxu0 0
        %3732 = vmatprep.subr.bf16.mxu0 0
        %3733 = vmatpush1.bf16.msra.mxu0 0
        %3734 = vmatprep.subr.bf16.mxu0 0
        %3735 = vmatpush1.bf16.msra.mxu0 0
        %3736 = vmatprep.subr.bf16.mxu0 0
        %3737 = vmatpush1.bf16.msra.mxu0 0
        %3738 = vmatprep.subr.bf16.mxu0 0
        %3739 = vmatpush1.bf16.msra.mxu0 0
        %3740 = vmatprep.subr.bf16.mxu0 0
        %3741 = vmatpush1.bf16.msra.mxu0 0
        %3742 = vmatprep.subr.bf16.mxu0 0
        %3743 = vmatpush1.bf16.msra.mxu0 0
        %3744 = vmatprep.subr.bf16.mxu0 0
        %3745 = vmatpush1.bf16.msra.mxu0 0
        %3746 = vmatprep.subr.bf16.mxu0 0
        %3747 = vmatpush1.bf16.msra.mxu0 0
        %3748 = vmatprep.mubr.bf16.mxu0 0
        %3749 = vmatmul.mubr.bf16.gmra.mrb[0].mxu0 %v3696
        %v3750 = vpop.f32.mrb[0].mxu0
        %v3751 = vadd.f32 0.0, %v3750
        %v3752 = vpop.f32.mrb[0].mxu0
        %v3753 = vpop.f32.mrb[0].mxu0
        %v3754 = vadd.f32 0.0, %v3753
        %v3755 = vpop.f32.mrb[0].mxu0
        %3756 = vmatprep.mubr.bf16.mxu0 0
        %3757 = vmatmul.mubr.bf16.gmra.mrb[0].mxu0 %v3699
        %v3758 = vpop.f32.mrb[0].mxu0
        %v3759 = vadd.f32 0.0, %v3758
        %v3760 = vpop.f32.mrb[0].mxu0
        %v3761 = vpop.f32.mrb[0].mxu0
        %v3762 = vadd.f32 0.0, %v3761
        %v3763 = vpop.f32.mrb[0].mxu0
        %3764 = vmatprep.mubr.bf16.mxu0 0
        %3765 = vmatmul.mubr.bf16.gmra.mrb[0].mxu0 %v3702
        %v3766 = vpop.f32.mrb[0].mxu0
        %v3767 = vadd.f32 0.0, %v3766
        %v3768 = vpop.f32.mrb[0].mxu0
        %v3769 = vpop.f32.mrb[0].mxu0
        %v3770 = vadd.f32 0.0, %v3769
        %v3771 = vpop.f32.mrb[0].mxu0
        %3772 = vmatprep.mubr.bf16.mxu0 0
        %3773 = vmatmul.mubr.bf16.gmra.mrb[0].mxu0 %v3705
        %v3774 = vpop.f32.mrb[0].mxu0
        %v3775 = vadd.f32 0.0, %v3774
        %v3776 = vpop.f32.mrb[0].mxu0
        %v3777 = vpop.f32.mrb[0].mxu0
        %v3778 = vadd.f32 0.0, %v3777
        %v3779 = vpop.f32.mrb[0].mxu0
        %3780 = vmatprep.mubr.bf16.mxu0 0
        %3781 = vmatmul.mubr.bf16.gmra.mrb[0].mxu0 %v3708
        %v3782 = vpop.f32.mrb[0].mxu0
        %v3783 = vadd.f32 0.0, %v3782
        %v3784 = vpop.f32.mrb[0].mxu0
        %v3785 = vpop.f32.mrb[0].mxu0
        %v3786 = vadd.f32 0.0, %v3785
        %v3787 = vpop.f32.mrb[0].mxu0
        %3788 = vmatprep.mubr.bf16.mxu0 0
        %3789 = vmatmul.mubr.bf16.gmra.mrb[0].mxu0 %v3711
        %v3790 = vpop.f32.mrb[0].mxu0
        %v3791 = vadd.f32 0.0, %v3790
        %v3792 = vpop.f32.mrb[0].mxu0
        %v3793 = vpop.f32.mrb[0].mxu0
        %v3794 = vadd.f32 0.0, %v3793
        %v3795 = vpop.f32.mrb[0].mxu0
        %3796 = vmatprep.mubr.bf16.mxu0 0
        %3797 = vmatmul.mubr.bf16.gmra.mrb[0].mxu0 %v3714
        %v3798 = vpop.f32.mrb[0].mxu0
        %v3799 = vadd.f32 0.0, %v3798
        %v3800 = vpop.f32.mrb[0].mxu0
        %v3801 = vpop.f32.mrb[0].mxu0
        %v3802 = vadd.f32 0.0, %v3801
        %v3803 = vpop.f32.mrb[0].mxu0
        %3804 = vdwg.mxu0
        %v3805 = vadd.f32 %v3637, %v3751
        %v3806 = vadd.f32 %v3638, %v3754
        %v3807 = vadd.f32 %v3639, %v3759
        %v3808 = vadd.f32 %v3640, %v3762
        %v3809 = vadd.f32 %v3641, %v3767
        %v3810 = vadd.f32 %v3642, %v3770
        %v3811 = vadd.f32 %v3643, %v3775
        %v3812 = vadd.f32 %v3644, %v3778
        %v3813 = vadd.f32 %v3645, %v3783
        %v3814 = vadd.f32 %v3646, %v3786
        %v3815 = vadd.f32 %v3647, %v3791
        %v3816 = vadd.f32 %v3648, %v3794
        %v3817 = vadd.f32 %v3649, %v3799
        %v3818 = vadd.f32 %v3650, %v3802
        %v3819 = vpack.c.bf16 %v3507, %v3508
        %v3820 = vpack.c.bf16 %v3505, %v3506
        %v3821 = vpack.c.bf16 %v3503, %v3504
        %v3822 = vpack.c.bf16 %v3501, %v3502
        %v3823 = vpack.c.bf16 %v3499, %v3500
        %v3824 = vpack.c.bf16 %v3497, %v3498
        %v3825 = vpack.c.bf16 %v3509, %v3510
        %s3826 = scalar_lea.vmem %s3, 32
        %v3827 = vld [vmem:[%s3826] sm:$0xf]
        %v3828 = vld [vmem:[%s3826 + $0x4] sm:$0xf]
        %v3831 = vunpack.c.l.b16 %v3827
        %v3832 = vunpack.c.l.b16 %v3828
        %v3833 = vpack.c.b16 %v3832, %v3831
        %v3836 = vsel %vm3007, %v3819, 0
        %v3839 = vsel %vm3007, %v3820, 0
        %v3842 = vsel %vm3007, %v3821, 0
        %v3845 = vsel %vm3007, %v3822, 0
        %v3848 = vsel %vm3007, %v3823, 0
        %v3851 = vsel %vm3007, %v3824, 0
        %v3854 = vsel %vm3007, %v3825, 0
        %3856 = vmatprep.subr.bf16.mxu0 0
        %3857 = vmatpush1.bf16.msra.mxu0 %v3833
        %3858 = vmatprep.subr.bf16.mxu0 0
        %3859 = vmatpush1.bf16.msra.mxu0 0
        %3860 = vmatprep.subr.bf16.mxu0 0
        %3861 = vmatpush1.bf16.msra.mxu0 0
        %3862 = vmatprep.subr.bf16.mxu0 0
        %3863 = vmatpush1.bf16.msra.mxu0 0
        %3864 = vmatprep.subr.bf16.mxu0 0
        %3865 = vmatpush1.bf16.msra.mxu0 0
        %3866 = vmatprep.subr.bf16.mxu0 0
        %3867 = vmatpush1.bf16.msra.mxu0 0
        %3868 = vmatprep.subr.bf16.mxu0 0
        %3869 = vmatpush1.bf16.msra.mxu0 0
        %3870 = vmatprep.subr.bf16.mxu0 0
        %3871 = vmatpush1.bf16.msra.mxu0 0
        %3872 = vmatprep.subr.bf16.mxu0 0
        %3873 = vmatpush1.bf16.msra.mxu0 0
        %3874 = vmatprep.subr.bf16.mxu0 0
        %3875 = vmatpush1.bf16.msra.mxu0 0
        %3876 = vmatprep.subr.bf16.mxu0 0
        %3877 = vmatpush1.bf16.msra.mxu0 0
        %3878 = vmatprep.subr.bf16.mxu0 0
        %3879 = vmatpush1.bf16.msra.mxu0 0
        %3880 = vmatprep.subr.bf16.mxu0 0
        %3881 = vmatpush1.bf16.msra.mxu0 0
        %3882 = vmatprep.subr.bf16.mxu0 0
        %3883 = vmatpush1.bf16.msra.mxu0 0
        %3884 = vmatprep.subr.bf16.mxu0 0
        %3885 = vmatpush1.bf16.msra.mxu0 0
        %3886 = vmatprep.subr.bf16.mxu0 0
        %3887 = vmatpush1.bf16.msra.mxu0 0
        %3888 = vmatprep.mubr.bf16.mxu0 0
        %3889 = vmatmul.mubr.bf16.gmra.mrb[0].mxu0 %v3836
        %v3890 = vpop.f32.mrb[0].mxu0
        %v3891 = vadd.f32 0.0, %v3890
        %v3892 = vpop.f32.mrb[0].mxu0
        %v3893 = vpop.f32.mrb[0].mxu0
        %v3894 = vadd.f32 0.0, %v3893
        %v3895 = vpop.f32.mrb[0].mxu0
        %3896 = vmatprep.mubr.bf16.mxu0 0
        %3897 = vmatmul.mubr.bf16.gmra.mrb[0].mxu0 %v3839
        %v3898 = vpop.f32.mrb[0].mxu0
        %v3899 = vadd.f32 0.0, %v3898
        %v3900 = vpop.f32.mrb[0].mxu0
        %v3901 = vpop.f32.mrb[0].mxu0
        %v3902 = vadd.f32 0.0, %v3901
        %v3903 = vpop.f32.mrb[0].mxu0
        %3904 = vmatprep.mubr.bf16.mxu0 0
        %3905 = vmatmul.mubr.bf16.gmra.mrb[0].mxu0 %v3842
        %v3906 = vpop.f32.mrb[0].mxu0
        %v3907 = vadd.f32 0.0, %v3906
        %v3908 = vpop.f32.mrb[0].mxu0
        %v3909 = vpop.f32.mrb[0].mxu0
        %v3910 = vadd.f32 0.0, %v3909
        %v3911 = vpop.f32.mrb[0].mxu0
        %3912 = vmatprep.mubr.bf16.mxu0 0
        %3913 = vmatmul.mubr.bf16.gmra.mrb[0].mxu0 %v3845
        %v3914 = vpop.f32.mrb[0].mxu0
        %v3915 = vadd.f32 0.0, %v3914
        %v3916 = vpop.f32.mrb[0].mxu0
        %v3917 = vpop.f32.mrb[0].mxu0
        %v3918 = vadd.f32 0.0, %v3917
        %v3919 = vpop.f32.mrb[0].mxu0
        %3920 = vmatprep.mubr.bf16.mxu0 0
        %3921 = vmatmul.mubr.bf16.gmra.mrb[0].mxu0 %v3848
        %v3922 = vpop.f32.mrb[0].mxu0
        %v3923 = vadd.f32 0.0, %v3922
        %v3924 = vpop.f32.mrb[0].mxu0
        %v3925 = vpop.f32.mrb[0].mxu0
        %v3926 = vadd.f32 0.0, %v3925
        %v3927 = vpop.f32.mrb[0].mxu0
        %3928 = vmatprep.mubr.bf16.mxu0 0
        %3929 = vmatmul.mubr.bf16.gmra.mrb[0].mxu0 %v3851
        %v3930 = vpop.f32.mrb[0].mxu0
        %v3931 = vadd.f32 0.0, %v3930
        %v3932 = vpop.f32.mrb[0].mxu0
        %v3933 = vpop.f32.mrb[0].mxu0
        %v3934 = vadd.f32 0.0, %v3933
        %v3935 = vpop.f32.mrb[0].mxu0
        %3936 = vmatprep.mubr.bf16.mxu0 0
        %3937 = vmatmul.mubr.bf16.gmra.mrb[0].mxu0 %v3854
        %v3938 = vpop.f32.mrb[0].mxu0
        %v3939 = vadd.f32 0.0, %v3938
        %v3940 = vpop.f32.mrb[0].mxu0
        %v3941 = vpop.f32.mrb[0].mxu0
        %v3942 = vadd.f32 0.0, %v3941
        %v3943 = vpop.f32.mrb[0].mxu0
        %3944 = vdwg.mxu0
        %v3945 = vadd.f32 %v3805, %v3891
        %v3946 = vadd.f32 %v3806, %v3894
        %v3947 = vadd.f32 %v3807, %v3899
        %v3948 = vadd.f32 %v3808, %v3902
        %v3949 = vadd.f32 %v3809, %v3907
        %v3950 = vadd.f32 %v3810, %v3910
        %v3951 = vadd.f32 %v3811, %v3915
        %v3952 = vadd.f32 %v3812, %v3918
        %v3953 = vadd.f32 %v3813, %v3923
        %v3954 = vadd.f32 %v3814, %v3926
        %v3955 = vadd.f32 %v3815, %v3931
        %v3956 = vadd.f32 %v3816, %v3934
        %v3957 = vadd.f32 %v3817, %v3939
        %v3958 = vadd.f32 %v3818, %v3942
        %v3959 = vpack.c.bf16 %v3675, %v3676
        %v3960 = vpack.c.bf16 %v3673, %v3674
        %v3961 = vpack.c.bf16 %v3671, %v3672
        %v3962 = vpack.c.bf16 %v3669, %v3670
        %v3963 = vpack.c.bf16 %v3667, %v3668
        %v3964 = vpack.c.bf16 %v3665, %v3666
        %v3965 = vpack.c.bf16 %v3677, %v3678
        %s3966 = scalar_lea.vmem %s3, 40
        %v3967 = vld [vmem:[%s3966] sm:$0xf]
        %v3968 = vld [vmem:[%s3966 + $0x4] sm:$0xf]
        %v3971 = vunpack.c.l.b16 %v3967
        %v3972 = vunpack.c.l.b16 %v3968
        %v3973 = vpack.c.b16 %v3972, %v3971
        %v3976 = vsel %vm3007, %v3959, 0
        %v3979 = vsel %vm3007, %v3960, 0
        %v3982 = vsel %vm3007, %v3961, 0
        %v3985 = vsel %vm3007, %v3962, 0
        %v3988 = vsel %vm3007, %v3963, 0
        %v3991 = vsel %vm3007, %v3964, 0
        %v3994 = vsel %vm3007, %v3965, 0
        %3996 = vmatprep.subr.bf16.mxu0 0
        %3997 = vmatpush1.bf16.msra.mxu0 %v3973
        %3998 = vmatprep.subr.bf16.mxu0 0
        %3999 = vmatpush1.bf16.msra.mxu0 0
        %4000 = vmatprep.subr.bf16.mxu0 0
        %4001 = vmatpush1.bf16.msra.mxu0 0
        %4002 = vmatprep.subr.bf16.mxu0 0
        %4003 = vmatpush1.bf16.msra.mxu0 0
        %4004 = vmatprep.subr.bf16.mxu0 0
        %4005 = vmatpush1.bf16.msra.mxu0 0
        %4006 = vmatprep.subr.bf16.mxu0 0
        %4007 = vmatpush1.bf16.msra.mxu0 0
        %4008 = vmatprep.subr.bf16.mxu0 0
        %4009 = vmatpush1.bf16.msra.mxu0 0
        %4010 = vmatprep.subr.bf16.mxu0 0
        %4011 = vmatpush1.bf16.msra.mxu0 0
        %4012 = vmatprep.subr.bf16.mxu0 0
        %4013 = vmatpush1.bf16.msra.mxu0 0
        %4014 = vmatprep.subr.bf16.mxu0 0
        %4015 = vmatpush1.bf16.msra.mxu0 0
        %4016 = vmatprep.subr.bf16.mxu0 0
        %4017 = vmatpush1.bf16.msra.mxu0 0
        %4018 = vmatprep.subr.bf16.mxu0 0
        %4019 = vmatpush1.bf16.msra.mxu0 0
        %4020 = vmatprep.subr.bf16.mxu0 0
        %4021 = vmatpush1.bf16.msra.mxu0 0
        %4022 = vmatprep.subr.bf16.mxu0 0
        %4023 = vmatpush1.bf16.msra.mxu0 0
        %4024 = vmatprep.subr.bf16.mxu0 0
        %4025 = vmatpush1.bf16.msra.mxu0 0
        %4026 = vmatprep.subr.bf16.mxu0 0
        %4027 = vmatpush1.bf16.msra.mxu0 0
        %4028 = vmatprep.mubr.bf16.mxu0 0
        %4029 = vmatmul.mubr.bf16.gmra.mrb[0].mxu0 %v3976
        %v4030 = vpop.f32.mrb[0].mxu0
        %v4031 = vadd.f32 0.0, %v4030
        %v4032 = vpop.f32.mrb[0].mxu0
        %v4033 = vpop.f32.mrb[0].mxu0
        %v4034 = vadd.f32 0.0, %v4033
        %v4035 = vpop.f32.mrb[0].mxu0
        %4036 = vmatprep.mubr.bf16.mxu0 0
        %4037 = vmatmul.mubr.bf16.gmra.mrb[0].mxu0 %v3979
        %v4038 = vpop.f32.mrb[0].mxu0
        %v4039 = vadd.f32 0.0, %v4038
        %v4040 = vpop.f32.mrb[0].mxu0
        %v4041 = vpop.f32.mrb[0].mxu0
        %v4042 = vadd.f32 0.0, %v4041
        %v4043 = vpop.f32.mrb[0].mxu0
        %4044 = vmatprep.mubr.bf16.mxu0 0
        %4045 = vmatmul.mubr.bf16.gmra.mrb[0].mxu0 %v3982
        %v4046 = vpop.f32.mrb[0].mxu0
        %v4047 = vadd.f32 0.0, %v4046
        %v4048 = vpop.f32.mrb[0].mxu0
        %v4049 = vpop.f32.mrb[0].mxu0
        %v4050 = vadd.f32 0.0, %v4049
        %v4051 = vpop.f32.mrb[0].mxu0
        %4052 = vmatprep.mubr.bf16.mxu0 0
        %4053 = vmatmul.mubr.bf16.gmra.mrb[0].mxu0 %v3985
        %v4054 = vpop.f32.mrb[0].mxu0
        %v4055 = vadd.f32 0.0, %v4054
        %v4056 = vpop.f32.mrb[0].mxu0
        %v4057 = vpop.f32.mrb[0].mxu0
        %v4058 = vadd.f32 0.0, %v4057
        %v4059 = vpop.f32.mrb[0].mxu0
        %4060 = vmatprep.mubr.bf16.mxu0 0
        %4061 = vmatmul.mubr.bf16.gmra.mrb[0].mxu0 %v3988
        %v4062 = vpop.f32.mrb[0].mxu0
        %v4063 = vadd.f32 0.0, %v4062
        %v4064 = vpop.f32.mrb[0].mxu0
        %v4065 = vpop.f32.mrb[0].mxu0
        %v4066 = vadd.f32 0.0, %v4065
        %v4067 = vpop.f32.mrb[0].mxu0
        %4068 = vmatprep.mubr.bf16.mxu0 0
        %4069 = vmatmul.mubr.bf16.gmra.mrb[0].mxu0 %v3991
        %v4070 = vpop.f32.mrb[0].mxu0
        %v4071 = vadd.f32 0.0, %v4070
        %v4072 = vpop.f32.mrb[0].mxu0
        %v4073 = vpop.f32.mrb[0].mxu0
        %v4074 = vadd.f32 0.0, %v4073
        %v4075 = vpop.f32.mrb[0].mxu0
        %4076 = vmatprep.mubr.bf16.mxu0 0
        %4077 = vmatmul.mubr.bf16.gmra.mrb[0].mxu0 %v3994
        %v4078 = vpop.f32.mrb[0].mxu0
        %v4079 = vadd.f32 0.0, %v4078
        %v4080 = vpop.f32.mrb[0].mxu0
        %v4081 = vpop.f32.mrb[0].mxu0
        %v4082 = vadd.f32 0.0, %v4081
        %v4083 = vpop.f32.mrb[0].mxu0
        %4084 = vdwg.mxu0
        %v4085 = vadd.f32 %v3945, %v4031
        %v4086 = vadd.f32 %v3946, %v4034
        %v4087 = vadd.f32 %v3947, %v4039
        %v4088 = vadd.f32 %v3948, %v4042
        %v4089 = vadd.f32 %v3949, %v4047
        %v4090 = vadd.f32 %v3950, %v4050
        %v4091 = vadd.f32 %v3951, %v4055
        %v4092 = vadd.f32 %v3952, %v4058
        %v4093 = vadd.f32 %v3953, %v4063
        %v4094 = vadd.f32 %v3954, %v4066
        %v4095 = vadd.f32 %v3955, %v4071
        %v4096 = vadd.f32 %v3956, %v4074
        %v4097 = vadd.f32 %v3957, %v4079
        %v4098 = vadd.f32 %v3958, %v4082
        %v4099 = vrot.slane %v3190, 4
        %v4100 = vrot.slane %v3203, 4
        %v4101 = vrot.slane %v3202, 4
        %v4102 = vrot.slane %v3201, 4
        %v4103 = vrot.slane %v3200, 4
        %v4104 = vrot.slane %v3199, 4
        %v4105 = vrot.slane %v3198, 4
        %v4106 = vrot.slane %v3197, 4
        %v4107 = vrot.slane %v3196, 4
        %v4108 = vrot.slane %v3195, 4
        %v4109 = vrot.slane %v3194, 4
        %v4110 = vrot.slane %v3193, 4
        %v4111 = vrot.slane %v3192, 4
        %v4112 = vrot.slane %v3191, 4
        %v4113 = vsel %vm1503, %v4111, %v4112
        %v4114 = vsel %vm1503, %v4110, %v4111
        %v4115 = vsel %vm1503, %v4109, %v4110
        %v4116 = vsel %vm1503, %v4108, %v4109
        %v4117 = vsel %vm1503, %v4107, %v4108
        %v4118 = vsel %vm1503, %v4106, %v4107
        %v4119 = vsel %vm1503, %v4105, %v4106
        %v4120 = vsel %vm1503, %v4104, %v4105
        %v4121 = vsel %vm1503, %v4103, %v4104
        %v4122 = vsel %vm1503, %v4102, %v4103
        %v4123 = vsel %vm1503, %v4101, %v4102
        %v4124 = vsel %vm1503, %v4100, %v4101
        %v4125 = vsel %vm1503, %v4099, %v4100
        %v4126 = vsel %vm1503, %v4112, %v4099
        %v4127 = vpack.c.bf16 %v4123, %v4124
        %v4128 = vpack.c.bf16 %v4121, %v4122
        %v4129 = vpack.c.bf16 %v4119, %v4120
        %v4130 = vpack.c.bf16 %v4117, %v4118
        %v4131 = vpack.c.bf16 %v4115, %v4116
        %v4132 = vpack.c.bf16 %v4113, %v4114
        %v4133 = vpack.c.bf16 %v4125, %v4126
        %s4134 = scalar_lea.vmem %s3, 48
        %v4135 = vld [vmem:[%s4134] sm:$0xf]
        %v4136 = vld [vmem:[%s4134 + $0x4] sm:$0xf]
        %v4139 = vunpack.c.l.b16 %v4135
        %v4140 = vunpack.c.l.b16 %v4136
        %v4141 = vpack.c.b16 %v4140, %v4139
        %v4144 = vsel %vm3007, %v4127, 0
        %v4147 = vsel %vm3007, %v4128, 0
        %v4150 = vsel %vm3007, %v4129, 0
        %v4153 = vsel %vm3007, %v4130, 0
        %v4156 = vsel %vm3007, %v4131, 0
        %v4159 = vsel %vm3007, %v4132, 0
        %v4162 = vsel %vm3007, %v4133, 0
        %4164 = vmatprep.subr.bf16.mxu0 0
        %4165 = vmatpush1.bf16.msra.mxu0 %v4141
        %4166 = vmatprep.subr.bf16.mxu0 0
        %4167 = vmatpush1.bf16.msra.mxu0 0
        %4168 = vmatprep.subr.bf16.mxu0 0
        %4169 = vmatpush1.bf16.msra.mxu0 0
        %4170 = vmatprep.subr.bf16.mxu0 0
        %4171 = vmatpush1.bf16.msra.mxu0 0
        %4172 = vmatprep.subr.bf16.mxu0 0
        %4173 = vmatpush1.bf16.msra.mxu0 0
        %4174 = vmatprep.subr.bf16.mxu0 0
        %4175 = vmatpush1.bf16.msra.mxu0 0
        %4176 = vmatprep.subr.bf16.mxu0 0
        %4177 = vmatpush1.bf16.msra.mxu0 0
        %4178 = vmatprep.subr.bf16.mxu0 0
        %4179 = vmatpush1.bf16.msra.mxu0 0
        %4180 = vmatprep.subr.bf16.mxu0 0
        %4181 = vmatpush1.bf16.msra.mxu0 0
        %4182 = vmatprep.subr.bf16.mxu0 0
        %4183 = vmatpush1.bf16.msra.mxu0 0
        %4184 = vmatprep.subr.bf16.mxu0 0
        %4185 = vmatpush1.bf16.msra.mxu0 0
        %4186 = vmatprep.subr.bf16.mxu0 0
        %4187 = vmatpush1.bf16.msra.mxu0 0
        %4188 = vmatprep.subr.bf16.mxu0 0
        %4189 = vmatpush1.bf16.msra.mxu0 0
        %4190 = vmatprep.subr.bf16.mxu0 0
        %4191 = vmatpush1.bf16.msra.mxu0 0
        %4192 = vmatprep.subr.bf16.mxu0 0
        %4193 = vmatpush1.bf16.msra.mxu0 0
        %4194 = vmatprep.subr.bf16.mxu0 0
        %4195 = vmatpush1.bf16.msra.mxu0 0
        %4196 = vmatprep.mubr.bf16.mxu0 0
        %4197 = vmatmul.mubr.bf16.gmra.mrb[0].mxu0 %v4144
        %v4198 = vpop.f32.mrb[0].mxu0
        %v4199 = vadd.f32 0.0, %v4198
        %v4200 = vpop.f32.mrb[0].mxu0
        %v4201 = vpop.f32.mrb[0].mxu0
        %v4202 = vadd.f32 0.0, %v4201
        %v4203 = vpop.f32.mrb[0].mxu0
        %4204 = vmatprep.mubr.bf16.mxu0 0
        %4205 = vmatmul.mubr.bf16.gmra.mrb[0].mxu0 %v4147
        %v4206 = vpop.f32.mrb[0].mxu0
        %v4207 = vadd.f32 0.0, %v4206
        %v4208 = vpop.f32.mrb[0].mxu0
        %v4209 = vpop.f32.mrb[0].mxu0
        %v4210 = vadd.f32 0.0, %v4209
        %v4211 = vpop.f32.mrb[0].mxu0
        %4212 = vmatprep.mubr.bf16.mxu0 0
        %4213 = vmatmul.mubr.bf16.gmra.mrb[0].mxu0 %v4150
        %v4214 = vpop.f32.mrb[0].mxu0
        %v4215 = vadd.f32 0.0, %v4214
        %v4216 = vpop.f32.mrb[0].mxu0
        %v4217 = vpop.f32.mrb[0].mxu0
        %v4218 = vadd.f32 0.0, %v4217
        %v4219 = vpop.f32.mrb[0].mxu0
        %4220 = vmatprep.mubr.bf16.mxu0 0
        %4221 = vmatmul.mubr.bf16.gmra.mrb[0].mxu0 %v4153
        %v4222 = vpop.f32.mrb[0].mxu0
        %v4223 = vadd.f32 0.0, %v4222
        %v4224 = vpop.f32.mrb[0].mxu0
        %v4225 = vpop.f32.mrb[0].mxu0
        %v4226 = vadd.f32 0.0, %v4225
        %v4227 = vpop.f32.mrb[0].mxu0
        %4228 = vmatprep.mubr.bf16.mxu0 0
        %4229 = vmatmul.mubr.bf16.gmra.mrb[0].mxu0 %v4156
        %v4230 = vpop.f32.mrb[0].mxu0
        %v4231 = vadd.f32 0.0, %v4230
        %v4232 = vpop.f32.mrb[0].mxu0
        %v4233 = vpop.f32.mrb[0].mxu0
        %v4234 = vadd.f32 0.0, %v4233
        %v4235 = vpop.f32.mrb[0].mxu0
        %4236 = vmatprep.mubr.bf16.mxu0 0
        %4237 = vmatmul.mubr.bf16.gmra.mrb[0].mxu0 %v4159
        %v4238 = vpop.f32.mrb[0].mxu0
        %v4239 = vadd.f32 0.0, %v4238
        %v4240 = vpop.f32.mrb[0].mxu0
        %v4241 = vpop.f32.mrb[0].mxu0
        %v4242 = vadd.f32 0.0, %v4241
        %v4243 = vpop.f32.mrb[0].mxu0
        %4244 = vmatprep.mubr.bf16.mxu0 0
        %4245 = vmatmul.mubr.bf16.gmra.mrb[0].mxu0 %v4162
        %v4246 = vpop.f32.mrb[0].mxu0
        %v4247 = vadd.f32 0.0, %v4246
        %v4248 = vpop.f32.mrb[0].mxu0
        %v4249 = vpop.f32.mrb[0].mxu0
        %v4250 = vadd.f32 0.0, %v4249
        %v4251 = vpop.f32.mrb[0].mxu0
        %4252 = vdwg.mxu0
        %v4253 = vadd.f32 %v4085, %v4199
        %v4254 = vadd.f32 %v4086, %v4202
        %v4255 = vadd.f32 %v4087, %v4207
        %v4256 = vadd.f32 %v4088, %v4210
        %v4257 = vadd.f32 %v4089, %v4215
        %v4258 = vadd.f32 %v4090, %v4218
        %v4259 = vadd.f32 %v4091, %v4223
        %v4260 = vadd.f32 %v4092, %v4226
        %v4261 = vadd.f32 %v4093, %v4231
        %v4262 = vadd.f32 %v4094, %v4234
        %v4263 = vadd.f32 %v4095, %v4239
        %v4264 = vadd.f32 %v4096, %v4242
        %v4265 = vadd.f32 %v4097, %v4247
        %v4266 = vadd.f32 %v4098, %v4250
        %v4267 = vrot.slane %v3190, 5
        %v4268 = vrot.slane %v3203, 5
        %v4269 = vrot.slane %v3202, 5
        %v4270 = vrot.slane %v3201, 5
        %v4271 = vrot.slane %v3200, 5
        %v4272 = vrot.slane %v3199, 5
        %v4273 = vrot.slane %v3198, 5
        %v4274 = vrot.slane %v3197, 5
        %v4275 = vrot.slane %v3196, 5
        %v4276 = vrot.slane %v3195, 5
        %v4277 = vrot.slane %v3194, 5
        %v4278 = vrot.slane %v3193, 5
        %v4279 = vrot.slane %v3192, 5
        %v4280 = vrot.slane %v3191, 5
        %v4281 = vsel %vm1668, %v4279, %v4280
        %v4282 = vsel %vm1668, %v4278, %v4279
        %v4283 = vsel %vm1668, %v4277, %v4278
        %v4284 = vsel %vm1668, %v4276, %v4277
        %v4285 = vsel %vm1668, %v4275, %v4276
        %v4286 = vsel %vm1668, %v4274, %v4275
        %v4287 = vsel %vm1668, %v4273, %v4274
        %v4288 = vsel %vm1668, %v4272, %v4273
        %v4289 = vsel %vm1668, %v4271, %v4272
        %v4290 = vsel %vm1668, %v4270, %v4271
        %v4291 = vsel %vm1668, %v4269, %v4270
        %v4292 = vsel %vm1668, %v4268, %v4269
        %v4293 = vsel %vm1668, %v4267, %v4268
        %v4294 = vsel %vm1668, %v4280, %v4267
        %v4295 = vpack.c.bf16 %v4291, %v4292
        %v4296 = vpack.c.bf16 %v4289, %v4290
        %v4297 = vpack.c.bf16 %v4287, %v4288
        %v4298 = vpack.c.bf16 %v4285, %v4286
        %v4299 = vpack.c.bf16 %v4283, %v4284
        %v4300 = vpack.c.bf16 %v4281, %v4282
        %v4301 = vpack.c.bf16 %v4293, %v4294
        %s4302 = scalar_lea.vmem %s3, 56
        %v4303 = vld [vmem:[%s4302] sm:$0xf]
        %v4304 = vld [vmem:[%s4302 + $0x4] sm:$0xf]
        %v4307 = vunpack.c.l.b16 %v4303
        %v4308 = vunpack.c.l.b16 %v4304
        %v4309 = vpack.c.b16 %v4308, %v4307
        %v4312 = vsel %vm3007, %v4295, 0
        %v4315 = vsel %vm3007, %v4296, 0
        %v4318 = vsel %vm3007, %v4297, 0
        %v4321 = vsel %vm3007, %v4298, 0
        %v4324 = vsel %vm3007, %v4299, 0
        %v4327 = vsel %vm3007, %v4300, 0
        %v4330 = vsel %vm3007, %v4301, 0
        %4332 = vmatprep.subr.bf16.mxu0 0
        %4333 = vmatpush1.bf16.msra.mxu0 %v4309
        %4334 = vmatprep.subr.bf16.mxu0 0
        %4335 = vmatpush1.bf16.msra.mxu0 0
        %4336 = vmatprep.subr.bf16.mxu0 0
        %4337 = vmatpush1.bf16.msra.mxu0 0
        %4338 = vmatprep.subr.bf16.mxu0 0
        %4339 = vmatpush1.bf16.msra.mxu0 0
        %4340 = vmatprep.subr.bf16.mxu0 0
        %4341 = vmatpush1.bf16.msra.mxu0 0
        %4342 = vmatprep.subr.bf16.mxu0 0
        %4343 = vmatpush1.bf16.msra.mxu0 0
        %4344 = vmatprep.subr.bf16.mxu0 0
        %4345 = vmatpush1.bf16.msra.mxu0 0
        %4346 = vmatprep.subr.bf16.mxu0 0
        %4347 = vmatpush1.bf16.msra.mxu0 0
        %4348 = vmatprep.subr.bf16.mxu0 0
        %4349 = vmatpush1.bf16.msra.mxu0 0
        %4350 = vmatprep.subr.bf16.mxu0 0
        %4351 = vmatpush1.bf16.msra.mxu0 0
        %4352 = vmatprep.subr.bf16.mxu0 0
        %4353 = vmatpush1.bf16.msra.mxu0 0
        %4354 = vmatprep.subr.bf16.mxu0 0
        %4355 = vmatpush1.bf16.msra.mxu0 0
        %4356 = vmatprep.subr.bf16.mxu0 0
        %4357 = vmatpush1.bf16.msra.mxu0 0
        %4358 = vmatprep.subr.bf16.mxu0 0
        %4359 = vmatpush1.bf16.msra.mxu0 0
        %4360 = vmatprep.subr.bf16.mxu0 0
        %4361 = vmatpush1.bf16.msra.mxu0 0
        %4362 = vmatprep.subr.bf16.mxu0 0
        %4363 = vmatpush1.bf16.msra.mxu0 0
        %4364 = vmatprep.mubr.bf16.mxu0 0
        %4365 = vmatmul.mubr.bf16.gmra.mrb[0].mxu0 %v4312
        %v4366 = vpop.f32.mrb[0].mxu0
        %v4367 = vadd.f32 0.0, %v4366
        %v4368 = vpop.f32.mrb[0].mxu0
        %v4369 = vpop.f32.mrb[0].mxu0
        %v4370 = vadd.f32 0.0, %v4369
        %v4371 = vpop.f32.mrb[0].mxu0
        %4372 = vmatprep.mubr.bf16.mxu0 0
        %4373 = vmatmul.mubr.bf16.gmra.mrb[0].mxu0 %v4315
        %v4374 = vpop.f32.mrb[0].mxu0
        %v4375 = vadd.f32 0.0, %v4374
        %v4376 = vpop.f32.mrb[0].mxu0
        %v4377 = vpop.f32.mrb[0].mxu0
        %v4378 = vadd.f32 0.0, %v4377
        %v4379 = vpop.f32.mrb[0].mxu0
        %4380 = vmatprep.mubr.bf16.mxu0 0
        %4381 = vmatmul.mubr.bf16.gmra.mrb[0].mxu0 %v4318
        %v4382 = vpop.f32.mrb[0].mxu0
        %v4383 = vadd.f32 0.0, %v4382
        %v4384 = vpop.f32.mrb[0].mxu0
        %v4385 = vpop.f32.mrb[0].mxu0
        %v4386 = vadd.f32 0.0, %v4385
        %v4387 = vpop.f32.mrb[0].mxu0
        %4388 = vmatprep.mubr.bf16.mxu0 0
        %4389 = vmatmul.mubr.bf16.gmra.mrb[0].mxu0 %v4321
        %v4390 = vpop.f32.mrb[0].mxu0
        %v4391 = vadd.f32 0.0, %v4390
        %v4392 = vpop.f32.mrb[0].mxu0
        %v4393 = vpop.f32.mrb[0].mxu0
        %v4394 = vadd.f32 0.0, %v4393
        %v4395 = vpop.f32.mrb[0].mxu0
        %4396 = vmatprep.mubr.bf16.mxu0 0
        %4397 = vmatmul.mubr.bf16.gmra.mrb[0].mxu0 %v4324
        %v4398 = vpop.f32.mrb[0].mxu0
        %v4399 = vadd.f32 0.0, %v4398
        %v4400 = vpop.f32.mrb[0].mxu0
        %v4401 = vpop.f32.mrb[0].mxu0
        %v4402 = vadd.f32 0.0, %v4401
        %v4403 = vpop.f32.mrb[0].mxu0
        %4404 = vmatprep.mubr.bf16.mxu0 0
        %4405 = vmatmul.mubr.bf16.gmra.mrb[0].mxu0 %v4327
        %v4406 = vpop.f32.mrb[0].mxu0
        %v4407 = vadd.f32 0.0, %v4406
        %v4408 = vpop.f32.mrb[0].mxu0
        %v4409 = vpop.f32.mrb[0].mxu0
        %v4410 = vadd.f32 0.0, %v4409
        %v4411 = vpop.f32.mrb[0].mxu0
        %4412 = vmatprep.mubr.bf16.mxu0 0
        %4413 = vmatmul.mubr.bf16.gmra.mrb[0].mxu0 %v4330
        %v4414 = vpop.f32.mrb[0].mxu0
        %v4415 = vadd.f32 0.0, %v4414
        %v4416 = vpop.f32.mrb[0].mxu0
        %v4417 = vpop.f32.mrb[0].mxu0
        %v4418 = vadd.f32 0.0, %v4417
        %v4419 = vpop.f32.mrb[0].mxu0
        %4420 = vdwg.mxu0
        %v4421 = vadd.f32 %v4253, %v4367
        %v4422 = vadd.f32 %v4254, %v4370
        %v4423 = vadd.f32 %v4255, %v4375
        %v4424 = vadd.f32 %v4256, %v4378
        %v4425 = vadd.f32 %v4257, %v4383
        %v4426 = vadd.f32 %v4258, %v4386
        %v4427 = vadd.f32 %v4259, %v4391
        %v4428 = vadd.f32 %v4260, %v4394
        %v4429 = vadd.f32 %v4261, %v4399
        %v4430 = vadd.f32 %v4262, %v4402
        %v4431 = vadd.f32 %v4263, %v4407
        %v4432 = vadd.f32 %v4264, %v4410
        %v4433 = vadd.f32 %v4265, %v4415
        %v4434 = vadd.f32 %v4266, %v4418
        %v4435 = vpack.c.bf16 %v4122, %v4123
        %v4436 = vpack.c.bf16 %v4120, %v4121
        %v4437 = vpack.c.bf16 %v4118, %v4119
        %v4438 = vpack.c.bf16 %v4116, %v4117
        %v4439 = vpack.c.bf16 %v4114, %v4115
        %v4440 = vpack.c.bf16 %v4126, %v4113
        %v4441 = vpack.c.bf16 %v4124, %v4125
        %s4442 = scalar_lea.vmem %s3, 64
        %v4443 = vld [vmem:[%s4442] sm:$0xf]
        %v4444 = vld [vmem:[%s4442 + $0x4] sm:$0xf]
        %v4447 = vunpack.c.l.b16 %v4443
        %v4448 = vunpack.c.l.b16 %v4444
        %v4449 = vpack.c.b16 %v4448, %v4447
        %v4452 = vsel %vm3007, %v4435, 0
        %v4455 = vsel %vm3007, %v4436, 0
        %v4458 = vsel %vm3007, %v4437, 0
        %v4461 = vsel %vm3007, %v4438, 0
        %v4464 = vsel %vm3007, %v4439, 0
        %v4467 = vsel %vm3007, %v4440, 0
        %v4470 = vsel %vm3007, %v4441, 0
        %4472 = vmatprep.subr.bf16.mxu0 0
        %4473 = vmatpush1.bf16.msra.mxu0 %v4449
        %4474 = vmatprep.subr.bf16.mxu0 0
        %4475 = vmatpush1.bf16.msra.mxu0 0
        %4476 = vmatprep.subr.bf16.mxu0 0
        %4477 = vmatpush1.bf16.msra.mxu0 0
        %4478 = vmatprep.subr.bf16.mxu0 0
        %4479 = vmatpush1.bf16.msra.mxu0 0
        %4480 = vmatprep.subr.bf16.mxu0 0
        %4481 = vmatpush1.bf16.msra.mxu0 0
        %4482 = vmatprep.subr.bf16.mxu0 0
        %4483 = vmatpush1.bf16.msra.mxu0 0
        %4484 = vmatprep.subr.bf16.mxu0 0
        %4485 = vmatpush1.bf16.msra.mxu0 0
        %4486 = vmatprep.subr.bf16.mxu0 0
        %4487 = vmatpush1.bf16.msra.mxu0 0
        %4488 = vmatprep.subr.bf16.mxu0 0
        %4489 = vmatpush1.bf16.msra.mxu0 0
        %4490 = vmatprep.subr.bf16.mxu0 0
        %4491 = vmatpush1.bf16.msra.mxu0 0
        %4492 = vmatprep.subr.bf16.mxu0 0
        %4493 = vmatpush1.bf16.msra.mxu0 0
        %4494 = vmatprep.subr.bf16.mxu0 0
        %4495 = vmatpush1.bf16.msra.mxu0 0
        %4496 = vmatprep.subr.bf16.mxu0 0
        %4497 = vmatpush1.bf16.msra.mxu0 0
        %4498 = vmatprep.subr.bf16.mxu0 0
        %4499 = vmatpush1.bf16.msra.mxu0 0
        %4500 = vmatprep.subr.bf16.mxu0 0
        %4501 = vmatpush1.bf16.msra.mxu0 0
        %4502 = vmatprep.subr.bf16.mxu0 0
        %4503 = vmatpush1.bf16.msra.mxu0 0
        %4504 = vmatprep.mubr.bf16.mxu0 0
        %4505 = vmatmul.mubr.bf16.gmra.mrb[0].mxu0 %v4452
        %v4506 = vpop.f32.mrb[0].mxu0
        %v4507 = vadd.f32 0.0, %v4506
        %v4508 = vpop.f32.mrb[0].mxu0
        %v4509 = vpop.f32.mrb[0].mxu0
        %v4510 = vadd.f32 0.0, %v4509
        %v4511 = vpop.f32.mrb[0].mxu0
        %4512 = vmatprep.mubr.bf16.mxu0 0
        %4513 = vmatmul.mubr.bf16.gmra.mrb[0].mxu0 %v4455
        %v4514 = vpop.f32.mrb[0].mxu0
        %v4515 = vadd.f32 0.0, %v4514
        %v4516 = vpop.f32.mrb[0].mxu0
        %v4517 = vpop.f32.mrb[0].mxu0
        %v4518 = vadd.f32 0.0, %v4517
        %v4519 = vpop.f32.mrb[0].mxu0
        %4520 = vmatprep.mubr.bf16.mxu0 0
        %4521 = vmatmul.mubr.bf16.gmra.mrb[0].mxu0 %v4458
        %v4522 = vpop.f32.mrb[0].mxu0
        %v4523 = vadd.f32 0.0, %v4522
        %v4524 = vpop.f32.mrb[0].mxu0
        %v4525 = vpop.f32.mrb[0].mxu0
        %v4526 = vadd.f32 0.0, %v4525
        %v4527 = vpop.f32.mrb[0].mxu0
        %4528 = vmatprep.mubr.bf16.mxu0 0
        %4529 = vmatmul.mubr.bf16.gmra.mrb[0].mxu0 %v4461
        %v4530 = vpop.f32.mrb[0].mxu0
        %v4531 = vadd.f32 0.0, %v4530
        %v4532 = vpop.f32.mrb[0].mxu0
        %v4533 = vpop.f32.mrb[0].mxu0
        %v4534 = vadd.f32 0.0, %v4533
        %v4535 = vpop.f32.mrb[0].mxu0
        %4536 = vmatprep.mubr.bf16.mxu0 0
        %4537 = vmatmul.mubr.bf16.gmra.mrb[0].mxu0 %v4464
        %v4538 = vpop.f32.mrb[0].mxu0
        %v4539 = vadd.f32 0.0, %v4538
        %v4540 = vpop.f32.mrb[0].mxu0
        %v4541 = vpop.f32.mrb[0].mxu0
        %v4542 = vadd.f32 0.0, %v4541
        %v4543 = vpop.f32.mrb[0].mxu0
        %4544 = vmatprep.mubr.bf16.mxu0 0
        %4545 = vmatmul.mubr.bf16.gmra.mrb[0].mxu0 %v4467
        %v4546 = vpop.f32.mrb[0].mxu0
        %v4547 = vadd.f32 0.0, %v4546
        %v4548 = vpop.f32.mrb[0].mxu0
        %v4549 = vpop.f32.mrb[0].mxu0
        %v4550 = vadd.f32 0.0, %v4549
        %v4551 = vpop.f32.mrb[0].mxu0
        %4552 = vmatprep.mubr.bf16.mxu0 0
        %4553 = vmatmul.mubr.bf16.gmra.mrb[0].mxu0 %v4470
        %v4554 = vpop.f32.mrb[0].mxu0
        %v4555 = vadd.f32 0.0, %v4554
        %v4556 = vpop.f32.mrb[0].mxu0
        %v4557 = vpop.f32.mrb[0].mxu0
        %v4558 = vadd.f32 0.0, %v4557
        %v4559 = vpop.f32.mrb[0].mxu0
        %4560 = vdwg.mxu0
        %v4561 = vadd.f32 %v4421, %v4507
        %v4562 = vadd.f32 %v4422, %v4510
        %v4563 = vadd.f32 %v4423, %v4515
        %v4564 = vadd.f32 %v4424, %v4518
        %v4565 = vadd.f32 %v4425, %v4523
        %v4566 = vadd.f32 %v4426, %v4526
        %v4567 = vadd.f32 %v4427, %v4531
        %v4568 = vadd.f32 %v4428, %v4534
        %v4569 = vadd.f32 %v4429, %v4539
        %v4570 = vadd.f32 %v4430, %v4542
        %v4571 = vadd.f32 %v4431, %v4547
        %v4572 = vadd.f32 %v4432, %v4550
        %v4573 = vadd.f32 %v4433, %v4555
        %v4574 = vadd.f32 %v4434, %v4558
        %v4575 = vpack.c.bf16 %v4290, %v4291
        %v4576 = vpack.c.bf16 %v4288, %v4289
        %v4577 = vpack.c.bf16 %v4286, %v4287
        %v4578 = vpack.c.bf16 %v4284, %v4285
        %v4579 = vpack.c.bf16 %v4282, %v4283
        %v4580 = vpack.c.bf16 %v4294, %v4281
        %v4581 = vpack.c.bf16 %v4292, %v4293
        %s4582 = scalar_lea.vmem %s3, 72
        %v4583 = vld [vmem:[%s4582] sm:$0xf]
        %v4584 = vld [vmem:[%s4582 + $0x4] sm:$0xf]
        %v4587 = vunpack.c.l.b16 %v4583
        %v4588 = vunpack.c.l.b16 %v4584
        %v4589 = vpack.c.b16 %v4588, %v4587
        %v4592 = vsel %vm3007, %v4575, 0
        %v4595 = vsel %vm3007, %v4576, 0
        %v4598 = vsel %vm3007, %v4577, 0
        %v4601 = vsel %vm3007, %v4578, 0
        %v4604 = vsel %vm3007, %v4579, 0
        %v4607 = vsel %vm3007, %v4580, 0
        %v4610 = vsel %vm3007, %v4581, 0
        %4612 = vmatprep.subr.bf16.mxu0 0
        %4613 = vmatpush1.bf16.msra.mxu0 %v4589
        %4614 = vmatprep.subr.bf16.mxu0 0
        %4615 = vmatpush1.bf16.msra.mxu0 0
        %4616 = vmatprep.subr.bf16.mxu0 0
        %4617 = vmatpush1.bf16.msra.mxu0 0
        %4618 = vmatprep.subr.bf16.mxu0 0
        %4619 = vmatpush1.bf16.msra.mxu0 0
        %4620 = vmatprep.subr.bf16.mxu0 0
        %4621 = vmatpush1.bf16.msra.mxu0 0
        %4622 = vmatprep.subr.bf16.mxu0 0
        %4623 = vmatpush1.bf16.msra.mxu0 0
        %4624 = vmatprep.subr.bf16.mxu0 0
        %4625 = vmatpush1.bf16.msra.mxu0 0
        %4626 = vmatprep.subr.bf16.mxu0 0
        %4627 = vmatpush1.bf16.msra.mxu0 0
        %4628 = vmatprep.subr.bf16.mxu0 0
        %4629 = vmatpush1.bf16.msra.mxu0 0
        %4630 = vmatprep.subr.bf16.mxu0 0
        %4631 = vmatpush1.bf16.msra.mxu0 0
        %4632 = vmatprep.subr.bf16.mxu0 0
        %4633 = vmatpush1.bf16.msra.mxu0 0
        %4634 = vmatprep.subr.bf16.mxu0 0
        %4635 = vmatpush1.bf16.msra.mxu0 0
        %4636 = vmatprep.subr.bf16.mxu0 0
        %4637 = vmatpush1.bf16.msra.mxu0 0
        %4638 = vmatprep.subr.bf16.mxu0 0
        %4639 = vmatpush1.bf16.msra.mxu0 0
        %4640 = vmatprep.subr.bf16.mxu0 0
        %4641 = vmatpush1.bf16.msra.mxu0 0
        %4642 = vmatprep.subr.bf16.mxu0 0
        %4643 = vmatpush1.bf16.msra.mxu0 0
        %4644 = vmatprep.mubr.bf16.mxu0 0
        %4645 = vmatmul.mubr.bf16.gmra.mrb[0].mxu0 %v4592
        %v4646 = vpop.f32.mrb[0].mxu0
        %v4647 = vadd.f32 0.0, %v4646
        %v4648 = vpop.f32.mrb[0].mxu0
        %v4649 = vpop.f32.mrb[0].mxu0
        %v4650 = vadd.f32 0.0, %v4649
        %v4651 = vpop.f32.mrb[0].mxu0
        %4652 = vmatprep.mubr.bf16.mxu0 0
        %4653 = vmatmul.mubr.bf16.gmra.mrb[0].mxu0 %v4595
        %v4654 = vpop.f32.mrb[0].mxu0
        %v4655 = vadd.f32 0.0, %v4654
        %v4656 = vpop.f32.mrb[0].mxu0
        %v4657 = vpop.f32.mrb[0].mxu0
        %v4658 = vadd.f32 0.0, %v4657
        %v4659 = vpop.f32.mrb[0].mxu0
        %4660 = vmatprep.mubr.bf16.mxu0 0
        %4661 = vmatmul.mubr.bf16.gmra.mrb[0].mxu0 %v4598
        %v4662 = vpop.f32.mrb[0].mxu0
        %v4663 = vadd.f32 0.0, %v4662
        %v4664 = vpop.f32.mrb[0].mxu0
        %v4665 = vpop.f32.mrb[0].mxu0
        %v4666 = vadd.f32 0.0, %v4665
        %v4667 = vpop.f32.mrb[0].mxu0
        %4668 = vmatprep.mubr.bf16.mxu0 0
        %4669 = vmatmul.mubr.bf16.gmra.mrb[0].mxu0 %v4601
        %v4670 = vpop.f32.mrb[0].mxu0
        %v4671 = vadd.f32 0.0, %v4670
        %v4672 = vpop.f32.mrb[0].mxu0
        %v4673 = vpop.f32.mrb[0].mxu0
        %v4674 = vadd.f32 0.0, %v4673
        %v4675 = vpop.f32.mrb[0].mxu0
        %4676 = vmatprep.mubr.bf16.mxu0 0
        %4677 = vmatmul.mubr.bf16.gmra.mrb[0].mxu0 %v4604
        %v4678 = vpop.f32.mrb[0].mxu0
        %v4679 = vadd.f32 0.0, %v4678
        %v4680 = vpop.f32.mrb[0].mxu0
        %v4681 = vpop.f32.mrb[0].mxu0
        %v4682 = vadd.f32 0.0, %v4681
        %v4683 = vpop.f32.mrb[0].mxu0
        %4684 = vmatprep.mubr.bf16.mxu0 0
        %4685 = vmatmul.mubr.bf16.gmra.mrb[0].mxu0 %v4607
        %v4686 = vpop.f32.mrb[0].mxu0
        %v4687 = vadd.f32 0.0, %v4686
        %v4688 = vpop.f32.mrb[0].mxu0
        %v4689 = vpop.f32.mrb[0].mxu0
        %v4690 = vadd.f32 0.0, %v4689
        %v4691 = vpop.f32.mrb[0].mxu0
        %4692 = vmatprep.mubr.bf16.mxu0 0
        %4693 = vmatmul.mubr.bf16.gmra.mrb[0].mxu0 %v4610
        %v4694 = vpop.f32.mrb[0].mxu0
        %v4695 = vadd.f32 0.0, %v4694
        %v4696 = vpop.f32.mrb[0].mxu0
        %v4697 = vpop.f32.mrb[0].mxu0
        %v4698 = vadd.f32 0.0, %v4697
        %v4699 = vpop.f32.mrb[0].mxu0
        %4700 = vdwg.mxu0
        %v4701 = vadd.f32 %v4561, %v4647
        %v4702 = vadd.f32 %v4562, %v4650
        %v4703 = vadd.f32 %v4563, %v4655
        %v4704 = vadd.f32 %v4564, %v4658
        %v4705 = vadd.f32 %v4565, %v4663
        %v4706 = vadd.f32 %v4566, %v4666
        %v4707 = vadd.f32 %v4567, %v4671
        %v4708 = vadd.f32 %v4568, %v4674
        %v4709 = vadd.f32 %v4569, %v4679
        %v4710 = vadd.f32 %v4570, %v4682
        %v4711 = vadd.f32 %v4571, %v4687
        %v4712 = vadd.f32 %v4572, %v4690
        %v4713 = vadd.f32 %v4573, %v4695
        %v4714 = vadd.f32 %v4574, %v4698
        %v4715 = vrot.slane %v3190, 6
        %v4716 = vrot.slane %v3203, 6
        %v4717 = vrot.slane %v3202, 6
        %v4718 = vrot.slane %v3201, 6
        %v4719 = vrot.slane %v3200, 6
        %v4720 = vrot.slane %v3199, 6
        %v4721 = vrot.slane %v3198, 6
        %v4722 = vrot.slane %v3197, 6
        %v4723 = vrot.slane %v3196, 6
        %v4724 = vrot.slane %v3195, 6
        %v4725 = vrot.slane %v3194, 6
        %v4726 = vrot.slane %v3193, 6
        %v4727 = vrot.slane %v3192, 6
        %v4728 = vrot.slane %v3191, 6
        %v4729 = vsel %vm2105, %v4727, %v4728
        %v4730 = vsel %vm2105, %v4726, %v4727
        %v4731 = vsel %vm2105, %v4725, %v4726
        %v4732 = vsel %vm2105, %v4724, %v4725
        %v4733 = vsel %vm2105, %v4723, %v4724
        %v4734 = vsel %vm2105, %v4722, %v4723
        %v4735 = vsel %vm2105, %v4721, %v4722
        %v4736 = vsel %vm2105, %v4720, %v4721
        %v4737 = vsel %vm2105, %v4719, %v4720
        %v4738 = vsel %vm2105, %v4718, %v4719
        %v4739 = vsel %vm2105, %v4717, %v4718
        %v4740 = vsel %vm2105, %v4716, %v4717
        %v4741 = vsel %vm2105, %v4715, %v4716
        %v4742 = vsel %vm2105, %v4728, %v4715
        %v4743 = vpack.c.bf16 %v4738, %v4739
        %v4744 = vpack.c.bf16 %v4736, %v4737
        %v4745 = vpack.c.bf16 %v4734, %v4735
        %v4746 = vpack.c.bf16 %v4732, %v4733
        %v4747 = vpack.c.bf16 %v4730, %v4731
        %v4748 = vpack.c.bf16 %v4742, %v4729
        %v4749 = vpack.c.bf16 %v4740, %v4741
        %s4750 = scalar_lea.vmem %s3, 80
        %v4751 = vld [vmem:[%s4750] sm:$0xf]
        %v4752 = vld [vmem:[%s4750 + $0x4] sm:$0xf]
        %v4755 = vunpack.c.l.b16 %v4751
        %v4756 = vunpack.c.l.b16 %v4752
        %v4757 = vpack.c.b16 %v4756, %v4755
        %v4760 = vsel %vm3007, %v4743, 0
        %v4763 = vsel %vm3007, %v4744, 0
        %v4766 = vsel %vm3007, %v4745, 0
        %v4769 = vsel %vm3007, %v4746, 0
        %v4772 = vsel %vm3007, %v4747, 0
        %v4775 = vsel %vm3007, %v4748, 0
        %v4778 = vsel %vm3007, %v4749, 0
        %4780 = vmatprep.subr.bf16.mxu0 0
        %4781 = vmatpush1.bf16.msra.mxu0 %v4757
        %4782 = vmatprep.subr.bf16.mxu0 0
        %4783 = vmatpush1.bf16.msra.mxu0 0
        %4784 = vmatprep.subr.bf16.mxu0 0
        %4785 = vmatpush1.bf16.msra.mxu0 0
        %4786 = vmatprep.subr.bf16.mxu0 0
        %4787 = vmatpush1.bf16.msra.mxu0 0
        %4788 = vmatprep.subr.bf16.mxu0 0
        %4789 = vmatpush1.bf16.msra.mxu0 0
        %4790 = vmatprep.subr.bf16.mxu0 0
        %4791 = vmatpush1.bf16.msra.mxu0 0
        %4792 = vmatprep.subr.bf16.mxu0 0
        %4793 = vmatpush1.bf16.msra.mxu0 0
        %4794 = vmatprep.subr.bf16.mxu0 0
        %4795 = vmatpush1.bf16.msra.mxu0 0
        %4796 = vmatprep.subr.bf16.mxu0 0
        %4797 = vmatpush1.bf16.msra.mxu0 0
        %4798 = vmatprep.subr.bf16.mxu0 0
        %4799 = vmatpush1.bf16.msra.mxu0 0
        %4800 = vmatprep.subr.bf16.mxu0 0
        %4801 = vmatpush1.bf16.msra.mxu0 0
        %4802 = vmatprep.subr.bf16.mxu0 0
        %4803 = vmatpush1.bf16.msra.mxu0 0
        %4804 = vmatprep.subr.bf16.mxu0 0
        %4805 = vmatpush1.bf16.msra.mxu0 0
        %4806 = vmatprep.subr.bf16.mxu0 0
        %4807 = vmatpush1.bf16.msra.mxu0 0
        %4808 = vmatprep.subr.bf16.mxu0 0
        %4809 = vmatpush1.bf16.msra.mxu0 0
        %4810 = vmatprep.subr.bf16.mxu0 0
        %4811 = vmatpush1.bf16.msra.mxu0 0
        %4812 = vmatprep.mubr.bf16.mxu0 0
        %4813 = vmatmul.mubr.bf16.gmra.mrb[0].mxu0 %v4760
        %v4814 = vpop.f32.mrb[0].mxu0
        %v4815 = vadd.f32 0.0, %v4814
        %v4816 = vpop.f32.mrb[0].mxu0
        %v4817 = vpop.f32.mrb[0].mxu0
        %v4818 = vadd.f32 0.0, %v4817
        %v4819 = vpop.f32.mrb[0].mxu0
        %4820 = vmatprep.mubr.bf16.mxu0 0
        %4821 = vmatmul.mubr.bf16.gmra.mrb[0].mxu0 %v4763
        %v4822 = vpop.f32.mrb[0].mxu0
        %v4823 = vadd.f32 0.0, %v4822
        %v4824 = vpop.f32.mrb[0].mxu0
        %v4825 = vpop.f32.mrb[0].mxu0
        %v4826 = vadd.f32 0.0, %v4825
        %v4827 = vpop.f32.mrb[0].mxu0
        %4828 = vmatprep.mubr.bf16.mxu0 0
        %4829 = vmatmul.mubr.bf16.gmra.mrb[0].mxu0 %v4766
        %v4830 = vpop.f32.mrb[0].mxu0
        %v4831 = vadd.f32 0.0, %v4830
        %v4832 = vpop.f32.mrb[0].mxu0
        %v4833 = vpop.f32.mrb[0].mxu0
        %v4834 = vadd.f32 0.0, %v4833
        %v4835 = vpop.f32.mrb[0].mxu0
        %4836 = vmatprep.mubr.bf16.mxu0 0
        %4837 = vmatmul.mubr.bf16.gmra.mrb[0].mxu0 %v4769
        %v4838 = vpop.f32.mrb[0].mxu0
        %v4839 = vadd.f32 0.0, %v4838
        %v4840 = vpop.f32.mrb[0].mxu0
        %v4841 = vpop.f32.mrb[0].mxu0
        %v4842 = vadd.f32 0.0, %v4841
        %v4843 = vpop.f32.mrb[0].mxu0
        %4844 = vmatprep.mubr.bf16.mxu0 0
        %4845 = vmatmul.mubr.bf16.gmra.mrb[0].mxu0 %v4772
        %v4846 = vpop.f32.mrb[0].mxu0
        %v4847 = vadd.f32 0.0, %v4846
        %v4848 = vpop.f32.mrb[0].mxu0
        %v4849 = vpop.f32.mrb[0].mxu0
        %v4850 = vadd.f32 0.0, %v4849
        %v4851 = vpop.f32.mrb[0].mxu0
        %4852 = vmatprep.mubr.bf16.mxu0 0
        %4853 = vmatmul.mubr.bf16.gmra.mrb[0].mxu0 %v4775
        %v4854 = vpop.f32.mrb[0].mxu0
        %v4855 = vadd.f32 0.0, %v4854
        %v4856 = vpop.f32.mrb[0].mxu0
        %v4857 = vpop.f32.mrb[0].mxu0
        %v4858 = vadd.f32 0.0, %v4857
        %v4859 = vpop.f32.mrb[0].mxu0
        %4860 = vmatprep.mubr.bf16.mxu0 0
        %4861 = vmatmul.mubr.bf16.gmra.mrb[0].mxu0 %v4778
        %v4862 = vpop.f32.mrb[0].mxu0
        %v4863 = vadd.f32 0.0, %v4862
        %v4864 = vpop.f32.mrb[0].mxu0
        %v4865 = vpop.f32.mrb[0].mxu0
        %v4866 = vadd.f32 0.0, %v4865
        %v4867 = vpop.f32.mrb[0].mxu0
        %4868 = vdwg.mxu0
        %v4869 = vadd.f32 %v4701, %v4815
        %v4870 = vadd.f32 %v4702, %v4818
        %v4871 = vadd.f32 %v4703, %v4823
        %v4872 = vadd.f32 %v4704, %v4826
        %v4873 = vadd.f32 %v4705, %v4831
        %v4874 = vadd.f32 %v4706, %v4834
        %v4875 = vadd.f32 %v4707, %v4839
        %v4876 = vadd.f32 %v4708, %v4842
        %v4877 = vadd.f32 %v4709, %v4847
        %v4878 = vadd.f32 %v4710, %v4850
        %v4879 = vadd.f32 %v4711, %v4855
        %v4880 = vadd.f32 %v4712, %v4858
        %v4881 = vadd.f32 %v4713, %v4863
        %v4882 = vadd.f32 %v4714, %v4866
        %v4883 = vrot.slane %v3190, 7
        %v4884 = vrot.slane %v3203, 7
        %v4885 = vrot.slane %v3202, 7
        %v4886 = vrot.slane %v3201, 7
        %v4887 = vrot.slane %v3200, 7
        %v4888 = vrot.slane %v3199, 7
        %v4889 = vrot.slane %v3198, 7
        %v4890 = vrot.slane %v3197, 7
        %v4891 = vrot.slane %v3196, 7
        %v4892 = vrot.slane %v3195, 7
        %v4893 = vrot.slane %v3194, 7
        %v4894 = vrot.slane %v3193, 7
        %v4895 = vrot.slane %v3192, 7
        %v4896 = vrot.slane %v3191, 7
        %v4897 = vsel %vm2270, %v4895, %v4896
        %v4898 = vsel %vm2270, %v4894, %v4895
        %v4899 = vsel %vm2270, %v4893, %v4894
        %v4900 = vsel %vm2270, %v4892, %v4893
        %v4901 = vsel %vm2270, %v4891, %v4892
        %v4902 = vsel %vm2270, %v4890, %v4891
        %v4903 = vsel %vm2270, %v4889, %v4890
        %v4904 = vsel %vm2270, %v4888, %v4889
        %v4905 = vsel %vm2270, %v4887, %v4888
        %v4906 = vsel %vm2270, %v4886, %v4887
        %v4907 = vsel %vm2270, %v4885, %v4886
        %v4908 = vsel %vm2270, %v4884, %v4885
        %v4909 = vsel %vm2270, %v4883, %v4884
        %v4910 = vsel %vm2270, %v4896, %v4883
        %v4911 = vpack.c.bf16 %v4906, %v4907
        %v4912 = vpack.c.bf16 %v4904, %v4905
        %v4913 = vpack.c.bf16 %v4902, %v4903
        %v4914 = vpack.c.bf16 %v4900, %v4901
        %v4915 = vpack.c.bf16 %v4898, %v4899
        %v4916 = vpack.c.bf16 %v4910, %v4897
        %v4917 = vpack.c.bf16 %v4908, %v4909
        %s4918 = scalar_lea.vmem %s3, 88
        %v4919 = vld [vmem:[%s4918] sm:$0xf]
        %v4920 = vld [vmem:[%s4918 + $0x4] sm:$0xf]
        %v4923 = vunpack.c.l.b16 %v4919
        %v4924 = vunpack.c.l.b16 %v4920
        %v4925 = vpack.c.b16 %v4924, %v4923
        %v4928 = vsel %vm3007, %v4911, 0
        %v4931 = vsel %vm3007, %v4912, 0
        %v4934 = vsel %vm3007, %v4913, 0
        %v4937 = vsel %vm3007, %v4914, 0
        %v4940 = vsel %vm3007, %v4915, 0
        %v4943 = vsel %vm3007, %v4916, 0
        %v4946 = vsel %vm3007, %v4917, 0
        %4948 = vmatprep.subr.bf16.mxu0 0
        %4949 = vmatpush1.bf16.msra.mxu0 %v4925
        %4950 = vmatprep.subr.bf16.mxu0 0
        %4951 = vmatpush1.bf16.msra.mxu0 0
        %4952 = vmatprep.subr.bf16.mxu0 0
        %4953 = vmatpush1.bf16.msra.mxu0 0
        %4954 = vmatprep.subr.bf16.mxu0 0
        %4955 = vmatpush1.bf16.msra.mxu0 0
        %4956 = vmatprep.subr.bf16.mxu0 0
        %4957 = vmatpush1.bf16.msra.mxu0 0
        %4958 = vmatprep.subr.bf16.mxu0 0
        %4959 = vmatpush1.bf16.msra.mxu0 0
        %4960 = vmatprep.subr.bf16.mxu0 0
        %4961 = vmatpush1.bf16.msra.mxu0 0
        %4962 = vmatprep.subr.bf16.mxu0 0
        %4963 = vmatpush1.bf16.msra.mxu0 0
        %4964 = vmatprep.subr.bf16.mxu0 0
        %4965 = vmatpush1.bf16.msra.mxu0 0
        %4966 = vmatprep.subr.bf16.mxu0 0
        %4967 = vmatpush1.bf16.msra.mxu0 0
        %4968 = vmatprep.subr.bf16.mxu0 0
        %4969 = vmatpush1.bf16.msra.mxu0 0
        %4970 = vmatprep.subr.bf16.mxu0 0
        %4971 = vmatpush1.bf16.msra.mxu0 0
        %4972 = vmatprep.subr.bf16.mxu0 0
        %4973 = vmatpush1.bf16.msra.mxu0 0
        %4974 = vmatprep.subr.bf16.mxu0 0
        %4975 = vmatpush1.bf16.msra.mxu0 0
        %4976 = vmatprep.subr.bf16.mxu0 0
        %4977 = vmatpush1.bf16.msra.mxu0 0
        %4978 = vmatprep.subr.bf16.mxu0 0
        %4979 = vmatpush1.bf16.msra.mxu0 0
        %4980 = vmatprep.mubr.bf16.mxu0 0
        %4981 = vmatmul.mubr.bf16.gmra.mrb[0].mxu0 %v4928
        %v4982 = vpop.f32.mrb[0].mxu0
        %v4983 = vadd.f32 0.0, %v4982
        %v4984 = vpop.f32.mrb[0].mxu0
        %v4985 = vpop.f32.mrb[0].mxu0
        %v4986 = vadd.f32 0.0, %v4985
        %v4987 = vpop.f32.mrb[0].mxu0
        %4988 = vmatprep.mubr.bf16.mxu0 0
        %4989 = vmatmul.mubr.bf16.gmra.mrb[0].mxu0 %v4931
        %v4990 = vpop.f32.mrb[0].mxu0
        %v4991 = vadd.f32 0.0, %v4990
        %v4992 = vpop.f32.mrb[0].mxu0
        %v4993 = vpop.f32.mrb[0].mxu0
        %v4994 = vadd.f32 0.0, %v4993
        %v4995 = vpop.f32.mrb[0].mxu0
        %4996 = vmatprep.mubr.bf16.mxu0 0
        %4997 = vmatmul.mubr.bf16.gmra.mrb[0].mxu0 %v4934
        %v4998 = vpop.f32.mrb[0].mxu0
        %v4999 = vadd.f32 0.0, %v4998
        %v5000 = vpop.f32.mrb[0].mxu0
        %v5001 = vpop.f32.mrb[0].mxu0
        %v5002 = vadd.f32 0.0, %v5001
        %v5003 = vpop.f32.mrb[0].mxu0
        %5004 = vmatprep.mubr.bf16.mxu0 0
        %5005 = vmatmul.mubr.bf16.gmra.mrb[0].mxu0 %v4937
        %v5006 = vpop.f32.mrb[0].mxu0
        %v5007 = vadd.f32 0.0, %v5006
        %v5008 = vpop.f32.mrb[0].mxu0
        %v5009 = vpop.f32.mrb[0].mxu0
        %v5010 = vadd.f32 0.0, %v5009
        %v5011 = vpop.f32.mrb[0].mxu0
        %5012 = vmatprep.mubr.bf16.mxu0 0
        %5013 = vmatmul.mubr.bf16.gmra.mrb[0].mxu0 %v4940
        %v5014 = vpop.f32.mrb[0].mxu0
        %v5015 = vadd.f32 0.0, %v5014
        %v5016 = vpop.f32.mrb[0].mxu0
        %v5017 = vpop.f32.mrb[0].mxu0
        %v5018 = vadd.f32 0.0, %v5017
        %v5019 = vpop.f32.mrb[0].mxu0
        %5020 = vmatprep.mubr.bf16.mxu0 0
        %5021 = vmatmul.mubr.bf16.gmra.mrb[0].mxu0 %v4943
        %v5022 = vpop.f32.mrb[0].mxu0
        %v5023 = vadd.f32 0.0, %v5022
        %v5024 = vpop.f32.mrb[0].mxu0
        %v5025 = vpop.f32.mrb[0].mxu0
        %v5026 = vadd.f32 0.0, %v5025
        %v5027 = vpop.f32.mrb[0].mxu0
        %5028 = vmatprep.mubr.bf16.mxu0 0
        %5029 = vmatmul.mubr.bf16.gmra.mrb[0].mxu0 %v4946
        %v5030 = vpop.f32.mrb[0].mxu0
        %v5031 = vadd.f32 0.0, %v5030
        %v5032 = vpop.f32.mrb[0].mxu0
        %v5033 = vpop.f32.mrb[0].mxu0
        %v5034 = vadd.f32 0.0, %v5033
        %v5035 = vpop.f32.mrb[0].mxu0
        %5036 = vdwg.mxu0
        %v5037 = vadd.f32 %v4869, %v4983
        %v5038 = vadd.f32 %v4870, %v4986
        %v5039 = vadd.f32 %v4871, %v4991
        %v5040 = vadd.f32 %v4872, %v4994
        %v5041 = vadd.f32 %v4873, %v4999
        %v5042 = vadd.f32 %v4874, %v5002
        %v5043 = vadd.f32 %v4875, %v5007
        %v5044 = vadd.f32 %v4876, %v5010
        %v5045 = vadd.f32 %v4877, %v5015
        %v5046 = vadd.f32 %v4878, %v5018
        %v5047 = vadd.f32 %v4879, %v5023
        %v5048 = vadd.f32 %v4880, %v5026
        %v5049 = vadd.f32 %v4881, %v5031
        %v5050 = vadd.f32 %v4882, %v5034
        %v5051 = vpack.c.bf16 %v4737, %v4738
        %v5052 = vpack.c.bf16 %v4735, %v4736
        %v5053 = vpack.c.bf16 %v4733, %v4734
        %v5054 = vpack.c.bf16 %v4731, %v4732
        %v5055 = vpack.c.bf16 %v4729, %v4730
        %v5056 = vpack.c.bf16 %v4741, %v4742
        %v5057 = vpack.c.bf16 %v4739, %v4740
        %s5058 = scalar_lea.vmem %s3, 96
        %v5059 = vld [vmem:[%s5058] sm:$0xf]
        %v5060 = vld [vmem:[%s5058 + $0x4] sm:$0xf]
        %v5063 = vunpack.c.l.b16 %v5059
        %v5064 = vunpack.c.l.b16 %v5060
        %v5065 = vpack.c.b16 %v5064, %v5063
        %v5068 = vsel %vm3007, %v5051, 0
        %v5071 = vsel %vm3007, %v5052, 0
        %v5074 = vsel %vm3007, %v5053, 0
        %v5077 = vsel %vm3007, %v5054, 0
        %v5080 = vsel %vm3007, %v5055, 0
        %v5083 = vsel %vm3007, %v5056, 0
        %v5086 = vsel %vm3007, %v5057, 0
        %5088 = vmatprep.subr.bf16.mxu0 0
        %5089 = vmatpush1.bf16.msra.mxu0 %v5065
        %5090 = vmatprep.subr.bf16.mxu0 0
        %5091 = vmatpush1.bf16.msra.mxu0 0
        %5092 = vmatprep.subr.bf16.mxu0 0
        %5093 = vmatpush1.bf16.msra.mxu0 0
        %5094 = vmatprep.subr.bf16.mxu0 0
        %5095 = vmatpush1.bf16.msra.mxu0 0
        %5096 = vmatprep.subr.bf16.mxu0 0
        %5097 = vmatpush1.bf16.msra.mxu0 0
        %5098 = vmatprep.subr.bf16.mxu0 0
        %5099 = vmatpush1.bf16.msra.mxu0 0
        %5100 = vmatprep.subr.bf16.mxu0 0
        %5101 = vmatpush1.bf16.msra.mxu0 0
        %5102 = vmatprep.subr.bf16.mxu0 0
        %5103 = vmatpush1.bf16.msra.mxu0 0
        %5104 = vmatprep.subr.bf16.mxu0 0
        %5105 = vmatpush1.bf16.msra.mxu0 0
        %5106 = vmatprep.subr.bf16.mxu0 0
        %5107 = vmatpush1.bf16.msra.mxu0 0
        %5108 = vmatprep.subr.bf16.mxu0 0
        %5109 = vmatpush1.bf16.msra.mxu0 0
        %5110 = vmatprep.subr.bf16.mxu0 0
        %5111 = vmatpush1.bf16.msra.mxu0 0
        %5112 = vmatprep.subr.bf16.mxu0 0
        %5113 = vmatpush1.bf16.msra.mxu0 0
        %5114 = vmatprep.subr.bf16.mxu0 0
        %5115 = vmatpush1.bf16.msra.mxu0 0
        %5116 = vmatprep.subr.bf16.mxu0 0
        %5117 = vmatpush1.bf16.msra.mxu0 0
        %5118 = vmatprep.subr.bf16.mxu0 0
        %5119 = vmatpush1.bf16.msra.mxu0 0
        %5120 = vmatprep.mubr.bf16.mxu0 0
        %5121 = vmatmul.mubr.bf16.gmra.mrb[0].mxu0 %v5068
        %v5122 = vpop.f32.mrb[0].mxu0
        %v5123 = vadd.f32 0.0, %v5122
        %v5124 = vpop.f32.mrb[0].mxu0
        %v5125 = vpop.f32.mrb[0].mxu0
        %v5126 = vadd.f32 0.0, %v5125
        %v5127 = vpop.f32.mrb[0].mxu0
        %5128 = vmatprep.mubr.bf16.mxu0 0
        %5129 = vmatmul.mubr.bf16.gmra.mrb[0].mxu0 %v5071
        %v5130 = vpop.f32.mrb[0].mxu0
        %v5131 = vadd.f32 0.0, %v5130
        %v5132 = vpop.f32.mrb[0].mxu0
        %v5133 = vpop.f32.mrb[0].mxu0
        %v5134 = vadd.f32 0.0, %v5133
        %v5135 = vpop.f32.mrb[0].mxu0
        %5136 = vmatprep.mubr.bf16.mxu0 0
        %5137 = vmatmul.mubr.bf16.gmra.mrb[0].mxu0 %v5074
        %v5138 = vpop.f32.mrb[0].mxu0
        %v5139 = vadd.f32 0.0, %v5138
        %v5140 = vpop.f32.mrb[0].mxu0
        %v5141 = vpop.f32.mrb[0].mxu0
        %v5142 = vadd.f32 0.0, %v5141
        %v5143 = vpop.f32.mrb[0].mxu0
        %5144 = vmatprep.mubr.bf16.mxu0 0
        %5145 = vmatmul.mubr.bf16.gmra.mrb[0].mxu0 %v5077
        %v5146 = vpop.f32.mrb[0].mxu0
        %v5147 = vadd.f32 0.0, %v5146
        %v5148 = vpop.f32.mrb[0].mxu0
        %v5149 = vpop.f32.mrb[0].mxu0
        %v5150 = vadd.f32 0.0, %v5149
        %v5151 = vpop.f32.mrb[0].mxu0
        %5152 = vmatprep.mubr.bf16.mxu0 0
        %5153 = vmatmul.mubr.bf16.gmra.mrb[0].mxu0 %v5080
        %v5154 = vpop.f32.mrb[0].mxu0
        %v5155 = vadd.f32 0.0, %v5154
        %v5156 = vpop.f32.mrb[0].mxu0
        %v5157 = vpop.f32.mrb[0].mxu0
        %v5158 = vadd.f32 0.0, %v5157
        %v5159 = vpop.f32.mrb[0].mxu0
        %5160 = vmatprep.mubr.bf16.mxu0 0
        %5161 = vmatmul.mubr.bf16.gmra.mrb[0].mxu0 %v5083
        %v5162 = vpop.f32.mrb[0].mxu0
        %v5163 = vadd.f32 0.0, %v5162
        %v5164 = vpop.f32.mrb[0].mxu0
        %v5165 = vpop.f32.mrb[0].mxu0
        %v5166 = vadd.f32 0.0, %v5165
        %v5167 = vpop.f32.mrb[0].mxu0
        %5168 = vmatprep.mubr.bf16.mxu0 0
        %5169 = vmatmul.mubr.bf16.gmra.mrb[0].mxu0 %v5086
        %v5170 = vpop.f32.mrb[0].mxu0
        %v5171 = vadd.f32 0.0, %v5170
        %v5172 = vpop.f32.mrb[0].mxu0
        %v5173 = vpop.f32.mrb[0].mxu0
        %v5174 = vadd.f32 0.0, %v5173
        %v5175 = vpop.f32.mrb[0].mxu0
        %5176 = vdwg.mxu0
        %v5177 = vadd.f32 %v5037, %v5123
        %v5178 = vadd.f32 %v5038, %v5126
        %v5179 = vadd.f32 %v5039, %v5131
        %v5180 = vadd.f32 %v5040, %v5134
        %v5181 = vadd.f32 %v5041, %v5139
        %v5182 = vadd.f32 %v5042, %v5142
        %v5183 = vadd.f32 %v5043, %v5147
        %v5184 = vadd.f32 %v5044, %v5150
        %v5185 = vadd.f32 %v5045, %v5155
        %v5186 = vadd.f32 %v5046, %v5158
        %v5187 = vadd.f32 %v5047, %v5163
        %v5188 = vadd.f32 %v5048, %v5166
        %v5189 = vadd.f32 %v5049, %v5171
        %v5190 = vadd.f32 %v5050, %v5174
        %v5191 = vpack.c.bf16 %v4905, %v4906
        %v5192 = vpack.c.bf16 %v4903, %v4904
        %v5193 = vpack.c.bf16 %v4901, %v4902
        %v5194 = vpack.c.bf16 %v4899, %v4900
        %v5195 = vpack.c.bf16 %v4897, %v4898
        %v5196 = vpack.c.bf16 %v4909, %v4910
        %v5197 = vpack.c.bf16 %v4907, %v4908
        %s5198 = scalar_lea.vmem %s3, 104
        %v5199 = vld [vmem:[%s5198] sm:$0xf]
        %v5200 = vld [vmem:[%s5198 + $0x4] sm:$0xf]
        %v5203 = vunpack.c.l.b16 %v5199
        %v5204 = vunpack.c.l.b16 %v5200
        %v5205 = vpack.c.b16 %v5204, %v5203
        %v5208 = vsel %vm3007, %v5191, 0
        %v5211 = vsel %vm3007, %v5192, 0
        %v5214 = vsel %vm3007, %v5193, 0
        %v5217 = vsel %vm3007, %v5194, 0
        %v5220 = vsel %vm3007, %v5195, 0
        %v5223 = vsel %vm3007, %v5196, 0
        %v5226 = vsel %vm3007, %v5197, 0
        %5228 = vmatprep.subr.bf16.mxu0 0
        %5229 = vmatpush1.bf16.msra.mxu0 %v5205
        %5230 = vmatprep.subr.bf16.mxu0 0
        %5231 = vmatpush1.bf16.msra.mxu0 0
        %5232 = vmatprep.subr.bf16.mxu0 0
        %5233 = vmatpush1.bf16.msra.mxu0 0
        %5234 = vmatprep.subr.bf16.mxu0 0
        %5235 = vmatpush1.bf16.msra.mxu0 0
        %5236 = vmatprep.subr.bf16.mxu0 0
        %5237 = vmatpush1.bf16.msra.mxu0 0
        %5238 = vmatprep.subr.bf16.mxu0 0
        %5239 = vmatpush1.bf16.msra.mxu0 0
        %5240 = vmatprep.subr.bf16.mxu0 0
        %5241 = vmatpush1.bf16.msra.mxu0 0
        %5242 = vmatprep.subr.bf16.mxu0 0
        %5243 = vmatpush1.bf16.msra.mxu0 0
        %5244 = vmatprep.subr.bf16.mxu0 0
        %5245 = vmatpush1.bf16.msra.mxu0 0
        %5246 = vmatprep.subr.bf16.mxu0 0
        %5247 = vmatpush1.bf16.msra.mxu0 0
        %5248 = vmatprep.subr.bf16.mxu0 0
        %5249 = vmatpush1.bf16.msra.mxu0 0
        %5250 = vmatprep.subr.bf16.mxu0 0
        %5251 = vmatpush1.bf16.msra.mxu0 0
        %5252 = vmatprep.subr.bf16.mxu0 0
        %5253 = vmatpush1.bf16.msra.mxu0 0
        %5254 = vmatprep.subr.bf16.mxu0 0
        %5255 = vmatpush1.bf16.msra.mxu0 0
        %5256 = vmatprep.subr.bf16.mxu0 0
        %5257 = vmatpush1.bf16.msra.mxu0 0
        %5258 = vmatprep.subr.bf16.mxu0 0
        %5259 = vmatpush1.bf16.msra.mxu0 0
        %5260 = vmatprep.mubr.bf16.mxu0 0
        %5261 = vmatmul.mubr.bf16.gmra.mrb[0].mxu0 %v5208
        %v5262 = vpop.f32.mrb[0].mxu0
        %v5263 = vadd.f32 0.0, %v5262
        %v5264 = vpop.f32.mrb[0].mxu0
        %v5265 = vpop.f32.mrb[0].mxu0
        %v5266 = vadd.f32 0.0, %v5265
        %v5267 = vpop.f32.mrb[0].mxu0
        %5268 = vmatprep.mubr.bf16.mxu0 0
        %5269 = vmatmul.mubr.bf16.gmra.mrb[0].mxu0 %v5211
        %v5270 = vpop.f32.mrb[0].mxu0
        %v5271 = vadd.f32 0.0, %v5270
        %v5272 = vpop.f32.mrb[0].mxu0
        %v5273 = vpop.f32.mrb[0].mxu0
        %v5274 = vadd.f32 0.0, %v5273
        %v5275 = vpop.f32.mrb[0].mxu0
        %5276 = vmatprep.mubr.bf16.mxu0 0
        %5277 = vmatmul.mubr.bf16.gmra.mrb[0].mxu0 %v5214
        %v5278 = vpop.f32.mrb[0].mxu0
        %v5279 = vadd.f32 0.0, %v5278
        %v5280 = vpop.f32.mrb[0].mxu0
        %v5281 = vpop.f32.mrb[0].mxu0
        %v5282 = vadd.f32 0.0, %v5281
        %v5283 = vpop.f32.mrb[0].mxu0
        %5284 = vmatprep.mubr.bf16.mxu0 0
        %5285 = vmatmul.mubr.bf16.gmra.mrb[0].mxu0 %v5217
        %v5286 = vpop.f32.mrb[0].mxu0
        %v5287 = vadd.f32 0.0, %v5286
        %v5288 = vpop.f32.mrb[0].mxu0
        %v5289 = vpop.f32.mrb[0].mxu0
        %v5290 = vadd.f32 0.0, %v5289
        %v5291 = vpop.f32.mrb[0].mxu0
        %5292 = vmatprep.mubr.bf16.mxu0 0
        %5293 = vmatmul.mubr.bf16.gmra.mrb[0].mxu0 %v5220
        %v5294 = vpop.f32.mrb[0].mxu0
        %v5295 = vadd.f32 0.0, %v5294
        %v5296 = vpop.f32.mrb[0].mxu0
        %v5297 = vpop.f32.mrb[0].mxu0
        %v5298 = vadd.f32 0.0, %v5297
        %v5299 = vpop.f32.mrb[0].mxu0
        %5300 = vmatprep.mubr.bf16.mxu0 0
        %5301 = vmatmul.mubr.bf16.gmra.mrb[0].mxu0 %v5223
        %v5302 = vpop.f32.mrb[0].mxu0
        %v5303 = vadd.f32 0.0, %v5302
        %v5304 = vpop.f32.mrb[0].mxu0
        %v5305 = vpop.f32.mrb[0].mxu0
        %v5306 = vadd.f32 0.0, %v5305
        %v5307 = vpop.f32.mrb[0].mxu0
        %5308 = vmatprep.mubr.bf16.mxu0 0
        %5309 = vmatmul.mubr.bf16.gmra.mrb[0].mxu0 %v5226
        %v5310 = vpop.f32.mrb[0].mxu0
        %v5311 = vadd.f32 0.0, %v5310
        %v5312 = vpop.f32.mrb[0].mxu0
        %v5313 = vpop.f32.mrb[0].mxu0
        %v5314 = vadd.f32 0.0, %v5313
        %v5315 = vpop.f32.mrb[0].mxu0
        %5316 = vdwg.mxu0
        %v5317 = vadd.f32 %v5177, %v5263
        %v5318 = vadd.f32 %v5178, %v5266
        %v5319 = vadd.f32 %v5179, %v5271
        %v5320 = vadd.f32 %v5180, %v5274
        %v5321 = vadd.f32 %v5181, %v5279
        %v5322 = vadd.f32 %v5182, %v5282
        %v5323 = vadd.f32 %v5183, %v5287
        %v5324 = vadd.f32 %v5184, %v5290
        %v5325 = vadd.f32 %v5185, %v5295
        %v5326 = vadd.f32 %v5186, %v5298
        %v5327 = vadd.f32 %v5187, %v5303
        %v5328 = vadd.f32 %v5188, %v5306
        %v5329 = vadd.f32 %v5189, %v5311
        %v5330 = vadd.f32 %v5190, %v5314
        %s5331 = scalar_lea.vmem %s3, 112
        %v5332 = vld [vmem:[%s5331] sm:$0xf]
        %v5333 = vld [vmem:[%s5331 + $0x4] sm:$0xf]
        %v5336 = vunpack.c.l.b16 %v5332
        %v5337 = vunpack.c.l.b16 %v5333
        %v5338 = vpack.c.b16 %v5337, %v5336
        %5340 = vmatprep.subr.bf16.mxu0 0
        %5341 = vmatpush1.bf16.msra.mxu0 %v5338
        %5342 = vmatprep.subr.bf16.mxu0 0
        %5343 = vmatpush1.bf16.msra.mxu0 0
        %5344 = vmatprep.subr.bf16.mxu0 0
        %5345 = vmatpush1.bf16.msra.mxu0 0
        %5346 = vmatprep.subr.bf16.mxu0 0
        %5347 = vmatpush1.bf16.msra.mxu0 0
        %5348 = vmatprep.subr.bf16.mxu0 0
        %5349 = vmatpush1.bf16.msra.mxu0 0
        %5350 = vmatprep.subr.bf16.mxu0 0
        %5351 = vmatpush1.bf16.msra.mxu0 0
        %5352 = vmatprep.subr.bf16.mxu0 0
        %5353 = vmatpush1.bf16.msra.mxu0 0
        %5354 = vmatprep.subr.bf16.mxu0 0
        %5355 = vmatpush1.bf16.msra.mxu0 0
        %5356 = vmatprep.subr.bf16.mxu0 0
        %5357 = vmatpush1.bf16.msra.mxu0 0
        %5358 = vmatprep.subr.bf16.mxu0 0
        %5359 = vmatpush1.bf16.msra.mxu0 0
        %5360 = vmatprep.subr.bf16.mxu0 0
        %5361 = vmatpush1.bf16.msra.mxu0 0
        %5362 = vmatprep.subr.bf16.mxu0 0
        %5363 = vmatpush1.bf16.msra.mxu0 0
        %5364 = vmatprep.subr.bf16.mxu0 0
        %5365 = vmatpush1.bf16.msra.mxu0 0
        %5366 = vmatprep.subr.bf16.mxu0 0
        %5367 = vmatpush1.bf16.msra.mxu0 0
        %5368 = vmatprep.subr.bf16.mxu0 0
        %5369 = vmatpush1.bf16.msra.mxu0 0
        %5370 = vmatprep.subr.bf16.mxu0 0
        %5371 = vmatpush1.bf16.msra.mxu0 0
        %5372 = vmatprep.mubr.bf16.mxu0 0
        %5373 = vmatmul.mubr.bf16.gmra.mrb[0].mxu0 %v3380
        %v5374 = vpop.f32.mrb[0].mxu0
        %v5375 = vadd.f32 0.0, %v5374
        %v5376 = vpop.f32.mrb[0].mxu0
        %v5377 = vpop.f32.mrb[0].mxu0
        %v5378 = vadd.f32 0.0, %v5377
        %v5379 = vpop.f32.mrb[0].mxu0
        %5380 = vmatprep.mubr.bf16.mxu0 0
        %5381 = vmatmul.mubr.bf16.gmra.mrb[0].mxu0 %v3383
        %v5382 = vpop.f32.mrb[0].mxu0
        %v5383 = vadd.f32 0.0, %v5382
        %v5384 = vpop.f32.mrb[0].mxu0
        %v5385 = vpop.f32.mrb[0].mxu0
        %v5386 = vadd.f32 0.0, %v5385
        %v5387 = vpop.f32.mrb[0].mxu0
        %5388 = vmatprep.mubr.bf16.mxu0 0
        %5389 = vmatmul.mubr.bf16.gmra.mrb[0].mxu0 %v3386
        %v5390 = vpop.f32.mrb[0].mxu0
        %v5391 = vadd.f32 0.0, %v5390
        %v5392 = vpop.f32.mrb[0].mxu0
        %v5393 = vpop.f32.mrb[0].mxu0
        %v5394 = vadd.f32 0.0, %v5393
        %v5395 = vpop.f32.mrb[0].mxu0
        %5396 = vmatprep.mubr.bf16.mxu0 0
        %5397 = vmatmul.mubr.bf16.gmra.mrb[0].mxu0 %v3389
        %v5398 = vpop.f32.mrb[0].mxu0
        %v5399 = vadd.f32 0.0, %v5398
        %v5400 = vpop.f32.mrb[0].mxu0
        %v5401 = vpop.f32.mrb[0].mxu0
        %v5402 = vadd.f32 0.0, %v5401
        %v5403 = vpop.f32.mrb[0].mxu0
        %5404 = vmatprep.mubr.bf16.mxu0 0
        %5405 = vmatmul.mubr.bf16.gmra.mrb[0].mxu0 %v3392
        %v5406 = vpop.f32.mrb[0].mxu0
        %v5407 = vadd.f32 0.0, %v5406
        %v5408 = vpop.f32.mrb[0].mxu0
        %v5409 = vpop.f32.mrb[0].mxu0
        %v5410 = vadd.f32 0.0, %v5409
        %v5411 = vpop.f32.mrb[0].mxu0
        %5412 = vmatprep.mubr.bf16.mxu0 0
        %5413 = vmatmul.mubr.bf16.gmra.mrb[0].mxu0 %v3374
        %v5414 = vpop.f32.mrb[0].mxu0
        %v5415 = vadd.f32 0.0, %v5414
        %v5416 = vpop.f32.mrb[0].mxu0
        %v5417 = vpop.f32.mrb[0].mxu0
        %v5418 = vadd.f32 0.0, %v5417
        %v5419 = vpop.f32.mrb[0].mxu0
        %5420 = vmatprep.mubr.bf16.mxu0 0
        %5421 = vmatmul.mubr.bf16.gmra.mrb[0].mxu0 %v3377
        %v5422 = vpop.f32.mrb[0].mxu0
        %v5423 = vadd.f32 0.0, %v5422
        %v5424 = vpop.f32.mrb[0].mxu0
        %v5425 = vpop.f32.mrb[0].mxu0
        %v5426 = vadd.f32 0.0, %v5425
        %v5427 = vpop.f32.mrb[0].mxu0
        %5428 = vdwg.mxu0
        %v5429 = vadd.f32 %v5317, %v5375
        %v5430 = vadd.f32 %v5318, %v5378
        %v5431 = vadd.f32 %v5319, %v5383
        %v5432 = vadd.f32 %v5320, %v5386
        %v5433 = vadd.f32 %v5321, %v5391
        %v5434 = vadd.f32 %v5322, %v5394
        %v5435 = vadd.f32 %v5323, %v5399
        %v5436 = vadd.f32 %v5324, %v5402
        %v5437 = vadd.f32 %v5325, %v5407
        %v5438 = vadd.f32 %v5326, %v5410
        %v5439 = vadd.f32 %v5327, %v5415
        %v5440 = vadd.f32 %v5328, %v5418
        %v5441 = vadd.f32 %v5329, %v5423
        %v5442 = vadd.f32 %v5330, %v5426
        %s5443 = scalar_lea.vmem %s3, 120
        %v5444 = vld [vmem:[%s5443] sm:$0xf]
        %v5445 = vld [vmem:[%s5443 + $0x4] sm:$0xf]
        %v5448 = vunpack.c.l.b16 %v5444
        %v5449 = vunpack.c.l.b16 %v5445
        %v5450 = vpack.c.b16 %v5449, %v5448
        %5452 = vmatprep.subr.bf16.mxu0 0
        %5453 = vmatpush1.bf16.msra.mxu0 %v5450
        %5454 = vmatprep.subr.bf16.mxu0 0
        %5455 = vmatpush1.bf16.msra.mxu0 0
        %5456 = vmatprep.subr.bf16.mxu0 0
        %5457 = vmatpush1.bf16.msra.mxu0 0
        %5458 = vmatprep.subr.bf16.mxu0 0
        %5459 = vmatpush1.bf16.msra.mxu0 0
        %5460 = vmatprep.subr.bf16.mxu0 0
        %5461 = vmatpush1.bf16.msra.mxu0 0
        %5462 = vmatprep.subr.bf16.mxu0 0
        %5463 = vmatpush1.bf16.msra.mxu0 0
        %5464 = vmatprep.subr.bf16.mxu0 0
        %5465 = vmatpush1.bf16.msra.mxu0 0
        %5466 = vmatprep.subr.bf16.mxu0 0
        %5467 = vmatpush1.bf16.msra.mxu0 0
        %5468 = vmatprep.subr.bf16.mxu0 0
        %5469 = vmatpush1.bf16.msra.mxu0 0
        %5470 = vmatprep.subr.bf16.mxu0 0
        %5471 = vmatpush1.bf16.msra.mxu0 0
        %5472 = vmatprep.subr.bf16.mxu0 0
        %5473 = vmatpush1.bf16.msra.mxu0 0
        %5474 = vmatprep.subr.bf16.mxu0 0
        %5475 = vmatpush1.bf16.msra.mxu0 0
        %5476 = vmatprep.subr.bf16.mxu0 0
        %5477 = vmatpush1.bf16.msra.mxu0 0
        %5478 = vmatprep.subr.bf16.mxu0 0
        %5479 = vmatpush1.bf16.msra.mxu0 0
        %5480 = vmatprep.subr.bf16.mxu0 0
        %5481 = vmatpush1.bf16.msra.mxu0 0
        %5482 = vmatprep.subr.bf16.mxu0 0
        %5483 = vmatpush1.bf16.msra.mxu0 0
        %5484 = vmatprep.mubr.bf16.mxu0 0
        %5485 = vmatmul.mubr.bf16.gmra.mrb[0].mxu0 %v3264
        %v5486 = vpop.f32.mrb[0].mxu0
        %v5487 = vadd.f32 0.0, %v5486
        %v5488 = vpop.f32.mrb[0].mxu0
        %v5489 = vpop.f32.mrb[0].mxu0
        %v5490 = vadd.f32 0.0, %v5489
        %v5491 = vpop.f32.mrb[0].mxu0
        %5492 = vmatprep.mubr.bf16.mxu0 0
        %5493 = vmatmul.mubr.bf16.gmra.mrb[0].mxu0 %v3267
        %v5494 = vpop.f32.mrb[0].mxu0
        %v5495 = vadd.f32 0.0, %v5494
        %v5496 = vpop.f32.mrb[0].mxu0
        %v5497 = vpop.f32.mrb[0].mxu0
        %v5498 = vadd.f32 0.0, %v5497
        %v5499 = vpop.f32.mrb[0].mxu0
        %5500 = vmatprep.mubr.bf16.mxu0 0
        %5501 = vmatmul.mubr.bf16.gmra.mrb[0].mxu0 %v3270
        %v5502 = vpop.f32.mrb[0].mxu0
        %v5503 = vadd.f32 0.0, %v5502
        %v5504 = vpop.f32.mrb[0].mxu0
        %v5505 = vpop.f32.mrb[0].mxu0
        %v5506 = vadd.f32 0.0, %v5505
        %v5507 = vpop.f32.mrb[0].mxu0
        %5508 = vmatprep.mubr.bf16.mxu0 0
        %5509 = vmatmul.mubr.bf16.gmra.mrb[0].mxu0 %v3273
        %v5510 = vpop.f32.mrb[0].mxu0
        %v5511 = vadd.f32 0.0, %v5510
        %v5512 = vpop.f32.mrb[0].mxu0
        %v5513 = vpop.f32.mrb[0].mxu0
        %v5514 = vadd.f32 0.0, %v5513
        %v5515 = vpop.f32.mrb[0].mxu0
        %5516 = vmatprep.mubr.bf16.mxu0 0
        %5517 = vmatmul.mubr.bf16.gmra.mrb[0].mxu0 %v3276
        %v5518 = vpop.f32.mrb[0].mxu0
        %v5519 = vadd.f32 0.0, %v5518
        %v5520 = vpop.f32.mrb[0].mxu0
        %v5521 = vpop.f32.mrb[0].mxu0
        %v5522 = vadd.f32 0.0, %v5521
        %v5523 = vpop.f32.mrb[0].mxu0
        %5524 = vmatprep.mubr.bf16.mxu0 0
        %5525 = vmatmul.mubr.bf16.gmra.mrb[0].mxu0 %v3258
        %v5526 = vpop.f32.mrb[0].mxu0
        %v5527 = vadd.f32 0.0, %v5526
        %v5528 = vpop.f32.mrb[0].mxu0
        %v5529 = vpop.f32.mrb[0].mxu0
        %v5530 = vadd.f32 0.0, %v5529
        %v5531 = vpop.f32.mrb[0].mxu0
        %5532 = vmatprep.mubr.bf16.mxu0 0
        %5533 = vmatmul.mubr.bf16.gmra.mrb[0].mxu0 %v3261
        %v5534 = vpop.f32.mrb[0].mxu0
        %v5535 = vadd.f32 0.0, %v5534
        %v5536 = vpop.f32.mrb[0].mxu0
        %v5537 = vpop.f32.mrb[0].mxu0
        %v5538 = vadd.f32 0.0, %v5537
        %v5539 = vpop.f32.mrb[0].mxu0
        %5540 = vdwg.mxu0
        %v5541 = vadd.f32 %v5429, %v5487
        %v5542 = vadd.f32 %v5430, %v5490
        %v5543 = vadd.f32 %v5431, %v5495
        %v5544 = vadd.f32 %v5432, %v5498
        %v5545 = vadd.f32 %v5433, %v5503
        %v5546 = vadd.f32 %v5434, %v5506
        %v5547 = vadd.f32 %v5435, %v5511
        %v5548 = vadd.f32 %v5436, %v5514
        %v5549 = vadd.f32 %v5437, %v5519
        %v5550 = vadd.f32 %v5438, %v5522
        %v5551 = vadd.f32 %v5439, %v5527
        %v5552 = vadd.f32 %v5440, %v5530
        %v5553 = vadd.f32 %v5441, %v5535
        %v5554 = vadd.f32 %v5442, %v5538
        %v5555 = vld [vmem:[%s10] sm:$0xff]
        %v5556 = vld [vmem:[%s10 + $0x8] sm:$0xff]
        %v5557 = vld [vmem:[%s10 + $0x10] sm:$0xff]
        %v5558 = vld [vmem:[%s10 + $0x18] sm:$0xff]
        %v5559 = vld [vmem:[%s10 + $0x20] sm:$0xff]
        %v5560 = vld [vmem:[%s10 + $0x28] sm:$0xff]
        %v5561 = vld [vmem:[%s10 + $0x30] sm:$0xff]
        %v5562 = vld [vmem:[%s10 + $0x38] sm:$0xff]
        %v5563 = vld [vmem:[%s10 + $0x40] sm:$0xff]
        %v5564 = vld [vmem:[%s10 + $0x48] sm:$0xff]
        %v5565 = vld [vmem:[%s10 + $0x50] sm:$0xff]
        %v5566 = vld [vmem:[%s10 + $0x58] sm:$0xff]
        %v5567 = vld [vmem:[%s10 + $0x60] sm:$0xff]
        %v5568 = vld [vmem:[%s10 + $0x68] sm:$0xff]
        %5570 = vset.pattern.permute.xlu0 0
        %5571 = vperm.xlu0 %5570, %v5555
        %v5572 = vpop.permute.xlu0 %5571
        %5575 = vset.pattern.permute.xlu0 0
        %5576 = vperm.xlu0 %5575, %v5556
        %v5577 = vpop.permute.xlu0 %5576
        %5580 = vset.pattern.permute.xlu0 0
        %5581 = vperm.xlu0 %5580, %v5557
        %v5582 = vpop.permute.xlu0 %5581
        %5585 = vset.pattern.permute.xlu0 0
        %5586 = vperm.xlu0 %5585, %v5558
        %v5587 = vpop.permute.xlu0 %5586
        %5590 = vset.pattern.permute.xlu0 0
        %5591 = vperm.xlu0 %5590, %v5559
        %v5592 = vpop.permute.xlu0 %5591
        %5595 = vset.pattern.permute.xlu0 0
        %5596 = vperm.xlu0 %5595, %v5560
        %v5597 = vpop.permute.xlu0 %5596
        %5600 = vset.pattern.permute.xlu0 0
        %5601 = vperm.xlu0 %5600, %v5561
        %v5602 = vpop.permute.xlu0 %5601
        %5605 = vset.pattern.permute.xlu0 0
        %5606 = vperm.xlu0 %5605, %v5562
        %v5607 = vpop.permute.xlu0 %5606
        %5610 = vset.pattern.permute.xlu0 0
        %5611 = vperm.xlu0 %5610, %v5563
        %v5612 = vpop.permute.xlu0 %5611
        %5615 = vset.pattern.permute.xlu0 0
        %5616 = vperm.xlu0 %5615, %v5564
        %v5617 = vpop.permute.xlu0 %5616
        %5620 = vset.pattern.permute.xlu0 0
        %5621 = vperm.xlu0 %5620, %v5565
        %v5622 = vpop.permute.xlu0 %5621
        %5625 = vset.pattern.permute.xlu0 0
        %5626 = vperm.xlu0 %5625, %v5566
        %v5627 = vpop.permute.xlu0 %5626
        %5630 = vset.pattern.permute.xlu0 0
        %5631 = vperm.xlu0 %5630, %v5567
        %v5632 = vpop.permute.xlu0 %5631
        %5635 = vset.pattern.permute.xlu0 0
        %5636 = vperm.xlu0 %5635, %v5568
        %v5637 = vpop.permute.xlu0 %5636
        %v5639 = vmul.f32 %v5541, %v5572
        %v5640 = vmul.f32 %v5542, %v5577
        %v5641 = vmul.f32 %v5543, %v5582
        %v5642 = vmul.f32 %v5544, %v5587
        %v5643 = vmul.f32 %v5545, %v5592
        %v5644 = vmul.f32 %v5546, %v5597
        %v5645 = vmul.f32 %v5547, %v5602
        %v5646 = vmul.f32 %v5548, %v5607
        %v5647 = vmul.f32 %v5549, %v5612
        %v5648 = vmul.f32 %v5550, %v5617
        %v5649 = vmul.f32 %v5551, %v5622
        %v5650 = vmul.f32 %v5552, %v5627
        %v5651 = vmul.f32 %v5553, %v5632
        %v5652 = vmul.f32 %v5554, %v5637
        %vm5653 = vcmask 261120
        %v5654 = vsel %vm5653, %v5639, 0.0
        %v5655 = vsel %vm5653, %v5640, 0.0
        %v5656 = vadd.f32 %v5654, %v5655
        %v5657 = vsel %vm5653, %v5641, 0.0
        %v5658 = vadd.f32 %v5656, %v5657
        %v5659 = vsel %vm5653, %v5642, 0.0
        %v5660 = vadd.f32 %v5658, %v5659
        %v5661 = vsel %vm5653, %v5643, 0.0
        %v5662 = vadd.f32 %v5660, %v5661
        %v5663 = vsel %vm5653, %v5644, 0.0
        %v5664 = vadd.f32 %v5662, %v5663
        %v5665 = vsel %vm5653, %v5645, 0.0
        %v5666 = vadd.f32 %v5664, %v5665
        %v5667 = vsel %vm5653, %v5646, 0.0
        %v5668 = vadd.f32 %v5666, %v5667
        %v5669 = vsel %vm5653, %v5647, 0.0
        %v5670 = vadd.f32 %v5668, %v5669
        %v5671 = vsel %vm5653, %v5648, 0.0
        %v5672 = vadd.f32 %v5670, %v5671
        %v5673 = vsel %vm5653, %v5649, 0.0
        %v5674 = vadd.f32 %v5672, %v5673
        %v5675 = vsel %vm5653, %v5650, 0.0
        %v5676 = vadd.f32 %v5674, %v5675
        %v5677 = vsel %vm5653, %v5651, 0.0
        %v5678 = vadd.f32 %v5676, %v5677
        %v5679 = vsel %vm5653, %v5652, 0.0
        %v5680 = vadd.f32 %v5678, %v5679
        %v5681 = vrot.slane %v5680, 4
        %v5682 = vadd.f32 %v5680, %v5681
        %v5683 = vrot.slane %v5682, 2
        %v5684 = vadd.f32 %v5682, %v5683
        %v5685 = vrot.slane %v5684, 1
        %v5686 = vadd.f32 %v5684, %v5685
        %v5687 = vmul.f32 %v5686, 0.027777778
        %v5688 = vsub.f32 %v5541, %v5687
        %v5689 = vsub.f32 %v5542, %v5687
        %v5690 = vsub.f32 %v5543, %v5687
        %v5691 = vsub.f32 %v5544, %v5687
        %v5692 = vsub.f32 %v5545, %v5687
        %v5693 = vsub.f32 %v5546, %v5687
        %v5694 = vsub.f32 %v5547, %v5687
        %v5695 = vsub.f32 %v5548, %v5687
        %v5696 = vsub.f32 %v5549, %v5687
        %v5697 = vsub.f32 %v5550, %v5687
        %v5698 = vsub.f32 %v5551, %v5687
        %v5699 = vsub.f32 %v5552, %v5687
        %v5700 = vsub.f32 %v5553, %v5687
        %v5701 = vsub.f32 %v5554, %v5687
        %v5702 = vmul.f32 %v5688, %v5572
        %v5703 = vmul.f32 %v5689, %v5577
        %v5704 = vmul.f32 %v5690, %v5582
        %v5705 = vmul.f32 %v5691, %v5587
        %v5706 = vmul.f32 %v5692, %v5592
        %v5707 = vmul.f32 %v5693, %v5597
        %v5708 = vmul.f32 %v5694, %v5602
        %v5709 = vmul.f32 %v5695, %v5607
        %v5710 = vmul.f32 %v5696, %v5612
        %v5711 = vmul.f32 %v5697, %v5617
        %v5712 = vmul.f32 %v5698, %v5622
        %v5713 = vmul.f32 %v5699, %v5627
        %v5714 = vmul.f32 %v5700, %v5632
        %v5715 = vmul.f32 %v5701, %v5637
        %v5716 = vmul.f32 %v5702, %v5702
        %v5717 = vmul.f32 %v5703, %v5703
        %v5718 = vmul.f32 %v5704, %v5704
        %v5719 = vmul.f32 %v5705, %v5705
        %v5720 = vmul.f32 %v5706, %v5706
        %v5721 = vmul.f32 %v5707, %v5707
        %v5722 = vmul.f32 %v5708, %v5708
        %v5723 = vmul.f32 %v5709, %v5709
        %v5724 = vmul.f32 %v5710, %v5710
        %v5725 = vmul.f32 %v5711, %v5711
        %v5726 = vmul.f32 %v5712, %v5712
        %v5727 = vmul.f32 %v5713, %v5713
        %v5728 = vmul.f32 %v5714, %v5714
        %v5729 = vmul.f32 %v5715, %v5715
        %v5730 = vsel %vm5653, %v5716, 0.0
        %v5731 = vsel %vm5653, %v5717, 0.0
        %v5732 = vadd.f32 %v5730, %v5731
        %v5733 = vsel %vm5653, %v5718, 0.0
        %v5734 = vadd.f32 %v5732, %v5733
        %v5735 = vsel %vm5653, %v5719, 0.0
        %v5736 = vadd.f32 %v5734, %v5735
        %v5737 = vsel %vm5653, %v5720, 0.0
        %v5738 = vadd.f32 %v5736, %v5737
        %v5739 = vsel %vm5653, %v5721, 0.0
        %v5740 = vadd.f32 %v5738, %v5739
        %v5741 = vsel %vm5653, %v5722, 0.0
        %v5742 = vadd.f32 %v5740, %v5741
        %v5743 = vsel %vm5653, %v5723, 0.0
        %v5744 = vadd.f32 %v5742, %v5743
        %v5745 = vsel %vm5653, %v5724, 0.0
        %v5746 = vadd.f32 %v5744, %v5745
        %v5747 = vsel %vm5653, %v5725, 0.0
        %v5748 = vadd.f32 %v5746, %v5747
        %v5749 = vsel %vm5653, %v5726, 0.0
        %v5750 = vadd.f32 %v5748, %v5749
        %v5751 = vsel %vm5653, %v5727, 0.0
        %v5752 = vadd.f32 %v5750, %v5751
        %v5753 = vsel %vm5653, %v5728, 0.0
        %v5754 = vadd.f32 %v5752, %v5753
        %v5755 = vsel %vm5653, %v5729, 0.0
        %v5756 = vadd.f32 %v5754, %v5755
        %v5757 = vrot.slane %v5756, 4
        %v5758 = vadd.f32 %v5756, %v5757
        %v5759 = vrot.slane %v5758, 2
        %v5760 = vadd.f32 %v5758, %v5759
        %v5761 = vrot.slane %v5760, 1
        %v5762 = vadd.f32 %v5760, %v5761
        %v5763 = vmul.f32 %v5762, 0.027777778
        %v5764 = vadd.f32 %v5763, 1e-05
        %v5765 = vrsqrt.pop %v5764
        %v5766 = vmul.f32 %v5702, %v5765
        %v5767 = vmul.f32 %v5703, %v5765
        %v5768 = vmul.f32 %v5704, %v5765
        %v5769 = vmul.f32 %v5705, %v5765
        %v5770 = vmul.f32 %v5706, %v5765
        %v5771 = vmul.f32 %v5707, %v5765
        %v5772 = vmul.f32 %v5708, %v5765
        %v5773 = vmul.f32 %v5709, %v5765
        %v5774 = vmul.f32 %v5710, %v5765
        %v5775 = vmul.f32 %v5711, %v5765
        %v5776 = vmul.f32 %v5712, %v5765
        %v5777 = vmul.f32 %v5713, %v5765
        %v5778 = vmul.f32 %v5714, %v5765
        %v5779 = vmul.f32 %v5715, %v5765
        %vm5780 = vcmp.ge.f32.partialorder %v5766, 0.0
        %vm5781 = vcmp.ge.f32.partialorder %v5767, 0.0
        %vm5782 = vcmp.ge.f32.partialorder %v5768, 0.0
        %vm5783 = vcmp.ge.f32.partialorder %v5769, 0.0
        %vm5784 = vcmp.ge.f32.partialorder %v5770, 0.0
        %vm5785 = vcmp.ge.f32.partialorder %v5771, 0.0
        %vm5786 = vcmp.ge.f32.partialorder %v5772, 0.0
        %vm5787 = vcmp.ge.f32.partialorder %v5773, 0.0
        %vm5788 = vcmp.ge.f32.partialorder %v5774, 0.0
        %vm5789 = vcmp.ge.f32.partialorder %v5775, 0.0
        %vm5790 = vcmp.ge.f32.partialorder %v5776, 0.0
        %vm5791 = vcmp.ge.f32.partialorder %v5777, 0.0
        %vm5792 = vcmp.ge.f32.partialorder %v5778, 0.0
        %vm5793 = vcmp.ge.f32.partialorder %v5779, 0.0
        %v5794 = vmul.f32 %v5766, 0.01
        %v5795 = vmul.f32 %v5767, 0.01
        %v5796 = vmul.f32 %v5768, 0.01
        %v5797 = vmul.f32 %v5769, 0.01
        %v5798 = vmul.f32 %v5770, 0.01
        %v5799 = vmul.f32 %v5771, 0.01
        %v5800 = vmul.f32 %v5772, 0.01
        %v5801 = vmul.f32 %v5773, 0.01
        %v5802 = vmul.f32 %v5774, 0.01
        %v5803 = vmul.f32 %v5775, 0.01
        %v5804 = vmul.f32 %v5776, 0.01
        %v5805 = vmul.f32 %v5777, 0.01
        %v5806 = vmul.f32 %v5778, 0.01
        %v5807 = vmul.f32 %v5779, 0.01
        %v5808 = vsel %vm5780, %v5766, %v5794
        %v5809 = vsel %vm5781, %v5767, %v5795
        %v5810 = vsel %vm5782, %v5768, %v5796
        %v5811 = vsel %vm5783, %v5769, %v5797
        %v5812 = vsel %vm5784, %v5770, %v5798
        %v5813 = vsel %vm5785, %v5771, %v5799
        %v5814 = vsel %vm5786, %v5772, %v5800
        %v5815 = vsel %vm5787, %v5773, %v5801
        %v5816 = vsel %vm5788, %v5774, %v5802
        %v5817 = vsel %vm5789, %v5775, %v5803
        %v5818 = vsel %vm5790, %v5776, %v5804
        %v5819 = vsel %vm5791, %v5777, %v5805
        %v5820 = vsel %vm5792, %v5778, %v5806
        %v5821 = vsel %vm5793, %v5779, %v5807
        %v5822 = vrot.slane %v5808, 5
        %v5823 = vrot.slane %v5809, 5
        %v5824 = vrot.slane %v5810, 5
        %v5825 = vrot.slane %v5811, 5
        %v5826 = vrot.slane %v5812, 5
        %v5827 = vrot.slane %v5813, 5
        %v5828 = vrot.slane %v5814, 5
        %v5829 = vrot.slane %v5815, 5
        %v5830 = vrot.slane %v5816, 5
        %v5831 = vrot.slane %v5817, 5
        %v5832 = vrot.slane %v5818, 5
        %v5833 = vrot.slane %v5819, 5
        %v5834 = vrot.slane %v5820, 5
        %v5835 = vrot.slane %v5821, 5
        %v5836 = vsel %vm1668, %v5834, %v5835
        %v5837 = vsel %vm1668, %v5833, %v5834
        %v5838 = vsel %vm1668, %v5832, %v5833
        %v5839 = vsel %vm1668, %v5831, %v5832
        %v5840 = vsel %vm1668, %v5830, %v5831
        %v5841 = vsel %vm1668, %v5829, %v5830
        %v5842 = vsel %vm1668, %v5828, %v5829
        %v5843 = vsel %vm1668, %v5827, %v5828
        %v5844 = vsel %vm1668, %v5826, %v5827
        %v5845 = vsel %vm1668, %v5825, %v5826
        %v5846 = vsel %vm1668, %v5824, %v5825
        %v5847 = vsel %vm1668, %v5823, %v5824
        %v5848 = vsel %vm1668, %v5822, %v5823
        %v5849 = vsel %vm1668, %v5835, %v5822
        %v5850 = vpack.c.bf16 %v5849, %v5836
        %v5851 = vpack.c.bf16 %v5847, %v5848
        %v5852 = vpack.c.bf16 %v5845, %v5846
        %v5853 = vpack.c.bf16 %v5843, %v5844
        %v5854 = vpack.c.bf16 %v5841, %v5842
        %v5855 = vpack.c.bf16 %v5839, %v5840
        %v5856 = vpack.c.bf16 %v5837, %v5838
        %v5857 = vld [vmem:[%s4] sm:$0xf]
        %v5858 = vld [vmem:[%s4 + $0x4] sm:$0xf]
        %v5859 = vld [vmem:[%s4 + $0x8] sm:$0xf]
        %v5860 = vld [vmem:[%s4 + $0xc] sm:$0xf]
        %v5861 = vrot.slane %v5836, 1
        %v5862 = vrot.slane %v5849, 1
        %v5863 = vrot.slane %v5848, 1
        %v5864 = vrot.slane %v5847, 1
        %v5865 = vrot.slane %v5846, 1
        %v5866 = vrot.slane %v5845, 1
        %v5867 = vrot.slane %v5844, 1
        %v5868 = vrot.slane %v5843, 1
        %v5869 = vrot.slane %v5842, 1
        %v5870 = vrot.slane %v5841, 1
        %v5871 = vrot.slane %v5840, 1
        %v5872 = vrot.slane %v5839, 1
        %v5873 = vrot.slane %v5838, 1
        %v5874 = vrot.slane %v5837, 1
        %v5875 = vsel %vm635, %v5873, %v5874
        %v5876 = vsel %vm635, %v5872, %v5873
        %v5877 = vsel %vm635, %v5871, %v5872
        %v5878 = vsel %vm635, %v5870, %v5871
        %v5879 = vsel %vm635, %v5869, %v5870
        %v5880 = vsel %vm635, %v5868, %v5869
        %v5881 = vsel %vm635, %v5867, %v5868
        %v5882 = vsel %vm635, %v5866, %v5867
        %v5883 = vsel %vm635, %v5865, %v5866
        %v5884 = vsel %vm635, %v5864, %v5865
        %v5885 = vsel %vm635, %v5863, %v5864
        %v5886 = vsel %vm635, %v5862, %v5863
        %v5887 = vsel %vm635, %v5861, %v5862
        %v5888 = vsel %vm635, %v5874, %v5861
        %v5889 = vpack.c.bf16 %v5886, %v5887
        %v5890 = vpack.c.bf16 %v5884, %v5885
        %v5891 = vpack.c.bf16 %v5882, %v5883
        %v5892 = vpack.c.bf16 %v5880, %v5881
        %v5893 = vpack.c.bf16 %v5878, %v5879
        %v5894 = vpack.c.bf16 %v5876, %v5877
        %v5895 = vpack.c.bf16 %v5888, %v5875
        %s5896 = scalar_lea.vmem %s4, 16
        %v5897 = vld [vmem:[%s5896] sm:$0xf]
        %v5898 = vld [vmem:[%s5896 + $0x4] sm:$0xf]
        %v5899 = vld [vmem:[%s5896 + $0x8] sm:$0xf]
        %v5900 = vld [vmem:[%s5896 + $0xc] sm:$0xf]
        %v5905 = vunpack.c.l.b16 %v5897
        %v5906 = vunpack.c.l.b16 %v5898
        %v5907 = vunpack.c.l.b16 %v5899
        %v5908 = vunpack.c.l.b16 %v5900
        %v5909 = vpack.c.b16 %v5906, %v5905
        %v5910 = vpack.c.b16 %v5908, %v5907
        %v5914 = vsel %vm5653, %v5889, 0
        %v5917 = vsel %vm5653, %v5890, 0
        %v5920 = vsel %vm5653, %v5891, 0
        %v5923 = vsel %vm5653, %v5892, 0
        %v5926 = vsel %vm5653, %v5893, 0
        %v5929 = vsel %vm5653, %v5894, 0
        %v5932 = vsel %vm5653, %v5895, 0
        %5934 = vmatprep.subr.bf16.mxu0 0
        %5935 = vmatpush1.bf16.msra.mxu0 %v5909
        %5936 = vmatprep.subr.bf16.mxu0 0
        %5937 = vmatpush1.bf16.msra.mxu0 %v5910
        %5938 = vmatprep.subr.bf16.mxu0 0
        %5939 = vmatpush1.bf16.msra.mxu0 0
        %5940 = vmatprep.subr.bf16.mxu0 0
        %5941 = vmatpush1.bf16.msra.mxu0 0
        %5942 = vmatprep.subr.bf16.mxu0 0
        %5943 = vmatpush1.bf16.msra.mxu0 0
        %5944 = vmatprep.subr.bf16.mxu0 0
        %5945 = vmatpush1.bf16.msra.mxu0 0
        %5946 = vmatprep.subr.bf16.mxu0 0
        %5947 = vmatpush1.bf16.msra.mxu0 0
        %5948 = vmatprep.subr.bf16.mxu0 0
        %5949 = vmatpush1.bf16.msra.mxu0 0
        %5950 = vmatprep.subr.bf16.mxu0 0
        %5951 = vmatpush1.bf16.msra.mxu0 0
        %5952 = vmatprep.subr.bf16.mxu0 0
        %5953 = vmatpush1.bf16.msra.mxu0 0
        %5954 = vmatprep.subr.bf16.mxu0 0
        %5955 = vmatpush1.bf16.msra.mxu0 0
        %5956 = vmatprep.subr.bf16.mxu0 0
        %5957 = vmatpush1.bf16.msra.mxu0 0
        %5958 = vmatprep.subr.bf16.mxu0 0
        %5959 = vmatpush1.bf16.msra.mxu0 0
        %5960 = vmatprep.subr.bf16.mxu0 0
        %5961 = vmatpush1.bf16.msra.mxu0 0
        %5962 = vmatprep.subr.bf16.mxu0 0
        %5963 = vmatpush1.bf16.msra.mxu0 0
        %5964 = vmatprep.subr.bf16.mxu0 0
        %5965 = vmatpush1.bf16.msra.mxu0 0
        %5966 = vmatprep.mubr.bf16.mxu0 0
        %5967 = vmatmul.mubr.bf16.gmra.mrb[0].mxu0 %v5914
        %v5968 = vpop.f32.mrb[0].mxu0
        %v5969 = vadd.f32 0.0, %v5968
        %v5970 = vpop.f32.mrb[0].mxu0
        %v5971 = vpop.f32.mrb[0].mxu0
        %v5972 = vadd.f32 0.0, %v5971
        %v5973 = vpop.f32.mrb[0].mxu0
        %5974 = vmatprep.mubr.bf16.mxu0 0
        %5975 = vmatmul.mubr.bf16.gmra.mrb[0].mxu0 %v5917
        %v5976 = vpop.f32.mrb[0].mxu0
        %v5977 = vadd.f32 0.0, %v5976
        %v5978 = vpop.f32.mrb[0].mxu0
        %v5979 = vpop.f32.mrb[0].mxu0
        %v5980 = vadd.f32 0.0, %v5979
        %v5981 = vpop.f32.mrb[0].mxu0
        %5982 = vmatprep.mubr.bf16.mxu0 0
        %5983 = vmatmul.mubr.bf16.gmra.mrb[0].mxu0 %v5920
        %v5984 = vpop.f32.mrb[0].mxu0
        %v5985 = vadd.f32 0.0, %v5984
        %v5986 = vpop.f32.mrb[0].mxu0
        %v5987 = vpop.f32.mrb[0].mxu0
        %v5988 = vadd.f32 0.0, %v5987
        %v5989 = vpop.f32.mrb[0].mxu0
        %5990 = vmatprep.mubr.bf16.mxu0 0
        %5991 = vmatmul.mubr.bf16.gmra.mrb[0].mxu0 %v5923
        %v5992 = vpop.f32.mrb[0].mxu0
        %v5993 = vadd.f32 0.0, %v5992
        %v5994 = vpop.f32.mrb[0].mxu0
        %v5995 = vpop.f32.mrb[0].mxu0
        %v5996 = vadd.f32 0.0, %v5995
        %v5997 = vpop.f32.mrb[0].mxu0
        %5998 = vmatprep.mubr.bf16.mxu0 0
        %5999 = vmatmul.mubr.bf16.gmra.mrb[0].mxu0 %v5926
        %v6000 = vpop.f32.mrb[0].mxu0
        %v6001 = vpop.f32.mrb[0].mxu0
        %v6002 = vpop.f32.mrb[0].mxu0
        %v6003 = vpop.f32.mrb[0].mxu0
        %6004 = vmatprep.mubr.bf16.mxu0 0
        %6005 = vmatmul.mubr.bf16.gmra.mrb[0].mxu0 %v5929
        %v6006 = vpop.f32.mrb[0].mxu0
        %v6007 = vpop.f32.mrb[0].mxu0
        %v6008 = vpop.f32.mrb[0].mxu0
        %v6009 = vpop.f32.mrb[0].mxu0
        %6010 = vmatprep.mubr.bf16.mxu0 0
        %6011 = vmatmul.mubr.bf16.gmra.mrb[0].mxu0 %v5932
        %v6012 = vpop.f32.mrb[0].mxu0
        %v6013 = vpop.f32.mrb[0].mxu0
        %v6014 = vpop.f32.mrb[0].mxu0
        %v6015 = vpop.f32.mrb[0].mxu0
        %6016 = vdwg.mxu0
        %v6021 = vunpack.c.l.b16 %v5857
        %v6022 = vunpack.c.l.b16 %v5858
        %v6023 = vunpack.c.l.b16 %v5859
        %v6024 = vunpack.c.l.b16 %v5860
        %v6025 = vpack.c.b16 %v6022, %v6021
        %v6026 = vpack.c.b16 %v6024, %v6023
        %v6030 = vsel %vm5653, %v5850, 0
        %v6033 = vsel %vm5653, %v5851, 0
        %v6036 = vsel %vm5653, %v5852, 0
        %v6039 = vsel %vm5653, %v5853, 0
        %v6042 = vsel %vm5653, %v5854, 0
        %v6045 = vsel %vm5653, %v5855, 0
        %v6048 = vsel %vm5653, %v5856, 0
        %6050 = vmatprep.subr.bf16.mxu0 0
        %6051 = vmatpush1.bf16.msra.mxu0 %v6025
        %6052 = vmatprep.subr.bf16.mxu0 0
        %6053 = vmatpush1.bf16.msra.mxu0 %v6026
        %6054 = vmatprep.subr.bf16.mxu0 0
        %6055 = vmatpush1.bf16.msra.mxu0 0
        %6056 = vmatprep.subr.bf16.mxu0 0
        %6057 = vmatpush1.bf16.msra.mxu0 0
        %6058 = vmatprep.subr.bf16.mxu0 0
        %6059 = vmatpush1.bf16.msra.mxu0 0
        %6060 = vmatprep.subr.bf16.mxu0 0
        %6061 = vmatpush1.bf16.msra.mxu0 0
        %6062 = vmatprep.subr.bf16.mxu0 0
        %6063 = vmatpush1.bf16.msra.mxu0 0
        %6064 = vmatprep.subr.bf16.mxu0 0
        %6065 = vmatpush1.bf16.msra.mxu0 0
        %6066 = vmatprep.subr.bf16.mxu0 0
        %6067 = vmatpush1.bf16.msra.mxu0 0
        %6068 = vmatprep.subr.bf16.mxu0 0
        %6069 = vmatpush1.bf16.msra.mxu0 0
        %6070 = vmatprep.subr.bf16.mxu0 0
        %6071 = vmatpush1.bf16.msra.mxu0 0
        %6072 = vmatprep.subr.bf16.mxu0 0
        %6073 = vmatpush1.bf16.msra.mxu0 0
        %6074 = vmatprep.subr.bf16.mxu0 0
        %6075 = vmatpush1.bf16.msra.mxu0 0
        %6076 = vmatprep.subr.bf16.mxu0 0
        %6077 = vmatpush1.bf16.msra.mxu0 0
        %6078 = vmatprep.subr.bf16.mxu0 0
        %6079 = vmatpush1.bf16.msra.mxu0 0
        %6080 = vmatprep.subr.bf16.mxu0 0
        %6081 = vmatpush1.bf16.msra.mxu0 0
        %6082 = vmatprep.mubr.bf16.mxu0 0
        %6083 = vmatmul.mubr.bf16.gmra.mrb[0].mxu0 %v6030
        %v6084 = vpop.f32.mrb[0].mxu0
        %v6085 = vadd.f32 %v5969, %v6084
        %v6086 = vpop.f32.mrb[0].mxu0
        %v6087 = vpop.f32.mrb[0].mxu0
        %v6088 = vadd.f32 %v5972, %v6087
        %v6089 = vpop.f32.mrb[0].mxu0
        %6090 = vmatprep.mubr.bf16.mxu0 0
        %6091 = vmatmul.mubr.bf16.gmra.mrb[0].mxu0 %v6033
        %v6092 = vpop.f32.mrb[0].mxu0
        %v6093 = vadd.f32 %v5977, %v6092
        %v6094 = vpop.f32.mrb[0].mxu0
        %v6095 = vpop.f32.mrb[0].mxu0
        %v6096 = vadd.f32 %v5980, %v6095
        %v6097 = vpop.f32.mrb[0].mxu0
        %6098 = vmatprep.mubr.bf16.mxu0 0
        %6099 = vmatmul.mubr.bf16.gmra.mrb[0].mxu0 %v6036
        %v6100 = vpop.f32.mrb[0].mxu0
        %v6101 = vadd.f32 %v5985, %v6100
        %v6102 = vpop.f32.mrb[0].mxu0
        %v6103 = vpop.f32.mrb[0].mxu0
        %v6104 = vadd.f32 %v5988, %v6103
        %v6105 = vpop.f32.mrb[0].mxu0
        %6106 = vmatprep.mubr.bf16.mxu0 0
        %6107 = vmatmul.mubr.bf16.gmra.mrb[0].mxu0 %v6039
        %v6108 = vpop.f32.mrb[0].mxu0
        %v6109 = vadd.f32 %v5993, %v6108
        %v6110 = vpop.f32.mrb[0].mxu0
        %v6111 = vpop.f32.mrb[0].mxu0
        %v6112 = vadd.f32 %v5996, %v6111
        %v6113 = vpop.f32.mrb[0].mxu0
        %6114 = vmatprep.mubr.bf16.mxu0 0
        %6115 = vmatmul.mubr.bf16.gmra.mrb[0].mxu0 %v6042
        %v6116 = vpop.f32.mrb[0].mxu0
        %v6117 = vpop.f32.mrb[0].mxu0
        %v6118 = vpop.f32.mrb[0].mxu0
        %v6119 = vpop.f32.mrb[0].mxu0
        %6120 = vmatprep.mubr.bf16.mxu0 0
        %6121 = vmatmul.mubr.bf16.gmra.mrb[0].mxu0 %v6045
        %v6122 = vpop.f32.mrb[0].mxu0
        %v6123 = vpop.f32.mrb[0].mxu0
        %v6124 = vpop.f32.mrb[0].mxu0
        %v6125 = vpop.f32.mrb[0].mxu0
        %6126 = vmatprep.mubr.bf16.mxu0 0
        %6127 = vmatmul.mubr.bf16.gmra.mrb[0].mxu0 %v6048
        %v6128 = vpop.f32.mrb[0].mxu0
        %v6129 = vpop.f32.mrb[0].mxu0
        %v6130 = vpop.f32.mrb[0].mxu0
        %v6131 = vpop.f32.mrb[0].mxu0
        %6132 = vdwg.mxu0
        %v6133 = vrot.slane %v5836, 2
        %v6134 = vrot.slane %v5849, 2
        %v6135 = vrot.slane %v5848, 2
        %v6136 = vrot.slane %v5847, 2
        %v6137 = vrot.slane %v5846, 2
        %v6138 = vrot.slane %v5845, 2
        %v6139 = vrot.slane %v5844, 2
        %v6140 = vrot.slane %v5843, 2
        %v6141 = vrot.slane %v5842, 2
        %v6142 = vrot.slane %v5841, 2
        %v6143 = vrot.slane %v5840, 2
        %v6144 = vrot.slane %v5839, 2
        %v6145 = vrot.slane %v5838, 2
        %v6146 = vrot.slane %v5837, 2
        %v6147 = vsel %vm901, %v6145, %v6146
        %v6148 = vsel %vm901, %v6144, %v6145
        %v6149 = vsel %vm901, %v6143, %v6144
        %v6150 = vsel %vm901, %v6142, %v6143
        %v6151 = vsel %vm901, %v6141, %v6142
        %v6152 = vsel %vm901, %v6140, %v6141
        %v6153 = vsel %vm901, %v6139, %v6140
        %v6154 = vsel %vm901, %v6138, %v6139
        %v6155 = vsel %vm901, %v6137, %v6138
        %v6156 = vsel %vm901, %v6136, %v6137
        %v6157 = vsel %vm901, %v6135, %v6136
        %v6158 = vsel %vm901, %v6134, %v6135
        %v6159 = vsel %vm901, %v6133, %v6134
        %v6160 = vsel %vm901, %v6146, %v6133
        %v6161 = vpack.c.bf16 %v6158, %v6159
        %v6162 = vpack.c.bf16 %v6156, %v6157
        %v6163 = vpack.c.bf16 %v6154, %v6155
        %v6164 = vpack.c.bf16 %v6152, %v6153
        %v6165 = vpack.c.bf16 %v6150, %v6151
        %v6166 = vpack.c.bf16 %v6148, %v6149
        %v6167 = vpack.c.bf16 %v6160, %v6147
        %s6168 = scalar_lea.vmem %s4, 32
        %v6169 = vld [vmem:[%s6168] sm:$0xf]
        %v6170 = vld [vmem:[%s6168 + $0x4] sm:$0xf]
        %v6171 = vld [vmem:[%s6168 + $0x8] sm:$0xf]
        %v6172 = vld [vmem:[%s6168 + $0xc] sm:$0xf]
        %v6177 = vunpack.c.l.b16 %v6169
        %v6178 = vunpack.c.l.b16 %v6170
        %v6179 = vunpack.c.l.b16 %v6171
        %v6180 = vunpack.c.l.b16 %v6172
        %v6181 = vpack.c.b16 %v6178, %v6177
        %v6182 = vpack.c.b16 %v6180, %v6179
        %v6186 = vsel %vm5653, %v6161, 0
        %v6189 = vsel %vm5653, %v6162, 0
        %v6192 = vsel %vm5653, %v6163, 0
        %v6195 = vsel %vm5653, %v6164, 0
        %v6198 = vsel %vm5653, %v6165, 0
        %v6201 = vsel %vm5653, %v6166, 0
        %v6204 = vsel %vm5653, %v6167, 0
        %6206 = vmatprep.subr.bf16.mxu0 0
        %6207 = vmatpush1.bf16.msra.mxu0 %v6181
        %6208 = vmatprep.subr.bf16.mxu0 0
        %6209 = vmatpush1.bf16.msra.mxu0 %v6182
        %6210 = vmatprep.subr.bf16.mxu0 0
        %6211 = vmatpush1.bf16.msra.mxu0 0
        %6212 = vmatprep.subr.bf16.mxu0 0
        %6213 = vmatpush1.bf16.msra.mxu0 0
        %6214 = vmatprep.subr.bf16.mxu0 0
        %6215 = vmatpush1.bf16.msra.mxu0 0
        %6216 = vmatprep.subr.bf16.mxu0 0
        %6217 = vmatpush1.bf16.msra.mxu0 0
        %6218 = vmatprep.subr.bf16.mxu0 0
        %6219 = vmatpush1.bf16.msra.mxu0 0
        %6220 = vmatprep.subr.bf16.mxu0 0
        %6221 = vmatpush1.bf16.msra.mxu0 0
        %6222 = vmatprep.subr.bf16.mxu0 0
        %6223 = vmatpush1.bf16.msra.mxu0 0
        %6224 = vmatprep.subr.bf16.mxu0 0
        %6225 = vmatpush1.bf16.msra.mxu0 0
        %6226 = vmatprep.subr.bf16.mxu0 0
        %6227 = vmatpush1.bf16.msra.mxu0 0
        %6228 = vmatprep.subr.bf16.mxu0 0
        %6229 = vmatpush1.bf16.msra.mxu0 0
        %6230 = vmatprep.subr.bf16.mxu0 0
        %6231 = vmatpush1.bf16.msra.mxu0 0
        %6232 = vmatprep.subr.bf16.mxu0 0
        %6233 = vmatpush1.bf16.msra.mxu0 0
        %6234 = vmatprep.subr.bf16.mxu0 0
        %6235 = vmatpush1.bf16.msra.mxu0 0
        %6236 = vmatprep.subr.bf16.mxu0 0
        %6237 = vmatpush1.bf16.msra.mxu0 0
        %6238 = vmatprep.mubr.bf16.mxu0 0
        %6239 = vmatmul.mubr.bf16.gmra.mrb[0].mxu0 %v6186
        %v6240 = vpop.f32.mrb[0].mxu0
        %v6241 = vadd.f32 0.0, %v6240
        %v6242 = vpop.f32.mrb[0].mxu0
        %v6243 = vpop.f32.mrb[0].mxu0
        %v6244 = vadd.f32 0.0, %v6243
        %v6245 = vpop.f32.mrb[0].mxu0
        %6246 = vmatprep.mubr.bf16.mxu0 0
        %6247 = vmatmul.mubr.bf16.gmra.mrb[0].mxu0 %v6189
        %v6248 = vpop.f32.mrb[0].mxu0
        %v6249 = vadd.f32 0.0, %v6248
        %v6250 = vpop.f32.mrb[0].mxu0
        %v6251 = vpop.f32.mrb[0].mxu0
        %v6252 = vadd.f32 0.0, %v6251
        %v6253 = vpop.f32.mrb[0].mxu0
        %6254 = vmatprep.mubr.bf16.mxu0 0
        %6255 = vmatmul.mubr.bf16.gmra.mrb[0].mxu0 %v6192
        %v6256 = vpop.f32.mrb[0].mxu0
        %v6257 = vadd.f32 0.0, %v6256
        %v6258 = vpop.f32.mrb[0].mxu0
        %v6259 = vpop.f32.mrb[0].mxu0
        %v6260 = vadd.f32 0.0, %v6259
        %v6261 = vpop.f32.mrb[0].mxu0
        %6262 = vmatprep.mubr.bf16.mxu0 0
        %6263 = vmatmul.mubr.bf16.gmra.mrb[0].mxu0 %v6195
        %v6264 = vpop.f32.mrb[0].mxu0
        %v6265 = vadd.f32 0.0, %v6264
        %v6266 = vpop.f32.mrb[0].mxu0
        %v6267 = vpop.f32.mrb[0].mxu0
        %v6268 = vadd.f32 0.0, %v6267
        %v6269 = vpop.f32.mrb[0].mxu0
        %6270 = vmatprep.mubr.bf16.mxu0 0
        %6271 = vmatmul.mubr.bf16.gmra.mrb[0].mxu0 %v6198
        %v6272 = vpop.f32.mrb[0].mxu0
        %v6273 = vpop.f32.mrb[0].mxu0
        %v6274 = vpop.f32.mrb[0].mxu0
        %v6275 = vpop.f32.mrb[0].mxu0
        %6276 = vmatprep.mubr.bf16.mxu0 0
        %6277 = vmatmul.mubr.bf16.gmra.mrb[0].mxu0 %v6201
        %v6278 = vpop.f32.mrb[0].mxu0
        %v6279 = vpop.f32.mrb[0].mxu0
        %v6280 = vpop.f32.mrb[0].mxu0
        %v6281 = vpop.f32.mrb[0].mxu0
        %6282 = vmatprep.mubr.bf16.mxu0 0
        %6283 = vmatmul.mubr.bf16.gmra.mrb[0].mxu0 %v6204
        %v6284 = vpop.f32.mrb[0].mxu0
        %v6285 = vpop.f32.mrb[0].mxu0
        %v6286 = vpop.f32.mrb[0].mxu0
        %v6287 = vpop.f32.mrb[0].mxu0
        %6288 = vdwg.mxu0
        %v6289 = vadd.f32 %v6085, %v6241
        %v6290 = vadd.f32 %v6088, %v6244
        %v6291 = vadd.f32 %v6093, %v6249
        %v6292 = vadd.f32 %v6096, %v6252
        %v6293 = vadd.f32 %v6101, %v6257
        %v6294 = vadd.f32 %v6104, %v6260
        %v6295 = vadd.f32 %v6109, %v6265
        %v6296 = vadd.f32 %v6112, %v6268
        %v6297 = vrot.slane %v5836, 3
        %v6298 = vrot.slane %v5849, 3
        %v6299 = vrot.slane %v5848, 3
        %v6300 = vrot.slane %v5847, 3
        %v6301 = vrot.slane %v5846, 3
        %v6302 = vrot.slane %v5845, 3
        %v6303 = vrot.slane %v5844, 3
        %v6304 = vrot.slane %v5843, 3
        %v6305 = vrot.slane %v5842, 3
        %v6306 = vrot.slane %v5841, 3
        %v6307 = vrot.slane %v5840, 3
        %v6308 = vrot.slane %v5839, 3
        %v6309 = vrot.slane %v5838, 3
        %v6310 = vrot.slane %v5837, 3
        %v6311 = vsel %vm1066, %v6309, %v6310
        %v6312 = vsel %vm1066, %v6308, %v6309
        %v6313 = vsel %vm1066, %v6307, %v6308
        %v6314 = vsel %vm1066, %v6306, %v6307
        %v6315 = vsel %vm1066, %v6305, %v6306
        %v6316 = vsel %vm1066, %v6304, %v6305
        %v6317 = vsel %vm1066, %v6303, %v6304
        %v6318 = vsel %vm1066, %v6302, %v6303
        %v6319 = vsel %vm1066, %v6301, %v6302
        %v6320 = vsel %vm1066, %v6300, %v6301
        %v6321 = vsel %vm1066, %v6299, %v6300
        %v6322 = vsel %vm1066, %v6298, %v6299
        %v6323 = vsel %vm1066, %v6297, %v6298
        %v6324 = vsel %vm1066, %v6310, %v6297
        %v6325 = vpack.c.bf16 %v6322, %v6323
        %v6326 = vpack.c.bf16 %v6320, %v6321
        %v6327 = vpack.c.bf16 %v6318, %v6319
        %v6328 = vpack.c.bf16 %v6316, %v6317
        %v6329 = vpack.c.bf16 %v6314, %v6315
        %v6330 = vpack.c.bf16 %v6312, %v6313
        %v6331 = vpack.c.bf16 %v6324, %v6311
        %s6332 = scalar_lea.vmem %s4, 48
        %v6333 = vld [vmem:[%s6332] sm:$0xf]
        %v6334 = vld [vmem:[%s6332 + $0x4] sm:$0xf]
        %v6335 = vld [vmem:[%s6332 + $0x8] sm:$0xf]
        %v6336 = vld [vmem:[%s6332 + $0xc] sm:$0xf]
        %v6341 = vunpack.c.l.b16 %v6333
        %v6342 = vunpack.c.l.b16 %v6334
        %v6343 = vunpack.c.l.b16 %v6335
        %v6344 = vunpack.c.l.b16 %v6336
        %v6345 = vpack.c.b16 %v6342, %v6341
        %v6346 = vpack.c.b16 %v6344, %v6343
        %v6350 = vsel %vm5653, %v6325, 0
        %v6353 = vsel %vm5653, %v6326, 0
        %v6356 = vsel %vm5653, %v6327, 0
        %v6359 = vsel %vm5653, %v6328, 0
        %v6362 = vsel %vm5653, %v6329, 0
        %v6365 = vsel %vm5653, %v6330, 0
        %v6368 = vsel %vm5653, %v6331, 0
        %6370 = vmatprep.subr.bf16.mxu0 0
        %6371 = vmatpush1.bf16.msra.mxu0 %v6345
        %6372 = vmatprep.subr.bf16.mxu0 0
        %6373 = vmatpush1.bf16.msra.mxu0 %v6346
        %6374 = vmatprep.subr.bf16.mxu0 0
        %6375 = vmatpush1.bf16.msra.mxu0 0
        %6376 = vmatprep.subr.bf16.mxu0 0
        %6377 = vmatpush1.bf16.msra.mxu0 0
        %6378 = vmatprep.subr.bf16.mxu0 0
        %6379 = vmatpush1.bf16.msra.mxu0 0
        %6380 = vmatprep.subr.bf16.mxu0 0
        %6381 = vmatpush1.bf16.msra.mxu0 0
        %6382 = vmatprep.subr.bf16.mxu0 0
        %6383 = vmatpush1.bf16.msra.mxu0 0
        %6384 = vmatprep.subr.bf16.mxu0 0
        %6385 = vmatpush1.bf16.msra.mxu0 0
        %6386 = vmatprep.subr.bf16.mxu0 0
        %6387 = vmatpush1.bf16.msra.mxu0 0
        %6388 = vmatprep.subr.bf16.mxu0 0
        %6389 = vmatpush1.bf16.msra.mxu0 0
        %6390 = vmatprep.subr.bf16.mxu0 0
        %6391 = vmatpush1.bf16.msra.mxu0 0
        %6392 = vmatprep.subr.bf16.mxu0 0
        %6393 = vmatpush1.bf16.msra.mxu0 0
        %6394 = vmatprep.subr.bf16.mxu0 0
        %6395 = vmatpush1.bf16.msra.mxu0 0
        %6396 = vmatprep.subr.bf16.mxu0 0
        %6397 = vmatpush1.bf16.msra.mxu0 0
        %6398 = vmatprep.subr.bf16.mxu0 0
        %6399 = vmatpush1.bf16.msra.mxu0 0
        %6400 = vmatprep.subr.bf16.mxu0 0
        %6401 = vmatpush1.bf16.msra.mxu0 0
        %6402 = vmatprep.mubr.bf16.mxu0 0
        %6403 = vmatmul.mubr.bf16.gmra.mrb[0].mxu0 %v6350
        %v6404 = vpop.f32.mrb[0].mxu0
        %v6405 = vadd.f32 0.0, %v6404
        %v6406 = vpop.f32.mrb[0].mxu0
        %v6407 = vpop.f32.mrb[0].mxu0
        %v6408 = vadd.f32 0.0, %v6407
        %v6409 = vpop.f32.mrb[0].mxu0
        %6410 = vmatprep.mubr.bf16.mxu0 0
        %6411 = vmatmul.mubr.bf16.gmra.mrb[0].mxu0 %v6353
        %v6412 = vpop.f32.mrb[0].mxu0
        %v6413 = vadd.f32 0.0, %v6412
        %v6414 = vpop.f32.mrb[0].mxu0
        %v6415 = vpop.f32.mrb[0].mxu0
        %v6416 = vadd.f32 0.0, %v6415
        %v6417 = vpop.f32.mrb[0].mxu0
        %6418 = vmatprep.mubr.bf16.mxu0 0
        %6419 = vmatmul.mubr.bf16.gmra.mrb[0].mxu0 %v6356
        %v6420 = vpop.f32.mrb[0].mxu0
        %v6421 = vadd.f32 0.0, %v6420
        %v6422 = vpop.f32.mrb[0].mxu0
        %v6423 = vpop.f32.mrb[0].mxu0
        %v6424 = vadd.f32 0.0, %v6423
        %v6425 = vpop.f32.mrb[0].mxu0
        %6426 = vmatprep.mubr.bf16.mxu0 0
        %6427 = vmatmul.mubr.bf16.gmra.mrb[0].mxu0 %v6359
        %v6428 = vpop.f32.mrb[0].mxu0
        %v6429 = vadd.f32 0.0, %v6428
        %v6430 = vpop.f32.mrb[0].mxu0
        %v6431 = vpop.f32.mrb[0].mxu0
        %v6432 = vadd.f32 0.0, %v6431
        %v6433 = vpop.f32.mrb[0].mxu0
        %6434 = vmatprep.mubr.bf16.mxu0 0
        %6435 = vmatmul.mubr.bf16.gmra.mrb[0].mxu0 %v6362
        %v6436 = vpop.f32.mrb[0].mxu0
        %v6437 = vpop.f32.mrb[0].mxu0
        %v6438 = vpop.f32.mrb[0].mxu0
        %v6439 = vpop.f32.mrb[0].mxu0
        %6440 = vmatprep.mubr.bf16.mxu0 0
        %6441 = vmatmul.mubr.bf16.gmra.mrb[0].mxu0 %v6365
        %v6442 = vpop.f32.mrb[0].mxu0
        %v6443 = vpop.f32.mrb[0].mxu0
        %v6444 = vpop.f32.mrb[0].mxu0
        %v6445 = vpop.f32.mrb[0].mxu0
        %6446 = vmatprep.mubr.bf16.mxu0 0
        %6447 = vmatmul.mubr.bf16.gmra.mrb[0].mxu0 %v6368
        %v6448 = vpop.f32.mrb[0].mxu0
        %v6449 = vpop.f32.mrb[0].mxu0
        %v6450 = vpop.f32.mrb[0].mxu0
        %v6451 = vpop.f32.mrb[0].mxu0
        %6452 = vdwg.mxu0
        %v6453 = vadd.f32 %v6289, %v6405
        %v6454 = vadd.f32 %v6290, %v6408
        %v6455 = vadd.f32 %v6291, %v6413
        %v6456 = vadd.f32 %v6292, %v6416
        %v6457 = vadd.f32 %v6293, %v6421
        %v6458 = vadd.f32 %v6294, %v6424
        %v6459 = vadd.f32 %v6295, %v6429
        %v6460 = vadd.f32 %v6296, %v6432
        %v6461 = vpack.c.bf16 %v6157, %v6158
        %v6462 = vpack.c.bf16 %v6155, %v6156
        %v6463 = vpack.c.bf16 %v6153, %v6154
        %v6464 = vpack.c.bf16 %v6151, %v6152
        %v6465 = vpack.c.bf16 %v6149, %v6150
        %v6466 = vpack.c.bf16 %v6147, %v6148
        %v6467 = vpack.c.bf16 %v6159, %v6160
        %s6468 = scalar_lea.vmem %s4, 64
        %v6469 = vld [vmem:[%s6468] sm:$0xf]
        %v6470 = vld [vmem:[%s6468 + $0x4] sm:$0xf]
        %v6471 = vld [vmem:[%s6468 + $0x8] sm:$0xf]
        %v6472 = vld [vmem:[%s6468 + $0xc] sm:$0xf]
        %v6477 = vunpack.c.l.b16 %v6469
        %v6478 = vunpack.c.l.b16 %v6470
        %v6479 = vunpack.c.l.b16 %v6471
        %v6480 = vunpack.c.l.b16 %v6472
        %v6481 = vpack.c.b16 %v6478, %v6477
        %v6482 = vpack.c.b16 %v6480, %v6479
        %v6486 = vsel %vm5653, %v6461, 0
        %v6489 = vsel %vm5653, %v6462, 0
        %v6492 = vsel %vm5653, %v6463, 0
        %v6495 = vsel %vm5653, %v6464, 0
        %v6498 = vsel %vm5653, %v6465, 0
        %v6501 = vsel %vm5653, %v6466, 0
        %v6504 = vsel %vm5653, %v6467, 0
        %6506 = vmatprep.subr.bf16.mxu0 0
        %6507 = vmatpush1.bf16.msra.mxu0 %v6481
        %6508 = vmatprep.subr.bf16.mxu0 0
        %6509 = vmatpush1.bf16.msra.mxu0 %v6482
        %6510 = vmatprep.subr.bf16.mxu0 0
        %6511 = vmatpush1.bf16.msra.mxu0 0
        %6512 = vmatprep.subr.bf16.mxu0 0
        %6513 = vmatpush1.bf16.msra.mxu0 0
        %6514 = vmatprep.subr.bf16.mxu0 0
        %6515 = vmatpush1.bf16.msra.mxu0 0
        %6516 = vmatprep.subr.bf16.mxu0 0
        %6517 = vmatpush1.bf16.msra.mxu0 0
        %6518 = vmatprep.subr.bf16.mxu0 0
        %6519 = vmatpush1.bf16.msra.mxu0 0
        %6520 = vmatprep.subr.bf16.mxu0 0
        %6521 = vmatpush1.bf16.msra.mxu0 0
        %6522 = vmatprep.subr.bf16.mxu0 0
        %6523 = vmatpush1.bf16.msra.mxu0 0
        %6524 = vmatprep.subr.bf16.mxu0 0
        %6525 = vmatpush1.bf16.msra.mxu0 0
        %6526 = vmatprep.subr.bf16.mxu0 0
        %6527 = vmatpush1.bf16.msra.mxu0 0
        %6528 = vmatprep.subr.bf16.mxu0 0
        %6529 = vmatpush1.bf16.msra.mxu0 0
        %6530 = vmatprep.subr.bf16.mxu0 0
        %6531 = vmatpush1.bf16.msra.mxu0 0
        %6532 = vmatprep.subr.bf16.mxu0 0
        %6533 = vmatpush1.bf16.msra.mxu0 0
        %6534 = vmatprep.subr.bf16.mxu0 0
        %6535 = vmatpush1.bf16.msra.mxu0 0
        %6536 = vmatprep.subr.bf16.mxu0 0
        %6537 = vmatpush1.bf16.msra.mxu0 0
        %6538 = vmatprep.mubr.bf16.mxu0 0
        %6539 = vmatmul.mubr.bf16.gmra.mrb[0].mxu0 %v6486
        %v6540 = vpop.f32.mrb[0].mxu0
        %v6541 = vadd.f32 0.0, %v6540
        %v6542 = vpop.f32.mrb[0].mxu0
        %v6543 = vpop.f32.mrb[0].mxu0
        %v6544 = vadd.f32 0.0, %v6543
        %v6545 = vpop.f32.mrb[0].mxu0
        %6546 = vmatprep.mubr.bf16.mxu0 0
        %6547 = vmatmul.mubr.bf16.gmra.mrb[0].mxu0 %v6489
        %v6548 = vpop.f32.mrb[0].mxu0
        %v6549 = vadd.f32 0.0, %v6548
        %v6550 = vpop.f32.mrb[0].mxu0
        %v6551 = vpop.f32.mrb[0].mxu0
        %v6552 = vadd.f32 0.0, %v6551
        %v6553 = vpop.f32.mrb[0].mxu0
        %6554 = vmatprep.mubr.bf16.mxu0 0
        %6555 = vmatmul.mubr.bf16.gmra.mrb[0].mxu0 %v6492
        %v6556 = vpop.f32.mrb[0].mxu0
        %v6557 = vadd.f32 0.0, %v6556
        %v6558 = vpop.f32.mrb[0].mxu0
        %v6559 = vpop.f32.mrb[0].mxu0
        %v6560 = vadd.f32 0.0, %v6559
        %v6561 = vpop.f32.mrb[0].mxu0
        %6562 = vmatprep.mubr.bf16.mxu0 0
        %6563 = vmatmul.mubr.bf16.gmra.mrb[0].mxu0 %v6495
        %v6564 = vpop.f32.mrb[0].mxu0
        %v6565 = vadd.f32 0.0, %v6564
        %v6566 = vpop.f32.mrb[0].mxu0
        %v6567 = vpop.f32.mrb[0].mxu0
        %v6568 = vadd.f32 0.0, %v6567
        %v6569 = vpop.f32.mrb[0].mxu0
        %6570 = vmatprep.mubr.bf16.mxu0 0
        %6571 = vmatmul.mubr.bf16.gmra.mrb[0].mxu0 %v6498
        %v6572 = vpop.f32.mrb[0].mxu0
        %v6573 = vpop.f32.mrb[0].mxu0
        %v6574 = vpop.f32.mrb[0].mxu0
        %v6575 = vpop.f32.mrb[0].mxu0
        %6576 = vmatprep.mubr.bf16.mxu0 0
        %6577 = vmatmul.mubr.bf16.gmra.mrb[0].mxu0 %v6501
        %v6578 = vpop.f32.mrb[0].mxu0
        %v6579 = vpop.f32.mrb[0].mxu0
        %v6580 = vpop.f32.mrb[0].mxu0
        %v6581 = vpop.f32.mrb[0].mxu0
        %6582 = vmatprep.mubr.bf16.mxu0 0
        %6583 = vmatmul.mubr.bf16.gmra.mrb[0].mxu0 %v6504
        %v6584 = vpop.f32.mrb[0].mxu0
        %v6585 = vpop.f32.mrb[0].mxu0
        %v6586 = vpop.f32.mrb[0].mxu0
        %v6587 = vpop.f32.mrb[0].mxu0
        %6588 = vdwg.mxu0
        %v6589 = vadd.f32 %v6453, %v6541
        %v6590 = vadd.f32 %v6454, %v6544
        %v6591 = vadd.f32 %v6455, %v6549
        %v6592 = vadd.f32 %v6456, %v6552
        %v6593 = vadd.f32 %v6457, %v6557
        %v6594 = vadd.f32 %v6458, %v6560
        %v6595 = vadd.f32 %v6459, %v6565
        %v6596 = vadd.f32 %v6460, %v6568
        %v6597 = vpack.c.bf16 %v6321, %v6322
        %v6598 = vpack.c.bf16 %v6319, %v6320
        %v6599 = vpack.c.bf16 %v6317, %v6318
        %v6600 = vpack.c.bf16 %v6315, %v6316
        %v6601 = vpack.c.bf16 %v6313, %v6314
        %v6602 = vpack.c.bf16 %v6311, %v6312
        %v6603 = vpack.c.bf16 %v6323, %v6324
        %s6604 = scalar_lea.vmem %s4, 80
        %v6605 = vld [vmem:[%s6604] sm:$0xf]
        %v6606 = vld [vmem:[%s6604 + $0x4] sm:$0xf]
        %v6607 = vld [vmem:[%s6604 + $0x8] sm:$0xf]
        %v6608 = vld [vmem:[%s6604 + $0xc] sm:$0xf]
        %v6613 = vunpack.c.l.b16 %v6605
        %v6614 = vunpack.c.l.b16 %v6606
        %v6615 = vunpack.c.l.b16 %v6607
        %v6616 = vunpack.c.l.b16 %v6608
        %v6617 = vpack.c.b16 %v6614, %v6613
        %v6618 = vpack.c.b16 %v6616, %v6615
        %v6622 = vsel %vm5653, %v6597, 0
        %v6625 = vsel %vm5653, %v6598, 0
        %v6628 = vsel %vm5653, %v6599, 0
        %v6631 = vsel %vm5653, %v6600, 0
        %v6634 = vsel %vm5653, %v6601, 0
        %v6637 = vsel %vm5653, %v6602, 0
        %v6640 = vsel %vm5653, %v6603, 0
        %6642 = vmatprep.subr.bf16.mxu0 0
        %6643 = vmatpush1.bf16.msra.mxu0 %v6617
        %6644 = vmatprep.subr.bf16.mxu0 0
        %6645 = vmatpush1.bf16.msra.mxu0 %v6618
        %6646 = vmatprep.subr.bf16.mxu0 0
        %6647 = vmatpush1.bf16.msra.mxu0 0
        %6648 = vmatprep.subr.bf16.mxu0 0
        %6649 = vmatpush1.bf16.msra.mxu0 0
        %6650 = vmatprep.subr.bf16.mxu0 0
        %6651 = vmatpush1.bf16.msra.mxu0 0
        %6652 = vmatprep.subr.bf16.mxu0 0
        %6653 = vmatpush1.bf16.msra.mxu0 0
        %6654 = vmatprep.subr.bf16.mxu0 0
        %6655 = vmatpush1.bf16.msra.mxu0 0
        %6656 = vmatprep.subr.bf16.mxu0 0
        %6657 = vmatpush1.bf16.msra.mxu0 0
        %6658 = vmatprep.subr.bf16.mxu0 0
        %6659 = vmatpush1.bf16.msra.mxu0 0
        %6660 = vmatprep.subr.bf16.mxu0 0
        %6661 = vmatpush1.bf16.msra.mxu0 0
        %6662 = vmatprep.subr.bf16.mxu0 0
        %6663 = vmatpush1.bf16.msra.mxu0 0
        %6664 = vmatprep.subr.bf16.mxu0 0
        %6665 = vmatpush1.bf16.msra.mxu0 0
        %6666 = vmatprep.subr.bf16.mxu0 0
        %6667 = vmatpush1.bf16.msra.mxu0 0
        %6668 = vmatprep.subr.bf16.mxu0 0
        %6669 = vmatpush1.bf16.msra.mxu0 0
        %6670 = vmatprep.subr.bf16.mxu0 0
        %6671 = vmatpush1.bf16.msra.mxu0 0
        %6672 = vmatprep.subr.bf16.mxu0 0
        %6673 = vmatpush1.bf16.msra.mxu0 0
        %6674 = vmatprep.mubr.bf16.mxu0 0
        %6675 = vmatmul.mubr.bf16.gmra.mrb[0].mxu0 %v6622
        %v6676 = vpop.f32.mrb[0].mxu0
        %v6677 = vadd.f32 0.0, %v6676
        %v6678 = vpop.f32.mrb[0].mxu0
        %v6679 = vpop.f32.mrb[0].mxu0
        %v6680 = vadd.f32 0.0, %v6679
        %v6681 = vpop.f32.mrb[0].mxu0
        %6682 = vmatprep.mubr.bf16.mxu0 0
        %6683 = vmatmul.mubr.bf16.gmra.mrb[0].mxu0 %v6625
        %v6684 = vpop.f32.mrb[0].mxu0
        %v6685 = vadd.f32 0.0, %v6684
        %v6686 = vpop.f32.mrb[0].mxu0
        %v6687 = vpop.f32.mrb[0].mxu0
        %v6688 = vadd.f32 0.0, %v6687
        %v6689 = vpop.f32.mrb[0].mxu0
        %6690 = vmatprep.mubr.bf16.mxu0 0
        %6691 = vmatmul.mubr.bf16.gmra.mrb[0].mxu0 %v6628
        %v6692 = vpop.f32.mrb[0].mxu0
        %v6693 = vadd.f32 0.0, %v6692
        %v6694 = vpop.f32.mrb[0].mxu0
        %v6695 = vpop.f32.mrb[0].mxu0
        %v6696 = vadd.f32 0.0, %v6695
        %v6697 = vpop.f32.mrb[0].mxu0
        %6698 = vmatprep.mubr.bf16.mxu0 0
        %6699 = vmatmul.mubr.bf16.gmra.mrb[0].mxu0 %v6631
        %v6700 = vpop.f32.mrb[0].mxu0
        %v6701 = vadd.f32 0.0, %v6700
        %v6702 = vpop.f32.mrb[0].mxu0
        %v6703 = vpop.f32.mrb[0].mxu0
        %v6704 = vadd.f32 0.0, %v6703
        %v6705 = vpop.f32.mrb[0].mxu0
        %6706 = vmatprep.mubr.bf16.mxu0 0
        %6707 = vmatmul.mubr.bf16.gmra.mrb[0].mxu0 %v6634
        %v6708 = vpop.f32.mrb[0].mxu0
        %v6709 = vpop.f32.mrb[0].mxu0
        %v6710 = vpop.f32.mrb[0].mxu0
        %v6711 = vpop.f32.mrb[0].mxu0
        %6712 = vmatprep.mubr.bf16.mxu0 0
        %6713 = vmatmul.mubr.bf16.gmra.mrb[0].mxu0 %v6637
        %v6714 = vpop.f32.mrb[0].mxu0
        %v6715 = vpop.f32.mrb[0].mxu0
        %v6716 = vpop.f32.mrb[0].mxu0
        %v6717 = vpop.f32.mrb[0].mxu0
        %6718 = vmatprep.mubr.bf16.mxu0 0
        %6719 = vmatmul.mubr.bf16.gmra.mrb[0].mxu0 %v6640
        %v6720 = vpop.f32.mrb[0].mxu0
        %v6721 = vpop.f32.mrb[0].mxu0
        %v6722 = vpop.f32.mrb[0].mxu0
        %v6723 = vpop.f32.mrb[0].mxu0
        %6724 = vdwg.mxu0
        %v6725 = vadd.f32 %v6589, %v6677
        %v6726 = vadd.f32 %v6590, %v6680
        %v6727 = vadd.f32 %v6591, %v6685
        %v6728 = vadd.f32 %v6592, %v6688
        %v6729 = vadd.f32 %v6593, %v6693
        %v6730 = vadd.f32 %v6594, %v6696
        %v6731 = vadd.f32 %v6595, %v6701
        %v6732 = vadd.f32 %v6596, %v6704
        %v6733 = vrot.slane %v5836, 4
        %v6734 = vrot.slane %v5849, 4
        %v6735 = vrot.slane %v5848, 4
        %v6736 = vrot.slane %v5847, 4
        %v6737 = vrot.slane %v5846, 4
        %v6738 = vrot.slane %v5845, 4
        %v6739 = vrot.slane %v5844, 4
        %v6740 = vrot.slane %v5843, 4
        %v6741 = vrot.slane %v5842, 4
        %v6742 = vrot.slane %v5841, 4
        %v6743 = vrot.slane %v5840, 4
        %v6744 = vrot.slane %v5839, 4
        %v6745 = vrot.slane %v5838, 4
        %v6746 = vrot.slane %v5837, 4
        %v6747 = vsel %vm1503, %v6745, %v6746
        %v6748 = vsel %vm1503, %v6744, %v6745
        %v6749 = vsel %vm1503, %v6743, %v6744
        %v6750 = vsel %vm1503, %v6742, %v6743
        %v6751 = vsel %vm1503, %v6741, %v6742
        %v6752 = vsel %vm1503, %v6740, %v6741
        %v6753 = vsel %vm1503, %v6739, %v6740
        %v6754 = vsel %vm1503, %v6738, %v6739
        %v6755 = vsel %vm1503, %v6737, %v6738
        %v6756 = vsel %vm1503, %v6736, %v6737
        %v6757 = vsel %vm1503, %v6735, %v6736
        %v6758 = vsel %vm1503, %v6734, %v6735
        %v6759 = vsel %vm1503, %v6733, %v6734
        %v6760 = vsel %vm1503, %v6746, %v6733
        %v6761 = vpack.c.bf16 %v6757, %v6758
        %v6762 = vpack.c.bf16 %v6755, %v6756
        %v6763 = vpack.c.bf16 %v6753, %v6754
        %v6764 = vpack.c.bf16 %v6751, %v6752
        %v6765 = vpack.c.bf16 %v6749, %v6750
        %v6766 = vpack.c.bf16 %v6747, %v6748
        %v6767 = vpack.c.bf16 %v6759, %v6760
        %s6768 = scalar_lea.vmem %s4, 96
        %v6769 = vld [vmem:[%s6768] sm:$0xf]
        %v6770 = vld [vmem:[%s6768 + $0x4] sm:$0xf]
        %v6771 = vld [vmem:[%s6768 + $0x8] sm:$0xf]
        %v6772 = vld [vmem:[%s6768 + $0xc] sm:$0xf]
        %v6777 = vunpack.c.l.b16 %v6769
        %v6778 = vunpack.c.l.b16 %v6770
        %v6779 = vunpack.c.l.b16 %v6771
        %v6780 = vunpack.c.l.b16 %v6772
        %v6781 = vpack.c.b16 %v6778, %v6777
        %v6782 = vpack.c.b16 %v6780, %v6779
        %v6786 = vsel %vm5653, %v6761, 0
        %v6789 = vsel %vm5653, %v6762, 0
        %v6792 = vsel %vm5653, %v6763, 0
        %v6795 = vsel %vm5653, %v6764, 0
        %v6798 = vsel %vm5653, %v6765, 0
        %v6801 = vsel %vm5653, %v6766, 0
        %v6804 = vsel %vm5653, %v6767, 0
        %6806 = vmatprep.subr.bf16.mxu0 0
        %6807 = vmatpush1.bf16.msra.mxu0 %v6781
        %6808 = vmatprep.subr.bf16.mxu0 0
        %6809 = vmatpush1.bf16.msra.mxu0 %v6782
        %6810 = vmatprep.subr.bf16.mxu0 0
        %6811 = vmatpush1.bf16.msra.mxu0 0
        %6812 = vmatprep.subr.bf16.mxu0 0
        %6813 = vmatpush1.bf16.msra.mxu0 0
        %6814 = vmatprep.subr.bf16.mxu0 0
        %6815 = vmatpush1.bf16.msra.mxu0 0
        %6816 = vmatprep.subr.bf16.mxu0 0
        %6817 = vmatpush1.bf16.msra.mxu0 0
        %6818 = vmatprep.subr.bf16.mxu0 0
        %6819 = vmatpush1.bf16.msra.mxu0 0
        %6820 = vmatprep.subr.bf16.mxu0 0
        %6821 = vmatpush1.bf16.msra.mxu0 0
        %6822 = vmatprep.subr.bf16.mxu0 0
        %6823 = vmatpush1.bf16.msra.mxu0 0
        %6824 = vmatprep.subr.bf16.mxu0 0
        %6825 = vmatpush1.bf16.msra.mxu0 0
        %6826 = vmatprep.subr.bf16.mxu0 0
        %6827 = vmatpush1.bf16.msra.mxu0 0
        %6828 = vmatprep.subr.bf16.mxu0 0
        %6829 = vmatpush1.bf16.msra.mxu0 0
        %6830 = vmatprep.subr.bf16.mxu0 0
        %6831 = vmatpush1.bf16.msra.mxu0 0
        %6832 = vmatprep.subr.bf16.mxu0 0
        %6833 = vmatpush1.bf16.msra.mxu0 0
        %6834 = vmatprep.subr.bf16.mxu0 0
        %6835 = vmatpush1.bf16.msra.mxu0 0
        %6836 = vmatprep.subr.bf16.mxu0 0
        %6837 = vmatpush1.bf16.msra.mxu0 0
        %6838 = vmatprep.mubr.bf16.mxu0 0
        %6839 = vmatmul.mubr.bf16.gmra.mrb[0].mxu0 %v6786
        %v6840 = vpop.f32.mrb[0].mxu0
        %v6841 = vadd.f32 0.0, %v6840
        %v6842 = vpop.f32.mrb[0].mxu0
        %v6843 = vpop.f32.mrb[0].mxu0
        %v6844 = vadd.f32 0.0, %v6843
        %v6845 = vpop.f32.mrb[0].mxu0
        %6846 = vmatprep.mubr.bf16.mxu0 0
        %6847 = vmatmul.mubr.bf16.gmra.mrb[0].mxu0 %v6789
        %v6848 = vpop.f32.mrb[0].mxu0
        %v6849 = vadd.f32 0.0, %v6848
        %v6850 = vpop.f32.mrb[0].mxu0
        %v6851 = vpop.f32.mrb[0].mxu0
        %v6852 = vadd.f32 0.0, %v6851
        %v6853 = vpop.f32.mrb[0].mxu0
        %6854 = vmatprep.mubr.bf16.mxu0 0
        %6855 = vmatmul.mubr.bf16.gmra.mrb[0].mxu0 %v6792
        %v6856 = vpop.f32.mrb[0].mxu0
        %v6857 = vadd.f32 0.0, %v6856
        %v6858 = vpop.f32.mrb[0].mxu0
        %v6859 = vpop.f32.mrb[0].mxu0
        %v6860 = vadd.f32 0.0, %v6859
        %v6861 = vpop.f32.mrb[0].mxu0
        %6862 = vmatprep.mubr.bf16.mxu0 0
        %6863 = vmatmul.mubr.bf16.gmra.mrb[0].mxu0 %v6795
        %v6864 = vpop.f32.mrb[0].mxu0
        %v6865 = vadd.f32 0.0, %v6864
        %v6866 = vpop.f32.mrb[0].mxu0
        %v6867 = vpop.f32.mrb[0].mxu0
        %v6868 = vadd.f32 0.0, %v6867
        %v6869 = vpop.f32.mrb[0].mxu0
        %6870 = vmatprep.mubr.bf16.mxu0 0
        %6871 = vmatmul.mubr.bf16.gmra.mrb[0].mxu0 %v6798
        %v6872 = vpop.f32.mrb[0].mxu0
        %v6873 = vpop.f32.mrb[0].mxu0
        %v6874 = vpop.f32.mrb[0].mxu0
        %v6875 = vpop.f32.mrb[0].mxu0
        %6876 = vmatprep.mubr.bf16.mxu0 0
        %6877 = vmatmul.mubr.bf16.gmra.mrb[0].mxu0 %v6801
        %v6878 = vpop.f32.mrb[0].mxu0
        %v6879 = vpop.f32.mrb[0].mxu0
        %v6880 = vpop.f32.mrb[0].mxu0
        %v6881 = vpop.f32.mrb[0].mxu0
        %6882 = vmatprep.mubr.bf16.mxu0 0
        %6883 = vmatmul.mubr.bf16.gmra.mrb[0].mxu0 %v6804
        %v6884 = vpop.f32.mrb[0].mxu0
        %v6885 = vpop.f32.mrb[0].mxu0
        %v6886 = vpop.f32.mrb[0].mxu0
        %v6887 = vpop.f32.mrb[0].mxu0
        %6888 = vdwg.mxu0
        %v6889 = vadd.f32 %v6725, %v6841
        %v6890 = vadd.f32 %v6726, %v6844
        %v6891 = vadd.f32 %v6727, %v6849
        %v6892 = vadd.f32 %v6728, %v6852
        %v6893 = vadd.f32 %v6729, %v6857
        %v6894 = vadd.f32 %v6730, %v6860
        %v6895 = vadd.f32 %v6731, %v6865
        %v6896 = vadd.f32 %v6732, %v6868
        %v6897 = vrot.slane %v5836, 5
        %v6898 = vrot.slane %v5849, 5
        %v6899 = vrot.slane %v5848, 5
        %v6900 = vrot.slane %v5847, 5
        %v6901 = vrot.slane %v5846, 5
        %v6902 = vrot.slane %v5845, 5
        %v6903 = vrot.slane %v5844, 5
        %v6904 = vrot.slane %v5843, 5
        %v6905 = vrot.slane %v5842, 5
        %v6906 = vrot.slane %v5841, 5
        %v6907 = vrot.slane %v5840, 5
        %v6908 = vrot.slane %v5839, 5
        %v6909 = vrot.slane %v5838, 5
        %v6910 = vrot.slane %v5837, 5
        %v6911 = vsel %vm1668, %v6909, %v6910
        %v6912 = vsel %vm1668, %v6908, %v6909
        %v6913 = vsel %vm1668, %v6907, %v6908
        %v6914 = vsel %vm1668, %v6906, %v6907
        %v6915 = vsel %vm1668, %v6905, %v6906
        %v6916 = vsel %vm1668, %v6904, %v6905
        %v6917 = vsel %vm1668, %v6903, %v6904
        %v6918 = vsel %vm1668, %v6902, %v6903
        %v6919 = vsel %vm1668, %v6901, %v6902
        %v6920 = vsel %vm1668, %v6900, %v6901
        %v6921 = vsel %vm1668, %v6899, %v6900
        %v6922 = vsel %vm1668, %v6898, %v6899
        %v6923 = vsel %vm1668, %v6897, %v6898
        %v6924 = vsel %vm1668, %v6910, %v6897
        %v6925 = vpack.c.bf16 %v6921, %v6922
        %v6926 = vpack.c.bf16 %v6919, %v6920
        %v6927 = vpack.c.bf16 %v6917, %v6918
        %v6928 = vpack.c.bf16 %v6915, %v6916
        %v6929 = vpack.c.bf16 %v6913, %v6914
        %v6930 = vpack.c.bf16 %v6911, %v6912
        %v6931 = vpack.c.bf16 %v6923, %v6924
        %s6932 = scalar_lea.vmem %s4, 112
        %v6933 = vld [vmem:[%s6932] sm:$0xf]
        %v6934 = vld [vmem:[%s6932 + $0x4] sm:$0xf]
        %v6935 = vld [vmem:[%s6932 + $0x8] sm:$0xf]
        %v6936 = vld [vmem:[%s6932 + $0xc] sm:$0xf]
        %v6941 = vunpack.c.l.b16 %v6933
        %v6942 = vunpack.c.l.b16 %v6934
        %v6943 = vunpack.c.l.b16 %v6935
        %v6944 = vunpack.c.l.b16 %v6936
        %v6945 = vpack.c.b16 %v6942, %v6941
        %v6946 = vpack.c.b16 %v6944, %v6943
        %v6950 = vsel %vm5653, %v6925, 0
        %v6953 = vsel %vm5653, %v6926, 0
        %v6956 = vsel %vm5653, %v6927, 0
        %v6959 = vsel %vm5653, %v6928, 0
        %v6962 = vsel %vm5653, %v6929, 0
        %v6965 = vsel %vm5653, %v6930, 0
        %v6968 = vsel %vm5653, %v6931, 0
        %6970 = vmatprep.subr.bf16.mxu0 0
        %6971 = vmatpush1.bf16.msra.mxu0 %v6945
        %6972 = vmatprep.subr.bf16.mxu0 0
        %6973 = vmatpush1.bf16.msra.mxu0 %v6946
        %6974 = vmatprep.subr.bf16.mxu0 0
        %6975 = vmatpush1.bf16.msra.mxu0 0
        %6976 = vmatprep.subr.bf16.mxu0 0
        %6977 = vmatpush1.bf16.msra.mxu0 0
        %6978 = vmatprep.subr.bf16.mxu0 0
        %6979 = vmatpush1.bf16.msra.mxu0 0
        %6980 = vmatprep.subr.bf16.mxu0 0
        %6981 = vmatpush1.bf16.msra.mxu0 0
        %6982 = vmatprep.subr.bf16.mxu0 0
        %6983 = vmatpush1.bf16.msra.mxu0 0
        %6984 = vmatprep.subr.bf16.mxu0 0
        %6985 = vmatpush1.bf16.msra.mxu0 0
        %6986 = vmatprep.subr.bf16.mxu0 0
        %6987 = vmatpush1.bf16.msra.mxu0 0
        %6988 = vmatprep.subr.bf16.mxu0 0
        %6989 = vmatpush1.bf16.msra.mxu0 0
        %6990 = vmatprep.subr.bf16.mxu0 0
        %6991 = vmatpush1.bf16.msra.mxu0 0
        %6992 = vmatprep.subr.bf16.mxu0 0
        %6993 = vmatpush1.bf16.msra.mxu0 0
        %6994 = vmatprep.subr.bf16.mxu0 0
        %6995 = vmatpush1.bf16.msra.mxu0 0
        %6996 = vmatprep.subr.bf16.mxu0 0
        %6997 = vmatpush1.bf16.msra.mxu0 0
        %6998 = vmatprep.subr.bf16.mxu0 0
        %6999 = vmatpush1.bf16.msra.mxu0 0
        %7000 = vmatprep.subr.bf16.mxu0 0
        %7001 = vmatpush1.bf16.msra.mxu0 0
        %7002 = vmatprep.mubr.bf16.mxu0 0
        %7003 = vmatmul.mubr.bf16.gmra.mrb[0].mxu0 %v6950
        %v7004 = vpop.f32.mrb[0].mxu0
        %v7005 = vadd.f32 0.0, %v7004
        %v7006 = vpop.f32.mrb[0].mxu0
        %v7007 = vpop.f32.mrb[0].mxu0
        %v7008 = vadd.f32 0.0, %v7007
        %v7009 = vpop.f32.mrb[0].mxu0
        %7010 = vmatprep.mubr.bf16.mxu0 0
        %7011 = vmatmul.mubr.bf16.gmra.mrb[0].mxu0 %v6953
        %v7012 = vpop.f32.mrb[0].mxu0
        %v7013 = vadd.f32 0.0, %v7012
        %v7014 = vpop.f32.mrb[0].mxu0
        %v7015 = vpop.f32.mrb[0].mxu0
        %v7016 = vadd.f32 0.0, %v7015
        %v7017 = vpop.f32.mrb[0].mxu0
        %7018 = vmatprep.mubr.bf16.mxu0 0
        %7019 = vmatmul.mubr.bf16.gmra.mrb[0].mxu0 %v6956
        %v7020 = vpop.f32.mrb[0].mxu0
        %v7021 = vadd.f32 0.0, %v7020
        %v7022 = vpop.f32.mrb[0].mxu0
        %v7023 = vpop.f32.mrb[0].mxu0
        %v7024 = vadd.f32 0.0, %v7023
        %v7025 = vpop.f32.mrb[0].mxu0
        %7026 = vmatprep.mubr.bf16.mxu0 0
        %7027 = vmatmul.mubr.bf16.gmra.mrb[0].mxu0 %v6959
        %v7028 = vpop.f32.mrb[0].mxu0
        %v7029 = vadd.f32 0.0, %v7028
        %v7030 = vpop.f32.mrb[0].mxu0
        %v7031 = vpop.f32.mrb[0].mxu0
        %v7032 = vadd.f32 0.0, %v7031
        %v7033 = vpop.f32.mrb[0].mxu0
        %7034 = vmatprep.mubr.bf16.mxu0 0
        %7035 = vmatmul.mubr.bf16.gmra.mrb[0].mxu0 %v6962
        %v7036 = vpop.f32.mrb[0].mxu0
        %v7037 = vpop.f32.mrb[0].mxu0
        %v7038 = vpop.f32.mrb[0].mxu0
        %v7039 = vpop.f32.mrb[0].mxu0
        %7040 = vmatprep.mubr.bf16.mxu0 0
        %7041 = vmatmul.mubr.bf16.gmra.mrb[0].mxu0 %v6965
        %v7042 = vpop.f32.mrb[0].mxu0
        %v7043 = vpop.f32.mrb[0].mxu0
        %v7044 = vpop.f32.mrb[0].mxu0
        %v7045 = vpop.f32.mrb[0].mxu0
        %7046 = vmatprep.mubr.bf16.mxu0 0
        %7047 = vmatmul.mubr.bf16.gmra.mrb[0].mxu0 %v6968
        %v7048 = vpop.f32.mrb[0].mxu0
        %v7049 = vpop.f32.mrb[0].mxu0
        %v7050 = vpop.f32.mrb[0].mxu0
        %v7051 = vpop.f32.mrb[0].mxu0
        %7052 = vdwg.mxu0
        %v7053 = vadd.f32 %v6889, %v7005
        %v7054 = vadd.f32 %v6890, %v7008
        %v7055 = vadd.f32 %v6891, %v7013
        %v7056 = vadd.f32 %v6892, %v7016
        %v7057 = vadd.f32 %v6893, %v7021
        %v7058 = vadd.f32 %v6894, %v7024
        %v7059 = vadd.f32 %v6895, %v7029
        %v7060 = vadd.f32 %v6896, %v7032
        %v7061 = vpack.c.bf16 %v6756, %v6757
        %v7062 = vpack.c.bf16 %v6754, %v6755
        %v7063 = vpack.c.bf16 %v6752, %v6753
        %v7064 = vpack.c.bf16 %v6750, %v6751
        %v7065 = vpack.c.bf16 %v6748, %v6749
        %v7066 = vpack.c.bf16 %v6760, %v6747
        %v7067 = vpack.c.bf16 %v6758, %v6759
        %s7068 = scalar_lea.vmem %s4, 128
        %v7069 = vld [vmem:[%s7068] sm:$0xf]
        %v7070 = vld [vmem:[%s7068 + $0x4] sm:$0xf]
        %v7071 = vld [vmem:[%s7068 + $0x8] sm:$0xf]
        %v7072 = vld [vmem:[%s7068 + $0xc] sm:$0xf]
        %v7077 = vunpack.c.l.b16 %v7069
        %v7078 = vunpack.c.l.b16 %v7070
        %v7079 = vunpack.c.l.b16 %v7071
        %v7080 = vunpack.c.l.b16 %v7072
        %v7081 = vpack.c.b16 %v7078, %v7077
        %v7082 = vpack.c.b16 %v7080, %v7079
        %v7086 = vsel %vm5653, %v7061, 0
        %v7089 = vsel %vm5653, %v7062, 0
        %v7092 = vsel %vm5653, %v7063, 0
        %v7095 = vsel %vm5653, %v7064, 0
        %v7098 = vsel %vm5653, %v7065, 0
        %v7101 = vsel %vm5653, %v7066, 0
        %v7104 = vsel %vm5653, %v7067, 0
        %7106 = vmatprep.subr.bf16.mxu0 0
        %7107 = vmatpush1.bf16.msra.mxu0 %v7081
        %7108 = vmatprep.subr.bf16.mxu0 0
        %7109 = vmatpush1.bf16.msra.mxu0 %v7082
        %7110 = vmatprep.subr.bf16.mxu0 0
        %7111 = vmatpush1.bf16.msra.mxu0 0
        %7112 = vmatprep.subr.bf16.mxu0 0
        %7113 = vmatpush1.bf16.msra.mxu0 0
        %7114 = vmatprep.subr.bf16.mxu0 0
        %7115 = vmatpush1.bf16.msra.mxu0 0
        %7116 = vmatprep.subr.bf16.mxu0 0
        %7117 = vmatpush1.bf16.msra.mxu0 0
        %7118 = vmatprep.subr.bf16.mxu0 0
        %7119 = vmatpush1.bf16.msra.mxu0 0
        %7120 = vmatprep.subr.bf16.mxu0 0
        %7121 = vmatpush1.bf16.msra.mxu0 0
        %7122 = vmatprep.subr.bf16.mxu0 0
        %7123 = vmatpush1.bf16.msra.mxu0 0
        %7124 = vmatprep.subr.bf16.mxu0 0
        %7125 = vmatpush1.bf16.msra.mxu0 0
        %7126 = vmatprep.subr.bf16.mxu0 0
        %7127 = vmatpush1.bf16.msra.mxu0 0
        %7128 = vmatprep.subr.bf16.mxu0 0
        %7129 = vmatpush1.bf16.msra.mxu0 0
        %7130 = vmatprep.subr.bf16.mxu0 0
        %7131 = vmatpush1.bf16.msra.mxu0 0
        %7132 = vmatprep.subr.bf16.mxu0 0
        %7133 = vmatpush1.bf16.msra.mxu0 0
        %7134 = vmatprep.subr.bf16.mxu0 0
        %7135 = vmatpush1.bf16.msra.mxu0 0
        %7136 = vmatprep.subr.bf16.mxu0 0
        %7137 = vmatpush1.bf16.msra.mxu0 0
        %7138 = vmatprep.mubr.bf16.mxu0 0
        %7139 = vmatmul.mubr.bf16.gmra.mrb[0].mxu0 %v7086
        %v7140 = vpop.f32.mrb[0].mxu0
        %v7141 = vadd.f32 0.0, %v7140
        %v7142 = vpop.f32.mrb[0].mxu0
        %v7143 = vpop.f32.mrb[0].mxu0
        %v7144 = vadd.f32 0.0, %v7143
        %v7145 = vpop.f32.mrb[0].mxu0
        %7146 = vmatprep.mubr.bf16.mxu0 0
        %7147 = vmatmul.mubr.bf16.gmra.mrb[0].mxu0 %v7089
        %v7148 = vpop.f32.mrb[0].mxu0
        %v7149 = vadd.f32 0.0, %v7148
        %v7150 = vpop.f32.mrb[0].mxu0
        %v7151 = vpop.f32.mrb[0].mxu0
        %v7152 = vadd.f32 0.0, %v7151
        %v7153 = vpop.f32.mrb[0].mxu0
        %7154 = vmatprep.mubr.bf16.mxu0 0
        %7155 = vmatmul.mubr.bf16.gmra.mrb[0].mxu0 %v7092
        %v7156 = vpop.f32.mrb[0].mxu0
        %v7157 = vadd.f32 0.0, %v7156
        %v7158 = vpop.f32.mrb[0].mxu0
        %v7159 = vpop.f32.mrb[0].mxu0
        %v7160 = vadd.f32 0.0, %v7159
        %v7161 = vpop.f32.mrb[0].mxu0
        %7162 = vmatprep.mubr.bf16.mxu0 0
        %7163 = vmatmul.mubr.bf16.gmra.mrb[0].mxu0 %v7095
        %v7164 = vpop.f32.mrb[0].mxu0
        %v7165 = vadd.f32 0.0, %v7164
        %v7166 = vpop.f32.mrb[0].mxu0
        %v7167 = vpop.f32.mrb[0].mxu0
        %v7168 = vadd.f32 0.0, %v7167
        %v7169 = vpop.f32.mrb[0].mxu0
        %7170 = vmatprep.mubr.bf16.mxu0 0
        %7171 = vmatmul.mubr.bf16.gmra.mrb[0].mxu0 %v7098
        %v7172 = vpop.f32.mrb[0].mxu0
        %v7173 = vpop.f32.mrb[0].mxu0
        %v7174 = vpop.f32.mrb[0].mxu0
        %v7175 = vpop.f32.mrb[0].mxu0
        %7176 = vmatprep.mubr.bf16.mxu0 0
        %7177 = vmatmul.mubr.bf16.gmra.mrb[0].mxu0 %v7101
        %v7178 = vpop.f32.mrb[0].mxu0
        %v7179 = vpop.f32.mrb[0].mxu0
        %v7180 = vpop.f32.mrb[0].mxu0
        %v7181 = vpop.f32.mrb[0].mxu0
        %7182 = vmatprep.mubr.bf16.mxu0 0
        %7183 = vmatmul.mubr.bf16.gmra.mrb[0].mxu0 %v7104
        %v7184 = vpop.f32.mrb[0].mxu0
        %v7185 = vpop.f32.mrb[0].mxu0
        %v7186 = vpop.f32.mrb[0].mxu0
        %v7187 = vpop.f32.mrb[0].mxu0
        %7188 = vdwg.mxu0
        %v7189 = vadd.f32 %v7053, %v7141
        %v7190 = vadd.f32 %v7054, %v7144
        %v7191 = vadd.f32 %v7055, %v7149
        %v7192 = vadd.f32 %v7056, %v7152
        %v7193 = vadd.f32 %v7057, %v7157
        %v7194 = vadd.f32 %v7058, %v7160
        %v7195 = vadd.f32 %v7059, %v7165
        %v7196 = vadd.f32 %v7060, %v7168
        %v7197 = vpack.c.bf16 %v6920, %v6921
        %v7198 = vpack.c.bf16 %v6918, %v6919
        %v7199 = vpack.c.bf16 %v6916, %v6917
        %v7200 = vpack.c.bf16 %v6914, %v6915
        %v7201 = vpack.c.bf16 %v6912, %v6913
        %v7202 = vpack.c.bf16 %v6924, %v6911
        %v7203 = vpack.c.bf16 %v6922, %v6923
        %s7204 = scalar_lea.vmem %s4, 144
        %v7205 = vld [vmem:[%s7204] sm:$0xf]
        %v7206 = vld [vmem:[%s7204 + $0x4] sm:$0xf]
        %v7207 = vld [vmem:[%s7204 + $0x8] sm:$0xf]
        %v7208 = vld [vmem:[%s7204 + $0xc] sm:$0xf]
        %v7213 = vunpack.c.l.b16 %v7205
        %v7214 = vunpack.c.l.b16 %v7206
        %v7215 = vunpack.c.l.b16 %v7207
        %v7216 = vunpack.c.l.b16 %v7208
        %v7217 = vpack.c.b16 %v7214, %v7213
        %v7218 = vpack.c.b16 %v7216, %v7215
        %v7222 = vsel %vm5653, %v7197, 0
        %v7225 = vsel %vm5653, %v7198, 0
        %v7228 = vsel %vm5653, %v7199, 0
        %v7231 = vsel %vm5653, %v7200, 0
        %v7234 = vsel %vm5653, %v7201, 0
        %v7237 = vsel %vm5653, %v7202, 0
        %v7240 = vsel %vm5653, %v7203, 0
        %7242 = vmatprep.subr.bf16.mxu0 0
        %7243 = vmatpush1.bf16.msra.mxu0 %v7217
        %7244 = vmatprep.subr.bf16.mxu0 0
        %7245 = vmatpush1.bf16.msra.mxu0 %v7218
        %7246 = vmatprep.subr.bf16.mxu0 0
        %7247 = vmatpush1.bf16.msra.mxu0 0
        %7248 = vmatprep.subr.bf16.mxu0 0
        %7249 = vmatpush1.bf16.msra.mxu0 0
        %7250 = vmatprep.subr.bf16.mxu0 0
        %7251 = vmatpush1.bf16.msra.mxu0 0
        %7252 = vmatprep.subr.bf16.mxu0 0
        %7253 = vmatpush1.bf16.msra.mxu0 0
        %7254 = vmatprep.subr.bf16.mxu0 0
        %7255 = vmatpush1.bf16.msra.mxu0 0
        %7256 = vmatprep.subr.bf16.mxu0 0
        %7257 = vmatpush1.bf16.msra.mxu0 0
        %7258 = vmatprep.subr.bf16.mxu0 0
        %7259 = vmatpush1.bf16.msra.mxu0 0
        %7260 = vmatprep.subr.bf16.mxu0 0
        %7261 = vmatpush1.bf16.msra.mxu0 0
        %7262 = vmatprep.subr.bf16.mxu0 0
        %7263 = vmatpush1.bf16.msra.mxu0 0
        %7264 = vmatprep.subr.bf16.mxu0 0
        %7265 = vmatpush1.bf16.msra.mxu0 0
        %7266 = vmatprep.subr.bf16.mxu0 0
        %7267 = vmatpush1.bf16.msra.mxu0 0
        %7268 = vmatprep.subr.bf16.mxu0 0
        %7269 = vmatpush1.bf16.msra.mxu0 0
        %7270 = vmatprep.subr.bf16.mxu0 0
        %7271 = vmatpush1.bf16.msra.mxu0 0
        %7272 = vmatprep.subr.bf16.mxu0 0
        %7273 = vmatpush1.bf16.msra.mxu0 0
        %7274 = vmatprep.mubr.bf16.mxu0 0
        %7275 = vmatmul.mubr.bf16.gmra.mrb[0].mxu0 %v7222
        %v7276 = vpop.f32.mrb[0].mxu0
        %v7277 = vadd.f32 0.0, %v7276
        %v7278 = vpop.f32.mrb[0].mxu0
        %v7279 = vpop.f32.mrb[0].mxu0
        %v7280 = vadd.f32 0.0, %v7279
        %v7281 = vpop.f32.mrb[0].mxu0
        %7282 = vmatprep.mubr.bf16.mxu0 0
        %7283 = vmatmul.mubr.bf16.gmra.mrb[0].mxu0 %v7225
        %v7284 = vpop.f32.mrb[0].mxu0
        %v7285 = vadd.f32 0.0, %v7284
        %v7286 = vpop.f32.mrb[0].mxu0
        %v7287 = vpop.f32.mrb[0].mxu0
        %v7288 = vadd.f32 0.0, %v7287
        %v7289 = vpop.f32.mrb[0].mxu0
        %7290 = vmatprep.mubr.bf16.mxu0 0
        %7291 = vmatmul.mubr.bf16.gmra.mrb[0].mxu0 %v7228
        %v7292 = vpop.f32.mrb[0].mxu0
        %v7293 = vadd.f32 0.0, %v7292
        %v7294 = vpop.f32.mrb[0].mxu0
        %v7295 = vpop.f32.mrb[0].mxu0
        %v7296 = vadd.f32 0.0, %v7295
        %v7297 = vpop.f32.mrb[0].mxu0
        %7298 = vmatprep.mubr.bf16.mxu0 0
        %7299 = vmatmul.mubr.bf16.gmra.mrb[0].mxu0 %v7231
        %v7300 = vpop.f32.mrb[0].mxu0
        %v7301 = vadd.f32 0.0, %v7300
        %v7302 = vpop.f32.mrb[0].mxu0
        %v7303 = vpop.f32.mrb[0].mxu0
        %v7304 = vadd.f32 0.0, %v7303
        %v7305 = vpop.f32.mrb[0].mxu0
        %7306 = vmatprep.mubr.bf16.mxu0 0
        %7307 = vmatmul.mubr.bf16.gmra.mrb[0].mxu0 %v7234
        %v7308 = vpop.f32.mrb[0].mxu0
        %v7309 = vpop.f32.mrb[0].mxu0
        %v7310 = vpop.f32.mrb[0].mxu0
        %v7311 = vpop.f32.mrb[0].mxu0
        %7312 = vmatprep.mubr.bf16.mxu0 0
        %7313 = vmatmul.mubr.bf16.gmra.mrb[0].mxu0 %v7237
        %v7314 = vpop.f32.mrb[0].mxu0
        %v7315 = vpop.f32.mrb[0].mxu0
        %v7316 = vpop.f32.mrb[0].mxu0
        %v7317 = vpop.f32.mrb[0].mxu0
        %7318 = vmatprep.mubr.bf16.mxu0 0
        %7319 = vmatmul.mubr.bf16.gmra.mrb[0].mxu0 %v7240
        %v7320 = vpop.f32.mrb[0].mxu0
        %v7321 = vpop.f32.mrb[0].mxu0
        %v7322 = vpop.f32.mrb[0].mxu0
        %v7323 = vpop.f32.mrb[0].mxu0
        %7324 = vdwg.mxu0
        %v7325 = vadd.f32 %v7189, %v7277
        %v7326 = vadd.f32 %v7190, %v7280
        %v7327 = vadd.f32 %v7191, %v7285
        %v7328 = vadd.f32 %v7192, %v7288
        %v7329 = vadd.f32 %v7193, %v7293
        %v7330 = vadd.f32 %v7194, %v7296
        %v7331 = vadd.f32 %v7195, %v7301
        %v7332 = vadd.f32 %v7196, %v7304
        %v7333 = vrot.slane %v5836, 6
        %v7334 = vrot.slane %v5849, 6
        %v7335 = vrot.slane %v5848, 6
        %v7336 = vrot.slane %v5847, 6
        %v7337 = vrot.slane %v5846, 6
        %v7338 = vrot.slane %v5845, 6
        %v7339 = vrot.slane %v5844, 6
        %v7340 = vrot.slane %v5843, 6
        %v7341 = vrot.slane %v5842, 6
        %v7342 = vrot.slane %v5841, 6
        %v7343 = vrot.slane %v5840, 6
        %v7344 = vrot.slane %v5839, 6
        %v7345 = vrot.slane %v5838, 6
        %v7346 = vrot.slane %v5837, 6
        %v7347 = vsel %vm2105, %v7345, %v7346
        %v7348 = vsel %vm2105, %v7344, %v7345
        %v7349 = vsel %vm2105, %v7343, %v7344
        %v7350 = vsel %vm2105, %v7342, %v7343
        %v7351 = vsel %vm2105, %v7341, %v7342
        %v7352 = vsel %vm2105, %v7340, %v7341
        %v7353 = vsel %vm2105, %v7339, %v7340
        %v7354 = vsel %vm2105, %v7338, %v7339
        %v7355 = vsel %vm2105, %v7337, %v7338
        %v7356 = vsel %vm2105, %v7336, %v7337
        %v7357 = vsel %vm2105, %v7335, %v7336
        %v7358 = vsel %vm2105, %v7334, %v7335
        %v7359 = vsel %vm2105, %v7333, %v7334
        %v7360 = vsel %vm2105, %v7346, %v7333
        %v7361 = vpack.c.bf16 %v7356, %v7357
        %v7362 = vpack.c.bf16 %v7354, %v7355
        %v7363 = vpack.c.bf16 %v7352, %v7353
        %v7364 = vpack.c.bf16 %v7350, %v7351
        %v7365 = vpack.c.bf16 %v7348, %v7349
        %v7366 = vpack.c.bf16 %v7360, %v7347
        %v7367 = vpack.c.bf16 %v7358, %v7359
        %s7368 = scalar_lea.vmem %s4, 160
        %v7369 = vld [vmem:[%s7368] sm:$0xf]
        %v7370 = vld [vmem:[%s7368 + $0x4] sm:$0xf]
        %v7371 = vld [vmem:[%s7368 + $0x8] sm:$0xf]
        %v7372 = vld [vmem:[%s7368 + $0xc] sm:$0xf]
        %v7377 = vunpack.c.l.b16 %v7369
        %v7378 = vunpack.c.l.b16 %v7370
        %v7379 = vunpack.c.l.b16 %v7371
        %v7380 = vunpack.c.l.b16 %v7372
        %v7381 = vpack.c.b16 %v7378, %v7377
        %v7382 = vpack.c.b16 %v7380, %v7379
        %v7386 = vsel %vm5653, %v7361, 0
        %v7389 = vsel %vm5653, %v7362, 0
        %v7392 = vsel %vm5653, %v7363, 0
        %v7395 = vsel %vm5653, %v7364, 0
        %v7398 = vsel %vm5653, %v7365, 0
        %v7401 = vsel %vm5653, %v7366, 0
        %v7404 = vsel %vm5653, %v7367, 0
        %7406 = vmatprep.subr.bf16.mxu0 0
        %7407 = vmatpush1.bf16.msra.mxu0 %v7381
        %7408 = vmatprep.subr.bf16.mxu0 0
        %7409 = vmatpush1.bf16.msra.mxu0 %v7382
        %7410 = vmatprep.subr.bf16.mxu0 0
        %7411 = vmatpush1.bf16.msra.mxu0 0
        %7412 = vmatprep.subr.bf16.mxu0 0
        %7413 = vmatpush1.bf16.msra.mxu0 0
        %7414 = vmatprep.subr.bf16.mxu0 0
        %7415 = vmatpush1.bf16.msra.mxu0 0
        %7416 = vmatprep.subr.bf16.mxu0 0
        %7417 = vmatpush1.bf16.msra.mxu0 0
        %7418 = vmatprep.subr.bf16.mxu0 0
        %7419 = vmatpush1.bf16.msra.mxu0 0
        %7420 = vmatprep.subr.bf16.mxu0 0
        %7421 = vmatpush1.bf16.msra.mxu0 0
        %7422 = vmatprep.subr.bf16.mxu0 0
        %7423 = vmatpush1.bf16.msra.mxu0 0
        %7424 = vmatprep.subr.bf16.mxu0 0
        %7425 = vmatpush1.bf16.msra.mxu0 0
        %7426 = vmatprep.subr.bf16.mxu0 0
        %7427 = vmatpush1.bf16.msra.mxu0 0
        %7428 = vmatprep.subr.bf16.mxu0 0
        %7429 = vmatpush1.bf16.msra.mxu0 0
        %7430 = vmatprep.subr.bf16.mxu0 0
        %7431 = vmatpush1.bf16.msra.mxu0 0
        %7432 = vmatprep.subr.bf16.mxu0 0
        %7433 = vmatpush1.bf16.msra.mxu0 0
        %7434 = vmatprep.subr.bf16.mxu0 0
        %7435 = vmatpush1.bf16.msra.mxu0 0
        %7436 = vmatprep.subr.bf16.mxu0 0
        %7437 = vmatpush1.bf16.msra.mxu0 0
        %7438 = vmatprep.mubr.bf16.mxu0 0
        %7439 = vmatmul.mubr.bf16.gmra.mrb[0].mxu0 %v7386
        %v7440 = vpop.f32.mrb[0].mxu0
        %v7441 = vadd.f32 0.0, %v7440
        %v7442 = vpop.f32.mrb[0].mxu0
        %v7443 = vpop.f32.mrb[0].mxu0
        %v7444 = vadd.f32 0.0, %v7443
        %v7445 = vpop.f32.mrb[0].mxu0
        %7446 = vmatprep.mubr.bf16.mxu0 0
        %7447 = vmatmul.mubr.bf16.gmra.mrb[0].mxu0 %v7389
        %v7448 = vpop.f32.mrb[0].mxu0
        %v7449 = vadd.f32 0.0, %v7448
        %v7450 = vpop.f32.mrb[0].mxu0
        %v7451 = vpop.f32.mrb[0].mxu0
        %v7452 = vadd.f32 0.0, %v7451
        %v7453 = vpop.f32.mrb[0].mxu0
        %7454 = vmatprep.mubr.bf16.mxu0 0
        %7455 = vmatmul.mubr.bf16.gmra.mrb[0].mxu0 %v7392
        %v7456 = vpop.f32.mrb[0].mxu0
        %v7457 = vadd.f32 0.0, %v7456
        %v7458 = vpop.f32.mrb[0].mxu0
        %v7459 = vpop.f32.mrb[0].mxu0
        %v7460 = vadd.f32 0.0, %v7459
        %v7461 = vpop.f32.mrb[0].mxu0
        %7462 = vmatprep.mubr.bf16.mxu0 0
        %7463 = vmatmul.mubr.bf16.gmra.mrb[0].mxu0 %v7395
        %v7464 = vpop.f32.mrb[0].mxu0
        %v7465 = vadd.f32 0.0, %v7464
        %v7466 = vpop.f32.mrb[0].mxu0
        %v7467 = vpop.f32.mrb[0].mxu0
        %v7468 = vadd.f32 0.0, %v7467
        %v7469 = vpop.f32.mrb[0].mxu0
        %7470 = vmatprep.mubr.bf16.mxu0 0
        %7471 = vmatmul.mubr.bf16.gmra.mrb[0].mxu0 %v7398
        %v7472 = vpop.f32.mrb[0].mxu0
        %v7473 = vpop.f32.mrb[0].mxu0
        %v7474 = vpop.f32.mrb[0].mxu0
        %v7475 = vpop.f32.mrb[0].mxu0
        %7476 = vmatprep.mubr.bf16.mxu0 0
        %7477 = vmatmul.mubr.bf16.gmra.mrb[0].mxu0 %v7401
        %v7478 = vpop.f32.mrb[0].mxu0
        %v7479 = vpop.f32.mrb[0].mxu0
        %v7480 = vpop.f32.mrb[0].mxu0
        %v7481 = vpop.f32.mrb[0].mxu0
        %7482 = vmatprep.mubr.bf16.mxu0 0
        %7483 = vmatmul.mubr.bf16.gmra.mrb[0].mxu0 %v7404
        %v7484 = vpop.f32.mrb[0].mxu0
        %v7485 = vpop.f32.mrb[0].mxu0
        %v7486 = vpop.f32.mrb[0].mxu0
        %v7487 = vpop.f32.mrb[0].mxu0
        %7488 = vdwg.mxu0
        %v7489 = vadd.f32 %v7325, %v7441
        %v7490 = vadd.f32 %v7326, %v7444
        %v7491 = vadd.f32 %v7327, %v7449
        %v7492 = vadd.f32 %v7328, %v7452
        %v7493 = vadd.f32 %v7329, %v7457
        %v7494 = vadd.f32 %v7330, %v7460
        %v7495 = vadd.f32 %v7331, %v7465
        %v7496 = vadd.f32 %v7332, %v7468
        %v7497 = vrot.slane %v5836, 7
        %v7498 = vrot.slane %v5849, 7
        %v7499 = vrot.slane %v5848, 7
        %v7500 = vrot.slane %v5847, 7
        %v7501 = vrot.slane %v5846, 7
        %v7502 = vrot.slane %v5845, 7
        %v7503 = vrot.slane %v5844, 7
        %v7504 = vrot.slane %v5843, 7
        %v7505 = vrot.slane %v5842, 7
        %v7506 = vrot.slane %v5841, 7
        %v7507 = vrot.slane %v5840, 7
        %v7508 = vrot.slane %v5839, 7
        %v7509 = vrot.slane %v5838, 7
        %v7510 = vrot.slane %v5837, 7
        %v7511 = vsel %vm2270, %v7509, %v7510
        %v7512 = vsel %vm2270, %v7508, %v7509
        %v7513 = vsel %vm2270, %v7507, %v7508
        %v7514 = vsel %vm2270, %v7506, %v7507
        %v7515 = vsel %vm2270, %v7505, %v7506
        %v7516 = vsel %vm2270, %v7504, %v7505
        %v7517 = vsel %vm2270, %v7503, %v7504
        %v7518 = vsel %vm2270, %v7502, %v7503
        %v7519 = vsel %vm2270, %v7501, %v7502
        %v7520 = vsel %vm2270, %v7500, %v7501
        %v7521 = vsel %vm2270, %v7499, %v7500
        %v7522 = vsel %vm2270, %v7498, %v7499
        %v7523 = vsel %vm2270, %v7497, %v7498
        %v7524 = vsel %vm2270, %v7510, %v7497
        %v7525 = vpack.c.bf16 %v7520, %v7521
        %v7526 = vpack.c.bf16 %v7518, %v7519
        %v7527 = vpack.c.bf16 %v7516, %v7517
        %v7528 = vpack.c.bf16 %v7514, %v7515
        %v7529 = vpack.c.bf16 %v7512, %v7513
        %v7530 = vpack.c.bf16 %v7524, %v7511
        %v7531 = vpack.c.bf16 %v7522, %v7523
        %s7532 = scalar_lea.vmem %s4, 176
        %v7533 = vld [vmem:[%s7532] sm:$0xf]
        %v7534 = vld [vmem:[%s7532 + $0x4] sm:$0xf]
        %v7535 = vld [vmem:[%s7532 + $0x8] sm:$0xf]
        %v7536 = vld [vmem:[%s7532 + $0xc] sm:$0xf]
        %v7541 = vunpack.c.l.b16 %v7533
        %v7542 = vunpack.c.l.b16 %v7534
        %v7543 = vunpack.c.l.b16 %v7535
        %v7544 = vunpack.c.l.b16 %v7536
        %v7545 = vpack.c.b16 %v7542, %v7541
        %v7546 = vpack.c.b16 %v7544, %v7543
        %v7550 = vsel %vm5653, %v7525, 0
        %v7553 = vsel %vm5653, %v7526, 0
        %v7556 = vsel %vm5653, %v7527, 0
        %v7559 = vsel %vm5653, %v7528, 0
        %v7562 = vsel %vm5653, %v7529, 0
        %v7565 = vsel %vm5653, %v7530, 0
        %v7568 = vsel %vm5653, %v7531, 0
        %7570 = vmatprep.subr.bf16.mxu0 0
        %7571 = vmatpush1.bf16.msra.mxu0 %v7545
        %7572 = vmatprep.subr.bf16.mxu0 0
        %7573 = vmatpush1.bf16.msra.mxu0 %v7546
        %7574 = vmatprep.subr.bf16.mxu0 0
        %7575 = vmatpush1.bf16.msra.mxu0 0
        %7576 = vmatprep.subr.bf16.mxu0 0
        %7577 = vmatpush1.bf16.msra.mxu0 0
        %7578 = vmatprep.subr.bf16.mxu0 0
        %7579 = vmatpush1.bf16.msra.mxu0 0
        %7580 = vmatprep.subr.bf16.mxu0 0
        %7581 = vmatpush1.bf16.msra.mxu0 0
        %7582 = vmatprep.subr.bf16.mxu0 0
        %7583 = vmatpush1.bf16.msra.mxu0 0
        %7584 = vmatprep.subr.bf16.mxu0 0
        %7585 = vmatpush1.bf16.msra.mxu0 0
        %7586 = vmatprep.subr.bf16.mxu0 0
        %7587 = vmatpush1.bf16.msra.mxu0 0
        %7588 = vmatprep.subr.bf16.mxu0 0
        %7589 = vmatpush1.bf16.msra.mxu0 0
        %7590 = vmatprep.subr.bf16.mxu0 0
        %7591 = vmatpush1.bf16.msra.mxu0 0
        %7592 = vmatprep.subr.bf16.mxu0 0
        %7593 = vmatpush1.bf16.msra.mxu0 0
        %7594 = vmatprep.subr.bf16.mxu0 0
        %7595 = vmatpush1.bf16.msra.mxu0 0
        %7596 = vmatprep.subr.bf16.mxu0 0
        %7597 = vmatpush1.bf16.msra.mxu0 0
        %7598 = vmatprep.subr.bf16.mxu0 0
        %7599 = vmatpush1.bf16.msra.mxu0 0
        %7600 = vmatprep.subr.bf16.mxu0 0
        %7601 = vmatpush1.bf16.msra.mxu0 0
        %7602 = vmatprep.mubr.bf16.mxu0 0
        %7603 = vmatmul.mubr.bf16.gmra.mrb[0].mxu0 %v7550
        %v7604 = vpop.f32.mrb[0].mxu0
        %v7605 = vadd.f32 0.0, %v7604
        %v7606 = vpop.f32.mrb[0].mxu0
        %v7607 = vpop.f32.mrb[0].mxu0
        %v7608 = vadd.f32 0.0, %v7607
        %v7609 = vpop.f32.mrb[0].mxu0
        %7610 = vmatprep.mubr.bf16.mxu0 0
        %7611 = vmatmul.mubr.bf16.gmra.mrb[0].mxu0 %v7553
        %v7612 = vpop.f32.mrb[0].mxu0
        %v7613 = vadd.f32 0.0, %v7612
        %v7614 = vpop.f32.mrb[0].mxu0
        %v7615 = vpop.f32.mrb[0].mxu0
        %v7616 = vadd.f32 0.0, %v7615
        %v7617 = vpop.f32.mrb[0].mxu0
        %7618 = vmatprep.mubr.bf16.mxu0 0
        %7619 = vmatmul.mubr.bf16.gmra.mrb[0].mxu0 %v7556
        %v7620 = vpop.f32.mrb[0].mxu0
        %v7621 = vadd.f32 0.0, %v7620
        %v7622 = vpop.f32.mrb[0].mxu0
        %v7623 = vpop.f32.mrb[0].mxu0
        %v7624 = vadd.f32 0.0, %v7623
        %v7625 = vpop.f32.mrb[0].mxu0
        %7626 = vmatprep.mubr.bf16.mxu0 0
        %7627 = vmatmul.mubr.bf16.gmra.mrb[0].mxu0 %v7559
        %v7628 = vpop.f32.mrb[0].mxu0
        %v7629 = vadd.f32 0.0, %v7628
        %v7630 = vpop.f32.mrb[0].mxu0
        %v7631 = vpop.f32.mrb[0].mxu0
        %v7632 = vadd.f32 0.0, %v7631
        %v7633 = vpop.f32.mrb[0].mxu0
        %7634 = vmatprep.mubr.bf16.mxu0 0
        %7635 = vmatmul.mubr.bf16.gmra.mrb[0].mxu0 %v7562
        %v7636 = vpop.f32.mrb[0].mxu0
        %v7637 = vpop.f32.mrb[0].mxu0
        %v7638 = vpop.f32.mrb[0].mxu0
        %v7639 = vpop.f32.mrb[0].mxu0
        %7640 = vmatprep.mubr.bf16.mxu0 0
        %7641 = vmatmul.mubr.bf16.gmra.mrb[0].mxu0 %v7565
        %v7642 = vpop.f32.mrb[0].mxu0
        %v7643 = vpop.f32.mrb[0].mxu0
        %v7644 = vpop.f32.mrb[0].mxu0
        %v7645 = vpop.f32.mrb[0].mxu0
        %7646 = vmatprep.mubr.bf16.mxu0 0
        %7647 = vmatmul.mubr.bf16.gmra.mrb[0].mxu0 %v7568
        %v7648 = vpop.f32.mrb[0].mxu0
        %v7649 = vpop.f32.mrb[0].mxu0
        %v7650 = vpop.f32.mrb[0].mxu0
        %v7651 = vpop.f32.mrb[0].mxu0
        %7652 = vdwg.mxu0
        %v7653 = vadd.f32 %v7489, %v7605
        %v7654 = vadd.f32 %v7490, %v7608
        %v7655 = vadd.f32 %v7491, %v7613
        %v7656 = vadd.f32 %v7492, %v7616
        %v7657 = vadd.f32 %v7493, %v7621
        %v7658 = vadd.f32 %v7494, %v7624
        %v7659 = vadd.f32 %v7495, %v7629
        %v7660 = vadd.f32 %v7496, %v7632
        %v7661 = vpack.c.bf16 %v7355, %v7356
        %v7662 = vpack.c.bf16 %v7353, %v7354
        %v7663 = vpack.c.bf16 %v7351, %v7352
        %v7664 = vpack.c.bf16 %v7349, %v7350
        %v7665 = vpack.c.bf16 %v7347, %v7348
        %v7666 = vpack.c.bf16 %v7359, %v7360
        %v7667 = vpack.c.bf16 %v7357, %v7358
        %s7668 = scalar_lea.vmem %s4, 192
        %v7669 = vld [vmem:[%s7668] sm:$0xf]
        %v7670 = vld [vmem:[%s7668 + $0x4] sm:$0xf]
        %v7671 = vld [vmem:[%s7668 + $0x8] sm:$0xf]
        %v7672 = vld [vmem:[%s7668 + $0xc] sm:$0xf]
        %v7677 = vunpack.c.l.b16 %v7669
        %v7678 = vunpack.c.l.b16 %v7670
        %v7679 = vunpack.c.l.b16 %v7671
        %v7680 = vunpack.c.l.b16 %v7672
        %v7681 = vpack.c.b16 %v7678, %v7677
        %v7682 = vpack.c.b16 %v7680, %v7679
        %v7686 = vsel %vm5653, %v7661, 0
        %v7689 = vsel %vm5653, %v7662, 0
        %v7692 = vsel %vm5653, %v7663, 0
        %v7695 = vsel %vm5653, %v7664, 0
        %v7698 = vsel %vm5653, %v7665, 0
        %v7701 = vsel %vm5653, %v7666, 0
        %v7704 = vsel %vm5653, %v7667, 0
        %7706 = vmatprep.subr.bf16.mxu0 0
        %7707 = vmatpush1.bf16.msra.mxu0 %v7681
        %7708 = vmatprep.subr.bf16.mxu0 0
        %7709 = vmatpush1.bf16.msra.mxu0 %v7682
        %7710 = vmatprep.subr.bf16.mxu0 0
        %7711 = vmatpush1.bf16.msra.mxu0 0
        %7712 = vmatprep.subr.bf16.mxu0 0
        %7713 = vmatpush1.bf16.msra.mxu0 0
        %7714 = vmatprep.subr.bf16.mxu0 0
        %7715 = vmatpush1.bf16.msra.mxu0 0
        %7716 = vmatprep.subr.bf16.mxu0 0
        %7717 = vmatpush1.bf16.msra.mxu0 0
        %7718 = vmatprep.subr.bf16.mxu0 0
        %7719 = vmatpush1.bf16.msra.mxu0 0
        %7720 = vmatprep.subr.bf16.mxu0 0
        %7721 = vmatpush1.bf16.msra.mxu0 0
        %7722 = vmatprep.subr.bf16.mxu0 0
        %7723 = vmatpush1.bf16.msra.mxu0 0
        %7724 = vmatprep.subr.bf16.mxu0 0
        %7725 = vmatpush1.bf16.msra.mxu0 0
        %7726 = vmatprep.subr.bf16.mxu0 0
        %7727 = vmatpush1.bf16.msra.mxu0 0
        %7728 = vmatprep.subr.bf16.mxu0 0
        %7729 = vmatpush1.bf16.msra.mxu0 0
        %7730 = vmatprep.subr.bf16.mxu0 0
        %7731 = vmatpush1.bf16.msra.mxu0 0
        %7732 = vmatprep.subr.bf16.mxu0 0
        %7733 = vmatpush1.bf16.msra.mxu0 0
        %7734 = vmatprep.subr.bf16.mxu0 0
        %7735 = vmatpush1.bf16.msra.mxu0 0
        %7736 = vmatprep.subr.bf16.mxu0 0
        %7737 = vmatpush1.bf16.msra.mxu0 0
        %7738 = vmatprep.mubr.bf16.mxu0 0
        %7739 = vmatmul.mubr.bf16.gmra.mrb[0].mxu0 %v7686
        %v7740 = vpop.f32.mrb[0].mxu0
        %v7741 = vadd.f32 0.0, %v7740
        %v7742 = vpop.f32.mrb[0].mxu0
        %v7743 = vpop.f32.mrb[0].mxu0
        %v7744 = vadd.f32 0.0, %v7743
        %v7745 = vpop.f32.mrb[0].mxu0
        %7746 = vmatprep.mubr.bf16.mxu0 0
        %7747 = vmatmul.mubr.bf16.gmra.mrb[0].mxu0 %v7689
        %v7748 = vpop.f32.mrb[0].mxu0
        %v7749 = vadd.f32 0.0, %v7748
        %v7750 = vpop.f32.mrb[0].mxu0
        %v7751 = vpop.f32.mrb[0].mxu0
        %v7752 = vadd.f32 0.0, %v7751
        %v7753 = vpop.f32.mrb[0].mxu0
        %7754 = vmatprep.mubr.bf16.mxu0 0
        %7755 = vmatmul.mubr.bf16.gmra.mrb[0].mxu0 %v7692
        %v7756 = vpop.f32.mrb[0].mxu0
        %v7757 = vadd.f32 0.0, %v7756
        %v7758 = vpop.f32.mrb[0].mxu0
        %v7759 = vpop.f32.mrb[0].mxu0
        %v7760 = vadd.f32 0.0, %v7759
        %v7761 = vpop.f32.mrb[0].mxu0
        %7762 = vmatprep.mubr.bf16.mxu0 0
        %7763 = vmatmul.mubr.bf16.gmra.mrb[0].mxu0 %v7695
        %v7764 = vpop.f32.mrb[0].mxu0
        %v7765 = vadd.f32 0.0, %v7764
        %v7766 = vpop.f32.mrb[0].mxu0
        %v7767 = vpop.f32.mrb[0].mxu0
        %v7768 = vadd.f32 0.0, %v7767
        %v7769 = vpop.f32.mrb[0].mxu0
        %7770 = vmatprep.mubr.bf16.mxu0 0
        %7771 = vmatmul.mubr.bf16.gmra.mrb[0].mxu0 %v7698
        %v7772 = vpop.f32.mrb[0].mxu0
        %v7773 = vpop.f32.mrb[0].mxu0
        %v7774 = vpop.f32.mrb[0].mxu0
        %v7775 = vpop.f32.mrb[0].mxu0
        %7776 = vmatprep.mubr.bf16.mxu0 0
        %7777 = vmatmul.mubr.bf16.gmra.mrb[0].mxu0 %v7701
        %v7778 = vpop.f32.mrb[0].mxu0
        %v7779 = vpop.f32.mrb[0].mxu0
        %v7780 = vpop.f32.mrb[0].mxu0
        %v7781 = vpop.f32.mrb[0].mxu0
        %7782 = vmatprep.mubr.bf16.mxu0 0
        %7783 = vmatmul.mubr.bf16.gmra.mrb[0].mxu0 %v7704
        %v7784 = vpop.f32.mrb[0].mxu0
        %v7785 = vpop.f32.mrb[0].mxu0
        %v7786 = vpop.f32.mrb[0].mxu0
        %v7787 = vpop.f32.mrb[0].mxu0
        %7788 = vdwg.mxu0
        %v7789 = vadd.f32 %v7653, %v7741
        %v7790 = vadd.f32 %v7654, %v7744
        %v7791 = vadd.f32 %v7655, %v7749
        %v7792 = vadd.f32 %v7656, %v7752
        %v7793 = vadd.f32 %v7657, %v7757
        %v7794 = vadd.f32 %v7658, %v7760
        %v7795 = vadd.f32 %v7659, %v7765
        %v7796 = vadd.f32 %v7660, %v7768
        %v7797 = vpack.c.bf16 %v7519, %v7520
        %v7798 = vpack.c.bf16 %v7517, %v7518
        %v7799 = vpack.c.bf16 %v7515, %v7516
        %v7800 = vpack.c.bf16 %v7513, %v7514
        %v7801 = vpack.c.bf16 %v7511, %v7512
        %v7802 = vpack.c.bf16 %v7523, %v7524
        %v7803 = vpack.c.bf16 %v7521, %v7522
        %s7804 = scalar_lea.vmem %s4, 208
        %v7805 = vld [vmem:[%s7804] sm:$0xf]
        %v7806 = vld [vmem:[%s7804 + $0x4] sm:$0xf]
        %v7807 = vld [vmem:[%s7804 + $0x8] sm:$0xf]
        %v7808 = vld [vmem:[%s7804 + $0xc] sm:$0xf]
        %v7813 = vunpack.c.l.b16 %v7805
        %v7814 = vunpack.c.l.b16 %v7806
        %v7815 = vunpack.c.l.b16 %v7807
        %v7816 = vunpack.c.l.b16 %v7808
        %v7817 = vpack.c.b16 %v7814, %v7813
        %v7818 = vpack.c.b16 %v7816, %v7815
        %v7822 = vsel %vm5653, %v7797, 0
        %v7825 = vsel %vm5653, %v7798, 0
        %v7828 = vsel %vm5653, %v7799, 0
        %v7831 = vsel %vm5653, %v7800, 0
        %v7834 = vsel %vm5653, %v7801, 0
        %v7837 = vsel %vm5653, %v7802, 0
        %v7840 = vsel %vm5653, %v7803, 0
        %7842 = vmatprep.subr.bf16.mxu0 0
        %7843 = vmatpush1.bf16.msra.mxu0 %v7817
        %7844 = vmatprep.subr.bf16.mxu0 0
        %7845 = vmatpush1.bf16.msra.mxu0 %v7818
        %7846 = vmatprep.subr.bf16.mxu0 0
        %7847 = vmatpush1.bf16.msra.mxu0 0
        %7848 = vmatprep.subr.bf16.mxu0 0
        %7849 = vmatpush1.bf16.msra.mxu0 0
        %7850 = vmatprep.subr.bf16.mxu0 0
        %7851 = vmatpush1.bf16.msra.mxu0 0
        %7852 = vmatprep.subr.bf16.mxu0 0
        %7853 = vmatpush1.bf16.msra.mxu0 0
        %7854 = vmatprep.subr.bf16.mxu0 0
        %7855 = vmatpush1.bf16.msra.mxu0 0
        %7856 = vmatprep.subr.bf16.mxu0 0
        %7857 = vmatpush1.bf16.msra.mxu0 0
        %7858 = vmatprep.subr.bf16.mxu0 0
        %7859 = vmatpush1.bf16.msra.mxu0 0
        %7860 = vmatprep.subr.bf16.mxu0 0
        %7861 = vmatpush1.bf16.msra.mxu0 0
        %7862 = vmatprep.subr.bf16.mxu0 0
        %7863 = vmatpush1.bf16.msra.mxu0 0
        %7864 = vmatprep.subr.bf16.mxu0 0
        %7865 = vmatpush1.bf16.msra.mxu0 0
        %7866 = vmatprep.subr.bf16.mxu0 0
        %7867 = vmatpush1.bf16.msra.mxu0 0
        %7868 = vmatprep.subr.bf16.mxu0 0
        %7869 = vmatpush1.bf16.msra.mxu0 0
        %7870 = vmatprep.subr.bf16.mxu0 0
        %7871 = vmatpush1.bf16.msra.mxu0 0
        %7872 = vmatprep.subr.bf16.mxu0 0
        %7873 = vmatpush1.bf16.msra.mxu0 0
        %7874 = vmatprep.mubr.bf16.mxu0 0
        %7875 = vmatmul.mubr.bf16.gmra.mrb[0].mxu0 %v7822
        %v7876 = vpop.f32.mrb[0].mxu0
        %v7877 = vadd.f32 0.0, %v7876
        %v7878 = vpop.f32.mrb[0].mxu0
        %v7879 = vpop.f32.mrb[0].mxu0
        %v7880 = vadd.f32 0.0, %v7879
        %v7881 = vpop.f32.mrb[0].mxu0
        %7882 = vmatprep.mubr.bf16.mxu0 0
        %7883 = vmatmul.mubr.bf16.gmra.mrb[0].mxu0 %v7825
        %v7884 = vpop.f32.mrb[0].mxu0
        %v7885 = vadd.f32 0.0, %v7884
        %v7886 = vpop.f32.mrb[0].mxu0
        %v7887 = vpop.f32.mrb[0].mxu0
        %v7888 = vadd.f32 0.0, %v7887
        %v7889 = vpop.f32.mrb[0].mxu0
        %7890 = vmatprep.mubr.bf16.mxu0 0
        %7891 = vmatmul.mubr.bf16.gmra.mrb[0].mxu0 %v7828
        %v7892 = vpop.f32.mrb[0].mxu0
        %v7893 = vadd.f32 0.0, %v7892
        %v7894 = vpop.f32.mrb[0].mxu0
        %v7895 = vpop.f32.mrb[0].mxu0
        %v7896 = vadd.f32 0.0, %v7895
        %v7897 = vpop.f32.mrb[0].mxu0
        %7898 = vmatprep.mubr.bf16.mxu0 0
        %7899 = vmatmul.mubr.bf16.gmra.mrb[0].mxu0 %v7831
        %v7900 = vpop.f32.mrb[0].mxu0
        %v7901 = vadd.f32 0.0, %v7900
        %v7902 = vpop.f32.mrb[0].mxu0
        %v7903 = vpop.f32.mrb[0].mxu0
        %v7904 = vadd.f32 0.0, %v7903
        %v7905 = vpop.f32.mrb[0].mxu0
        %7906 = vmatprep.mubr.bf16.mxu0 0
        %7907 = vmatmul.mubr.bf16.gmra.mrb[0].mxu0 %v7834
        %v7908 = vpop.f32.mrb[0].mxu0
        %v7909 = vpop.f32.mrb[0].mxu0
        %v7910 = vpop.f32.mrb[0].mxu0
        %v7911 = vpop.f32.mrb[0].mxu0
        %7912 = vmatprep.mubr.bf16.mxu0 0
        %7913 = vmatmul.mubr.bf16.gmra.mrb[0].mxu0 %v7837
        %v7914 = vpop.f32.mrb[0].mxu0
        %v7915 = vpop.f32.mrb[0].mxu0
        %v7916 = vpop.f32.mrb[0].mxu0
        %v7917 = vpop.f32.mrb[0].mxu0
        %7918 = vmatprep.mubr.bf16.mxu0 0
        %7919 = vmatmul.mubr.bf16.gmra.mrb[0].mxu0 %v7840
        %v7920 = vpop.f32.mrb[0].mxu0
        %v7921 = vpop.f32.mrb[0].mxu0
        %v7922 = vpop.f32.mrb[0].mxu0
        %v7923 = vpop.f32.mrb[0].mxu0
        %7924 = vdwg.mxu0
        %v7925 = vadd.f32 %v7789, %v7877
        %v7926 = vadd.f32 %v7790, %v7880
        %v7927 = vadd.f32 %v7791, %v7885
        %v7928 = vadd.f32 %v7792, %v7888
        %v7929 = vadd.f32 %v7793, %v7893
        %v7930 = vadd.f32 %v7794, %v7896
        %v7931 = vadd.f32 %v7795, %v7901
        %v7932 = vadd.f32 %v7796, %v7904
        %s7933 = scalar_lea.vmem %s4, 224
        %v7934 = vld [vmem:[%s7933] sm:$0xf]
        %v7935 = vld [vmem:[%s7933 + $0x4] sm:$0xf]
        %v7936 = vld [vmem:[%s7933 + $0x8] sm:$0xf]
        %v7937 = vld [vmem:[%s7933 + $0xc] sm:$0xf]
        %v7942 = vunpack.c.l.b16 %v7934
        %v7943 = vunpack.c.l.b16 %v7935
        %v7944 = vunpack.c.l.b16 %v7936
        %v7945 = vunpack.c.l.b16 %v7937
        %v7946 = vpack.c.b16 %v7943, %v7942
        %v7947 = vpack.c.b16 %v7945, %v7944
        %7950 = vmatprep.subr.bf16.mxu0 0
        %7951 = vmatpush1.bf16.msra.mxu0 %v7946
        %7952 = vmatprep.subr.bf16.mxu0 0
        %7953 = vmatpush1.bf16.msra.mxu0 %v7947
        %7954 = vmatprep.subr.bf16.mxu0 0
        %7955 = vmatpush1.bf16.msra.mxu0 0
        %7956 = vmatprep.subr.bf16.mxu0 0
        %7957 = vmatpush1.bf16.msra.mxu0 0
        %7958 = vmatprep.subr.bf16.mxu0 0
        %7959 = vmatpush1.bf16.msra.mxu0 0
        %7960 = vmatprep.subr.bf16.mxu0 0
        %7961 = vmatpush1.bf16.msra.mxu0 0
        %7962 = vmatprep.subr.bf16.mxu0 0
        %7963 = vmatpush1.bf16.msra.mxu0 0
        %7964 = vmatprep.subr.bf16.mxu0 0
        %7965 = vmatpush1.bf16.msra.mxu0 0
        %7966 = vmatprep.subr.bf16.mxu0 0
        %7967 = vmatpush1.bf16.msra.mxu0 0
        %7968 = vmatprep.subr.bf16.mxu0 0
        %7969 = vmatpush1.bf16.msra.mxu0 0
        %7970 = vmatprep.subr.bf16.mxu0 0
        %7971 = vmatpush1.bf16.msra.mxu0 0
        %7972 = vmatprep.subr.bf16.mxu0 0
        %7973 = vmatpush1.bf16.msra.mxu0 0
        %7974 = vmatprep.subr.bf16.mxu0 0
        %7975 = vmatpush1.bf16.msra.mxu0 0
        %7976 = vmatprep.subr.bf16.mxu0 0
        %7977 = vmatpush1.bf16.msra.mxu0 0
        %7978 = vmatprep.subr.bf16.mxu0 0
        %7979 = vmatpush1.bf16.msra.mxu0 0
        %7980 = vmatprep.subr.bf16.mxu0 0
        %7981 = vmatpush1.bf16.msra.mxu0 0
        %7982 = vmatprep.mubr.bf16.mxu0 0
        %7983 = vmatmul.mubr.bf16.gmra.mrb[0].mxu0 %v6036
        %v7984 = vpop.f32.mrb[0].mxu0
        %v7985 = vadd.f32 0.0, %v7984
        %v7986 = vpop.f32.mrb[0].mxu0
        %v7987 = vpop.f32.mrb[0].mxu0
        %v7988 = vadd.f32 0.0, %v7987
        %v7989 = vpop.f32.mrb[0].mxu0
        %7990 = vmatprep.mubr.bf16.mxu0 0
        %7991 = vmatmul.mubr.bf16.gmra.mrb[0].mxu0 %v6039
        %v7992 = vpop.f32.mrb[0].mxu0
        %v7993 = vadd.f32 0.0, %v7992
        %v7994 = vpop.f32.mrb[0].mxu0
        %v7995 = vpop.f32.mrb[0].mxu0
        %v7996 = vadd.f32 0.0, %v7995
        %v7997 = vpop.f32.mrb[0].mxu0
        %7998 = vmatprep.mubr.bf16.mxu0 0
        %7999 = vmatmul.mubr.bf16.gmra.mrb[0].mxu0 %v6042
        %v8000 = vpop.f32.mrb[0].mxu0
        %v8001 = vadd.f32 0.0, %v8000
        %v8002 = vpop.f32.mrb[0].mxu0
        %v8003 = vpop.f32.mrb[0].mxu0
        %v8004 = vadd.f32 0.0, %v8003
        %v8005 = vpop.f32.mrb[0].mxu0
        %8006 = vmatprep.mubr.bf16.mxu0 0
        %8007 = vmatmul.mubr.bf16.gmra.mrb[0].mxu0 %v6045
        %v8008 = vpop.f32.mrb[0].mxu0
        %v8009 = vadd.f32 0.0, %v8008
        %v8010 = vpop.f32.mrb[0].mxu0
        %v8011 = vpop.f32.mrb[0].mxu0
        %v8012 = vadd.f32 0.0, %v8011
        %v8013 = vpop.f32.mrb[0].mxu0
        %8014 = vmatprep.mubr.bf16.mxu0 0
        %8015 = vmatmul.mubr.bf16.gmra.mrb[0].mxu0 %v6048
        %v8016 = vpop.f32.mrb[0].mxu0
        %v8017 = vpop.f32.mrb[0].mxu0
        %v8018 = vpop.f32.mrb[0].mxu0
        %v8019 = vpop.f32.mrb[0].mxu0
        %8020 = vmatprep.mubr.bf16.mxu0 0
        %8021 = vmatmul.mubr.bf16.gmra.mrb[0].mxu0 %v6030
        %v8022 = vpop.f32.mrb[0].mxu0
        %v8023 = vpop.f32.mrb[0].mxu0
        %v8024 = vpop.f32.mrb[0].mxu0
        %v8025 = vpop.f32.mrb[0].mxu0
        %8026 = vmatprep.mubr.bf16.mxu0 0
        %8027 = vmatmul.mubr.bf16.gmra.mrb[0].mxu0 %v6033
        %v8028 = vpop.f32.mrb[0].mxu0
        %v8029 = vpop.f32.mrb[0].mxu0
        %v8030 = vpop.f32.mrb[0].mxu0
        %v8031 = vpop.f32.mrb[0].mxu0
        %8032 = vdwg.mxu0
        %v8033 = vadd.f32 %v7925, %v7985
        %v8034 = vadd.f32 %v7926, %v7988
        %v8035 = vadd.f32 %v7927, %v7993
        %v8036 = vadd.f32 %v7928, %v7996
        %v8037 = vadd.f32 %v7929, %v8001
        %v8038 = vadd.f32 %v7930, %v8004
        %v8039 = vadd.f32 %v7931, %v8009
        %v8040 = vadd.f32 %v7932, %v8012
        %s8041 = scalar_lea.vmem %s4, 240
        %v8042 = vld [vmem:[%s8041] sm:$0xf]
        %v8043 = vld [vmem:[%s8041 + $0x4] sm:$0xf]
        %v8044 = vld [vmem:[%s8041 + $0x8] sm:$0xf]
        %v8045 = vld [vmem:[%s8041 + $0xc] sm:$0xf]
        %v8050 = vunpack.c.l.b16 %v8042
        %v8051 = vunpack.c.l.b16 %v8043
        %v8052 = vunpack.c.l.b16 %v8044
        %v8053 = vunpack.c.l.b16 %v8045
        %v8054 = vpack.c.b16 %v8051, %v8050
        %v8055 = vpack.c.b16 %v8053, %v8052
        %8058 = vmatprep.subr.bf16.mxu0 0
        %8059 = vmatpush1.bf16.msra.mxu0 %v8054
        %8060 = vmatprep.subr.bf16.mxu0 0
        %8061 = vmatpush1.bf16.msra.mxu0 %v8055
        %8062 = vmatprep.subr.bf16.mxu0 0
        %8063 = vmatpush1.bf16.msra.mxu0 0
        %8064 = vmatprep.subr.bf16.mxu0 0
        %8065 = vmatpush1.bf16.msra.mxu0 0
        %8066 = vmatprep.subr.bf16.mxu0 0
        %8067 = vmatpush1.bf16.msra.mxu0 0
        %8068 = vmatprep.subr.bf16.mxu0 0
        %8069 = vmatpush1.bf16.msra.mxu0 0
        %8070 = vmatprep.subr.bf16.mxu0 0
        %8071 = vmatpush1.bf16.msra.mxu0 0
        %8072 = vmatprep.subr.bf16.mxu0 0
        %8073 = vmatpush1.bf16.msra.mxu0 0
        %8074 = vmatprep.subr.bf16.mxu0 0
        %8075 = vmatpush1.bf16.msra.mxu0 0
        %8076 = vmatprep.subr.bf16.mxu0 0
        %8077 = vmatpush1.bf16.msra.mxu0 0
        %8078 = vmatprep.subr.bf16.mxu0 0
        %8079 = vmatpush1.bf16.msra.mxu0 0
        %8080 = vmatprep.subr.bf16.mxu0 0
        %8081 = vmatpush1.bf16.msra.mxu0 0
        %8082 = vmatprep.subr.bf16.mxu0 0
        %8083 = vmatpush1.bf16.msra.mxu0 0
        %8084 = vmatprep.subr.bf16.mxu0 0
        %8085 = vmatpush1.bf16.msra.mxu0 0
        %8086 = vmatprep.subr.bf16.mxu0 0
        %8087 = vmatpush1.bf16.msra.mxu0 0
        %8088 = vmatprep.subr.bf16.mxu0 0
        %8089 = vmatpush1.bf16.msra.mxu0 0
        %8090 = vmatprep.mubr.bf16.mxu0 0
        %8091 = vmatmul.mubr.bf16.gmra.mrb[0].mxu0 %v5920
        %v8092 = vpop.f32.mrb[0].mxu0
        %v8093 = vadd.f32 0.0, %v8092
        %v8094 = vpop.f32.mrb[0].mxu0
        %v8095 = vpop.f32.mrb[0].mxu0
        %v8096 = vadd.f32 0.0, %v8095
        %v8097 = vpop.f32.mrb[0].mxu0
        %8098 = vmatprep.mubr.bf16.mxu0 0
        %8099 = vmatmul.mubr.bf16.gmra.mrb[0].mxu0 %v5923
        %v8100 = vpop.f32.mrb[0].mxu0
        %v8101 = vadd.f32 0.0, %v8100
        %v8102 = vpop.f32.mrb[0].mxu0
        %v8103 = vpop.f32.mrb[0].mxu0
        %v8104 = vadd.f32 0.0, %v8103
        %v8105 = vpop.f32.mrb[0].mxu0
        %8106 = vmatprep.mubr.bf16.mxu0 0
        %8107 = vmatmul.mubr.bf16.gmra.mrb[0].mxu0 %v5926
        %v8108 = vpop.f32.mrb[0].mxu0
        %v8109 = vadd.f32 0.0, %v8108
        %v8110 = vpop.f32.mrb[0].mxu0
        %v8111 = vpop.f32.mrb[0].mxu0
        %v8112 = vadd.f32 0.0, %v8111
        %v8113 = vpop.f32.mrb[0].mxu0
        %8114 = vmatprep.mubr.bf16.mxu0 0
        %8115 = vmatmul.mubr.bf16.gmra.mrb[0].mxu0 %v5929
        %v8116 = vpop.f32.mrb[0].mxu0
        %v8117 = vadd.f32 0.0, %v8116
        %v8118 = vpop.f32.mrb[0].mxu0
        %v8119 = vpop.f32.mrb[0].mxu0
        %v8120 = vadd.f32 0.0, %v8119
        %v8121 = vpop.f32.mrb[0].mxu0
        %8122 = vmatprep.mubr.bf16.mxu0 0
        %8123 = vmatmul.mubr.bf16.gmra.mrb[0].mxu0 %v5932
        %v8124 = vpop.f32.mrb[0].mxu0
        %v8125 = vpop.f32.mrb[0].mxu0
        %v8126 = vpop.f32.mrb[0].mxu0
        %v8127 = vpop.f32.mrb[0].mxu0
        %8128 = vmatprep.mubr.bf16.mxu0 0
        %8129 = vmatmul.mubr.bf16.gmra.mrb[0].mxu0 %v5914
        %v8130 = vpop.f32.mrb[0].mxu0
        %v8131 = vpop.f32.mrb[0].mxu0
        %v8132 = vpop.f32.mrb[0].mxu0
        %v8133 = vpop.f32.mrb[0].mxu0
        %8134 = vmatprep.mubr.bf16.mxu0 0
        %8135 = vmatmul.mubr.bf16.gmra.mrb[0].mxu0 %v5917
        %v8136 = vpop.f32.mrb[0].mxu0
        %v8137 = vpop.f32.mrb[0].mxu0
        %v8138 = vpop.f32.mrb[0].mxu0
        %v8139 = vpop.f32.mrb[0].mxu0
        %8140 = vdwg.mxu0
        %v8141 = vadd.f32 %v8033, %v8093
        %v8142 = vadd.f32 %v8034, %v8096
        %v8143 = vadd.f32 %v8035, %v8101
        %v8144 = vadd.f32 %v8036, %v8104
        %v8145 = vadd.f32 %v8037, %v8109
        %v8146 = vadd.f32 %v8038, %v8112
        %v8147 = vadd.f32 %v8039, %v8117
        %v8148 = vadd.f32 %v8040, %v8120
        %v8149 = vrot.slane %v8141, 1
        %v8150 = vrot.slane %v8142, 1
        %v8151 = vrot.slane %v8143, 1
        %v8152 = vrot.slane %v8144, 1
        %v8153 = vrot.slane %v8145, 1
        %v8154 = vrot.slane %v8146, 1
        %v8155 = vrot.slane %v8147, 1
        %v8156 = vrot.slane %v8148, 1
        %v8157 = vsel %vm635, %v8155, %v8156
        %v8158 = vsel %vm635, %v8154, %v8155
        %v8159 = vsel %vm635, %v8153, %v8154
        %v8160 = vsel %vm635, %v8152, %v8153
        %v8161 = vsel %vm635, %v8151, %v8152
        %v8162 = vsel %vm635, %v8150, %v8151
        %v8163 = vsel %vm635, %v8149, %v8150
        %v8164 = vmax.f32 %v8141, %v8163
        %v8165 = vmax.f32 %v8142, %v8162
        %v8166 = vmax.f32 %v8143, %v8161
        %v8167 = vmax.f32 %v8144, %v8160
        %v8168 = vmax.f32 %v8145, %v8159
        %v8169 = vmax.f32 %v8146, %v8158
        %v8170 = vmax.f32 %v8147, %v8157
        %v8171 = vrot.slane %v8141, 2
        %v8172 = vrot.slane %v8142, 2
        %v8173 = vrot.slane %v8143, 2
        %v8174 = vrot.slane %v8144, 2
        %v8175 = vrot.slane %v8145, 2
        %v8176 = vrot.slane %v8146, 2
        %v8177 = vrot.slane %v8147, 2
        %v8178 = vsel %vm901, %v8176, %v8177
        %v8179 = vsel %vm901, %v8175, %v8176
        %v8180 = vsel %vm901, %v8174, %v8175
        %v8181 = vsel %vm901, %v8173, %v8174
        %v8182 = vsel %vm901, %v8172, %v8173
        %v8183 = vsel %vm901, %v8171, %v8172
        %v8184 = vmax.f32 %v8164, %v8183
        %v8185 = vmax.f32 %v8165, %v8182
        %v8186 = vmax.f32 %v8166, %v8181
        %v8187 = vmax.f32 %v8167, %v8180
        %v8188 = vmax.f32 %v8168, %v8179
        %v8189 = vmax.f32 %v8169, %v8178
        %v8190 = vrot.slane %v8165, 2
        %v8191 = vrot.slane %v8166, 2
        %v8192 = vrot.slane %v8167, 2
        %v8193 = vrot.slane %v8168, 2
        %v8194 = vrot.slane %v8169, 2
        %v8195 = vrot.slane %v8170, 2
        %v8196 = vsel %vm901, %v8194, %v8195
        %v8197 = vsel %vm901, %v8193, %v8194
        %v8198 = vsel %vm901, %v8192, %v8193
        %v8199 = vsel %vm901, %v8191, %v8192
        %v8200 = vsel %vm901, %v8190, %v8191
        %v8201 = vmax.f32 %v8164, %v8200
        %v8202 = vmax.f32 %v8165, %v8199
        %v8203 = vmax.f32 %v8166, %v8198
        %v8204 = vmax.f32 %v8167, %v8197
        %v8205 = vmax.f32 %v8168, %v8196
        %v8206 = vrot.slane %v8185, 2
        %v8207 = vrot.slane %v8186, 2
        %v8208 = vrot.slane %v8187, 2
        %v8209 = vrot.slane %v8188, 2
        %v8210 = vsel %vm901, %v8208, %v8209
        %v8211 = vsel %vm901, %v8206, %v8207
        %v8212 = vmax.f32 %v8184, %v8211
        %v8213 = vmax.f32 %v8186, %v8210
        %v8214 = vrot.slane %v8186, 4
        %v8215 = vrot.slane %v8187, 4
        %v8216 = vrot.slane %v8188, 4
        %v8217 = vrot.slane %v8189, 4
        %v8218 = vsel %vm1503, %v8216, %v8217
        %v8219 = vsel %vm1503, %v8214, %v8215
        %v8220 = vmax.f32 %v8212, %v8219
        %v8221 = vmax.f32 %v8213, %v8218
        %v8222 = vlaneseq
        %vm8223 = vcmp.ge.s32.totalorder %v8222, 0
        %vm8224 = vcmp.lt.s32.totalorder %v8222, 64
        %vm8225 = vmand %vm8223, %vm8224
        %8226 = vst.msk [vmem:[#allocation2] sm:$0x1] %vm8225, %v8201
        %v8229 = vunpack.c.l.s4 1966171168
        %v8230 = vunpack.c.0.s8 %v8229
        %v8231 = vlaneseq
        %v8232 = vshrl.u32 %v8231, 7
        %v8233 = vsub.s32 %v8230, %v8232
        %v8234 = vrot.slane %v8201, %v8233
        %v8235 = vcombine.high %v8234, %v8234
        %v8237 = vunpack.c.l.s4 1966171168
        %v8238 = vunpack.c.0.s8 %v8237
        %v8239 = vlaneseq
        %v8240 = vshrl.u32 %v8239, 7
        %v8241 = vsub.s32 %v8238, %v8240
        %v8242 = vrot.slane %v8234, %v8241
        %v8244 = vunpack.c.l.s4 1966171168
        %v8245 = vunpack.c.0.s8 %v8244
        %v8246 = vlaneseq
        %v8247 = vshrl.u32 %v8246, 7
        %v8248 = vsub.s32 %v8245, %v8247
        %v8249 = vrot.slane %v8235, %v8248
        %8250 = vrot.lane.b32.xlu0 %v8249, 64
        %v8251 = vpop.permute.xlu0 %8250
        %vm8253 = vcmp.ge.s32.totalorder %v8222, 64
        %vm8254 = vcmp.lt.s32.totalorder %v8222, 128
        %vm8255 = vmand %vm8253, %vm8254
        %8256 = vst.msk [vmem:[#allocation2] sm:$0x1] %vm8255, %v8251
        %v8257 = vcombine.high %v8242, %v8242
        %8259 = vst.msk [vmem:[#allocation2 + $0x1] sm:$0x1] %vm8225, %v8257
        %v8260 = vcombine.high %v8249, %v8249
        %8261 = vrot.lane.b32.xlu0 %v8260, 64
        %v8262 = vpop.permute.xlu0 %8261
        %8264 = vst.msk [vmem:[#allocation2 + $0x1] sm:$0x1] %vm8255, %v8262
        %v8267 = vunpack.c.l.s4 1966171168
        %v8268 = vunpack.c.0.s8 %v8267
        %v8269 = vlaneseq
        %v8270 = vshrl.u32 %v8269, 7
        %v8271 = vsub.s32 %v8268, %v8270
        %v8272 = vrot.slane %v8202, %v8271
        %v8274 = vunpack.c.l.s4 1966171168
        %v8275 = vunpack.c.0.s8 %v8274
        %v8276 = vlaneseq
        %v8277 = vshrl.u32 %v8276, 7
        %v8278 = vsub.s32 %v8275, %v8277
        %v8279 = vrot.slane %v8272, %v8278
        %v8280 = vcombine.high %v8279, %v8279
        %8282 = vst.msk [vmem:[#allocation2 + $0x2] sm:$0x1] %vm8225, %v8280
        %v8283 = vcombine.high %v8272, %v8272
        %v8285 = vunpack.c.l.s4 1966171168
        %v8286 = vunpack.c.0.s8 %v8285
        %v8287 = vlaneseq
        %v8288 = vshrl.u32 %v8287, 7
        %v8289 = vsub.s32 %v8286, %v8288
        %v8290 = vrot.slane %v8283, %v8289
        %v8291 = vcombine.high %v8290, %v8290
        %8292 = vrot.lane.b32.xlu0 %v8291, 64
        %v8293 = vpop.permute.xlu0 %8292
        %8295 = vst.msk [vmem:[#allocation2 + $0x2] sm:$0x1] %vm8255, %v8293
        %v8296 = vcombine.high %v8202, %v8202
        %v8298 = vunpack.c.l.s4 1966171168
        %v8299 = vunpack.c.0.s8 %v8298
        %v8300 = vlaneseq
        %v8301 = vshrl.u32 %v8300, 7
        %v8302 = vsub.s32 %v8299, %v8301
        %v8303 = vrot.slane %v8296, %v8302
        %v8305 = vunpack.c.l.s4 1966171168
        %v8306 = vunpack.c.0.s8 %v8305
        %v8307 = vlaneseq
        %v8308 = vshrl.u32 %v8307, 7
        %v8309 = vsub.s32 %v8306, %v8308
        %v8310 = vrot.slane %v8303, %v8309
        %8312 = vst.msk [vmem:[#allocation2 + $0x3] sm:$0x1] %vm8225, %v8310
        %v8313 = vcombine.high %v8303, %v8303
        %v8315 = vunpack.c.l.s4 1966171168
        %v8316 = vunpack.c.0.s8 %v8315
        %v8317 = vlaneseq
        %v8318 = vshrl.u32 %v8317, 7
        %v8319 = vsub.s32 %v8316, %v8318
        %v8320 = vrot.slane %v8313, %v8319
        %8321 = vrot.lane.b32.xlu0 %v8320, 64
        %v8322 = vpop.permute.xlu0 %8321
        %8324 = vst.msk [vmem:[#allocation2 + $0x3] sm:$0x1] %vm8255, %v8322
        %v8326 = vcombine.high %v8203, %v8203
        %v8328 = vunpack.c.l.s4 1966171168
        %v8329 = vunpack.c.0.s8 %v8328
        %v8330 = vlaneseq
        %v8331 = vshrl.u32 %v8330, 7
        %v8332 = vsub.s32 %v8329, %v8331
        %v8333 = vrot.slane %v8326, %v8332
        %v8335 = vunpack.c.l.s4 1966171168
        %v8336 = vunpack.c.0.s8 %v8335
        %v8337 = vlaneseq
        %v8338 = vshrl.u32 %v8337, 7
        %v8339 = vsub.s32 %v8336, %v8338
        %v8340 = vrot.slane %v8333, %v8339
        %8342 = vst.msk [vmem:[#allocation2 + $0x4] sm:$0x1] %vm8225, %v8340
        %v8343 = vcombine.high %v8333, %v8333
        %v8345 = vunpack.c.l.s4 1966171168
        %v8346 = vunpack.c.0.s8 %v8345
        %v8347 = vlaneseq
        %v8348 = vshrl.u32 %v8347, 7
        %v8349 = vsub.s32 %v8346, %v8348
        %v8350 = vrot.slane %v8343, %v8349
        %8351 = vrot.lane.b32.xlu0 %v8350, 64
        %v8352 = vpop.permute.xlu0 %8351
        %8354 = vst.msk [vmem:[#allocation2 + $0x4] sm:$0x1] %vm8255, %v8352
        %v8355 = vcombine.high %v8340, %v8340
        %8357 = vst.msk [vmem:[#allocation2 + $0x5] sm:$0x1] %vm8225, %v8355
        %v8358 = vcombine.high %v8350, %v8350
        %8359 = vrot.lane.b32.xlu0 %v8358, 64
        %v8360 = vpop.permute.xlu0 %8359
        %8362 = vst.msk [vmem:[#allocation2 + $0x5] sm:$0x1] %vm8255, %v8360
        %v8364 = vcombine.high %v8204, %v8204
        %v8366 = vunpack.c.l.s4 1966171168
        %v8367 = vunpack.c.0.s8 %v8366
        %v8368 = vlaneseq
        %v8369 = vshrl.u32 %v8368, 7
        %v8370 = vsub.s32 %v8367, %v8369
        %v8371 = vrot.slane %v8364, %v8370
        %v8373 = vunpack.c.l.s4 1966171168
        %v8374 = vunpack.c.0.s8 %v8373
        %v8375 = vlaneseq
        %v8376 = vshrl.u32 %v8375, 7
        %v8377 = vsub.s32 %v8374, %v8376
        %v8378 = vrot.slane %v8371, %v8377
        %v8379 = vcombine.high %v8378, %v8378
        %8381 = vst.msk [vmem:[#allocation2 + $0x6] sm:$0x1] %vm8225, %v8379
        %v8382 = vcombine.high %v8371, %v8371
        %v8384 = vunpack.c.l.s4 1966171168
        %v8385 = vunpack.c.0.s8 %v8384
        %v8386 = vlaneseq
        %v8387 = vshrl.u32 %v8386, 7
        %v8388 = vsub.s32 %v8385, %v8387
        %v8389 = vrot.slane %v8382, %v8388
        %v8390 = vcombine.high %v8389, %v8389
        %8391 = vrot.lane.b32.xlu0 %v8390, 64
        %v8392 = vpop.permute.xlu0 %8391
        %8394 = vst.msk [vmem:[#allocation2 + $0x6] sm:$0x1] %vm8255, %v8392
        %8395 = vst.msk [vmem:[#allocation2 + $0x7] sm:$0x1] %vm8225, %v8205
        %v8398 = vunpack.c.l.s4 1966171168
        %v8399 = vunpack.c.0.s8 %v8398
        %v8400 = vlaneseq
        %v8401 = vshrl.u32 %v8400, 7
        %v8402 = vsub.s32 %v8399, %v8401
        %v8403 = vrot.slane %v8205, %v8402
        %v8404 = vcombine.high %v8403, %v8403
        %v8406 = vunpack.c.l.s4 1966171168
        %v8407 = vunpack.c.0.s8 %v8406
        %v8408 = vlaneseq
        %v8409 = vshrl.u32 %v8408, 7
        %v8410 = vsub.s32 %v8407, %v8409
        %v8411 = vrot.slane %v8404, %v8410
        %8412 = vrot.lane.b32.xlu0 %v8411, 64
        %v8413 = vpop.permute.xlu0 %8412
        %8415 = vst.msk [vmem:[#allocation2 + $0x7] sm:$0x1] %vm8255, %v8413
        %8416 = vst.msk [vmem:[#allocation2 + $0x8] sm:$0x1] %vm8225, %v8220
        %v8419 = vunpack.c.l.s4 1966171168
        %v8420 = vunpack.c.0.s8 %v8419
        %v8421 = vlaneseq
        %v8422 = vshrl.u32 %v8421, 7
        %v8423 = vsub.s32 %v8420, %v8422
        %v8424 = vrot.slane %v8220, %v8423
        %v8426 = vunpack.c.l.s4 1966171168
        %v8427 = vunpack.c.0.s8 %v8426
        %v8428 = vlaneseq
        %v8429 = vshrl.u32 %v8428, 7
        %v8430 = vsub.s32 %v8427, %v8429
        %v8431 = vrot.slane %v8424, %v8430
        %v8432 = vcombine.high %v8431, %v8431
        %8433 = vrot.lane.b32.xlu0 %v8432, 64
        %v8434 = vpop.permute.xlu0 %8433
        %8436 = vst.msk [vmem:[#allocation2 + $0x8] sm:$0x1] %vm8255, %v8434
        %v8438 = vcombine.high %v8221, %v8221
        %v8440 = vunpack.c.l.s4 1966171168
        %v8441 = vunpack.c.0.s8 %v8440
        %v8442 = vlaneseq
        %v8443 = vshrl.u32 %v8442, 7
        %v8444 = vsub.s32 %v8441, %v8443
        %v8445 = vrot.slane %v8438, %v8444
        %v8447 = vunpack.c.l.s4 1966171168
        %v8448 = vunpack.c.0.s8 %v8447
        %v8449 = vlaneseq
        %v8450 = vshrl.u32 %v8449, 7
        %v8451 = vsub.s32 %v8448, %v8450
        %v8452 = vrot.slane %v8445, %v8451
        %8454 = vst.msk [vmem:[#allocation2 + $0x9] sm:$0x1] %vm8225, %v8452
        %v8455 = vcombine.high %v8452, %v8452
        %8456 = vrot.lane.b32.xlu0 %v8455, 64
        %v8457 = vpop.permute.xlu0 %8456
        %8459 = vst.msk [vmem:[#allocation2 + $0x9] sm:$0x1] %vm8255, %v8457
        %v8460 = vrot.slane %v8220, 2
        %v8462 = vmax.f32 %v8220, %v8460
        %v8463 = vrot.slane %v8221, 2
        %v8465 = vmax.f32 %v8221, %v8463
        %v8467 = vrot.slane %v8465, 4
        %v8469 = vmax.f32 %v8462, %v8467
        %8470 = vst.msk [vmem:[#allocation2 + $0xa] sm:$0x1] %vm8225, %v8469
        %v8471 = vld [vmem:[#allocation2] sm:$0xff]
        %v8472 = vld [vmem:[#allocation2 + $0x8] sm:$0x7]
        %v8475 = vlaneseq
        %v8476 = vshrl.u32 %v8475, 7
        %v8477 = vsub.s32 0, %v8476
        %v8478 = vrot.slane %v8471, %v8477
        %v8479 = vlaneseq
        %v8480 = vshrl.u32 %v8479, 7
        %v8481 = vsub.s32 1, %v8480
        %v8482 = vrot.slane %v8471, %v8481
        %v8483 = vlaneseq
        %v8484 = vshrl.u32 %v8483, 7
        %v8485 = vsub.s32 2, %v8484
        %v8486 = vrot.slane %v8471, %v8485
        %v8487 = vlaneseq
        %v8488 = vshrl.u32 %v8487, 7
        %v8489 = vsub.s32 3, %v8488
        %v8490 = vrot.slane %v8471, %v8489
        %v8491 = vlaneseq
        %v8492 = vshrl.u32 %v8491, 7
        %v8493 = vsub.s32 4, %v8492
        %v8494 = vrot.slane %v8471, %v8493
        %v8495 = vlaneseq
        %v8496 = vshrl.u32 %v8495, 7
        %v8497 = vsub.s32 5, %v8496
        %v8498 = vrot.slane %v8471, %v8497
        %v8499 = vlaneseq
        %v8500 = vshrl.u32 %v8499, 7
        %v8501 = vsub.s32 6, %v8500
        %v8502 = vrot.slane %v8471, %v8501
        %v8503 = vlaneseq
        %v8504 = vshrl.u32 %v8503, 7
        %v8505 = vsub.s32 7, %v8504
        %v8506 = vrot.slane %v8471, %v8505
        %v8507 = vlaneseq
        %v8508 = vshrl.u32 %v8507, 7
        %v8509 = vsub.s32 0, %v8508
        %v8510 = vrot.slane %v8472, %v8509
        %v8511 = vlaneseq
        %v8512 = vshrl.u32 %v8511, 7
        %v8513 = vsub.s32 1, %v8512
        %v8514 = vrot.slane %v8472, %v8513
        %v8515 = vlaneseq
        %v8516 = vshrl.u32 %v8515, 7
        %v8517 = vsub.s32 2, %v8516
        %v8518 = vrot.slane %v8472, %v8517
        %v8530 = vpack.c.bf16 %v8478, %v8478
        %v8531 = vpack.c.bf16 %v8482, %v8482
        %v8532 = vpack.c.bf16 %v8486, %v8486
        %v8533 = vpack.c.bf16 %v8490, %v8490
        %v8534 = vpack.c.bf16 %v8494, %v8494
        %v8535 = vpack.c.bf16 %v8498, %v8498
        %v8536 = vpack.c.bf16 %v8502, %v8502
        %v8537 = vpack.c.bf16 %v8506, %v8506
        %v8538 = vpack.c.bf16 %v8510, %v8510
        %v8539 = vpack.c.bf16 %v8514, %v8514
        %v8540 = vpack.c.bf16 %v8518, %v8518
        %v8541 = vld [vmem:[%s5] sm:$0xf]
        %v8542 = vld [vmem:[%s5 + $0x4] sm:$0xf]
        %v8543 = vld [vmem:[%s5 + $0x8] sm:$0xf]
        %v8544 = vld [vmem:[%s5 + $0xc] sm:$0xf]
        %v8545 = vld [vmem:[%s5 + $0x10] sm:$0xf]
        %v8546 = vld [vmem:[%s5 + $0x14] sm:$0xf]
        %v8547 = vld [vmem:[%s5 + $0x18] sm:$0xf]
        %v8548 = vld [vmem:[%s5 + $0x1c] sm:$0xf]
        %v8549 = vld [vmem:[%s5 + $0x20] sm:$0xf]
        %v8550 = vld [vmem:[%s5 + $0x24] sm:$0xf]
        %v8551 = vld [vmem:[%s5 + $0x28] sm:$0xf]
        %v8552 = vld [vmem:[%s5 + $0x2c] sm:$0xf]
        %v8553 = vld [vmem:[%s5 + $0x30] sm:$0xf]
        %v8554 = vld [vmem:[%s5 + $0x34] sm:$0xf]
        %v8555 = vld [vmem:[%s5 + $0x38] sm:$0xf]
        %v8556 = vld [vmem:[%s5 + $0x3c] sm:$0xf]
        %v8557 = vld [vmem:[%s5 + $0x40] sm:$0xf]
        %v8558 = vld [vmem:[%s5 + $0x44] sm:$0xf]
        %v8559 = vld [vmem:[%s5 + $0x48] sm:$0xf]
        %v8560 = vld [vmem:[%s5 + $0x4c] sm:$0xf]
        %v8561 = vld [vmem:[%s5 + $0x50] sm:$0xf]
        %v8562 = vld [vmem:[%s5 + $0x54] sm:$0xf]
        %v8563 = vld [vmem:[%s5 + $0x58] sm:$0xf]
        %v8564 = vld [vmem:[%s5 + $0x5c] sm:$0xf]
        %v8565 = vld [vmem:[%s5 + $0x60] sm:$0xf]
        %v8566 = vld [vmem:[%s5 + $0x64] sm:$0xf]
        %v8567 = vld [vmem:[%s5 + $0x68] sm:$0xf]
        %v8568 = vld [vmem:[%s5 + $0x6c] sm:$0xf]
        %v8569 = vld [vmem:[%s5 + $0x70] sm:$0xf]
        %v8570 = vld [vmem:[%s5 + $0x74] sm:$0xf]
        %v8571 = vld [vmem:[%s5 + $0x78] sm:$0xf]
        %v8572 = vld [vmem:[%s5 + $0x7c] sm:$0xf]
        %v8573 = vld [vmem:[%s5 + $0x80] sm:$0xf]
        %v8574 = vld [vmem:[%s5 + $0x84] sm:$0xf]
        %v8575 = vld [vmem:[%s5 + $0x88] sm:$0xf]
        %v8576 = vld [vmem:[%s5 + $0x8c] sm:$0xf]
        %v8577 = vld [vmem:[%s5 + $0x90] sm:$0xf]
        %v8578 = vld [vmem:[%s5 + $0x94] sm:$0xf]
        %v8579 = vld [vmem:[%s5 + $0x98] sm:$0xf]
        %v8580 = vld [vmem:[%s5 + $0x9c] sm:$0xf]
        %v8581 = vld [vmem:[%s5 + $0xa0] sm:$0xf]
        %v8582 = vld [vmem:[%s5 + $0xa4] sm:$0xf]
        %v8583 = vld [vmem:[%s5 + $0xa8] sm:$0xf]
        %v8584 = vld [vmem:[%s5 + $0xac] sm:$0xf]
        %v8585 = vld [vmem:[%s5 + $0xb0] sm:$0xf]
        %v8586 = vld [vmem:[%s5 + $0xb4] sm:$0xf]
        %v8587 = vld [vmem:[%s5 + $0xb8] sm:$0xf]
        %v8588 = vld [vmem:[%s5 + $0xbc] sm:$0xf]
        %v8589 = vld [vmem:[%s5 + $0xc0] sm:$0xf]
        %v8590 = vld [vmem:[%s5 + $0xc4] sm:$0xf]
        %v8591 = vld [vmem:[%s5 + $0xc8] sm:$0xf]
        %v8592 = vld [vmem:[%s5 + $0xcc] sm:$0xf]
        %v8593 = vld [vmem:[%s5 + $0xd0] sm:$0xf]
        %v8594 = vld [vmem:[%s5 + $0xd4] sm:$0xf]
        %v8595 = vld [vmem:[%s5 + $0xd8] sm:$0xf]
        %v8596 = vld [vmem:[%s5 + $0xdc] sm:$0xf]
        %v8597 = vld [vmem:[%s5 + $0xe0] sm:$0xf]
        %v8598 = vld [vmem:[%s5 + $0xe4] sm:$0xf]
        %v8599 = vld [vmem:[%s5 + $0xe8] sm:$0xf]
        %v8600 = vld [vmem:[%s5 + $0xec] sm:$0xf]
        %v8601 = vld [vmem:[%s5 + $0xf0] sm:$0xf]
        %v8602 = vld [vmem:[%s5 + $0xf4] sm:$0xf]
        %v8603 = vld [vmem:[%s5 + $0xf8] sm:$0xf]
        %v8604 = vld [vmem:[%s5 + $0xfc] sm:$0xf]
        %v8605 = vld [vmem:[%s5 + $0x100] sm:$0xf]
        %v8606 = vld [vmem:[%s5 + $0x104] sm:$0xf]
        %v8607 = vld [vmem:[%s5 + $0x108] sm:$0xf]
        %v8608 = vld [vmem:[%s5 + $0x10c] sm:$0xf]
        %v8609 = vld [vmem:[%s5 + $0x110] sm:$0xf]
        %v8610 = vld [vmem:[%s5 + $0x114] sm:$0xf]
        %v8611 = vld [vmem:[%s5 + $0x118] sm:$0xf]
        %v8612 = vld [vmem:[%s5 + $0x11c] sm:$0xf]
        %v8613 = vld [vmem:[%s5 + $0x120] sm:$0xf]
        %v8614 = vld [vmem:[%s5 + $0x124] sm:$0xf]
        %v8615 = vld [vmem:[%s5 + $0x128] sm:$0xf]
        %v8616 = vld [vmem:[%s5 + $0x12c] sm:$0xf]
        %v8617 = vld [vmem:[%s5 + $0x130] sm:$0xf]
        %v8618 = vld [vmem:[%s5 + $0x134] sm:$0xf]
        %v8619 = vld [vmem:[%s5 + $0x138] sm:$0xf]
        %v8620 = vld [vmem:[%s5 + $0x13c] sm:$0xf]
        %v8621 = vld [vmem:[%s5 + $0x140] sm:$0xf]
        %v8622 = vld [vmem:[%s5 + $0x144] sm:$0xf]
        %v8623 = vld [vmem:[%s5 + $0x148] sm:$0xf]
        %v8624 = vld [vmem:[%s5 + $0x14c] sm:$0xf]
        %v8625 = vld [vmem:[%s5 + $0x150] sm:$0xf]
        %v8626 = vld [vmem:[%s5 + $0x154] sm:$0xf]
        %v8627 = vld [vmem:[%s5 + $0x158] sm:$0xf]
        %v8628 = vld [vmem:[%s5 + $0x15c] sm:$0xf]
        %v8629 = vld [vmem:[%s5 + $0x160] sm:$0xf]
        %v8630 = vld [vmem:[%s5 + $0x164] sm:$0xf]
        %v8631 = vld [vmem:[%s5 + $0x168] sm:$0xf]
        %v8632 = vld [vmem:[%s5 + $0x16c] sm:$0xf]
        %v8633 = vld [vmem:[%s5 + $0x170] sm:$0xf]
        %v8634 = vld [vmem:[%s5 + $0x174] sm:$0xf]
        %v8635 = vld [vmem:[%s5 + $0x178] sm:$0xf]
        %v8636 = vld [vmem:[%s5 + $0x17c] sm:$0xf]
        %v8637 = vld [vmem:[%s5 + $0x180] sm:$0xf]
        %v8638 = vld [vmem:[%s5 + $0x184] sm:$0xf]
        %v8639 = vld [vmem:[%s5 + $0x188] sm:$0xf]
        %v8640 = vld [vmem:[%s5 + $0x18c] sm:$0xf]
        %v8641 = vld [vmem:[%s5 + $0x190] sm:$0xf]
        %v8642 = vld [vmem:[%s5 + $0x194] sm:$0xf]
        %v8643 = vld [vmem:[%s5 + $0x198] sm:$0xf]
        %v8644 = vld [vmem:[%s5 + $0x19c] sm:$0xf]
        %v8645 = vld [vmem:[%s5 + $0x1a0] sm:$0xf]
        %v8646 = vld [vmem:[%s5 + $0x1a4] sm:$0xf]
        %v8647 = vld [vmem:[%s5 + $0x1a8] sm:$0xf]
        %v8648 = vld [vmem:[%s5 + $0x1ac] sm:$0xf]
        %v8649 = vld [vmem:[%s5 + $0x1b0] sm:$0xf]
        %v8650 = vld [vmem:[%s5 + $0x1b4] sm:$0xf]
        %v8651 = vld [vmem:[%s5 + $0x1b8] sm:$0xf]
        %v8652 = vld [vmem:[%s5 + $0x1bc] sm:$0xf]
        %v8653 = vld [vmem:[%s5 + $0x1c0] sm:$0xf]
        %v8654 = vld [vmem:[%s5 + $0x1c4] sm:$0xf]
        %v8655 = vld [vmem:[%s5 + $0x1c8] sm:$0xf]
        %v8656 = vld [vmem:[%s5 + $0x1cc] sm:$0xf]
        %v8657 = vld [vmem:[%s5 + $0x1d0] sm:$0xf]
        %v8658 = vld [vmem:[%s5 + $0x1d4] sm:$0xf]
        %v8659 = vld [vmem:[%s5 + $0x1d8] sm:$0xf]
        %v8660 = vld [vmem:[%s5 + $0x1dc] sm:$0xf]
        %v8661 = vld [vmem:[%s5 + $0x1e0] sm:$0xf]
        %v8662 = vld [vmem:[%s5 + $0x1e4] sm:$0xf]
        %v8663 = vld [vmem:[%s5 + $0x1e8] sm:$0xf]
        %v8664 = vld [vmem:[%s5 + $0x1ec] sm:$0xf]
        %v8665 = vld [vmem:[%s5 + $0x1f0] sm:$0xf]
        %v8666 = vld [vmem:[%s5 + $0x1f4] sm:$0xf]
        %v8667 = vld [vmem:[%s5 + $0x1f8] sm:$0xf]
        %v8668 = vld [vmem:[%s5 + $0x1fc] sm:$0xf]
        %v8669 = vld [vmem:[%s5 + $0x200] sm:$0xf]
        %v8670 = vld [vmem:[%s5 + $0x204] sm:$0xf]
        %v8671 = vld [vmem:[%s5 + $0x208] sm:$0xf]
        %v8672 = vld [vmem:[%s5 + $0x20c] sm:$0xf]
        %v8673 = vld [vmem:[%s5 + $0x210] sm:$0xf]
        %v8674 = vld [vmem:[%s5 + $0x214] sm:$0xf]
        %v8675 = vld [vmem:[%s5 + $0x218] sm:$0xf]
        %v8676 = vld [vmem:[%s5 + $0x21c] sm:$0xf]
        %v8677 = vld [vmem:[%s5 + $0x220] sm:$0xf]
        %v8678 = vld [vmem:[%s5 + $0x224] sm:$0xf]
        %v8679 = vld [vmem:[%s5 + $0x228] sm:$0xf]
        %v8680 = vld [vmem:[%s5 + $0x22c] sm:$0xf]
        %v8681 = vld [vmem:[%s5 + $0x230] sm:$0xf]
        %v8682 = vld [vmem:[%s5 + $0x234] sm:$0xf]
        %v8683 = vld [vmem:[%s5 + $0x238] sm:$0xf]
        %v8684 = vld [vmem:[%s5 + $0x23c] sm:$0xf]
        %v8685 = vld [vmem:[%s5 + $0x240] sm:$0xf]
        %v8686 = vld [vmem:[%s5 + $0x244] sm:$0xf]
        %v8687 = vld [vmem:[%s5 + $0x248] sm:$0xf]
        %v8688 = vld [vmem:[%s5 + $0x24c] sm:$0xf]
        %v8689 = vld [vmem:[%s5 + $0x250] sm:$0xf]
        %v8690 = vld [vmem:[%s5 + $0x254] sm:$0xf]
        %v8691 = vld [vmem:[%s5 + $0x258] sm:$0xf]
        %v8692 = vld [vmem:[%s5 + $0x25c] sm:$0xf]
        %v8693 = vld [vmem:[%s5 + $0x260] sm:$0xf]
        %v8694 = vld [vmem:[%s5 + $0x264] sm:$0xf]
        %v8695 = vld [vmem:[%s5 + $0x268] sm:$0xf]
        %v8696 = vld [vmem:[%s5 + $0x26c] sm:$0xf]
        %v8697 = vld [vmem:[%s5 + $0x270] sm:$0xf]
        %v8698 = vld [vmem:[%s5 + $0x274] sm:$0xf]
        %v8699 = vld [vmem:[%s5 + $0x278] sm:$0xf]
        %v8700 = vld [vmem:[%s5 + $0x27c] sm:$0xf]
        %v8701 = vld [vmem:[%s5 + $0x280] sm:$0xf]
        %v8702 = vld [vmem:[%s5 + $0x284] sm:$0xf]
        %v8703 = vld [vmem:[%s5 + $0x288] sm:$0xf]
        %v8704 = vld [vmem:[%s5 + $0x28c] sm:$0xf]
        %v8705 = vld [vmem:[%s5 + $0x290] sm:$0xf]
        %v8706 = vld [vmem:[%s5 + $0x294] sm:$0xf]
        %v8707 = vld [vmem:[%s5 + $0x298] sm:$0xf]
        %v8708 = vld [vmem:[%s5 + $0x29c] sm:$0xf]
        %v8709 = vld [vmem:[%s6] sm:$0x1]
        %v8878 = vunpack.c.l.b16 %v8541
        %v8879 = vunpack.c.l.b16 %v8542
        %v8880 = vunpack.c.l.b16 %v8543
        %v8881 = vunpack.c.l.b16 %v8544
        %v8882 = vunpack.c.l.b16 %v8545
        %v8883 = vunpack.c.l.b16 %v8546
        %v8884 = vunpack.c.l.b16 %v8547
        %v8885 = vunpack.c.l.b16 %v8548
        %v8886 = vunpack.c.l.b16 %v8549
        %v8887 = vunpack.c.l.b16 %v8550
        %v8888 = vunpack.c.l.b16 %v8551
        %v8889 = vunpack.c.l.b16 %v8552
        %v8890 = vunpack.c.l.b16 %v8553
        %v8891 = vunpack.c.l.b16 %v8554
        %v8892 = vunpack.c.l.b16 %v8555
        %v8893 = vunpack.c.l.b16 %v8556
        %v8894 = vunpack.c.l.b16 %v8557
        %v8895 = vunpack.c.l.b16 %v8558
        %v8896 = vunpack.c.l.b16 %v8559
        %v8897 = vunpack.c.l.b16 %v8560
        %v8898 = vunpack.c.l.b16 %v8561
        %v8899 = vunpack.c.l.b16 %v8562
        %v8900 = vunpack.c.l.b16 %v8563
        %v8901 = vunpack.c.l.b16 %v8564
        %v8902 = vunpack.c.l.b16 %v8565
        %v8903 = vunpack.c.l.b16 %v8566
        %v8904 = vunpack.c.l.b16 %v8567
        %v8905 = vunpack.c.l.b16 %v8568
        %v8906 = vunpack.c.l.b16 %v8569
        %v8907 = vunpack.c.l.b16 %v8570
        %v8908 = vunpack.c.l.b16 %v8571
        %v8909 = vunpack.c.l.b16 %v8572
        %v8910 = vunpack.c.l.b16 %v8573
        %v8911 = vunpack.c.l.b16 %v8574
        %v8912 = vunpack.c.l.b16 %v8575
        %v8913 = vunpack.c.l.b16 %v8576
        %v8914 = vunpack.c.l.b16 %v8577
        %v8915 = vunpack.c.l.b16 %v8578
        %v8916 = vunpack.c.l.b16 %v8579
        %v8917 = vunpack.c.l.b16 %v8580
        %v8918 = vunpack.c.l.b16 %v8581
        %v8919 = vunpack.c.l.b16 %v8582
        %v8920 = vunpack.c.l.b16 %v8583
        %v8921 = vunpack.c.l.b16 %v8584
        %v8922 = vunpack.c.l.b16 %v8585
        %v8923 = vunpack.c.l.b16 %v8586
        %v8924 = vunpack.c.l.b16 %v8587
        %v8925 = vunpack.c.l.b16 %v8588
        %v8926 = vunpack.c.l.b16 %v8589
        %v8927 = vunpack.c.l.b16 %v8590
        %v8928 = vunpack.c.l.b16 %v8591
        %v8929 = vunpack.c.l.b16 %v8592
        %v8930 = vunpack.c.l.b16 %v8593
        %v8931 = vunpack.c.l.b16 %v8594
        %v8932 = vunpack.c.l.b16 %v8595
        %v8933 = vunpack.c.l.b16 %v8596
        %v8934 = vunpack.c.l.b16 %v8597
        %v8935 = vunpack.c.l.b16 %v8598
        %v8936 = vunpack.c.l.b16 %v8599
        %v8937 = vunpack.c.l.b16 %v8600
        %v8938 = vunpack.c.l.b16 %v8601
        %v8939 = vunpack.c.l.b16 %v8602
        %v8940 = vunpack.c.l.b16 %v8603
        %v8941 = vunpack.c.l.b16 %v8604
        %v8942 = vunpack.c.l.b16 %v8605
        %v8943 = vunpack.c.l.b16 %v8606
        %v8944 = vunpack.c.l.b16 %v8607
        %v8945 = vunpack.c.l.b16 %v8608
        %v8946 = vunpack.c.l.b16 %v8609
        %v8947 = vunpack.c.l.b16 %v8610
        %v8948 = vunpack.c.l.b16 %v8611
        %v8949 = vunpack.c.l.b16 %v8612
        %v8950 = vunpack.c.l.b16 %v8613
        %v8951 = vunpack.c.l.b16 %v8614
        %v8952 = vunpack.c.l.b16 %v8615
        %v8953 = vunpack.c.l.b16 %v8616
        %v8954 = vunpack.c.l.b16 %v8617
        %v8955 = vunpack.c.l.b16 %v8618
        %v8956 = vunpack.c.l.b16 %v8619
        %v8957 = vunpack.c.l.b16 %v8620
        %v8958 = vunpack.c.l.b16 %v8621
        %v8959 = vunpack.c.l.b16 %v8622
        %v8960 = vunpack.c.l.b16 %v8623
        %v8961 = vunpack.c.l.b16 %v8624
        %v8962 = vunpack.c.l.b16 %v8625
        %v8963 = vunpack.c.l.b16 %v8626
        %v8964 = vunpack.c.l.b16 %v8627
        %v8965 = vunpack.c.l.b16 %v8628
        %v8966 = vunpack.c.l.b16 %v8629
        %v8967 = vunpack.c.l.b16 %v8630
        %v8968 = vunpack.c.l.b16 %v8631
        %v8969 = vunpack.c.l.b16 %v8632
        %v8970 = vunpack.c.l.b16 %v8633
        %v8971 = vunpack.c.l.b16 %v8634
        %v8972 = vunpack.c.l.b16 %v8635
        %v8973 = vunpack.c.l.b16 %v8636
        %v8974 = vunpack.c.l.b16 %v8637
        %v8975 = vunpack.c.l.b16 %v8638
        %v8976 = vunpack.c.l.b16 %v8639
        %v8977 = vunpack.c.l.b16 %v8640
        %v8978 = vunpack.c.l.b16 %v8641
        %v8979 = vunpack.c.l.b16 %v8642
        %v8980 = vunpack.c.l.b16 %v8643
        %v8981 = vunpack.c.l.b16 %v8644
        %v8982 = vunpack.c.l.b16 %v8645
        %v8983 = vunpack.c.l.b16 %v8646
        %v8984 = vunpack.c.l.b16 %v8647
        %v8985 = vunpack.c.l.b16 %v8648
        %v8986 = vunpack.c.l.b16 %v8649
        %v8987 = vunpack.c.l.b16 %v8650
        %v8988 = vunpack.c.l.b16 %v8651
        %v8989 = vunpack.c.l.b16 %v8652
        %v8990 = vunpack.c.l.b16 %v8653
        %v8991 = vunpack.c.l.b16 %v8654
        %v8992 = vunpack.c.l.b16 %v8655
        %v8993 = vunpack.c.l.b16 %v8656
        %v8994 = vunpack.c.l.b16 %v8657
        %v8995 = vunpack.c.l.b16 %v8658
        %v8996 = vunpack.c.l.b16 %v8659
        %v8997 = vunpack.c.l.b16 %v8660
        %v8998 = vunpack.c.l.b16 %v8661
        %v8999 = vunpack.c.l.b16 %v8662
        %v9000 = vunpack.c.l.b16 %v8663
        %v9001 = vunpack.c.l.b16 %v8664
        %v9002 = vunpack.c.l.b16 %v8665
        %v9003 = vunpack.c.l.b16 %v8666
        %v9004 = vunpack.c.l.b16 %v8667
        %v9005 = vunpack.c.l.b16 %v8668
        %v9006 = vunpack.c.l.b16 %v8669
        %v9007 = vunpack.c.l.b16 %v8670
        %v9008 = vunpack.c.l.b16 %v8671
        %v9009 = vunpack.c.l.b16 %v8672
        %v9010 = vunpack.c.l.b16 %v8673
        %v9011 = vunpack.c.l.b16 %v8674
        %v9012 = vunpack.c.l.b16 %v8675
        %v9013 = vunpack.c.l.b16 %v8676
        %v9014 = vunpack.c.l.b16 %v8677
        %v9015 = vunpack.c.l.b16 %v8678
        %v9016 = vunpack.c.l.b16 %v8679
        %v9017 = vunpack.c.l.b16 %v8680
        %v9018 = vunpack.c.l.b16 %v8681
        %v9019 = vunpack.c.l.b16 %v8682
        %v9020 = vunpack.c.l.b16 %v8683
        %v9021 = vunpack.c.l.b16 %v8684
        %v9022 = vunpack.c.l.b16 %v8685
        %v9023 = vunpack.c.l.b16 %v8686
        %v9024 = vunpack.c.l.b16 %v8687
        %v9025 = vunpack.c.l.b16 %v8688
        %v9026 = vunpack.c.l.b16 %v8689
        %v9027 = vunpack.c.l.b16 %v8690
        %v9028 = vunpack.c.l.b16 %v8691
        %v9029 = vunpack.c.l.b16 %v8692
        %v9030 = vunpack.c.l.b16 %v8693
        %v9031 = vunpack.c.l.b16 %v8694
        %v9032 = vunpack.c.l.b16 %v8695
        %v9033 = vunpack.c.l.b16 %v8696
        %v9034 = vunpack.c.l.b16 %v8697
        %v9035 = vunpack.c.l.b16 %v8698
        %v9036 = vunpack.c.l.b16 %v8699
        %v9037 = vunpack.c.l.b16 %v8700
        %v9038 = vunpack.c.l.b16 %v8701
        %v9039 = vunpack.c.l.b16 %v8702
        %v9040 = vunpack.c.l.b16 %v8703
        %v9041 = vunpack.c.l.b16 %v8704
        %v9042 = vunpack.c.l.b16 %v8705
        %v9043 = vunpack.c.l.b16 %v8706
        %v9044 = vunpack.c.l.b16 %v8707
        %v9045 = vunpack.c.l.b16 %v8708
        %v9046 = vpack.c.b16 %v8879, %v8878
        %v9047 = vpack.c.b16 %v8881, %v8880
        %v9048 = vpack.c.b16 %v8883, %v8882
        %v9049 = vpack.c.b16 %v8885, %v8884
        %v9050 = vpack.c.b16 %v8887, %v8886
        %v9051 = vpack.c.b16 %v8889, %v8888
        %v9052 = vpack.c.b16 %v8891, %v8890
        %v9053 = vpack.c.b16 %v8893, %v8892
        %v9054 = vpack.c.b16 %v8895, %v8894
        %v9055 = vpack.c.b16 %v8897, %v8896
        %v9056 = vpack.c.b16 %v8899, %v8898
        %v9057 = vpack.c.b16 %v8901, %v8900
        %v9058 = vpack.c.b16 %v8903, %v8902
        %v9059 = vpack.c.b16 %v8905, %v8904
        %v9060 = vpack.c.b16 %v8907, %v8906
        %v9061 = vpack.c.b16 %v8909, %v8908
        %v9062 = vpack.c.b16 %v8911, %v8910
        %v9063 = vpack.c.b16 %v8913, %v8912
        %v9064 = vpack.c.b16 %v8915, %v8914
        %v9065 = vpack.c.b16 %v8917, %v8916
        %v9066 = vpack.c.b16 %v8919, %v8918
        %v9067 = vpack.c.b16 %v8921, %v8920
        %v9068 = vpack.c.b16 %v8923, %v8922
        %v9069 = vpack.c.b16 %v8925, %v8924
        %v9070 = vpack.c.b16 %v8927, %v8926
        %v9071 = vpack.c.b16 %v8929, %v8928
        %v9072 = vpack.c.b16 %v8931, %v8930
        %v9073 = vpack.c.b16 %v8933, %v8932
        %v9074 = vpack.c.b16 %v8935, %v8934
        %v9075 = vpack.c.b16 %v8937, %v8936
        %v9076 = vpack.c.b16 %v8939, %v8938
        %v9077 = vpack.c.b16 %v8941, %v8940
        %v9078 = vpack.c.b16 %v8943, %v8942
        %v9079 = vpack.c.b16 %v8945, %v8944
        %v9080 = vpack.c.b16 %v8947, %v8946
        %v9081 = vpack.c.b16 %v8949, %v8948
        %v9082 = vpack.c.b16 %v8951, %v8950
        %v9083 = vpack.c.b16 %v8953, %v8952
        %v9084 = vpack.c.b16 %v8955, %v8954
        %v9085 = vpack.c.b16 %v8957, %v8956
        %v9086 = vpack.c.b16 %v8959, %v8958
        %v9087 = vpack.c.b16 %v8961, %v8960
        %v9088 = vpack.c.b16 %v8963, %v8962
        %v9089 = vpack.c.b16 %v8965, %v8964
        %v9090 = vpack.c.b16 %v8967, %v8966
        %v9091 = vpack.c.b16 %v8969, %v8968
        %v9092 = vpack.c.b16 %v8971, %v8970
        %v9093 = vpack.c.b16 %v8973, %v8972
        %v9094 = vpack.c.b16 %v8975, %v8974
        %v9095 = vpack.c.b16 %v8977, %v8976
        %v9096 = vpack.c.b16 %v8979, %v8978
        %v9097 = vpack.c.b16 %v8981, %v8980
        %v9098 = vpack.c.b16 %v8983, %v8982
        %v9099 = vpack.c.b16 %v8985, %v8984
        %v9100 = vpack.c.b16 %v8987, %v8986
        %v9101 = vpack.c.b16 %v8989, %v8988
        %v9102 = vpack.c.b16 %v8991, %v8990
        %v9103 = vpack.c.b16 %v8993, %v8992
        %v9104 = vpack.c.b16 %v8995, %v8994
        %v9105 = vpack.c.b16 %v8997, %v8996
        %v9106 = vpack.c.b16 %v8999, %v8998
        %v9107 = vpack.c.b16 %v9001, %v9000
        %v9108 = vpack.c.b16 %v9003, %v9002
        %v9109 = vpack.c.b16 %v9005, %v9004
        %v9110 = vpack.c.b16 %v9007, %v9006
        %v9111 = vpack.c.b16 %v9009, %v9008
        %v9112 = vpack.c.b16 %v9011, %v9010
        %v9113 = vpack.c.b16 %v9013, %v9012
        %v9114 = vpack.c.b16 %v9015, %v9014
        %v9115 = vpack.c.b16 %v9017, %v9016
        %v9116 = vpack.c.b16 %v9019, %v9018
        %v9117 = vpack.c.b16 %v9021, %v9020
        %v9118 = vpack.c.b16 %v9023, %v9022
        %v9119 = vpack.c.b16 %v9025, %v9024
        %v9120 = vpack.c.b16 %v9027, %v9026
        %v9121 = vpack.c.b16 %v9029, %v9028
        %v9122 = vpack.c.b16 %v9031, %v9030
        %v9123 = vpack.c.b16 %v9033, %v9032
        %v9124 = vpack.c.b16 %v9035, %v9034
        %v9125 = vpack.c.b16 %v9037, %v9036
        %v9126 = vpack.c.b16 %v9039, %v9038
        %v9127 = vpack.c.b16 %v9041, %v9040
        %v9128 = vpack.c.b16 %v9043, %v9042
        %v9129 = vpack.c.b16 %v9045, %v9044
        %vm9214 = vcmask 523264
        %v9216 = vsel %vm9214, %v8540, 0
        %9218 = vmatprep.subr.bf16.mxu0 0
        %9219 = vmatpush1.bf16.msra.mxu0 %v9046
        %9220 = vmatprep.subr.bf16.mxu0 0
        %9221 = vmatpush1.bf16.msra.mxu0 %v9047
        %9222 = vmatprep.subr.bf16.mxu0 0
        %9223 = vmatpush1.bf16.msra.mxu0 %v9048
        %9224 = vmatprep.subr.bf16.mxu0 0
        %9225 = vmatpush1.bf16.msra.mxu0 %v9049
        %9226 = vmatprep.subr.bf16.mxu0 0
        %9227 = vmatpush1.bf16.msra.mxu0 %v9050
        %9228 = vmatprep.subr.bf16.mxu0 0
        %9229 = vmatpush1.bf16.msra.mxu0 %v9051
        %9230 = vmatprep.subr.bf16.mxu0 0
        %9231 = vmatpush1.bf16.msra.mxu0 %v9052
        %9232 = vmatprep.subr.bf16.mxu0 0
        %9233 = vmatpush1.bf16.msra.mxu0 %v9053
        %9234 = vmatprep.subr.bf16.mxu0 0
        %9235 = vmatpush1.bf16.msra.mxu0 %v9054
        %9236 = vmatprep.subr.bf16.mxu0 0
        %9237 = vmatpush1.bf16.msra.mxu0 %v9055
        %9238 = vmatprep.subr.bf16.mxu0 0
        %9239 = vmatpush1.bf16.msra.mxu0 %v9056
        %9240 = vmatprep.subr.bf16.mxu0 0
        %9241 = vmatpush1.bf16.msra.mxu0 %v9057
        %9242 = vmatprep.subr.bf16.mxu0 0
        %9243 = vmatpush1.bf16.msra.mxu0 %v9058
        %9244 = vmatprep.subr.bf16.mxu0 0
        %9245 = vmatpush1.bf16.msra.mxu0 %v9059
        %9246 = vmatprep.subr.bf16.mxu0 0
        %9247 = vmatpush1.bf16.msra.mxu0 %v9060
        %9248 = vmatprep.subr.bf16.mxu0 0
        %9249 = vmatpush1.bf16.msra.mxu0 %v9061
        %9250 = vmatprep.mubr.bf16.mxu0 %v8531
        %9251 = vmatmul.mubr.bf16.gmra.mrb[0].mxu0 %v8530
        %v9252 = vpop.f32.mrb[0].mxu0
        %v9253 = vadd.f32 %v8709, %v9252
        %v9254 = vpop.f32.mrb[0].mxu0
        %v9255 = vpop.f32.mrb[0].mxu0
        %v9256 = vpop.f32.mrb[0].mxu0
        %9257 = vdwg.mxu0
        %9258 = vmatprep.subr.bf16.mxu0 0
        %9259 = vmatpush1.bf16.msra.mxu0 %v9062
        %9260 = vmatprep.subr.bf16.mxu0 0
        %9261 = vmatpush1.bf16.msra.mxu0 %v9063
        %9262 = vmatprep.subr.bf16.mxu0 0
        %9263 = vmatpush1.bf16.msra.mxu0 %v9064
        %9264 = vmatprep.subr.bf16.mxu0 0
        %9265 = vmatpush1.bf16.msra.mxu0 %v9065
        %9266 = vmatprep.subr.bf16.mxu0 0
        %9267 = vmatpush1.bf16.msra.mxu0 %v9066
        %9268 = vmatprep.subr.bf16.mxu0 0
        %9269 = vmatpush1.bf16.msra.mxu0 %v9067
        %9270 = vmatprep.subr.bf16.mxu0 0
        %9271 = vmatpush1.bf16.msra.mxu0 %v9068
        %9272 = vmatprep.subr.bf16.mxu0 0
        %9273 = vmatpush1.bf16.msra.mxu0 %v9069
        %9274 = vmatprep.subr.bf16.mxu0 0
        %9275 = vmatpush1.bf16.msra.mxu0 %v9070
        %9276 = vmatprep.subr.bf16.mxu0 0
        %9277 = vmatpush1.bf16.msra.mxu0 %v9071
        %9278 = vmatprep.subr.bf16.mxu0 0
        %9279 = vmatpush1.bf16.msra.mxu0 %v9072
        %9280 = vmatprep.subr.bf16.mxu0 0
        %9281 = vmatpush1.bf16.msra.mxu0 %v9073
        %9282 = vmatprep.subr.bf16.mxu0 0
        %9283 = vmatpush1.bf16.msra.mxu0 %v9074
        %9284 = vmatprep.subr.bf16.mxu0 0
        %9285 = vmatpush1.bf16.msra.mxu0 %v9075
        %9286 = vmatprep.subr.bf16.mxu0 0
        %9287 = vmatpush1.bf16.msra.mxu0 %v9076
        %9288 = vmatprep.subr.bf16.mxu0 0
        %9289 = vmatpush1.bf16.msra.mxu0 %v9077
        %9290 = vmatprep.mubr.bf16.mxu0 %v8533
        %9291 = vmatmul.mubr.bf16.gmra.mrb[0].mxu0 %v8532
        %v9292 = vpop.f32.mrb[0].mxu0
        %v9293 = vadd.f32 %v9253, %v9292
        %v9294 = vpop.f32.mrb[0].mxu0
        %v9295 = vpop.f32.mrb[0].mxu0
        %v9296 = vpop.f32.mrb[0].mxu0
        %9297 = vdwg.mxu0
        %9298 = vmatprep.subr.bf16.mxu0 0
        %9299 = vmatpush1.bf16.msra.mxu0 %v9078
        %9300 = vmatprep.subr.bf16.mxu0 0
        %9301 = vmatpush1.bf16.msra.mxu0 %v9079
        %9302 = vmatprep.subr.bf16.mxu0 0
        %9303 = vmatpush1.bf16.msra.mxu0 %v9080
        %9304 = vmatprep.subr.bf16.mxu0 0
        %9305 = vmatpush1.bf16.msra.mxu0 %v9081
        %9306 = vmatprep.subr.bf16.mxu0 0
        %9307 = vmatpush1.bf16.msra.mxu0 %v9082
        %9308 = vmatprep.subr.bf16.mxu0 0
        %9309 = vmatpush1.bf16.msra.mxu0 %v9083
        %9310 = vmatprep.subr.bf16.mxu0 0
        %9311 = vmatpush1.bf16.msra.mxu0 %v9084
        %9312 = vmatprep.subr.bf16.mxu0 0
        %9313 = vmatpush1.bf16.msra.mxu0 %v9085
        %9314 = vmatprep.subr.bf16.mxu0 0
        %9315 = vmatpush1.bf16.msra.mxu0 %v9086
        %9316 = vmatprep.subr.bf16.mxu0 0
        %9317 = vmatpush1.bf16.msra.mxu0 %v9087
        %9318 = vmatprep.subr.bf16.mxu0 0
        %9319 = vmatpush1.bf16.msra.mxu0 %v9088
        %9320 = vmatprep.subr.bf16.mxu0 0
        %9321 = vmatpush1.bf16.msra.mxu0 %v9089
        %9322 = vmatprep.subr.bf16.mxu0 0
        %9323 = vmatpush1.bf16.msra.mxu0 %v9090
        %9324 = vmatprep.subr.bf16.mxu0 0
        %9325 = vmatpush1.bf16.msra.mxu0 %v9091
        %9326 = vmatprep.subr.bf16.mxu0 0
        %9327 = vmatpush1.bf16.msra.mxu0 %v9092
        %9328 = vmatprep.subr.bf16.mxu0 0
        %9329 = vmatpush1.bf16.msra.mxu0 %v9093
        %9330 = vmatprep.mubr.bf16.mxu0 %v8535
        %9331 = vmatmul.mubr.bf16.gmra.mrb[0].mxu0 %v8534
        %v9332 = vpop.f32.mrb[0].mxu0
        %v9333 = vadd.f32 %v9293, %v9332
        %v9334 = vpop.f32.mrb[0].mxu0
        %v9335 = vpop.f32.mrb[0].mxu0
        %v9336 = vpop.f32.mrb[0].mxu0
        %9337 = vdwg.mxu0
        %9338 = vmatprep.subr.bf16.mxu0 0
        %9339 = vmatpush1.bf16.msra.mxu0 %v9094
        %9340 = vmatprep.subr.bf16.mxu0 0
        %9341 = vmatpush1.bf16.msra.mxu0 %v9095
        %9342 = vmatprep.subr.bf16.mxu0 0
        %9343 = vmatpush1.bf16.msra.mxu0 %v9096
        %9344 = vmatprep.subr.bf16.mxu0 0
        %9345 = vmatpush1.bf16.msra.mxu0 %v9097
        %9346 = vmatprep.subr.bf16.mxu0 0
        %9347 = vmatpush1.bf16.msra.mxu0 %v9098
        %9348 = vmatprep.subr.bf16.mxu0 0
        %9349 = vmatpush1.bf16.msra.mxu0 %v9099
        %9350 = vmatprep.subr.bf16.mxu0 0
        %9351 = vmatpush1.bf16.msra.mxu0 %v9100
        %9352 = vmatprep.subr.bf16.mxu0 0
        %9353 = vmatpush1.bf16.msra.mxu0 %v9101
        %9354 = vmatprep.subr.bf16.mxu0 0
        %9355 = vmatpush1.bf16.msra.mxu0 %v9102
        %9356 = vmatprep.subr.bf16.mxu0 0
        %9357 = vmatpush1.bf16.msra.mxu0 %v9103
        %9358 = vmatprep.subr.bf16.mxu0 0
        %9359 = vmatpush1.bf16.msra.mxu0 %v9104
        %9360 = vmatprep.subr.bf16.mxu0 0
        %9361 = vmatpush1.bf16.msra.mxu0 %v9105
        %9362 = vmatprep.subr.bf16.mxu0 0
        %9363 = vmatpush1.bf16.msra.mxu0 %v9106
        %9364 = vmatprep.subr.bf16.mxu0 0
        %9365 = vmatpush1.bf16.msra.mxu0 %v9107
        %9366 = vmatprep.subr.bf16.mxu0 0
        %9367 = vmatpush1.bf16.msra.mxu0 %v9108
        %9368 = vmatprep.subr.bf16.mxu0 0
        %9369 = vmatpush1.bf16.msra.mxu0 %v9109
        %9370 = vmatprep.mubr.bf16.mxu0 %v8537
        %9371 = vmatmul.mubr.bf16.gmra.mrb[0].mxu0 %v8536
        %v9372 = vpop.f32.mrb[0].mxu0
        %v9373 = vadd.f32 %v9333, %v9372
        %v9374 = vpop.f32.mrb[0].mxu0
        %v9375 = vpop.f32.mrb[0].mxu0
        %v9376 = vpop.f32.mrb[0].mxu0
        %9377 = vdwg.mxu0
        %9378 = vmatprep.subr.bf16.mxu0 0
        %9379 = vmatpush1.bf16.msra.mxu0 %v9110
        %9380 = vmatprep.subr.bf16.mxu0 0
        %9381 = vmatpush1.bf16.msra.mxu0 %v9111
        %9382 = vmatprep.subr.bf16.mxu0 0
        %9383 = vmatpush1.bf16.msra.mxu0 %v9112
        %9384 = vmatprep.subr.bf16.mxu0 0
        %9385 = vmatpush1.bf16.msra.mxu0 %v9113
        %9386 = vmatprep.subr.bf16.mxu0 0
        %9387 = vmatpush1.bf16.msra.mxu0 %v9114
        %9388 = vmatprep.subr.bf16.mxu0 0
        %9389 = vmatpush1.bf16.msra.mxu0 %v9115
        %9390 = vmatprep.subr.bf16.mxu0 0
        %9391 = vmatpush1.bf16.msra.mxu0 %v9116
        %9392 = vmatprep.subr.bf16.mxu0 0
        %9393 = vmatpush1.bf16.msra.mxu0 %v9117
        %9394 = vmatprep.subr.bf16.mxu0 0
        %9395 = vmatpush1.bf16.msra.mxu0 %v9118
        %9396 = vmatprep.subr.bf16.mxu0 0
        %9397 = vmatpush1.bf16.msra.mxu0 %v9119
        %9398 = vmatprep.subr.bf16.mxu0 0
        %9399 = vmatpush1.bf16.msra.mxu0 %v9120
        %9400 = vmatprep.subr.bf16.mxu0 0
        %9401 = vmatpush1.bf16.msra.mxu0 %v9121
        %9402 = vmatprep.subr.bf16.mxu0 0
        %9403 = vmatpush1.bf16.msra.mxu0 %v9122
        %9404 = vmatprep.subr.bf16.mxu0 0
        %9405 = vmatpush1.bf16.msra.mxu0 %v9123
        %9406 = vmatprep.subr.bf16.mxu0 0
        %9407 = vmatpush1.bf16.msra.mxu0 %v9124
        %9408 = vmatprep.subr.bf16.mxu0 0
        %9409 = vmatpush1.bf16.msra.mxu0 %v9125
        %9410 = vmatprep.mubr.bf16.mxu0 %v8539
        %9411 = vmatmul.mubr.bf16.gmra.mrb[0].mxu0 %v8538
        %v9412 = vpop.f32.mrb[0].mxu0
        %v9413 = vadd.f32 %v9373, %v9412
        %v9414 = vpop.f32.mrb[0].mxu0
        %v9415 = vpop.f32.mrb[0].mxu0
        %v9416 = vpop.f32.mrb[0].mxu0
        %9417 = vdwg.mxu0
        %9418 = vmatprep.subr.bf16.mxu0 0
        %9419 = vmatpush1.bf16.msra.mxu0 %v9126
        %9420 = vmatprep.subr.bf16.mxu0 0
        %9421 = vmatpush1.bf16.msra.mxu0 %v9127
        %9422 = vmatprep.subr.bf16.mxu0 0
        %9423 = vmatpush1.bf16.msra.mxu0 %v9128
        %9424 = vmatprep.subr.bf16.mxu0 0
        %9425 = vmatpush1.bf16.msra.mxu0 %v9129
        %9426 = vmatprep.subr.bf16.mxu0 0
        %9427 = vmatpush1.bf16.msra.mxu0 0
        %9428 = vmatprep.subr.bf16.mxu0 0
        %9429 = vmatpush1.bf16.msra.mxu0 0
        %9430 = vmatprep.subr.bf16.mxu0 0
        %9431 = vmatpush1.bf16.msra.mxu0 0
        %9432 = vmatprep.subr.bf16.mxu0 0
        %9433 = vmatpush1.bf16.msra.mxu0 0
        %9434 = vmatprep.subr.bf16.mxu0 0
        %9435 = vmatpush1.bf16.msra.mxu0 0
        %9436 = vmatprep.subr.bf16.mxu0 0
        %9437 = vmatpush1.bf16.msra.mxu0 0
        %9438 = vmatprep.subr.bf16.mxu0 0
        %9439 = vmatpush1.bf16.msra.mxu0 0
        %9440 = vmatprep.subr.bf16.mxu0 0
        %9441 = vmatpush1.bf16.msra.mxu0 0
        %9442 = vmatprep.subr.bf16.mxu0 0
        %9443 = vmatpush1.bf16.msra.mxu0 0
        %9444 = vmatprep.subr.bf16.mxu0 0
        %9445 = vmatpush1.bf16.msra.mxu0 0
        %9446 = vmatprep.subr.bf16.mxu0 0
        %9447 = vmatpush1.bf16.msra.mxu0 0
        %9448 = vmatprep.subr.bf16.mxu0 0
        %9449 = vmatpush1.bf16.msra.mxu0 0
        %9450 = vmatprep.mubr.bf16.mxu0 0
        %9451 = vmatmul.mubr.bf16.gmra.mrb[0].mxu0 %v9216
        %v9452 = vpop.f32.mrb[0].mxu0
        %v9453 = vadd.f32 %v9413, %v9452
        %v9454 = vpop.f32.mrb[0].mxu0
        %v9455 = vpop.f32.mrb[0].mxu0
        %v9456 = vpop.f32.mrb[0].mxu0
        %9457 = vdwg.mxu0
        %v9458 = vpack.c.bf16 %v9453, %v9453
        %v9459 = vld [vmem:[%s7] sm:$0xf]
        %v9460 = vld [vmem:[%s7 + $0x4] sm:$0xf]
        %v9461 = vld [vmem:[%s7 + $0x8] sm:$0xf]
        %v9462 = vld [vmem:[%s7 + $0xc] sm:$0xf]
        %v9463 = vld [vmem:[%s7 + $0x10] sm:$0xf]
        %v9464 = vld [vmem:[%s7 + $0x14] sm:$0xf]
        %v9465 = vld [vmem:[%s7 + $0x18] sm:$0xf]
        %v9466 = vld [vmem:[%s7 + $0x1c] sm:$0xf]
        %v9467 = vld [vmem:[%s7 + $0x20] sm:$0xf]
        %v9468 = vld [vmem:[%s7 + $0x24] sm:$0xf]
        %v9469 = vld [vmem:[%s7 + $0x28] sm:$0xf]
        %v9470 = vld [vmem:[%s7 + $0x2c] sm:$0xf]
        %v9471 = vld [vmem:[%s7 + $0x30] sm:$0xf]
        %v9472 = vld [vmem:[%s7 + $0x34] sm:$0xf]
        %v9473 = vld [vmem:[%s7 + $0x38] sm:$0xf]
        %v9474 = vld [vmem:[%s7 + $0x3c] sm:$0xf]
        %v9475 = vld [vmem:[%s8] sm:$0x1]
        %v9492 = vunpack.c.l.b16 %v9459
        %v9493 = vunpack.c.l.b16 %v9460
        %v9494 = vunpack.c.l.b16 %v9461
        %v9495 = vunpack.c.l.b16 %v9462
        %v9496 = vunpack.c.l.b16 %v9463
        %v9497 = vunpack.c.l.b16 %v9464
        %v9498 = vunpack.c.l.b16 %v9465
        %v9499 = vunpack.c.l.b16 %v9466
        %v9500 = vunpack.c.l.b16 %v9467
        %v9501 = vunpack.c.l.b16 %v9468
        %v9502 = vunpack.c.l.b16 %v9469
        %v9503 = vunpack.c.l.b16 %v9470
        %v9504 = vunpack.c.l.b16 %v9471
        %v9505 = vunpack.c.l.b16 %v9472
        %v9506 = vunpack.c.l.b16 %v9473
        %v9507 = vunpack.c.l.b16 %v9474
        %v9508 = vpack.c.b16 %v9493, %v9492
        %v9509 = vpack.c.b16 %v9495, %v9494
        %v9510 = vpack.c.b16 %v9497, %v9496
        %v9511 = vpack.c.b16 %v9499, %v9498
        %v9512 = vpack.c.b16 %v9501, %v9500
        %v9513 = vpack.c.b16 %v9503, %v9502
        %v9514 = vpack.c.b16 %v9505, %v9504
        %v9515 = vpack.c.b16 %v9507, %v9506
        %9524 = vmatprep.subr.bf16.mxu0 0
        %9525 = vmatpush1.bf16.msra.mxu0 %v9508
        %9526 = vmatprep.subr.bf16.mxu0 0
        %9527 = vmatpush1.bf16.msra.mxu0 %v9509
        %9528 = vmatprep.subr.bf16.mxu0 0
        %9529 = vmatpush1.bf16.msra.mxu0 %v9510
        %9530 = vmatprep.subr.bf16.mxu0 0
        %9531 = vmatpush1.bf16.msra.mxu0 %v9511
        %9532 = vmatprep.subr.bf16.mxu0 0
        %9533 = vmatpush1.bf16.msra.mxu0 %v9512
        %9534 = vmatprep.subr.bf16.mxu0 0
        %9535 = vmatpush1.bf16.msra.mxu0 %v9513
        %9536 = vmatprep.subr.bf16.mxu0 0
        %9537 = vmatpush1.bf16.msra.mxu0 %v9514
        %9538 = vmatprep.subr.bf16.mxu0 0
        %9539 = vmatpush1.bf16.msra.mxu0 %v9515
        %9540 = vmatprep.subr.bf16.mxu0 0
        %9541 = vmatpush1.bf16.msra.mxu0 0
        %9542 = vmatprep.subr.bf16.mxu0 0
        %9543 = vmatpush1.bf16.msra.mxu0 0
        %9544 = vmatprep.subr.bf16.mxu0 0
        %9545 = vmatpush1.bf16.msra.mxu0 0
        %9546 = vmatprep.subr.bf16.mxu0 0
        %9547 = vmatpush1.bf16.msra.mxu0 0
        %9548 = vmatprep.subr.bf16.mxu0 0
        %9549 = vmatpush1.bf16.msra.mxu0 0
        %9550 = vmatprep.subr.bf16.mxu0 0
        %9551 = vmatpush1.bf16.msra.mxu0 0
        %9552 = vmatprep.subr.bf16.mxu0 0
        %9553 = vmatpush1.bf16.msra.mxu0 0
        %9554 = vmatprep.subr.bf16.mxu0 0
        %9555 = vmatpush1.bf16.msra.mxu0 0
        %9556 = vmatprep.mubr.bf16.mxu0 0
        %9557 = vmatmul.mubr.bf16.gmra.mrb[0].mxu0 %v9458
        %v9558 = vpop.f32.mrb[0].mxu0
        %v9559 = vadd.f32 %v9475, %v9558
        %v9560 = vpop.f32.mrb[0].mxu0
        %v9561 = vpop.f32.mrb[0].mxu0
        %v9562 = vpop.f32.mrb[0].mxu0
        %9563 = vdwg.mxu0
        %v9564 = vxor.u32 %v9559, 2147483648
        %v9565 = vmul.f32 %v9564, 1.442695
        %v9566 = vpow.pop %v9565
        %v9567 = vadd.f32 %v9566, 1.0
        %v9568 = vrcp.pop %v9567
        %v9569 = vmul.f32 1.0, %v9568
        %vm9570 = vcmask 516096
        %9571 = vst.msk [vmem:[%s378] sm:$0x1] %vm9570, %v9569
        %s9572 = sand.u32 %s269, 1
        %s9573 = scalar_lea.sflag [#allocation4], %s9572
        %s9574 = sand.u32 %s269, 1
        %s9575 = scalar_lea.vmem [#allocation3], %s9574
        // Predicated region
        $region65: #{spp_net_forward.1} parent=63 // pred_check
          %p9576 = pneg %p279
        $region66: #{spp_net_forward.1} parent=63 // pred_check_branch
          %9578 = sbr.rel (%p9576) target = $region68
        $region67: #{spp_net_forward.1} parent=63 // pred_region
          %s9580 = ssub.s32 16, 16
          %9581 = vsyncadd %s9573, %s9580
          %s9582 = smul.addr %s25, 16
          %s9583 = scalar_lea.hbm %s11, %s9582
          %s9585 = sshll.u32 %s9575, 4
          %s9586 = int_to_ptr.vmem [resolvable:$true] %s9585
          %9588 = dma.vmem_to_hbm [thread:$0]  %s9586, 16, %s9583, %s9573
        $region68: #{spp_net_forward.1} parent=63 // pred_fallthru
          _
      $region64: #{spp_net_forward.1} parent=5 // pred_fallthru
        _
      %p9589 = scmp.le.s32.totalorder 2, %s20
      // Predicated region
      $region69: #{spp_net_forward.1} parent=5 // pred_check
        %p9590 = pneg %p9589
      $region70: #{spp_net_forward.1} parent=5 // pred_check_branch
        %9592 = sbr.rel (%p9590) target = $region72
      $region71: #{spp_net_forward.1} parent=5 // pred_region
        %s9593 = ssub.s32 %s20, 2
        // Predicated region
        $region73: #{spp_net_forward.1} parent=71 // pred_check
          %p9594 = pneg %p285
        $region74: #{spp_net_forward.1} parent=71 // pred_check_branch
          %9596 = sbr.rel (%p9594) target = $region76
        $region75: #{spp_net_forward.1} parent=71 // pred_region
          %s9597 = sand.u32 %s270, 1
          %s9598 = scalar_lea.sflag [#allocation4], %s9597
          %s9599 = sand.u32 %s270, 1
          %s9600 = scalar_lea.vmem [#allocation3], %s9599
          %9601 = dma.done %s9598, 16
        $region76: #{spp_net_forward.1} parent=71 // pred_fallthru
          _
      $region72: #{spp_net_forward.1} parent=5 // pred_fallthru
        _
    $region6: #{spp_net_forward.1} parent=1 // loop_footer
      %s24 = sadd.s32 1, %s20
    $region7: #{spp_net_forward.1} parent=1 // loop_footer_branch
      %19 = sbr.rel target = $region3
    $region8: #{spp_net_forward.1} parent=1 // loop_exit
      _
    %9602 = vsyncpa [#allocation4], 1
    %s9603 = scalar_lea.sflag [#allocation4], 1
    %9604 = vsyncpa %s9603, 1

</llo_original>
